<compile_context>
chip_gen: v6e
topology: v6e:2x2x1
jax: 0.10.0
libtpu: 0.0.40
codegen_flags: <defaults>
</compile_context>

<pallas_src>
import functools
import math

import jax
import jax.numpy as jnp
from jax.experimental import pallas as pl
from jax.experimental.pallas import tpu as pltpu


# ----------------------------------------------------------------------------
# Helpers: per-generation VMEM budget and pixel-tile selection
# ----------------------------------------------------------------------------
def _vmem_limit_bytes():
    """~75% of physical VMEM: 48 MiB on v7x (64 MiB), 96 MiB on v5e/v6e (128 MiB)."""
    try:
        info = pltpu.get_tpu_info()
        cap = getattr(info, "vmem_capacity_bytes", None)
        if cap:
            return max(32 * 1024 * 1024, min(int(cap) * 3 // 4, 96 * 1024 * 1024))
    except Exception:
        pass
    return 48 * 1024 * 1024


def _pick_pixel_tile(N, B):
    """Large pixel tile (<=2048 rows, multiple of 128) to amortize grid-step
    overhead; with B == 1 keep >= 2 tiles so v7x megacore has parallel work."""
    if N <= 128:
        return N
    tn = min(2048, (N // 128) * 128)
    if B == 1 and N >= 256 and pl.cdiv(N, tn) < 2:
        tn = max(128, ((N // 2) // 128) * 128)
    return tn


# ----------------------------------------------------------------------------
# Pallas kernel 1: fused generator chain (LFF + conv1 + linears + ToRGB skip)
# ----------------------------------------------------------------------------
def _fused_cips_kernel(coords_ref, wlff_ref, blff_ref, w1_ref, b1_ref,
                       wlin_ref, blin_ref, wrgb_t_ref, brgb_sum_ref, o_ref,
                       *, n_stages, to_rgb_stride):
    sqrt2 = jnp.float32(math.sqrt(2.0))

    def lrelu(v):  # FusedLeakyReLU: sqrt(2) * leaky_relu(x + bias, 0.2)
        return jnp.where(v >= 0.0, v, 0.2 * v) * sqrt2

    coords = coords_ref[0]                                   # (TN, 2) f32
    wlff = wlff_ref[...]                                     # (2, Hf) f32

    # --- LFF (ConLinear k=1 over 2 coord channels + sin). K=2 -> VPU. ---
    h = (coords[:, 0:1] * wlff[0:1, :]
         + coords[:, 1:2] * wlff[1:2, :]
         + blff_ref[...])                                    # (TN, Hf)
    h = jnp.sin(h)

    # --- conv1: modulated 1x1 + FusedLeakyReLU (bf16 MXU, f32 accumulate) ---
    y = jnp.dot(h.astype(jnp.bfloat16), w1_ref[0],
                preferred_element_type=jnp.float32)          # (TN, C)
    y = lrelu(y + b1_ref[...])

    blin = blin_ref[...]                                     # (Llin, C) f32
    # rgb accumulator kept TRANSPOSED (3, TN): lane-dense stores, and the
    # ToRGB dots run in (3,C)x(TN,C)^T orientation (few MXU row pushes).
    rgb = jnp.zeros((3, coords.shape[0]), jnp.float32)

    for i in range(n_stages):
        for j in range(to_rgb_stride):                       # to_rgb_stride = 2
            l = i * to_rgb_stride + j
            y = jnp.dot(y.astype(jnp.bfloat16), wlin_ref[l, 0],
                        preferred_element_type=jnp.float32)
            y = lrelu(y + blin[l][None, :])
        # ToRGB (no demodulation) + skip accumulation, transposed orientation:
        # rgb[r, n] += sum_c wrgb_t[r, c] * y[n, c]
        rgb = rgb + jax.lax.dot_general(
            wrgb_t_ref[i, 0], y.astype(jnp.bfloat16),
            dimension_numbers=(((1,), (1,)), ((), ())),
            preferred_element_type=jnp.float32)              # (3, TN)

    # ToRGB biases are pixel-independent -> add their precomputed sum once.
    rgb = rgb + brgb_sum_ref[...]                            # (3, 1) broadcast
    o_ref[0] = rgb.astype(o_ref.dtype)                       # lane-dense (3, TN)


def fused_cips(coords, lff_w, lff_b, w1, b1, wlin, blin, wrgb_t, brgb_sum,
               *, n_stages, to_rgb_stride=2):
    """coords:(B,N,2); w1:(B,Hf,C); wlin:(Llin,B,C,C); wrgb_t:(S,B,3,C).
    Returns lane-dense rgb of shape (B, 3, N)."""
    B, N, _ = coords.shape
    Hf = lff_w.shape[0]
    C = w1.shape[2]
    Llin = wlin.shape[0]
    S = wrgb_t.shape[0]

    TN = _pick_pixel_tile(N, B)
    grid_n = pl.cdiv(N, TN)

    wlff_t = jnp.transpose(lff_w, (1, 0)).astype(jnp.float32)     # (2, Hf)
    blff = lff_b.reshape(1, Hf).astype(jnp.float32)

    kern = functools.partial(_fused_cips_kernel, n_stages=n_stages,
                             to_rgb_stride=to_rgb_stride)
    return pl.pallas_call(
        kern,
        out_shape=jax.ShapeDtypeStruct((B, 3, N), jnp.float32),
        grid=(B, grid_n),            # b outermost: weights stay VMEM-resident across n
        in_specs=[
            pl.BlockSpec((1, TN, 2), lambda b, n: (b, n, 0)),
            pl.BlockSpec((2, Hf), lambda b, n: (0, 0)),
            pl.BlockSpec((1, Hf), lambda b, n: (0, 0)),
            pl.BlockSpec((1, Hf, C), lambda b, n: (b, 0, 0)),
            pl.BlockSpec((1, C), lambda b, n: (0, 0)),
            pl.BlockSpec((Llin, 1, C, C), lambda b, n: (0, b, 0, 0)),
            pl.BlockSpec((Llin, C), lambda b, n: (0, 0)),
            pl.BlockSpec((S, 1, 3, C), lambda b, n: (0, b, 0, 0)),
            pl.BlockSpec((3, 1), lambda b, n: (0, 0)),
        ],
        out_specs=pl.BlockSpec((1, 3, TN), lambda b, n: (b, 0, n)),
        compiler_params=pltpu.CompilerParams(
            dimension_semantics=("parallel", "parallel"),
            vmem_limit_bytes=_vmem_limit_bytes()),
    )(coords.astype(jnp.float32),
      wlff_t, blff,
      w1.astype(jnp.bfloat16), b1.reshape(1, C).astype(jnp.float32),
      wlin.astype(jnp.bfloat16), blin.astype(jnp.float32),
      wrgb_t.astype(jnp.bfloat16), brgb_sum.astype(jnp.float32))


# ----------------------------------------------------------------------------
# Pallas kernel 2: fused 8-layer style MLP (PixelNorm + EqualLinear/fused_lrelu)
# ----------------------------------------------------------------------------
def _style_mlp_kernel(z_ref, w_ref, b_ref, o_ref, *, n_mlp):
    sqrt2 = jnp.float32(math.sqrt(2.0))
    z = z_ref[...]                                            # (B, D) f32
    # PixelNorm
    x = z * jax.lax.rsqrt(jnp.mean(z * z, axis=1, keepdims=True) + 1e-8)
    b = b_ref[...]                                            # (L, D) f32
    for l in range(n_mlp):
        x = jnp.dot(x.astype(jnp.bfloat16), w_ref[l],
                    preferred_element_type=jnp.float32) + b[l][None, :]
        x = jnp.where(x >= 0.0, x, 0.2 * x) * sqrt2           # fused_lrelu
    o_ref[...] = x


def style_mlp_pallas(z, w_stack, b_stack):
    B, D = z.shape
    L = w_stack.shape[0]
    kern = functools.partial(_style_mlp_kernel, n_mlp=L)
    return pl.pallas_call(
        kern,
        out_shape=jax.ShapeDtypeStruct((B, D), jnp.float32),
        grid=(1,),
        in_specs=[pl.BlockSpec((B, D), lambda i: (0, 0)),
                  pl.BlockSpec((L, D, D), lambda i: (0, 0, 0)),
                  pl.BlockSpec((L, D), lambda i: (0, 0))],
        out_specs=pl.BlockSpec((B, D), lambda i: (0, 0)),
    )(z.astype(jnp.float32), w_stack.astype(jnp.bfloat16),
      b_stack.astype(jnp.float32))


# ----------------------------------------------------------------------------
# Parameter initialization (deterministic, mirrors the PyTorch __init__ shapes)
# ----------------------------------------------------------------------------
def init_params(key, *, size, hidden_size, style_dim, n_mlp, base_channel):
    log_size = int(math.log(size, 2))
    n_intermediate = log_size - 1
    # TODO(synk): production channel schedule varies per stage (512..32*mult);
    # this test config uses a constant width (matches channels[0..k] for small
    # sizes).  For MXU efficiency production widths should be multiples of 128.
    channels = {i: base_channel for i in range(9)}

    keys = jax.random.split(key, 64)
    ki = iter(range(64))
    nk = lambda: keys[next(ki)]

    params = {}
    # LFF (ConLinear is_first=True: U(-sqrt(9/2), sqrt(9/2)) weight) + sin
    # TODO(synk): LFFMip variant assumed identical to LFF (2-ch coord 1x1 conv + sin).
    params["lff_w"] = jax.random.uniform(
        nk(), (hidden_size, 2), minval=-math.sqrt(9.0 / 2.0),
        maxval=math.sqrt(9.0 / 2.0), dtype=jnp.float32)
    params["lff_b"] = jax.random.uniform(
        nk(), (hidden_size,), minval=-1.0 / math.sqrt(2.0),
        maxval=1.0 / math.sqrt(2.0), dtype=jnp.float32)

    # style MLP: 8 x EqualLinear(style_dim, style_dim, lr_mul=0.01, fused_lrelu)
    lr_mul = 0.01
    mlp = []
    for _ in range(n_mlp):
        w = jax.random.normal(nk(), (style_dim, style_dim), jnp.float32) / lr_mul
        b = jnp.zeros((style_dim,), jnp.float32)
        mlp.append((w, b))
    params["mlp"] = mlp
    params["lr_mul"] = lr_mul

    def styled(cin, cout):
        return dict(
            weight=jax.random.normal(nk(), (cout, cin), jnp.float32),      # ModulatedConv2d (k=1)
            mod_w=jax.random.normal(nk(), (cin, style_dim), jnp.float32),  # EqualLinear modulation
            mod_b=jnp.ones((cin,), jnp.float32),                           # bias_init=1
            act_bias=jnp.zeros((cout,), jnp.float32),                      # FusedLeakyReLU bias
        )

    def torgb(cin):
        return dict(
            weight=jax.random.normal(nk(), (3, cin), jnp.float32),
            mod_w=jax.random.normal(nk(), (cin, style_dim), jnp.float32),
            mod_b=jnp.ones((cin,), jnp.float32),
            bias=jnp.zeros((3,), jnp.float32),
        )

    in_ch = channels[0]
    params["conv1"] = styled(hidden_size, in_ch)
    linears, to_rgbs = [], []
    for i in range(n_intermediate):
        out_ch = channels[i]
        linears.append(styled(in_ch, out_ch))
        linears.append(styled(out_ch, out_ch))
        to_rgbs.append(torgb(out_ch))
        in_ch = out_ch
    params["linears"] = linears
    params["to_rgbs"] = to_rgbs

    meta = dict(n_intermediate=n_intermediate, style_dim=style_dim,
                hidden_size=hidden_size)
    return params, meta


# ----------------------------------------------------------------------------
# Modulation / demodulation glue (fp32, in JAX; tiny per-batch math)
# ----------------------------------------------------------------------------
def modulated_weight(p, latent, *, demodulate, transpose=True):
    """Style-modulated 1x1 conv weight.  transpose=True -> (B, Cin, Cout)
    (row-activation matmul); transpose=False -> (B, Cout, Cin)."""
    cin, style_dim = p["mod_w"].shape
    # EqualLinear modulation: scale = 1/sqrt(style_dim), bias init 1
    style = latent @ (p["mod_w"] * (1.0 / math.sqrt(style_dim))).T + p["mod_b"]  # (B, Cin)
    scale = 1.0 / math.sqrt(cin)                       # 1/sqrt(in * k * k), k = 1
    w = scale * p["weight"][None, :, :] * style[:, None, :]                      # (B, Cout, Cin)
    if demodulate:
        demod = jax.lax.rsqrt(jnp.sum(w * w, axis=2) + 1e-8)                     # (B, Cout)
        w = w * demod[:, :, None]
    if transpose:
        return jnp.transpose(w, (0, 2, 1))             # (B, Cin, Cout)
    return w                                           # (B, Cout, Cin)


def style_mlp_apply(params, z):
    D = z.shape[1]
    lr_mul = params["lr_mul"]
    scale = (1.0 / math.sqrt(D)) * lr_mul
    w_stack = jnp.stack([(w * scale).T for (w, _) in params["mlp"]], axis=0)  # (L, D, D)
    b_stack = jnp.stack([b * lr_mul for (_, b) in params["mlp"]], axis=0)     # (L, D)
    return style_mlp_pallas(z, w_stack, b_stack)


def forward(params, meta, coords, latent_list, input_is_latent=False):
    latent = latent_list[0]
    if not input_is_latent:
        latent = style_mlp_apply(params, latent)

    B, _, H, W = coords.shape
    N = H * W
    coords_f = jnp.transpose(coords, (0, 2, 3, 1)).reshape(B, N, 2)

    # Stacked, pre-transposed modulated weights (fp32 math; cast to bf16 at the
    # kernel boundary inside fused_cips).
    # NoiseInjection weight is initialized to 0 in the reference -> no-op, skipped.
    # TODO(synk): at production widths (C=512, large B) move modulation /
    # demodulation in-kernel (pl.when on the first pixel tile) to avoid
    # materializing the (Llin, B, C, C) weight stack in HBM.
    w1 = modulated_weight(params["conv1"], latent, demodulate=True)          # (B, Hf, C)
    b1 = params["conv1"]["act_bias"]
    wlin = jnp.stack([modulated_weight(p, latent, demodulate=True)
                      for p in params["linears"]], axis=0)                   # (Llin, B, C, C)
    blin = jnp.stack([p["act_bias"] for p in params["linears"]], axis=0)     # (Llin, C)
    # ToRGB weights kept in (3, Cin) orientation for transposed MXU dots.
    wrgb_t = jnp.stack([modulated_weight(p, latent, demodulate=False,
                                         transpose=False)
                        for p in params["to_rgbs"]], axis=0)                 # (S, B, 3, C)
    brgb_sum = sum(p["bias"] for p in params["to_rgbs"]).reshape(3, 1)       # (3, 1)

    rgb = fused_cips(coords_f, params["lff_w"], params["lff_b"],
                     w1, b1, wlin, blin, wrgb_t, brgb_sum,
                     n_stages=meta["n_intermediate"])                        # (B, 3, N)

    return rgb.reshape(B, 3, H, W), None                                     # NCHW, no transpose


# ----------------------------------------------------------------------------
if __name__ == "__main__":
    key = jax.random.PRNGKey(0)
    kp, kz = jax.random.split(key, 2)

    # Small, module-consistent configuration:
    # size=16 -> log_size=4 -> n_intermediate=3 (6 StyledConv linears, 3 ToRGB)
    size = 16
    hidden_size = 32
    style_dim = 32
    base_channel = 64
    B, H, W = 2, 16, 16

    params, meta = init_params(kp, size=size, hidden_size=hidden_size,
                               style_dim=style_dim, n_mlp=8,
                               base_channel=base_channel)

    # coordinate grid in [-1, 1], NCHW (B, 2, H, W) like the torch module input
    ys = jnp.linspace(-1.0, 1.0, H)
    xs = jnp.linspace(-1.0, 1.0, W)
    gy, gx = jnp.meshgrid(ys, xs, indexing="ij")
    coords = jnp.broadcast_to(jnp.stack([gx, gy], axis=0)[None],
                              (B, 2, H, W)).astype(jnp.float32)
    z = jax.random.normal(kz, (B, style_dim), jnp.float32)

    rgb, _ = jax.jit(lambda c, zz: forward(params, meta, c, [zz]))(coords, z)
    jax.block_until_ready(rgb)
    assert rgb.shape == (B, 3, H, W) and rgb.dtype == jnp.float32
    assert bool(jnp.all(jnp.isfinite(rgb)))
    print("KERNEL_OK")
</pallas_src>

<mosaic_0001>
module attributes {stable_mosaic.version = 11 : i64} {
  func.func @_style_mlp_kernel(%arg0: i32, %arg1: memref<2x32xf32, #tpu.memory_space<vmem>>, %arg2: memref<8x32x32xbf16, #tpu.memory_space<vmem>>, %arg3: memref<8x32xf32, #tpu.memory_space<vmem>>, %arg4: memref<2x32xf32, #tpu.memory_space<vmem>>) attributes {dimension_semantics = [#tpu.dimension_semantics<arbitrary>], iteration_bounds = array<i64: 1>, scalar_prefetch = 0 : i64, scratch_operands = 0 : i64, tpu.core_type = #tpu.core_type<tc>, window_params = [{pipeline_mode = #tpu.pipeline_mode<synchronous>, transform_indices = @transform_0, window_bounds = array<i64: 2, 32>}, {pipeline_mode = #tpu.pipeline_mode<synchronous>, transform_indices = @transform_1, window_bounds = array<i64: 8, 32, 32>}, {pipeline_mode = #tpu.pipeline_mode<synchronous>, transform_indices = @transform_2, window_bounds = array<i64: 8, 32>}, {pipeline_mode = #tpu.pipeline_mode<synchronous>, transform_indices = @transform_3, window_bounds = array<i64: 2, 32>}]} {
    %c0 = arith.constant 0 : index
    %c0_0 = arith.constant 0 : index
    %0 = vector.load %arg1[%c0, %c0_0] : memref<2x32xf32, #tpu.memory_space<vmem>>, vector<2x32xf32>
    %1 = arith.mulf %0, %0 : vector<2x32xf32>
    %cst = arith.constant dense<0.000000e+00> : vector<2xf32>
    %2 = vector.multi_reduction <add>, %1, %cst [1] : vector<2x32xf32> to vector<2xf32>
    %3 = vector.shape_cast %2 : vector<2xf32> to vector<2x1xf32>
    %cst_1 = arith.constant 3.200000e+01 : f32
    %4 = vector.broadcast %cst_1 : f32 to vector<2x1xf32>
    %5 = arith.divf %3, %4 : vector<2x1xf32>
    %cst_2 = arith.constant 9.99999993E-9 : f32
    %6 = vector.broadcast %cst_2 : f32 to vector<2x1xf32>
    %7 = arith.addf %5, %6 : vector<2x1xf32>
    %8 = math.rsqrt %7 : vector<2x1xf32>
    %9 = vector.broadcast %8 : vector<2x1xf32> to vector<2x32xf32>
    %10 = arith.mulf %0, %9 : vector<2x32xf32>
    %c0_3 = arith.constant 0 : index
    %c0_4 = arith.constant 0 : index
    %11 = vector.load %arg3[%c0_3, %c0_4] : memref<8x32xf32, #tpu.memory_space<vmem>>, vector<8x32xf32>
    %12 = arith.truncf %10 : vector<2x32xf32> to vector<2x32xbf16>
    %c0_5 = arith.constant 0 : index
    %c0_6 = arith.constant 0 : index
    %c0_7 = arith.constant 0 : index
    %13 = vector.load %arg2[%c0_5, %c0_6, %c0_7] : memref<8x32x32xbf16, #tpu.memory_space<vmem>>, vector<1x32x32xbf16>
    %14 = vector.shape_cast %13 : vector<1x32x32xbf16> to vector<32x32xbf16>
    %cst_8 = arith.constant dense<0.000000e+00> : vector<2x32xf32>
    %15 = tpu.matmul %12, %14, %cst_8 {dimension_numbers = #tpu.dot_dimension_numbers<[1], [0], [0], [1], [0, 0, 1, 1], [], []>} : vector<2x32xbf16>, vector<32x32xbf16>, vector<2x32xf32> -> vector<2x32xf32>
    %16 = vector.extract_strided_slice %11 {offsets = [0, 0], sizes = [1, 32], strides = [1, 1]} : vector<8x32xf32> to vector<1x32xf32>
    %17 = vector.shape_cast %16 : vector<1x32xf32> to vector<32xf32>
    %18 = vector.shape_cast %17 : vector<32xf32> to vector<1x32xf32>
    %19 = vector.broadcast %18 : vector<1x32xf32> to vector<2x32xf32>
    %20 = arith.addf %15, %19 : vector<2x32xf32>
    %cst_9 = arith.constant 0.000000e+00 : f32
    %21 = vector.broadcast %cst_9 : f32 to vector<2x32xf32>
    %22 = arith.cmpf oge, %20, %21 : vector<2x32xf32>
    %cst_10 = arith.constant 2.000000e-01 : f32
    %23 = vector.broadcast %cst_10 : f32 to vector<2x32xf32>
    %24 = arith.mulf %23, %20 : vector<2x32xf32>
    %25 = arith.select %22, %20, %24 : vector<2x32xi1>, vector<2x32xf32>
    %cst_11 = arith.constant 1.41421354 : f32
    %26 = vector.broadcast %cst_11 : f32 to vector<2x32xf32>
    %27 = arith.mulf %25, %26 : vector<2x32xf32>
    %28 = arith.truncf %27 : vector<2x32xf32> to vector<2x32xbf16>
    %c1 = arith.constant 1 : index
    %c0_12 = arith.constant 0 : index
    %c0_13 = arith.constant 0 : index
    %29 = vector.load %arg2[%c1, %c0_12, %c0_13] : memref<8x32x32xbf16, #tpu.memory_space<vmem>>, vector<1x32x32xbf16>
    %30 = vector.shape_cast %29 : vector<1x32x32xbf16> to vector<32x32xbf16>
    %cst_14 = arith.constant dense<0.000000e+00> : vector<2x32xf32>
    %31 = tpu.matmul %28, %30, %cst_14 {dimension_numbers = #tpu.dot_dimension_numbers<[1], [0], [0], [1], [0, 0, 1, 1], [], []>} : vector<2x32xbf16>, vector<32x32xbf16>, vector<2x32xf32> -> vector<2x32xf32>
    %32 = vector.extract_strided_slice %11 {offsets = [1, 0], sizes = [1, 32], strides = [1, 1]} : vector<8x32xf32> to vector<1x32xf32>
    %33 = vector.shape_cast %32 : vector<1x32xf32> to vector<32xf32>
    %34 = vector.shape_cast %33 : vector<32xf32> to vector<1x32xf32>
    %35 = vector.broadcast %34 : vector<1x32xf32> to vector<2x32xf32>
    %36 = arith.addf %31, %35 : vector<2x32xf32>
    %cst_15 = arith.constant 0.000000e+00 : f32
    %37 = vector.broadcast %cst_15 : f32 to vector<2x32xf32>
    %38 = arith.cmpf oge, %36, %37 : vector<2x32xf32>
    %cst_16 = arith.constant 2.000000e-01 : f32
    %39 = vector.broadcast %cst_16 : f32 to vector<2x32xf32>
    %40 = arith.mulf %39, %36 : vector<2x32xf32>
    %41 = arith.select %38, %36, %40 : vector<2x32xi1>, vector<2x32xf32>
    %cst_17 = arith.constant 1.41421354 : f32
    %42 = vector.broadcast %cst_17 : f32 to vector<2x32xf32>
    %43 = arith.mulf %41, %42 : vector<2x32xf32>
    %44 = arith.truncf %43 : vector<2x32xf32> to vector<2x32xbf16>
    %c2 = arith.constant 2 : index
    %c0_18 = arith.constant 0 : index
    %c0_19 = arith.constant 0 : index
    %45 = vector.load %arg2[%c2, %c0_18, %c0_19] : memref<8x32x32xbf16, #tpu.memory_space<vmem>>, vector<1x32x32xbf16>
    %46 = vector.shape_cast %45 : vector<1x32x32xbf16> to vector<32x32xbf16>
    %cst_20 = arith.constant dense<0.000000e+00> : vector<2x32xf32>
    %47 = tpu.matmul %44, %46, %cst_20 {dimension_numbers = #tpu.dot_dimension_numbers<[1], [0], [0], [1], [0, 0, 1, 1], [], []>} : vector<2x32xbf16>, vector<32x32xbf16>, vector<2x32xf32> -> vector<2x32xf32>
    %48 = vector.extract_strided_slice %11 {offsets = [2, 0], sizes = [1, 32], strides = [1, 1]} : vector<8x32xf32> to vector<1x32xf32>
    %49 = vector.shape_cast %48 : vector<1x32xf32> to vector<32xf32>
    %50 = vector.shape_cast %49 : vector<32xf32> to vector<1x32xf32>
    %51 = vector.broadcast %50 : vector<1x32xf32> to vector<2x32xf32>
    %52 = arith.addf %47, %51 : vector<2x32xf32>
    %cst_21 = arith.constant 0.000000e+00 : f32
    %53 = vector.broadcast %cst_21 : f32 to vector<2x32xf32>
    %54 = arith.cmpf oge, %52, %53 : vector<2x32xf32>
    %cst_22 = arith.constant 2.000000e-01 : f32
    %55 = vector.broadcast %cst_22 : f32 to vector<2x32xf32>
    %56 = arith.mulf %55, %52 : vector<2x32xf32>
    %57 = arith.select %54, %52, %56 : vector<2x32xi1>, vector<2x32xf32>
    %cst_23 = arith.constant 1.41421354 : f32
    %58 = vector.broadcast %cst_23 : f32 to vector<2x32xf32>
    %59 = arith.mulf %57, %58 : vector<2x32xf32>
    %60 = arith.truncf %59 : vector<2x32xf32> to vector<2x32xbf16>
    %c3 = arith.constant 3 : index
    %c0_24 = arith.constant 0 : index
    %c0_25 = arith.constant 0 : index
    %61 = vector.load %arg2[%c3, %c0_24, %c0_25] : memref<8x32x32xbf16, #tpu.memory_space<vmem>>, vector<1x32x32xbf16>
    %62 = vector.shape_cast %61 : vector<1x32x32xbf16> to vector<32x32xbf16>
    %cst_26 = arith.constant dense<0.000000e+00> : vector<2x32xf32>
    %63 = tpu.matmul %60, %62, %cst_26 {dimension_numbers = #tpu.dot_dimension_numbers<[1], [0], [0], [1], [0, 0, 1, 1], [], []>} : vector<2x32xbf16>, vector<32x32xbf16>, vector<2x32xf32> -> vector<2x32xf32>
    %64 = vector.extract_strided_slice %11 {offsets = [3, 0], sizes = [1, 32], strides = [1, 1]} : vector<8x32xf32> to vector<1x32xf32>
    %65 = vector.shape_cast %64 : vector<1x32xf32> to vector<32xf32>
    %66 = vector.shape_cast %65 : vector<32xf32> to vector<1x32xf32>
    %67 = vector.broadcast %66 : vector<1x32xf32> to vector<2x32xf32>
    %68 = arith.addf %63, %67 : vector<2x32xf32>
    %cst_27 = arith.constant 0.000000e+00 : f32
    %69 = vector.broadcast %cst_27 : f32 to vector<2x32xf32>
    %70 = arith.cmpf oge, %68, %69 : vector<2x32xf32>
    %cst_28 = arith.constant 2.000000e-01 : f32
    %71 = vector.broadcast %cst_28 : f32 to vector<2x32xf32>
    %72 = arith.mulf %71, %68 : vector<2x32xf32>
    %73 = arith.select %70, %68, %72 : vector<2x32xi1>, vector<2x32xf32>
    %cst_29 = arith.constant 1.41421354 : f32
    %74 = vector.broadcast %cst_29 : f32 to vector<2x32xf32>
    %75 = arith.mulf %73, %74 : vector<2x32xf32>
    %76 = arith.truncf %75 : vector<2x32xf32> to vector<2x32xbf16>
    %c4 = arith.constant 4 : index
    %c0_30 = arith.constant 0 : index
    %c0_31 = arith.constant 0 : index
    %77 = vector.load %arg2[%c4, %c0_30, %c0_31] : memref<8x32x32xbf16, #tpu.memory_space<vmem>>, vector<1x32x32xbf16>
    %78 = vector.shape_cast %77 : vector<1x32x32xbf16> to vector<32x32xbf16>
    %cst_32 = arith.constant dense<0.000000e+00> : vector<2x32xf32>
    %79 = tpu.matmul %76, %78, %cst_32 {dimension_numbers = #tpu.dot_dimension_numbers<[1], [0], [0], [1], [0, 0, 1, 1], [], []>} : vector<2x32xbf16>, vector<32x32xbf16>, vector<2x32xf32> -> vector<2x32xf32>
    %80 = vector.extract_strided_slice %11 {offsets = [4, 0], sizes = [1, 32], strides = [1, 1]} : vector<8x32xf32> to vector<1x32xf32>
    %81 = vector.shape_cast %80 : vector<1x32xf32> to vector<32xf32>
    %82 = vector.shape_cast %81 : vector<32xf32> to vector<1x32xf32>
    %83 = vector.broadcast %82 : vector<1x32xf32> to vector<2x32xf32>
    %84 = arith.addf %79, %83 : vector<2x32xf32>
    %cst_33 = arith.constant 0.000000e+00 : f32
    %85 = vector.broadcast %cst_33 : f32 to vector<2x32xf32>
    %86 = arith.cmpf oge, %84, %85 : vector<2x32xf32>
    %cst_34 = arith.constant 2.000000e-01 : f32
    %87 = vector.broadcast %cst_34 : f32 to vector<2x32xf32>
    %88 = arith.mulf %87, %84 : vector<2x32xf32>
    %89 = arith.select %86, %84, %88 : vector<2x32xi1>, vector<2x32xf32>
    %cst_35 = arith.constant 1.41421354 : f32
    %90 = vector.broadcast %cst_35 : f32 to vector<2x32xf32>
    %91 = arith.mulf %89, %90 : vector<2x32xf32>
    %92 = arith.truncf %91 : vector<2x32xf32> to vector<2x32xbf16>
    %c5 = arith.constant 5 : index
    %c0_36 = arith.constant 0 : index
    %c0_37 = arith.constant 0 : index
    %93 = vector.load %arg2[%c5, %c0_36, %c0_37] : memref<8x32x32xbf16, #tpu.memory_space<vmem>>, vector<1x32x32xbf16>
    %94 = vector.shape_cast %93 : vector<1x32x32xbf16> to vector<32x32xbf16>
    %cst_38 = arith.constant dense<0.000000e+00> : vector<2x32xf32>
    %95 = tpu.matmul %92, %94, %cst_38 {dimension_numbers = #tpu.dot_dimension_numbers<[1], [0], [0], [1], [0, 0, 1, 1], [], []>} : vector<2x32xbf16>, vector<32x32xbf16>, vector<2x32xf32> -> vector<2x32xf32>
    %96 = vector.extract_strided_slice %11 {offsets = [5, 0], sizes = [1, 32], strides = [1, 1]} : vector<8x32xf32> to vector<1x32xf32>
    %97 = vector.shape_cast %96 : vector<1x32xf32> to vector<32xf32>
    %98 = vector.shape_cast %97 : vector<32xf32> to vector<1x32xf32>
    %99 = vector.broadcast %98 : vector<1x32xf32> to vector<2x32xf32>
    %100 = arith.addf %95, %99 : vector<2x32xf32>
    %cst_39 = arith.constant 0.000000e+00 : f32
    %101 = vector.broadcast %cst_39 : f32 to vector<2x32xf32>
    %102 = arith.cmpf oge, %100, %101 : vector<2x32xf32>
    %cst_40 = arith.constant 2.000000e-01 : f32
    %103 = vector.broadcast %cst_40 : f32 to vector<2x32xf32>
    %104 = arith.mulf %103, %100 : vector<2x32xf32>
    %105 = arith.select %102, %100, %104 : vector<2x32xi1>, vector<2x32xf32>
    %cst_41 = arith.constant 1.41421354 : f32
    %106 = vector.broadcast %cst_41 : f32 to vector<2x32xf32>
    %107 = arith.mulf %105, %106 : vector<2x32xf32>
    %108 = arith.truncf %107 : vector<2x32xf32> to vector<2x32xbf16>
    %c6 = arith.constant 6 : index
    %c0_42 = arith.constant 0 : index
    %c0_43 = arith.constant 0 : index
    %109 = vector.load %arg2[%c6, %c0_42, %c0_43] : memref<8x32x32xbf16, #tpu.memory_space<vmem>>, vector<1x32x32xbf16>
    %110 = vector.shape_cast %109 : vector<1x32x32xbf16> to vector<32x32xbf16>
    %cst_44 = arith.constant dense<0.000000e+00> : vector<2x32xf32>
    %111 = tpu.matmul %108, %110, %cst_44 {dimension_numbers = #tpu.dot_dimension_numbers<[1], [0], [0], [1], [0, 0, 1, 1], [], []>} : vector<2x32xbf16>, vector<32x32xbf16>, vector<2x32xf32> -> vector<2x32xf32>
    %112 = vector.extract_strided_slice %11 {offsets = [6, 0], sizes = [1, 32], strides = [1, 1]} : vector<8x32xf32> to vector<1x32xf32>
    %113 = vector.shape_cast %112 : vector<1x32xf32> to vector<32xf32>
    %114 = vector.shape_cast %113 : vector<32xf32> to vector<1x32xf32>
    %115 = vector.broadcast %114 : vector<1x32xf32> to vector<2x32xf32>
    %116 = arith.addf %111, %115 : vector<2x32xf32>
    %cst_45 = arith.constant 0.000000e+00 : f32
    %117 = vector.broadcast %cst_45 : f32 to vector<2x32xf32>
    %118 = arith.cmpf oge, %116, %117 : vector<2x32xf32>
    %cst_46 = arith.constant 2.000000e-01 : f32
    %119 = vector.broadcast %cst_46 : f32 to vector<2x32xf32>
    %120 = arith.mulf %119, %116 : vector<2x32xf32>
    %121 = arith.select %118, %116, %120 : vector<2x32xi1>, vector<2x32xf32>
    %cst_47 = arith.constant 1.41421354 : f32
    %122 = vector.broadcast %cst_47 : f32 to vector<2x32xf32>
    %123 = arith.mulf %121, %122 : vector<2x32xf32>
    %124 = arith.truncf %123 : vector<2x32xf32> to vector<2x32xbf16>
    %c7 = arith.constant 7 : index
    %c0_48 = arith.constant 0 : index
    %c0_49 = arith.constant 0 : index
    %125 = vector.load %arg2[%c7, %c0_48, %c0_49] : memref<8x32x32xbf16, #tpu.memory_space<vmem>>, vector<1x32x32xbf16>
    %126 = vector.shape_cast %125 : vector<1x32x32xbf16> to vector<32x32xbf16>
    %cst_50 = arith.constant dense<0.000000e+00> : vector<2x32xf32>
    %127 = tpu.matmul %124, %126, %cst_50 {dimension_numbers = #tpu.dot_dimension_numbers<[1], [0], [0], [1], [0, 0, 1, 1], [], []>} : vector<2x32xbf16>, vector<32x32xbf16>, vector<2x32xf32> -> vector<2x32xf32>
    %128 = vector.extract_strided_slice %11 {offsets = [7, 0], sizes = [1, 32], strides = [1, 1]} : vector<8x32xf32> to vector<1x32xf32>
    %129 = vector.shape_cast %128 : vector<1x32xf32> to vector<32xf32>
    %130 = vector.shape_cast %129 : vector<32xf32> to vector<1x32xf32>
    %131 = vector.broadcast %130 : vector<1x32xf32> to vector<2x32xf32>
    %132 = arith.addf %127, %131 : vector<2x32xf32>
    %cst_51 = arith.constant 0.000000e+00 : f32
    %133 = vector.broadcast %cst_51 : f32 to vector<2x32xf32>
    %134 = arith.cmpf oge, %132, %133 : vector<2x32xf32>
    %cst_52 = arith.constant 2.000000e-01 : f32
    %135 = vector.broadcast %cst_52 : f32 to vector<2x32xf32>
    %136 = arith.mulf %135, %132 : vector<2x32xf32>
    %137 = arith.select %134, %132, %136 : vector<2x32xi1>, vector<2x32xf32>
    %cst_53 = arith.constant 1.41421354 : f32
    %138 = vector.broadcast %cst_53 : f32 to vector<2x32xf32>
    %139 = arith.mulf %137, %138 : vector<2x32xf32>
    %c0_54 = arith.constant 0 : index
    %c0_55 = arith.constant 0 : index
    %140 = vector.load %arg4[%c0_54, %c0_55] : memref<2x32xf32, #tpu.memory_space<vmem>>, vector<2x32xf32>
    tpu.vector_store %arg4[%c0_54, %c0_55], %139 {strides = array<i32>} : memref<2x32xf32, #tpu.memory_space<vmem>>, vector<2x32xf32>,
    return
  }
  func.func @transform_0(%arg0: i32) -> (i32, i32) {
    %c0_i32 = arith.constant 0 : i32
    %c0_i32_0 = arith.constant 0 : i32
    %c0_i32_1 = arith.constant 0 : i32
    return %c0_i32, %c0_i32_0 : i32, i32
  }
  func.func @transform_1(%arg0: i32) -> (i32, i32, i32) {
    %c0_i32 = arith.constant 0 : i32
    %c0_i32_0 = arith.constant 0 : i32
    %c0_i32_1 = arith.constant 0 : i32
    %c0_i32_2 = arith.constant 0 : i32
    return %c0_i32, %c0_i32_0, %c0_i32_1 : i32, i32, i32
  }
  func.func @transform_2(%arg0: i32) -> (i32, i32) {
    %c0_i32 = arith.constant 0 : i32
    %c0_i32_0 = arith.constant 0 : i32
    %c0_i32_1 = arith.constant 0 : i32
    return %c0_i32, %c0_i32_0 : i32, i32
  }
  func.func @transform_3(%arg0: i32) -> (i32, i32) {
    %c0_i32 = arith.constant 0 : i32
    %c0_i32_0 = arith.constant 0 : i32
    %c0_i32_1 = arith.constant 0 : i32
    return %c0_i32, %c0_i32_0 : i32, i32
  }
}

module attributes {stable_mosaic.version = 11 : i64} {
  func.func @_fused_cips_kernel(%arg0: i32, %arg1: i32, %arg2: memref<1x256x2xf32, #tpu.memory_space<vmem>>, %arg3: memref<2x32xf32, #tpu.memory_space<vmem>>, %arg4: memref<1x32xf32, #tpu.memory_space<vmem>>, %arg5: memref<1x32x64xbf16, #tpu.memory_space<vmem>>, %arg6: memref<1x64xf32, #tpu.memory_space<vmem>>, %arg7: memref<6x1x64x64xbf16, #tpu.memory_space<vmem>>, %arg8: memref<6x64xf32, #tpu.memory_space<vmem>>, %arg9: memref<3x1x3x64xbf16, #tpu.memory_space<vmem>>, %arg10: memref<3x1xf32, #tpu.memory_space<vmem>>, %arg11: memref<1x3x256xf32, #tpu.memory_space<vmem>>) attributes {dimension_semantics = [#tpu.dimension_semantics<parallel>, #tpu.dimension_semantics<parallel>], iteration_bounds = array<i64: 2, 1>, scalar_prefetch = 0 : i64, scratch_operands = 0 : i64, tpu.core_type = #tpu.core_type<tc>, window_params = [{transform_indices = @transform_0, window_bounds = array<i64: 1, 256, 2>}, {pipeline_mode = #tpu.pipeline_mode<synchronous>, transform_indices = @transform_1, window_bounds = array<i64: 2, 32>}, {pipeline_mode = #tpu.pipeline_mode<synchronous>, transform_indices = @transform_2, window_bounds = array<i64: 1, 32>}, {transform_indices = @transform_3, window_bounds = array<i64: 1, 32, 64>}, {pipeline_mode = #tpu.pipeline_mode<synchronous>, transform_indices = @transform_4, window_bounds = array<i64: 1, 64>}, {transform_indices = @transform_5, window_bounds = array<i64: 6, 1, 64, 64>}, {pipeline_mode = #tpu.pipeline_mode<synchronous>, transform_indices = @transform_6, window_bounds = array<i64: 6, 64>}, {transform_indices = @transform_7, window_bounds = array<i64: 3, 1, 3, 64>}, {pipeline_mode = #tpu.pipeline_mode<synchronous>, transform_indices = @transform_8, window_bounds = array<i64: 3, 1>}, {transform_indices = @transform_9, window_bounds = array<i64: 1, 3, 256>}]} {
    %c0 = arith.constant 0 : index
    %c0_0 = arith.constant 0 : index
    %c0_1 = arith.constant 0 : index
    %0 = vector.load %arg2[%c0, %c0_0, %c0_1] : memref<1x256x2xf32, #tpu.memory_space<vmem>>, vector<1x256x2xf32>
    %1 = vector.shape_cast %0 : vector<1x256x2xf32> to vector<256x2xf32>
    %c0_2 = arith.constant 0 : index
    %c0_3 = arith.constant 0 : index
    %2 = vector.load %arg3[%c0_2, %c0_3] : memref<2x32xf32, #tpu.memory_space<vmem>>, vector<2x32xf32>
    %3 = vector.extract_strided_slice %1 {offsets = [0, 0], sizes = [256, 1], strides = [1, 1]} : vector<256x2xf32> to vector<256x1xf32>
    %4 = vector.extract_strided_slice %2 {offsets = [0, 0], sizes = [1, 32], strides = [1, 1]} : vector<2x32xf32> to vector<1x32xf32>
    %5 = vector.broadcast %3 : vector<256x1xf32> to vector<256x32xf32>
    %6 = vector.broadcast %4 : vector<1x32xf32> to vector<256x32xf32>
    %7 = arith.mulf %5, %6 : vector<256x32xf32>
    %8 = vector.extract_strided_slice %1 {offsets = [0, 1], sizes = [256, 1], strides = [1, 1]} : vector<256x2xf32> to vector<256x1xf32>
    %9 = vector.extract_strided_slice %2 {offsets = [1, 0], sizes = [1, 32], strides = [1, 1]} : vector<2x32xf32> to vector<1x32xf32>
    %10 = vector.broadcast %8 : vector<256x1xf32> to vector<256x32xf32>
    %11 = vector.broadcast %9 : vector<1x32xf32> to vector<256x32xf32>
    %12 = arith.mulf %10, %11 : vector<256x32xf32>
    %13 = arith.addf %7, %12 : vector<256x32xf32>
    %c0_4 = arith.constant 0 : index
    %c0_5 = arith.constant 0 : index
    %14 = vector.load %arg4[%c0_4, %c0_5] : memref<1x32xf32, #tpu.memory_space<vmem>>, vector<1x32xf32>
    %15 = vector.broadcast %14 : vector<1x32xf32> to vector<256x32xf32>
    %16 = arith.addf %13, %15 : vector<256x32xf32>
    %17 = math.sin %16 : vector<256x32xf32>
    %18 = arith.truncf %17 : vector<256x32xf32> to vector<256x32xbf16>
    %c0_6 = arith.constant 0 : index
    %c0_7 = arith.constant 0 : index
    %c0_8 = arith.constant 0 : index
    %19 = vector.load %arg5[%c0_6, %c0_7, %c0_8] : memref<1x32x64xbf16, #tpu.memory_space<vmem>>, vector<1x32x64xbf16>
    %20 = vector.shape_cast %19 : vector<1x32x64xbf16> to vector<32x64xbf16>
    %cst = arith.constant dense<0.000000e+00> : vector<256x64xf32>
    %21 = tpu.matmul %18, %20, %cst {dimension_numbers = #tpu.dot_dimension_numbers<[1], [0], [0], [1], [0, 0, 1, 1], [], []>} : vector<256x32xbf16>, vector<32x64xbf16>, vector<256x64xf32> -> vector<256x64xf32>
    %c0_9 = arith.constant 0 : index
    %c0_10 = arith.constant 0 : index
    %22 = vector.load %arg6[%c0_9, %c0_10] : memref<1x64xf32, #tpu.memory_space<vmem>>, vector<1x64xf32>
    %23 = vector.broadcast %22 : vector<1x64xf32> to vector<256x64xf32>
    %24 = arith.addf %21, %23 : vector<256x64xf32>
    %cst_11 = arith.constant 0.000000e+00 : f32
    %25 = vector.broadcast %cst_11 : f32 to vector<256x64xf32>
    %26 = arith.cmpf oge, %24, %25 : vector<256x64xf32>
    %cst_12 = arith.constant 2.000000e-01 : f32
    %27 = vector.broadcast %cst_12 : f32 to vector<256x64xf32>
    %28 = arith.mulf %27, %24 : vector<256x64xf32>
    %29 = arith.select %26, %24, %28 : vector<256x64xi1>, vector<256x64xf32>
    %cst_13 = arith.constant 1.41421354 : f32
    %30 = vector.broadcast %cst_13 : f32 to vector<256x64xf32>
    %31 = arith.mulf %29, %30 : vector<256x64xf32>
    %c0_14 = arith.constant 0 : index
    %c0_15 = arith.constant 0 : index
    %32 = vector.load %arg8[%c0_14, %c0_15] : memref<6x64xf32, #tpu.memory_space<vmem>>, vector<6x64xf32>
    %cst_16 = arith.constant 0.000000e+00 : f32
    %33 = vector.broadcast %cst_16 : f32 to vector<3x256xf32>
    %34 = arith.truncf %31 : vector<256x64xf32> to vector<256x64xbf16>
    %c0_17 = arith.constant 0 : index
    %c0_18 = arith.constant 0 : index
    %c0_19 = arith.constant 0 : index
    %c0_20 = arith.constant 0 : index
    %35 = vector.load %arg7[%c0_17, %c0_18, %c0_19, %c0_20] : memref<6x1x64x64xbf16, #tpu.memory_space<vmem>>, vector<1x1x64x64xbf16>
    %36 = vector.shape_cast %35 : vector<1x1x64x64xbf16> to vector<64x64xbf16>
    %cst_21 = arith.constant dense<0.000000e+00> : vector<256x64xf32>
    %37 = tpu.matmul %34, %36, %cst_21 {dimension_numbers = #tpu.dot_dimension_numbers<[1], [0], [0], [1], [0, 0, 1, 1], [], []>} : vector<256x64xbf16>, vector<64x64xbf16>, vector<256x64xf32> -> vector<256x64xf32>
    %38 = vector.extract_strided_slice %32 {offsets = [0, 0], sizes = [1, 64], strides = [1, 1]} : vector<6x64xf32> to vector<1x64xf32>
    %39 = vector.shape_cast %38 : vector<1x64xf32> to vector<64xf32>
    %40 = vector.shape_cast %39 : vector<64xf32> to vector<1x64xf32>
    %41 = vector.broadcast %40 : vector<1x64xf32> to vector<256x64xf32>
    %42 = arith.addf %37, %41 : vector<256x64xf32>
    %cst_22 = arith.constant 0.000000e+00 : f32
    %43 = vector.broadcast %cst_22 : f32 to vector<256x64xf32>
    %44 = arith.cmpf oge, %42, %43 : vector<256x64xf32>
    %cst_23 = arith.constant 2.000000e-01 : f32
    %45 = vector.broadcast %cst_23 : f32 to vector<256x64xf32>
    %46 = arith.mulf %45, %42 : vector<256x64xf32>
    %47 = arith.select %44, %42, %46 : vector<256x64xi1>, vector<256x64xf32>
    %cst_24 = arith.constant 1.41421354 : f32
    %48 = vector.broadcast %cst_24 : f32 to vector<256x64xf32>
    %49 = arith.mulf %47, %48 : vector<256x64xf32>
    %50 = arith.truncf %49 : vector<256x64xf32> to vector<256x64xbf16>
    %c1 = arith.constant 1 : index
    %c0_25 = arith.constant 0 : index
    %c0_26 = arith.constant 0 : index
    %c0_27 = arith.constant 0 : index
    %51 = vector.load %arg7[%c1, %c0_25, %c0_26, %c0_27] : memref<6x1x64x64xbf16, #tpu.memory_space<vmem>>, vector<1x1x64x64xbf16>
    %52 = vector.shape_cast %51 : vector<1x1x64x64xbf16> to vector<64x64xbf16>
    %cst_28 = arith.constant dense<0.000000e+00> : vector<256x64xf32>
    %53 = tpu.matmul %50, %52, %cst_28 {dimension_numbers = #tpu.dot_dimension_numbers<[1], [0], [0], [1], [0, 0, 1, 1], [], []>} : vector<256x64xbf16>, vector<64x64xbf16>, vector<256x64xf32> -> vector<256x64xf32>
    %54 = vector.extract_strided_slice %32 {offsets = [1, 0], sizes = [1, 64], strides = [1, 1]} : vector<6x64xf32> to vector<1x64xf32>
    %55 = vector.shape_cast %54 : vector<1x64xf32> to vector<64xf32>
    %56 = vector.shape_cast %55 : vector<64xf32> to vector<1x64xf32>
    %57 = vector.broadcast %56 : vector<1x64xf32> to vector<256x64xf32>
    %58 = arith.addf %53, %57 : vector<256x64xf32>
    %cst_29 = arith.constant 0.000000e+00 : f32
    %59 = vector.broadcast %cst_29 : f32 to vector<256x64xf32>
    %60 = arith.cmpf oge, %58, %59 : vector<256x64xf32>
    %cst_30 = arith.constant 2.000000e-01 : f32
    %61 = vector.broadcast %cst_30 : f32 to vector<256x64xf32>
    %62 = arith.mulf %61, %58 : vector<256x64xf32>
    %63 = arith.select %60, %58, %62 : vector<256x64xi1>, vector<256x64xf32>
    %cst_31 = arith.constant 1.41421354 : f32
    %64 = vector.broadcast %cst_31 : f32 to vector<256x64xf32>
    %65 = arith.mulf %63, %64 : vector<256x64xf32>
    %c0_32 = arith.constant 0 : index
    %c0_33 = arith.constant 0 : index
    %c0_34 = arith.constant 0 : index
    %c0_35 = arith.constant 0 : index
    %66 = vector.load %arg9[%c0_32, %c0_33, %c0_34, %c0_35] : memref<3x1x3x64xbf16, #tpu.memory_space<vmem>>, vector<1x1x3x64xbf16>
    %67 = vector.shape_cast %66 : vector<1x1x3x64xbf16> to vector<3x64xbf16>
    %68 = arith.truncf %65 : vector<256x64xf32> to vector<256x64xbf16>
    %cst_36 = arith.constant dense<0.000000e+00> : vector<3x256xf32>
    %69 = tpu.matmul %67, %68, %cst_36 {dimension_numbers = #tpu.dot_dimension_numbers<[1], [1], [0], [0], [0, 0, 1, 0], [], []>} : vector<3x64xbf16>, vector<256x64xbf16>, vector<3x256xf32> -> vector<3x256xf32>
    %70 = arith.addf %33, %69 : vector<3x256xf32>
    %71 = arith.truncf %65 : vector<256x64xf32> to vector<256x64xbf16>
    %c2 = arith.constant 2 : index
    %c0_37 = arith.constant 0 : index
    %c0_38 = arith.constant 0 : index
    %c0_39 = arith.constant 0 : index
    %72 = vector.load %arg7[%c2, %c0_37, %c0_38, %c0_39] : memref<6x1x64x64xbf16, #tpu.memory_space<vmem>>, vector<1x1x64x64xbf16>
    %73 = vector.shape_cast %72 : vector<1x1x64x64xbf16> to vector<64x64xbf16>
    %cst_40 = arith.constant dense<0.000000e+00> : vector<256x64xf32>
    %74 = tpu.matmul %71, %73, %cst_40 {dimension_numbers = #tpu.dot_dimension_numbers<[1], [0], [0], [1], [0, 0, 1, 1], [], []>} : vector<256x64xbf16>, vector<64x64xbf16>, vector<256x64xf32> -> vector<256x64xf32>
    %75 = vector.extract_strided_slice %32 {offsets = [2, 0], sizes = [1, 64], strides = [1, 1]} : vector<6x64xf32> to vector<1x64xf32>
    %76 = vector.shape_cast %75 : vector<1x64xf32> to vector<64xf32>
    %77 = vector.shape_cast %76 : vector<64xf32> to vector<1x64xf32>
    %78 = vector.broadcast %77 : vector<1x64xf32> to vector<256x64xf32>
    %79 = arith.addf %74, %78 : vector<256x64xf32>
    %cst_41 = arith.constant 0.000000e+00 : f32
    %80 = vector.broadcast %cst_41 : f32 to vector<256x64xf32>
    %81 = arith.cmpf oge, %79, %80 : vector<256x64xf32>
    %cst_42 = arith.constant 2.000000e-01 : f32
    %82 = vector.broadcast %cst_42 : f32 to vector<256x64xf32>
    %83 = arith.mulf %82, %79 : vector<256x64xf32>
    %84 = arith.select %81, %79, %83 : vector<256x64xi1>, vector<256x64xf32>
    %cst_43 = arith.constant 1.41421354 : f32
    %85 = vector.broadcast %cst_43 : f32 to vector<256x64xf32>
    %86 = arith.mulf %84, %85 : vector<256x64xf32>
    %87 = arith.truncf %86 : vector<256x64xf32> to vector<256x64xbf16>
    %c3 = arith.constant 3 : index
    %c0_44 = arith.constant 0 : index
    %c0_45 = arith.constant 0 : index
    %c0_46 = arith.constant 0 : index
    %88 = vector.load %arg7[%c3, %c0_44, %c0_45, %c0_46] : memref<6x1x64x64xbf16, #tpu.memory_space<vmem>>, vector<1x1x64x64xbf16>
    %89 = vector.shape_cast %88 : vector<1x1x64x64xbf16> to vector<64x64xbf16>
    %cst_47 = arith.constant dense<0.000000e+00> : vector<256x64xf32>
    %90 = tpu.matmul %87, %89, %cst_47 {dimension_numbers = #tpu.dot_dimension_numbers<[1], [0], [0], [1], [0, 0, 1, 1], [], []>} : vector<256x64xbf16>, vector<64x64xbf16>, vector<256x64xf32> -> vector<256x64xf32>
    %91 = vector.extract_strided_slice %32 {offsets = [3, 0], sizes = [1, 64], strides = [1, 1]} : vector<6x64xf32> to vector<1x64xf32>
    %92 = vector.shape_cast %91 : vector<1x64xf32> to vector<64xf32>
    %93 = vector.shape_cast %92 : vector<64xf32> to vector<1x64xf32>
    %94 = vector.broadcast %93 : vector<1x64xf32> to vector<256x64xf32>
    %95 = arith.addf %90, %94 : vector<256x64xf32>
    %cst_48 = arith.constant 0.000000e+00 : f32
    %96 = vector.broadcast %cst_48 : f32 to vector<256x64xf32>
    %97 = arith.cmpf oge, %95, %96 : vector<256x64xf32>
    %cst_49 = arith.constant 2.000000e-01 : f32
    %98 = vector.broadcast %cst_49 : f32 to vector<256x64xf32>
    %99 = arith.mulf %98, %95 : vector<256x64xf32>
    %100 = arith.select %97, %95, %99 : vector<256x64xi1>, vector<256x64xf32>
    %cst_50 = arith.constant 1.41421354 : f32
    %101 = vector.broadcast %cst_50 : f32 to vector<256x64xf32>
    %102 = arith.mulf %100, %101 : vector<256x64xf32>
    %c1_51 = arith.constant 1 : index
    %c0_52 = arith.constant 0 : index
    %c0_53 = arith.constant 0 : index
    %c0_54 = arith.constant 0 : index
    %103 = vector.load %arg9[%c1_51, %c0_52, %c0_53, %c0_54] : memref<3x1x3x64xbf16, #tpu.memory_space<vmem>>, vector<1x1x3x64xbf16>
    %104 = vector.shape_cast %103 : vector<1x1x3x64xbf16> to vector<3x64xbf16>
    %105 = arith.truncf %102 : vector<256x64xf32> to vector<256x64xbf16>
    %cst_55 = arith.constant dense<0.000000e+00> : vector<3x256xf32>
    %106 = tpu.matmul %104, %105, %cst_55 {dimension_numbers = #tpu.dot_dimension_numbers<[1], [1], [0], [0], [0, 0, 1, 0], [], []>} : vector<3x64xbf16>, vector<256x64xbf16>, vector<3x256xf32> -> vector<3x256xf32>
    %107 = arith.addf %70, %106 : vector<3x256xf32>
    %108 = arith.truncf %102 : vector<256x64xf32> to vector<256x64xbf16>
    %c4 = arith.constant 4 : index
    %c0_56 = arith.constant 0 : index
    %c0_57 = arith.constant 0 : index
    %c0_58 = arith.constant 0 : index
    %109 = vector.load %arg7[%c4, %c0_56, %c0_57, %c0_58] : memref<6x1x64x64xbf16, #tpu.memory_space<vmem>>, vector<1x1x64x64xbf16>
    %110 = vector.shape_cast %109 : vector<1x1x64x64xbf16> to vector<64x64xbf16>
    %cst_59 = arith.constant dense<0.000000e+00> : vector<256x64xf32>
    %111 = tpu.matmul %108, %110, %cst_59 {dimension_numbers = #tpu.dot_dimension_numbers<[1], [0], [0], [1], [0, 0, 1, 1], [], []>} : vector<256x64xbf16>, vector<64x64xbf16>, vector<256x64xf32> -> vector<256x64xf32>
    %112 = vector.extract_strided_slice %32 {offsets = [4, 0], sizes = [1, 64], strides = [1, 1]} : vector<6x64xf32> to vector<1x64xf32>
    %113 = vector.shape_cast %112 : vector<1x64xf32> to vector<64xf32>
    %114 = vector.shape_cast %113 : vector<64xf32> to vector<1x64xf32>
    %115 = vector.broadcast %114 : vector<1x64xf32> to vector<256x64xf32>
    %116 = arith.addf %111, %115 : vector<256x64xf32>
    %cst_60 = arith.constant 0.000000e+00 : f32
    %117 = vector.broadcast %cst_60 : f32 to vector<256x64xf32>
    %118 = arith.cmpf oge, %116, %117 : vector<256x64xf32>
    %cst_61 = arith.constant 2.000000e-01 : f32
    %119 = vector.broadcast %cst_61 : f32 to vector<256x64xf32>
    %120 = arith.mulf %119, %116 : vector<256x64xf32>
    %121 = arith.select %118, %116, %120 : vector<256x64xi1>, vector<256x64xf32>
    %cst_62 = arith.constant 1.41421354 : f32
    %122 = vector.broadcast %cst_62 : f32 to vector<256x64xf32>
    %123 = arith.mulf %121, %122 : vector<256x64xf32>
    %124 = arith.truncf %123 : vector<256x64xf32> to vector<256x64xbf16>
    %c5 = arith.constant 5 : index
    %c0_63 = arith.constant 0 : index
    %c0_64 = arith.constant 0 : index
    %c0_65 = arith.constant 0 : index
    %125 = vector.load %arg7[%c5, %c0_63, %c0_64, %c0_65] : memref<6x1x64x64xbf16, #tpu.memory_space<vmem>>, vector<1x1x64x64xbf16>
    %126 = vector.shape_cast %125 : vector<1x1x64x64xbf16> to vector<64x64xbf16>
    %cst_66 = arith.constant dense<0.000000e+00> : vector<256x64xf32>
    %127 = tpu.matmul %124, %126, %cst_66 {dimension_numbers = #tpu.dot_dimension_numbers<[1], [0], [0], [1], [0, 0, 1, 1], [], []>} : vector<256x64xbf16>, vector<64x64xbf16>, vector<256x64xf32> -> vector<256x64xf32>
    %128 = vector.extract_strided_slice %32 {offsets = [5, 0], sizes = [1, 64], strides = [1, 1]} : vector<6x64xf32> to vector<1x64xf32>
    %129 = vector.shape_cast %128 : vector<1x64xf32> to vector<64xf32>
    %130 = vector.shape_cast %129 : vector<64xf32> to vector<1x64xf32>
    %131 = vector.broadcast %130 : vector<1x64xf32> to vector<256x64xf32>
    %132 = arith.addf %127, %131 : vector<256x64xf32>
    %cst_67 = arith.constant 0.000000e+00 : f32
    %133 = vector.broadcast %cst_67 : f32 to vector<256x64xf32>
    %134 = arith.cmpf oge, %132, %133 : vector<256x64xf32>
    %cst_68 = arith.constant 2.000000e-01 : f32
    %135 = vector.broadcast %cst_68 : f32 to vector<256x64xf32>
    %136 = arith.mulf %135, %132 : vector<256x64xf32>
    %137 = arith.select %134, %132, %136 : vector<256x64xi1>, vector<256x64xf32>
    %cst_69 = arith.constant 1.41421354 : f32
    %138 = vector.broadcast %cst_69 : f32 to vector<256x64xf32>
    %139 = arith.mulf %137, %138 : vector<256x64xf32>
    %c2_70 = arith.constant 2 : index
    %c0_71 = arith.constant 0 : index
    %c0_72 = arith.constant 0 : index
    %c0_73 = arith.constant 0 : index
    %140 = vector.load %arg9[%c2_70, %c0_71, %c0_72, %c0_73] : memref<3x1x3x64xbf16, #tpu.memory_space<vmem>>, vector<1x1x3x64xbf16>
    %141 = vector.shape_cast %140 : vector<1x1x3x64xbf16> to vector<3x64xbf16>
    %142 = arith.truncf %139 : vector<256x64xf32> to vector<256x64xbf16>
    %cst_74 = arith.constant dense<0.000000e+00> : vector<3x256xf32>
    %143 = tpu.matmul %141, %142, %cst_74 {dimension_numbers = #tpu.dot_dimension_numbers<[1], [1], [0], [0], [0, 0, 1, 0], [], []>} : vector<3x64xbf16>, vector<256x64xbf16>, vector<3x256xf32> -> vector<3x256xf32>
    %144 = arith.addf %107, %143 : vector<3x256xf32>
    %c0_75 = arith.constant 0 : index
    %c0_76 = arith.constant 0 : index
    %145 = vector.load %arg10[%c0_75, %c0_76] : memref<3x1xf32, #tpu.memory_space<vmem>>, vector<3x1xf32>
    %146 = vector.broadcast %145 : vector<3x1xf32> to vector<3x256xf32>
    %147 = arith.addf %144, %146 : vector<3x256xf32>
    %c0_77 = arith.constant 0 : index
    %c0_78 = arith.constant 0 : index
    %c0_79 = arith.constant 0 : index
    %148 = vector.load %arg11[%c0_77, %c0_78, %c0_79] : memref<1x3x256xf32, #tpu.memory_space<vmem>>, vector<1x3x256xf32>
    %149 = vector.shape_cast %148 : vector<1x3x256xf32> to vector<3x256xf32>
    %150 = vector.shape_cast %147 : vector<3x256xf32> to vector<1x3x256xf32>
    tpu.vector_store %arg11[%c0_77, %c0_78, %c0_79], %150 {strides = array<i32>} : memref<1x3x256xf32, #tpu.memory_space<vmem>>, vector<1x3x256xf32>,
    return
  }
  func.func @transform_0(%arg0: i32, %arg1: i32) -> (i32, i32, i32) {
    %c0_i32 = arith.constant 0 : i32
    %c0_i32_0 = arith.constant 0 : i32
    return %arg0, %arg1, %c0_i32 : i32, i32, i32
  }
  func.func @transform_1(%arg0: i32, %arg1: i32) -> (i32, i32) {
    %c0_i32 = arith.constant 0 : i32
    %c0_i32_0 = arith.constant 0 : i32
    %c0_i32_1 = arith.constant 0 : i32
    return %c0_i32, %c0_i32_0 : i32, i32
  }
  func.func @transform_2(%arg0: i32, %arg1: i32) -> (i32, i32) {
    %c0_i32 = arith.constant 0 : i32
    %c0_i32_0 = arith.constant 0 : i32
    %c0_i32_1 = arith.constant 0 : i32
    return %c0_i32, %c0_i32_0 : i32, i32
  }
  func.func @transform_3(%arg0: i32, %arg1: i32) -> (i32, i32, i32) {
    %c0_i32 = arith.constant 0 : i32
    %c0_i32_0 = arith.constant 0 : i32
    %c0_i32_1 = arith.constant 0 : i32
    return %arg0, %c0_i32, %c0_i32_0 : i32, i32, i32
  }
  func.func @transform_4(%arg0: i32, %arg1: i32) -> (i32, i32) {
    %c0_i32 = arith.constant 0 : i32
    %c0_i32_0 = arith.constant 0 : i32
    %c0_i32_1 = arith.constant 0 : i32
    return %c0_i32, %c0_i32_0 : i32, i32
  }
  func.func @transform_5(%arg0: i32, %arg1: i32) -> (i32, i32, i32, i32) {
    %c0_i32 = arith.constant 0 : i32
    %c0_i32_0 = arith.constant 0 : i32
    %c0_i32_1 = arith.constant 0 : i32
    %c0_i32_2 = arith.constant 0 : i32
    return %c0_i32, %arg0, %c0_i32_0, %c0_i32_1 : i32, i32, i32, i32
  }
  func.func @transform_6(%arg0: i32, %arg1: i32) -> (i32, i32) {
    %c0_i32 = arith.constant 0 : i32
    %c0_i32_0 = arith.constant 0 : i32
    %c0_i32_1 = arith.constant 0 : i32
    return %c0_i32, %c0_i32_0 : i32, i32
  }
  func.func @transform_7(%arg0: i32, %arg1: i32) -> (i32, i32, i32, i32) {
    %c0_i32 = arith.constant 0 : i32
    %c0_i32_0 = arith.constant 0 : i32
    %c0_i32_1 = arith.constant 0 : i32
    %c0_i32_2 = arith.constant 0 : i32
    return %c0_i32, %arg0, %c0_i32_0, %c0_i32_1 : i32, i32, i32, i32
  }
  func.func @transform_8(%arg0: i32, %arg1: i32) -> (i32, i32) {
    %c0_i32 = arith.constant 0 : i32
    %c0_i32_0 = arith.constant 0 : i32
    %c0_i32_1 = arith.constant 0 : i32
    return %c0_i32, %c0_i32_0 : i32, i32
  }
  func.func @transform_9(%arg0: i32, %arg1: i32) -> (i32, i32, i32) {
    %c0_i32 = arith.constant 0 : i32
    %c0_i32_0 = arith.constant 0 : i32
    return %arg0, %c0_i32, %arg1 : i32, i32, i32
  }
}

</mosaic_0001>

<llo_original>
// kernel: _lambda_.2
$region0: #{_lambda_.2}
  #allocation0 [shape = 'u32[]', space=smem, size = 0x4, offset = 0x4, fixed_abs, tag = 'smem constant byte address 0x4 - core index']
  #allocation1 [shape = 'u32[144,128]{1,0:T(1,128)}', space=vmem, size = 0x12000, scoped, tag = 'internal scratch']
  %s0 = inlined_call_operand.vmem [shape: f32[2,32], index: 0, kind: input, shape index: {}]
  %s1 = inlined_call_operand.hbm [shape: bf16[8,32,32], index: 1, kind: input, shape index: {}]
  %s2 = inlined_call_operand.vmem [shape: f32[8,32], index: 2, kind: input, shape index: {}]
  %s3 = inlined_call_operand.vmem [shape: f32[2,32], index: 3, kind: output, shape index: {}]
  %s4 = sld [smem:[#allocation0]]
  $region26: #{_lambda_.2} parent=0
    _
  %s6 = ssub.s32 1, %s4
  %s7 = scalar_select 0, %s6, %s4
  $region1: #{_lambda_.2} parent=0
    #allocation2 [shape = 'u8[65536]{0}', space=vmem, size = 0x10000, scoped, tag = 'input window, operand 1, single buffered']
    #allocation3 [shape = 's32[1]{0}', space=sflag, size = 0x4, scoped, tag = 'scoped memory for _lambda_.2']
    %8 = vsyncpa [#allocation3], 0
    // Predicated region
    $region2: #{_lambda_.2} parent=1 // pred_check
      _
    $region3: #{_lambda_.2} parent=1 // pred_check_branch
      %10 = sbr.rel (0) target = $region5
    $region4: #{_lambda_.2} parent=1 // pred_region
      _
    $region5: #{_lambda_.2} parent=1 // pred_fallthru
      _
    // Predicated region
    $region6: #{_lambda_.2} parent=1 // pred_check
      _
    $region7: #{_lambda_.2} parent=1 // pred_check_branch
      %12 = sbr.rel (0) target = $region9
    $region8: #{_lambda_.2} parent=1 // pred_region
      %s14 = ssub.s32 2048, 2048
      %15 = vsyncadd [#allocation3], %s14
      %s16 = sshll.u32 [#allocation2], 4
      %s17 = int_to_ptr.vmem [resolvable:$true] %s16
      %22 = dma.hbm_to_vmem [thread:$0]  %s1, 2048, %s17, [#allocation3], 64, 64, 4
    $region9: #{_lambda_.2} parent=1 // pred_fallthru
      _
    // Predicated region
    $region10: #{_lambda_.2} parent=1 // pred_check
      _
    $region11: #{_lambda_.2} parent=1 // pred_check_branch
      %24 = sbr.rel (0) target = $region13
    $region12: #{_lambda_.2} parent=1 // pred_region
      _
    $region13: #{_lambda_.2} parent=1 // pred_fallthru
      _
    // Predicated region
    $region14: #{_lambda_.2} parent=1 // pred_check
      _
    $region15: #{_lambda_.2} parent=1 // pred_check_branch
      %26 = sbr.rel (0) target = $region17
    $region16: #{_lambda_.2} parent=1 // pred_region
      %27 = dma.done [#allocation3], 2048
    $region17: #{_lambda_.2} parent=1 // pred_fallthru
      _
    %v29 = vld [vmem:[%s0] sm:$0x3]
    %v30 = vmul.f32 %v29, %v29
    %vm31 = vcmask 254976
    %v32 = vsel %vm31, %v30, 0.0
    %33 = vadd.xlane.f32.xlu0 %v32
    %v34 = vpop.xlane.xlu0 %33
    %v35 = vrcp.pop 32.0
    %v36 = vmul.f32 %v34, %v35
    %v37 = vadd.f32 %v36, 1e-08
    %v38 = vrsqrt.pop %v37
    %v39 = vmul.f32 %v29, %v38
    %v40 = vld [vmem:[%s2] sm:$0xff]
    %v41 = vpack.c.bf16 %v39, %v39
    %v42 = vld [vmem:[#allocation2] sm:$0xf]
    %v43 = vld [vmem:[#allocation2 + $0x4] sm:$0xf]
    %v44 = vld [vmem:[#allocation2 + $0x8] sm:$0xf]
    %v45 = vld [vmem:[#allocation2 + $0xc] sm:$0xf]
    %v46 = vlaneseq
    %v47 = vshrl.u32 %v46, 7
    %v48 = vsub.s32 0, %v47
    %v49 = vrot.slane %v40, %v48
    %v54 = vunpack.c.l.b16 %v42
    %v55 = vunpack.c.l.b16 %v43
    %v56 = vunpack.c.l.b16 %v44
    %v57 = vunpack.c.l.b16 %v45
    %v58 = vpack.c.b16 %v55, %v54
    %v59 = vpack.c.b16 %v57, %v56
    %vm62 = vcmask 261120
    %v64 = vsel %vm62, %v41, 0
    %66 = vmatprep.subr.bf16.mxu0 0
    %67 = vmatpush1.bf16.msra.mxu0 0
    %68 = vmatprep.subr.bf16.mxu0 0
    %69 = vmatpush1.bf16.msra.mxu0 0
    %70 = vmatprep.subr.bf16.mxu0 0
    %71 = vmatpush1.bf16.msra.mxu0 0
    %72 = vmatprep.subr.bf16.mxu0 0
    %73 = vmatpush1.bf16.msra.mxu0 0
    %74 = vmatprep.subr.bf16.mxu0 0
    %75 = vmatpush1.bf16.msra.mxu0 0
    %76 = vmatprep.subr.bf16.mxu0 0
    %77 = vmatpush1.bf16.msra.mxu0 0
    %78 = vmatprep.subr.bf16.mxu0 0
    %79 = vmatpush1.bf16.msra.mxu0 %v59
    %80 = vmatprep.subr.bf16.mxu0 0
    %81 = vmatpush1.bf16.msra.mxu0 %v58
    %82 = vmatprep.subr.bf16.mxu0 0
    %83 = vmatpush2.bf16.msra.mxu0 0
    %84 = vmatprep.subr.bf16.mxu0 0
    %85 = vmatpush2.bf16.msra.mxu0 0
    %86 = vmatprep.subr.bf16.mxu0 0
    %87 = vmatpush2.bf16.msra.mxu0 0
    %88 = vmatprep.subr.bf16.mxu0 0
    %89 = vmatpush2.bf16.msra.mxu0 0
    %90 = vmatprep.subr.bf16.mxu0 0
    %91 = vmatpush2.bf16.msra.mxu0 0
    %92 = vmatprep.subr.bf16.mxu0 0
    %93 = vmatpush2.bf16.msra.mxu0 0
    %94 = vmatprep.subr.bf16.mxu0 0
    %95 = vmatpush2.bf16.msra.mxu0 0
    %96 = vmatprep.subr.bf16.mxu0 0
    %97 = vmatpush2.bf16.msra.mxu0 0
    %98 = vmatprep.mubr.bf16.mxu0 0
    %99 = vmatmul.mubr.bf16.gmra.mxu0 %v64
    %v100 = vpop.f32.mrf.mxu0
    %v101 = vadd.f32 %v49, %v100
    %v102 = vpop.f32.mrf.mxu0
    %v103 = vpop.f32.mrf.mxu0
    %v104 = vpop.f32.mrf.mxu0
    %105 = vdwg.mxu0
    %vm106 = vcmp.ge.f32.partialorder %v101, 0.0
    %v107 = vmul.f32 %v101, 0.2
    %v108 = vsel %vm106, %v101, %v107
    %v109 = vmul.f32 %v108, 1.4142135
    %v110 = vpack.c.bf16 %v109, %v109
    %s111 = scalar_lea.vmem [#allocation2], 16
    %v112 = vld [vmem:[%s111] sm:$0xf]
    %v113 = vld [vmem:[%s111 + $0x4] sm:$0xf]
    %v114 = vld [vmem:[%s111 + $0x8] sm:$0xf]
    %v115 = vld [vmem:[%s111 + $0xc] sm:$0xf]
    %v116 = vlaneseq
    %v117 = vshrl.u32 %v116, 7
    %v118 = vsub.s32 1, %v117
    %v119 = vrot.slane %v40, %v118
    %v124 = vunpack.c.l.b16 %v112
    %v125 = vunpack.c.l.b16 %v113
    %v126 = vunpack.c.l.b16 %v114
    %v127 = vunpack.c.l.b16 %v115
    %v128 = vpack.c.b16 %v125, %v124
    %v129 = vpack.c.b16 %v127, %v126
    %v133 = vsel %vm62, %v110, 0
    %135 = vmatprep.subr.bf16.mxu0 0
    %136 = vmatpush1.bf16.msra.mxu0 0
    %137 = vmatprep.subr.bf16.mxu0 0
    %138 = vmatpush1.bf16.msra.mxu0 0
    %139 = vmatprep.subr.bf16.mxu0 0
    %140 = vmatpush1.bf16.msra.mxu0 0
    %141 = vmatprep.subr.bf16.mxu0 0
    %142 = vmatpush1.bf16.msra.mxu0 0
    %143 = vmatprep.subr.bf16.mxu0 0
    %144 = vmatpush1.bf16.msra.mxu0 0
    %145 = vmatprep.subr.bf16.mxu0 0
    %146 = vmatpush1.bf16.msra.mxu0 0
    %147 = vmatprep.subr.bf16.mxu0 0
    %148 = vmatpush1.bf16.msra.mxu0 %v129
    %149 = vmatprep.subr.bf16.mxu0 0
    %150 = vmatpush1.bf16.msra.mxu0 %v128
    %151 = vmatprep.subr.bf16.mxu0 0
    %152 = vmatpush2.bf16.msra.mxu0 0
    %153 = vmatprep.subr.bf16.mxu0 0
    %154 = vmatpush2.bf16.msra.mxu0 0
    %155 = vmatprep.subr.bf16.mxu0 0
    %156 = vmatpush2.bf16.msra.mxu0 0
    %157 = vmatprep.subr.bf16.mxu0 0
    %158 = vmatpush2.bf16.msra.mxu0 0
    %159 = vmatprep.subr.bf16.mxu0 0
    %160 = vmatpush2.bf16.msra.mxu0 0
    %161 = vmatprep.subr.bf16.mxu0 0
    %162 = vmatpush2.bf16.msra.mxu0 0
    %163 = vmatprep.subr.bf16.mxu0 0
    %164 = vmatpush2.bf16.msra.mxu0 0
    %165 = vmatprep.subr.bf16.mxu0 0
    %166 = vmatpush2.bf16.msra.mxu0 0
    %167 = vmatprep.mubr.bf16.mxu0 0
    %168 = vmatmul.mubr.bf16.gmra.mxu0 %v133
    %v169 = vpop.f32.mrf.mxu0
    %v170 = vadd.f32 %v119, %v169
    %v171 = vpop.f32.mrf.mxu0
    %v172 = vpop.f32.mrf.mxu0
    %v173 = vpop.f32.mrf.mxu0
    %174 = vdwg.mxu0
    %vm175 = vcmp.ge.f32.partialorder %v170, 0.0
    %v176 = vmul.f32 %v170, 0.2
    %v177 = vsel %vm175, %v170, %v176
    %v178 = vmul.f32 %v177, 1.4142135
    %v179 = vpack.c.bf16 %v178, %v178
    %s180 = scalar_lea.vmem [#allocation2], 32
    %v181 = vld [vmem:[%s180] sm:$0xf]
    %v182 = vld [vmem:[%s180 + $0x4] sm:$0xf]
    %v183 = vld [vmem:[%s180 + $0x8] sm:$0xf]
    %v184 = vld [vmem:[%s180 + $0xc] sm:$0xf]
    %v185 = vlaneseq
    %v186 = vshrl.u32 %v185, 7
    %v187 = vsub.s32 2, %v186
    %v188 = vrot.slane %v40, %v187
    %v193 = vunpack.c.l.b16 %v181
    %v194 = vunpack.c.l.b16 %v182
    %v195 = vunpack.c.l.b16 %v183
    %v196 = vunpack.c.l.b16 %v184
    %v197 = vpack.c.b16 %v194, %v193
    %v198 = vpack.c.b16 %v196, %v195
    %v202 = vsel %vm62, %v179, 0
    %204 = vmatprep.subr.bf16.mxu0 0
    %205 = vmatpush1.bf16.msra.mxu0 0
    %206 = vmatprep.subr.bf16.mxu0 0
    %207 = vmatpush1.bf16.msra.mxu0 0
    %208 = vmatprep.subr.bf16.mxu0 0
    %209 = vmatpush1.bf16.msra.mxu0 0
    %210 = vmatprep.subr.bf16.mxu0 0
    %211 = vmatpush1.bf16.msra.mxu0 0
    %212 = vmatprep.subr.bf16.mxu0 0
    %213 = vmatpush1.bf16.msra.mxu0 0
    %214 = vmatprep.subr.bf16.mxu0 0
    %215 = vmatpush1.bf16.msra.mxu0 0
    %216 = vmatprep.subr.bf16.mxu0 0
    %217 = vmatpush1.bf16.msra.mxu0 %v198
    %218 = vmatprep.subr.bf16.mxu0 0
    %219 = vmatpush1.bf16.msra.mxu0 %v197
    %220 = vmatprep.subr.bf16.mxu0 0
    %221 = vmatpush2.bf16.msra.mxu0 0
    %222 = vmatprep.subr.bf16.mxu0 0
    %223 = vmatpush2.bf16.msra.mxu0 0
    %224 = vmatprep.subr.bf16.mxu0 0
    %225 = vmatpush2.bf16.msra.mxu0 0
    %226 = vmatprep.subr.bf16.mxu0 0
    %227 = vmatpush2.bf16.msra.mxu0 0
    %228 = vmatprep.subr.bf16.mxu0 0
    %229 = vmatpush2.bf16.msra.mxu0 0
    %230 = vmatprep.subr.bf16.mxu0 0
    %231 = vmatpush2.bf16.msra.mxu0 0
    %232 = vmatprep.subr.bf16.mxu0 0
    %233 = vmatpush2.bf16.msra.mxu0 0
    %234 = vmatprep.subr.bf16.mxu0 0
    %235 = vmatpush2.bf16.msra.mxu0 0
    %236 = vmatprep.mubr.bf16.mxu0 0
    %237 = vmatmul.mubr.bf16.gmra.mxu0 %v202
    %v238 = vpop.f32.mrf.mxu0
    %v239 = vadd.f32 %v188, %v238
    %v240 = vpop.f32.mrf.mxu0
    %v241 = vpop.f32.mrf.mxu0
    %v242 = vpop.f32.mrf.mxu0
    %243 = vdwg.mxu0
    %vm244 = vcmp.ge.f32.partialorder %v239, 0.0
    %v245 = vmul.f32 %v239, 0.2
    %v246 = vsel %vm244, %v239, %v245
    %v247 = vmul.f32 %v246, 1.4142135
    %v248 = vpack.c.bf16 %v247, %v247
    %s249 = scalar_lea.vmem [#allocation2], 48
    %v250 = vld [vmem:[%s249] sm:$0xf]
    %v251 = vld [vmem:[%s249 + $0x4] sm:$0xf]
    %v252 = vld [vmem:[%s249 + $0x8] sm:$0xf]
    %v253 = vld [vmem:[%s249 + $0xc] sm:$0xf]
    %v254 = vlaneseq
    %v255 = vshrl.u32 %v254, 7
    %v256 = vsub.s32 3, %v255
    %v257 = vrot.slane %v40, %v256
    %v262 = vunpack.c.l.b16 %v250
    %v263 = vunpack.c.l.b16 %v251
    %v264 = vunpack.c.l.b16 %v252
    %v265 = vunpack.c.l.b16 %v253
    %v266 = vpack.c.b16 %v263, %v262
    %v267 = vpack.c.b16 %v265, %v264
    %v271 = vsel %vm62, %v248, 0
    %273 = vmatprep.subr.bf16.mxu0 0
    %274 = vmatpush1.bf16.msra.mxu0 0
    %275 = vmatprep.subr.bf16.mxu0 0
    %276 = vmatpush1.bf16.msra.mxu0 0
    %277 = vmatprep.subr.bf16.mxu0 0
    %278 = vmatpush1.bf16.msra.mxu0 0
    %279 = vmatprep.subr.bf16.mxu0 0
    %280 = vmatpush1.bf16.msra.mxu0 0
    %281 = vmatprep.subr.bf16.mxu0 0
    %282 = vmatpush1.bf16.msra.mxu0 0
    %283 = vmatprep.subr.bf16.mxu0 0
    %284 = vmatpush1.bf16.msra.mxu0 0
    %285 = vmatprep.subr.bf16.mxu0 0
    %286 = vmatpush1.bf16.msra.mxu0 %v267
    %287 = vmatprep.subr.bf16.mxu0 0
    %288 = vmatpush1.bf16.msra.mxu0 %v266
    %289 = vmatprep.subr.bf16.mxu0 0
    %290 = vmatpush2.bf16.msra.mxu0 0
    %291 = vmatprep.subr.bf16.mxu0 0
    %292 = vmatpush2.bf16.msra.mxu0 0
    %293 = vmatprep.subr.bf16.mxu0 0
    %294 = vmatpush2.bf16.msra.mxu0 0
    %295 = vmatprep.subr.bf16.mxu0 0
    %296 = vmatpush2.bf16.msra.mxu0 0
    %297 = vmatprep.subr.bf16.mxu0 0
    %298 = vmatpush2.bf16.msra.mxu0 0
    %299 = vmatprep.subr.bf16.mxu0 0
    %300 = vmatpush2.bf16.msra.mxu0 0
    %301 = vmatprep.subr.bf16.mxu0 0
    %302 = vmatpush2.bf16.msra.mxu0 0
    %303 = vmatprep.subr.bf16.mxu0 0
    %304 = vmatpush2.bf16.msra.mxu0 0
    %305 = vmatprep.mubr.bf16.mxu0 0
    %306 = vmatmul.mubr.bf16.gmra.mxu0 %v271
    %v307 = vpop.f32.mrf.mxu0
    %v308 = vadd.f32 %v257, %v307
    %v309 = vpop.f32.mrf.mxu0
    %v310 = vpop.f32.mrf.mxu0
    %v311 = vpop.f32.mrf.mxu0
    %312 = vdwg.mxu0
    %vm313 = vcmp.ge.f32.partialorder %v308, 0.0
    %v314 = vmul.f32 %v308, 0.2
    %v315 = vsel %vm313, %v308, %v314
    %v316 = vmul.f32 %v315, 1.4142135
    %v317 = vpack.c.bf16 %v316, %v316
    %s318 = scalar_lea.vmem [#allocation2], 64
    %v319 = vld [vmem:[%s318] sm:$0xf]
    %v320 = vld [vmem:[%s318 + $0x4] sm:$0xf]
    %v321 = vld [vmem:[%s318 + $0x8] sm:$0xf]
    %v322 = vld [vmem:[%s318 + $0xc] sm:$0xf]
    %v323 = vlaneseq
    %v324 = vshrl.u32 %v323, 7
    %v325 = vsub.s32 4, %v324
    %v326 = vrot.slane %v40, %v325
    %v331 = vunpack.c.l.b16 %v319
    %v332 = vunpack.c.l.b16 %v320
    %v333 = vunpack.c.l.b16 %v321
    %v334 = vunpack.c.l.b16 %v322
    %v335 = vpack.c.b16 %v332, %v331
    %v336 = vpack.c.b16 %v334, %v333
    %v340 = vsel %vm62, %v317, 0
    %342 = vmatprep.subr.bf16.mxu0 0
    %343 = vmatpush1.bf16.msra.mxu0 0
    %344 = vmatprep.subr.bf16.mxu0 0
    %345 = vmatpush1.bf16.msra.mxu0 0
    %346 = vmatprep.subr.bf16.mxu0 0
    %347 = vmatpush1.bf16.msra.mxu0 0
    %348 = vmatprep.subr.bf16.mxu0 0
    %349 = vmatpush1.bf16.msra.mxu0 0
    %350 = vmatprep.subr.bf16.mxu0 0
    %351 = vmatpush1.bf16.msra.mxu0 0
    %352 = vmatprep.subr.bf16.mxu0 0
    %353 = vmatpush1.bf16.msra.mxu0 0
    %354 = vmatprep.subr.bf16.mxu0 0
    %355 = vmatpush1.bf16.msra.mxu0 %v336
    %356 = vmatprep.subr.bf16.mxu0 0
    %357 = vmatpush1.bf16.msra.mxu0 %v335
    %358 = vmatprep.subr.bf16.mxu0 0
    %359 = vmatpush2.bf16.msra.mxu0 0
    %360 = vmatprep.subr.bf16.mxu0 0
    %361 = vmatpush2.bf16.msra.mxu0 0
    %362 = vmatprep.subr.bf16.mxu0 0
    %363 = vmatpush2.bf16.msra.mxu0 0
    %364 = vmatprep.subr.bf16.mxu0 0
    %365 = vmatpush2.bf16.msra.mxu0 0
    %366 = vmatprep.subr.bf16.mxu0 0
    %367 = vmatpush2.bf16.msra.mxu0 0
    %368 = vmatprep.subr.bf16.mxu0 0
    %369 = vmatpush2.bf16.msra.mxu0 0
    %370 = vmatprep.subr.bf16.mxu0 0
    %371 = vmatpush2.bf16.msra.mxu0 0
    %372 = vmatprep.subr.bf16.mxu0 0
    %373 = vmatpush2.bf16.msra.mxu0 0
    %374 = vmatprep.mubr.bf16.mxu0 0
    %375 = vmatmul.mubr.bf16.gmra.mxu0 %v340
    %v376 = vpop.f32.mrf.mxu0
    %v377 = vadd.f32 %v326, %v376
    %v378 = vpop.f32.mrf.mxu0
    %v379 = vpop.f32.mrf.mxu0
    %v380 = vpop.f32.mrf.mxu0
    %381 = vdwg.mxu0
    %vm382 = vcmp.ge.f32.partialorder %v377, 0.0
    %v383 = vmul.f32 %v377, 0.2
    %v384 = vsel %vm382, %v377, %v383
    %v385 = vmul.f32 %v384, 1.4142135
    %v386 = vpack.c.bf16 %v385, %v385
    %s387 = scalar_lea.vmem [#allocation2], 80
    %v388 = vld [vmem:[%s387] sm:$0xf]
    %v389 = vld [vmem:[%s387 + $0x4] sm:$0xf]
    %v390 = vld [vmem:[%s387 + $0x8] sm:$0xf]
    %v391 = vld [vmem:[%s387 + $0xc] sm:$0xf]
    %v392 = vlaneseq
    %v393 = vshrl.u32 %v392, 7
    %v394 = vsub.s32 5, %v393
    %v395 = vrot.slane %v40, %v394
    %v400 = vunpack.c.l.b16 %v388
    %v401 = vunpack.c.l.b16 %v389
    %v402 = vunpack.c.l.b16 %v390
    %v403 = vunpack.c.l.b16 %v391
    %v404 = vpack.c.b16 %v401, %v400
    %v405 = vpack.c.b16 %v403, %v402
    %v409 = vsel %vm62, %v386, 0
    %411 = vmatprep.subr.bf16.mxu0 0
    %412 = vmatpush1.bf16.msra.mxu0 0
    %413 = vmatprep.subr.bf16.mxu0 0
    %414 = vmatpush1.bf16.msra.mxu0 0
    %415 = vmatprep.subr.bf16.mxu0 0
    %416 = vmatpush1.bf16.msra.mxu0 0
    %417 = vmatprep.subr.bf16.mxu0 0
    %418 = vmatpush1.bf16.msra.mxu0 0
    %419 = vmatprep.subr.bf16.mxu0 0
    %420 = vmatpush1.bf16.msra.mxu0 0
    %421 = vmatprep.subr.bf16.mxu0 0
    %422 = vmatpush1.bf16.msra.mxu0 0
    %423 = vmatprep.subr.bf16.mxu0 0
    %424 = vmatpush1.bf16.msra.mxu0 %v405
    %425 = vmatprep.subr.bf16.mxu0 0
    %426 = vmatpush1.bf16.msra.mxu0 %v404
    %427 = vmatprep.subr.bf16.mxu0 0
    %428 = vmatpush2.bf16.msra.mxu0 0
    %429 = vmatprep.subr.bf16.mxu0 0
    %430 = vmatpush2.bf16.msra.mxu0 0
    %431 = vmatprep.subr.bf16.mxu0 0
    %432 = vmatpush2.bf16.msra.mxu0 0
    %433 = vmatprep.subr.bf16.mxu0 0
    %434 = vmatpush2.bf16.msra.mxu0 0
    %435 = vmatprep.subr.bf16.mxu0 0
    %436 = vmatpush2.bf16.msra.mxu0 0
    %437 = vmatprep.subr.bf16.mxu0 0
    %438 = vmatpush2.bf16.msra.mxu0 0
    %439 = vmatprep.subr.bf16.mxu0 0
    %440 = vmatpush2.bf16.msra.mxu0 0
    %441 = vmatprep.subr.bf16.mxu0 0
    %442 = vmatpush2.bf16.msra.mxu0 0
    %443 = vmatprep.mubr.bf16.mxu0 0
    %444 = vmatmul.mubr.bf16.gmra.mxu0 %v409
    %v445 = vpop.f32.mrf.mxu0
    %v446 = vadd.f32 %v395, %v445
    %v447 = vpop.f32.mrf.mxu0
    %v448 = vpop.f32.mrf.mxu0
    %v449 = vpop.f32.mrf.mxu0
    %450 = vdwg.mxu0
    %vm451 = vcmp.ge.f32.partialorder %v446, 0.0
    %v452 = vmul.f32 %v446, 0.2
    %v453 = vsel %vm451, %v446, %v452
    %v454 = vmul.f32 %v453, 1.4142135
    %v455 = vpack.c.bf16 %v454, %v454
    %s456 = scalar_lea.vmem [#allocation2], 96
    %v457 = vld [vmem:[%s456] sm:$0xf]
    %v458 = vld [vmem:[%s456 + $0x4] sm:$0xf]
    %v459 = vld [vmem:[%s456 + $0x8] sm:$0xf]
    %v460 = vld [vmem:[%s456 + $0xc] sm:$0xf]
    %v461 = vlaneseq
    %v462 = vshrl.u32 %v461, 7
    %v463 = vsub.s32 6, %v462
    %v464 = vrot.slane %v40, %v463
    %v469 = vunpack.c.l.b16 %v457
    %v470 = vunpack.c.l.b16 %v458
    %v471 = vunpack.c.l.b16 %v459
    %v472 = vunpack.c.l.b16 %v460
    %v473 = vpack.c.b16 %v470, %v469
    %v474 = vpack.c.b16 %v472, %v471
    %v478 = vsel %vm62, %v455, 0
    %480 = vmatprep.subr.bf16.mxu0 0
    %481 = vmatpush1.bf16.msra.mxu0 0
    %482 = vmatprep.subr.bf16.mxu0 0
    %483 = vmatpush1.bf16.msra.mxu0 0
    %484 = vmatprep.subr.bf16.mxu0 0
    %485 = vmatpush1.bf16.msra.mxu0 0
    %486 = vmatprep.subr.bf16.mxu0 0
    %487 = vmatpush1.bf16.msra.mxu0 0
    %488 = vmatprep.subr.bf16.mxu0 0
    %489 = vmatpush1.bf16.msra.mxu0 0
    %490 = vmatprep.subr.bf16.mxu0 0
    %491 = vmatpush1.bf16.msra.mxu0 0
    %492 = vmatprep.subr.bf16.mxu0 0
    %493 = vmatpush1.bf16.msra.mxu0 %v474
    %494 = vmatprep.subr.bf16.mxu0 0
    %495 = vmatpush1.bf16.msra.mxu0 %v473
    %496 = vmatprep.subr.bf16.mxu0 0
    %497 = vmatpush2.bf16.msra.mxu0 0
    %498 = vmatprep.subr.bf16.mxu0 0
    %499 = vmatpush2.bf16.msra.mxu0 0
    %500 = vmatprep.subr.bf16.mxu0 0
    %501 = vmatpush2.bf16.msra.mxu0 0
    %502 = vmatprep.subr.bf16.mxu0 0
    %503 = vmatpush2.bf16.msra.mxu0 0
    %504 = vmatprep.subr.bf16.mxu0 0
    %505 = vmatpush2.bf16.msra.mxu0 0
    %506 = vmatprep.subr.bf16.mxu0 0
    %507 = vmatpush2.bf16.msra.mxu0 0
    %508 = vmatprep.subr.bf16.mxu0 0
    %509 = vmatpush2.bf16.msra.mxu0 0
    %510 = vmatprep.subr.bf16.mxu0 0
    %511 = vmatpush2.bf16.msra.mxu0 0
    %512 = vmatprep.mubr.bf16.mxu0 0
    %513 = vmatmul.mubr.bf16.gmra.mxu0 %v478
    %v514 = vpop.f32.mrf.mxu0
    %v515 = vadd.f32 %v464, %v514
    %v516 = vpop.f32.mrf.mxu0
    %v517 = vpop.f32.mrf.mxu0
    %v518 = vpop.f32.mrf.mxu0
    %519 = vdwg.mxu0
    %vm520 = vcmp.ge.f32.partialorder %v515, 0.0
    %v521 = vmul.f32 %v515, 0.2
    %v522 = vsel %vm520, %v515, %v521
    %v523 = vmul.f32 %v522, 1.4142135
    %v524 = vpack.c.bf16 %v523, %v523
    %s525 = scalar_lea.vmem [#allocation2], 112
    %v526 = vld [vmem:[%s525] sm:$0xf]
    %v527 = vld [vmem:[%s525 + $0x4] sm:$0xf]
    %v528 = vld [vmem:[%s525 + $0x8] sm:$0xf]
    %v529 = vld [vmem:[%s525 + $0xc] sm:$0xf]
    %v530 = vlaneseq
    %v531 = vshrl.u32 %v530, 7
    %v532 = vsub.s32 7, %v531
    %v533 = vrot.slane %v40, %v532
    %v538 = vunpack.c.l.b16 %v526
    %v539 = vunpack.c.l.b16 %v527
    %v540 = vunpack.c.l.b16 %v528
    %v541 = vunpack.c.l.b16 %v529
    %v542 = vpack.c.b16 %v539, %v538
    %v543 = vpack.c.b16 %v541, %v540
    %v547 = vsel %vm62, %v524, 0
    %549 = vmatprep.subr.bf16.mxu0 0
    %550 = vmatpush1.bf16.msra.mxu0 0
    %551 = vmatprep.subr.bf16.mxu0 0
    %552 = vmatpush1.bf16.msra.mxu0 0
    %553 = vmatprep.subr.bf16.mxu0 0
    %554 = vmatpush1.bf16.msra.mxu0 0
    %555 = vmatprep.subr.bf16.mxu0 0
    %556 = vmatpush1.bf16.msra.mxu0 0
    %557 = vmatprep.subr.bf16.mxu0 0
    %558 = vmatpush1.bf16.msra.mxu0 0
    %559 = vmatprep.subr.bf16.mxu0 0
    %560 = vmatpush1.bf16.msra.mxu0 0
    %561 = vmatprep.subr.bf16.mxu0 0
    %562 = vmatpush1.bf16.msra.mxu0 %v543
    %563 = vmatprep.subr.bf16.mxu0 0
    %564 = vmatpush1.bf16.msra.mxu0 %v542
    %565 = vmatprep.subr.bf16.mxu0 0
    %566 = vmatpush2.bf16.msra.mxu0 0
    %567 = vmatprep.subr.bf16.mxu0 0
    %568 = vmatpush2.bf16.msra.mxu0 0
    %569 = vmatprep.subr.bf16.mxu0 0
    %570 = vmatpush2.bf16.msra.mxu0 0
    %571 = vmatprep.subr.bf16.mxu0 0
    %572 = vmatpush2.bf16.msra.mxu0 0
    %573 = vmatprep.subr.bf16.mxu0 0
    %574 = vmatpush2.bf16.msra.mxu0 0
    %575 = vmatprep.subr.bf16.mxu0 0
    %576 = vmatpush2.bf16.msra.mxu0 0
    %577 = vmatprep.subr.bf16.mxu0 0
    %578 = vmatpush2.bf16.msra.mxu0 0
    %579 = vmatprep.subr.bf16.mxu0 0
    %580 = vmatpush2.bf16.msra.mxu0 0
    %581 = vmatprep.mubr.bf16.mxu0 0
    %582 = vmatmul.mubr.bf16.gmra.mxu0 %v547
    %v583 = vpop.f32.mrf.mxu0
    %v584 = vadd.f32 %v533, %v583
    %v585 = vpop.f32.mrf.mxu0
    %v586 = vpop.f32.mrf.mxu0
    %v587 = vpop.f32.mrf.mxu0
    %588 = vdwg.mxu0
    %vm589 = vcmp.ge.f32.partialorder %v584, 0.0
    %v590 = vmul.f32 %v584, 0.2
    %v591 = vsel %vm589, %v584, %v590
    %v592 = vmul.f32 %v591, 1.4142135
    %593 = vst.msk [vmem:[%s3] sm:$0x3] %vm31, %v592
    // Predicated region
    $region18: #{_lambda_.2} parent=1 // pred_check
      _
    $region19: #{_lambda_.2} parent=1 // pred_check_branch
      %595 = sbr.rel (0) target = $region21
    $region20: #{_lambda_.2} parent=1 // pred_region
      _
    $region21: #{_lambda_.2} parent=1 // pred_fallthru
      _
    // Predicated region
    $region22: #{_lambda_.2} parent=1 // pred_check
      _
    $region23: #{_lambda_.2} parent=1 // pred_check_branch
      %597 = sbr.rel (0) target = $region25
    $region24: #{_lambda_.2} parent=1 // pred_region
      _
    $region25: #{_lambda_.2} parent=1 // pred_fallthru
      _
    %598 = vsyncpa [#allocation3], 1

// kernel: _lambda_.3
$region0: #{_lambda_.3}
  #allocation0 [shape = 'u32[]', space=smem, size = 0x4, offset = 0x4, fixed_abs, tag = 'smem constant byte address 0x4 - core index']
  #allocation1 [shape = 'u32[144,128]{1,0:T(1,128)}', space=vmem, size = 0x12000, scoped, tag = 'internal scratch']
  %s0 = inlined_call_operand.vmem [shape: f32[2,256,2], index: 0, kind: input, shape index: {}]
  %s1 = inlined_call_operand.vmem [shape: f32[2,32], index: 1, kind: input, shape index: {}]
  %s2 = inlined_call_operand.vmem [shape: f32[1,32], index: 2, kind: input, shape index: {}]
  %s3 = inlined_call_operand.vmem [shape: bf16[2,32,64], index: 3, kind: input, shape index: {}]
  %s4 = inlined_call_operand.vmem [shape: f32[1,64], index: 4, kind: input, shape index: {}]
  %s5 = inlined_call_operand.vmem [shape: bf16[6,2,64,64], index: 5, kind: input, shape index: {}]
  %s6 = inlined_call_operand.vmem [shape: f32[6,64], index: 6, kind: input, shape index: {}]
  %s7 = inlined_call_operand.vmem [shape: bf16[3,2,3,64], index: 7, kind: input, shape index: {}]
  %s8 = inlined_call_operand.vmem [shape: f32[3,1], index: 8, kind: input, shape index: {}]
  %s9 = inlined_call_operand.vmem [shape: f32[2,3,256], index: 9, kind: output, shape index: {}]
  %s10 = sld [smem:[#allocation0]]
  $region144: #{_lambda_.3} parent=0
    _
  %s12 = ssub.s32 1, %s10
  %s13 = scalar_select 0, %s12, %s10
  $region1: #{_lambda_.3} parent=0
    #allocation2 [shape = 'u8[196608]{0}', space=vmem, size = 0x30000, scoped, tag = 'input window, operand 5']
    #allocation3 [shape = 'u8[6144]{0}', space=vmem, size = 0x1800, scoped, tag = 'input window, operand 7']
    loop: start=0, step=1, limit=4
    $region2: #{_lambda_.3} parent=1 // loop_pre_header
      _
    $region3: #{_lambda_.3} parent=1 // loop_header
      %s15 = sphi 0, %s19
      %p16 = scmp.ge.s32.totalorder %s15, 4
      %s22 = sphi 0, %s34
      %s23 = sphi 0, %s30
      %s24 = sphi 0, %s22
      %s25 = sphi 0, %s23
      %s26 = sphi 0, %s24
      %s27 = sphi 0, %s25
      %s39 = sphi 0, %s41
      %s42 = sphi 0, %s39
      %s43 = sphi 0, %s42
      %s59 = sphi 0, %s43
      %s63 = sphi 0, %s63
      %s65 = sphi 0, %s63
      %s66 = sphi 0, %s65
      %s80 = sphi 0, %s66
      %s84 = sphi 0, %s84
      %s86 = sphi 0, %s84
      %s87 = sphi 0, %s86
      %s101 = sphi 0, %s87
      %s107 = sphi 0, %s109
      %s110 = sphi 0, %s107
      %s111 = sphi 0, %s110
      %s127 = sphi 0, %s111
      %s131 = sphi 0, %s131
      %s133 = sphi 0, %s131
      %s134 = sphi 0, %s133
      %s148 = sphi 0, %s134
      %s154 = sphi 0, %s156
      %s157 = sphi 0, %s154
      %s158 = sphi 0, %s157
      %s174 = sphi 0, %s158
      %s178 = sphi 0, %s178
      %s180 = sphi 0, %s178
      %s181 = sphi 0, %s180
      %s195 = sphi 0, %s181
      %s201 = sphi 0, %s203
      %s204 = sphi 0, %s201
      %s205 = sphi 0, %s204
      %s221 = sphi 0, %s205
      %s225 = sphi 0, %s225
      %s227 = sphi 0, %s225
      %s228 = sphi 0, %s227
      %s242 = sphi 0, %s228
      %s250 = sphi 0, %s252
      %s253 = sphi 0, %s250
      %s254 = sphi 0, %s253
      %s270 = sphi 0, %s254
    $region4: #{_lambda_.3} parent=1 // loop_header_branch
      %18 = sbr.rel (%p16) target = $region8
    $region5: #{_lambda_.3} parent=1 // loop_body
      %s20 = ssub.s32 %s15, 1
      %s21 = ssub.s32 %s15, 2
      %s28 = sadd.s32 1, %s23
      %p29 = scmp.ge.s32.totalorder %s28, 1
      %s30 = scalar_select %p29, 0, %s28
      %s31 = sadd.s32 1, %s22
      %s32 = scalar_select %p29, %s31, %s22
      %p33 = scmp.ge.s32.totalorder %s32, 2
      %s34 = scalar_select %p33, 0, %s32
      %s35 = ssub.s32 %s22, %s34
      %s36 = ssub.s32 %s23, %s30
      %s37 = sor.u32 %s35, %s36
      %p38 = scmp.eq.s32.totalorder %s37, 0
      %s40 = sadd.s32 %s39, 1
      %s41 = scalar_select %p38, %s39, %s40
      %p44 = pneg %p38
      %p45 = scmp.eq.s32.totalorder %s15, 1
      %p46 = por %p44, %p45
      %p47 = scmp.ne.s32.totalorder %s39, %s42
      %p48 = scmp.eq.s32.totalorder %s15, 0
      %p49 = por %p47, %p48
      %p50 = scmp.ne.s32.totalorder %s39, %s42
      %p51 = scmp.eq.s32.totalorder %s20, 1
      %p52 = por %p50, %p51
      %p53 = scmp.ne.s32.totalorder %s42, %s43
      %p54 = scmp.eq.s32.totalorder %s20, 0
      %p55 = por %p53, %p54
      %p56 = scmp.ne.s32.totalorder %s42, %s43
      %p57 = scmp.eq.s32.totalorder %s21, 1
      %p58 = por %p56, %p57
      %p60 = scmp.ne.s32.totalorder %s43, %s59
      %p61 = scmp.eq.s32.totalorder %s21, 0
      %p62 = por %p60, %p61
      %s64 = sadd.s32 %s63, 1
      %p67 = scmp.eq.s32.totalorder %s15, 1
      %p68 = scmp.ne.s32.totalorder %s63, %s65
      %p69 = scmp.eq.s32.totalorder %s15, 0
      %p70 = por %p68, %p69
      %p71 = scmp.ne.s32.totalorder %s63, %s65
      %p72 = scmp.eq.s32.totalorder %s20, 1
      %p73 = por %p71, %p72
      %p74 = scmp.ne.s32.totalorder %s65, %s66
      %p75 = scmp.eq.s32.totalorder %s20, 0
      %p76 = por %p74, %p75
      %p77 = scmp.ne.s32.totalorder %s65, %s66
      %p78 = scmp.eq.s32.totalorder %s21, 1
      %p79 = por %p77, %p78
      %p81 = scmp.ne.s32.totalorder %s66, %s80
      %p82 = scmp.eq.s32.totalorder %s21, 0
      %p83 = por %p81, %p82
      %s85 = sadd.s32 %s84, 1
      %p88 = scmp.eq.s32.totalorder %s15, 1
      %p89 = scmp.ne.s32.totalorder %s84, %s86
      %p90 = scmp.eq.s32.totalorder %s15, 0
      %p91 = por %p89, %p90
      %p92 = scmp.ne.s32.totalorder %s84, %s86
      %p93 = scmp.eq.s32.totalorder %s20, 1
      %p94 = por %p92, %p93
      %p95 = scmp.ne.s32.totalorder %s86, %s87
      %p96 = scmp.eq.s32.totalorder %s20, 0
      %p97 = por %p95, %p96
      %p98 = scmp.ne.s32.totalorder %s86, %s87
      %p99 = scmp.eq.s32.totalorder %s21, 1
      %p100 = por %p98, %p99
      %p102 = scmp.ne.s32.totalorder %s87, %s101
      %p103 = scmp.eq.s32.totalorder %s21, 0
      %p104 = por %p102, %p103
      %s105 = ssub.s32 %s22, %s34
      %p106 = scmp.eq.s32.totalorder %s105, 0
      %s108 = sadd.s32 %s107, 1
      %s109 = scalar_select %p106, %s107, %s108
      %p112 = pneg %p106
      %p113 = scmp.eq.s32.totalorder %s15, 1
      %p114 = por %p112, %p113
      %p115 = scmp.ne.s32.totalorder %s107, %s110
      %p116 = scmp.eq.s32.totalorder %s15, 0
      %p117 = por %p115, %p116
      %p118 = scmp.ne.s32.totalorder %s107, %s110
      %p119 = scmp.eq.s32.totalorder %s20, 1
      %p120 = por %p118, %p119
      %p121 = scmp.ne.s32.totalorder %s110, %s111
      %p122 = scmp.eq.s32.totalorder %s20, 0
      %p123 = por %p121, %p122
      %p124 = scmp.ne.s32.totalorder %s110, %s111
      %p125 = scmp.eq.s32.totalorder %s21, 1
      %p126 = por %p124, %p125
      %p128 = scmp.ne.s32.totalorder %s111, %s127
      %p129 = scmp.eq.s32.totalorder %s21, 0
      %p130 = por %p128, %p129
      %s132 = sadd.s32 %s131, 1
      %p135 = scmp.eq.s32.totalorder %s15, 1
      %p136 = scmp.ne.s32.totalorder %s131, %s133
      %p137 = scmp.eq.s32.totalorder %s15, 0
      %p138 = por %p136, %p137
      %p139 = scmp.ne.s32.totalorder %s131, %s133
      %p140 = scmp.eq.s32.totalorder %s20, 1
      %p141 = por %p139, %p140
      %p142 = scmp.ne.s32.totalorder %s133, %s134
      %p143 = scmp.eq.s32.totalorder %s20, 0
      %p144 = por %p142, %p143
      %p145 = scmp.ne.s32.totalorder %s133, %s134
      %p146 = scmp.eq.s32.totalorder %s21, 1
      %p147 = por %p145, %p146
      %p149 = scmp.ne.s32.totalorder %s134, %s148
      %p150 = scmp.eq.s32.totalorder %s21, 0
      %p151 = por %p149, %p150
      %s152 = ssub.s32 %s22, %s34
      %p153 = scmp.eq.s32.totalorder %s152, 0
      %s155 = sadd.s32 %s154, 1
      %s156 = scalar_select %p153, %s154, %s155
      %p159 = pneg %p153
      %p160 = scmp.eq.s32.totalorder %s15, 1
      %p161 = por %p159, %p160
      %p162 = scmp.ne.s32.totalorder %s154, %s157
      %p163 = scmp.eq.s32.totalorder %s15, 0
      %p164 = por %p162, %p163
      %p165 = scmp.ne.s32.totalorder %s154, %s157
      %p166 = scmp.eq.s32.totalorder %s20, 1
      %p167 = por %p165, %p166
      %p168 = scmp.ne.s32.totalorder %s157, %s158
      %p169 = scmp.eq.s32.totalorder %s20, 0
      %p170 = por %p168, %p169
      %p171 = scmp.ne.s32.totalorder %s157, %s158
      %p172 = scmp.eq.s32.totalorder %s21, 1
      %p173 = por %p171, %p172
      %p175 = scmp.ne.s32.totalorder %s158, %s174
      %p176 = scmp.eq.s32.totalorder %s21, 0
      %p177 = por %p175, %p176
      %s179 = sadd.s32 %s178, 1
      %p182 = scmp.eq.s32.totalorder %s15, 1
      %p183 = scmp.ne.s32.totalorder %s178, %s180
      %p184 = scmp.eq.s32.totalorder %s15, 0
      %p185 = por %p183, %p184
      %p186 = scmp.ne.s32.totalorder %s178, %s180
      %p187 = scmp.eq.s32.totalorder %s20, 1
      %p188 = por %p186, %p187
      %p189 = scmp.ne.s32.totalorder %s180, %s181
      %p190 = scmp.eq.s32.totalorder %s20, 0
      %p191 = por %p189, %p190
      %p192 = scmp.ne.s32.totalorder %s180, %s181
      %p193 = scmp.eq.s32.totalorder %s21, 1
      %p194 = por %p192, %p193
      %p196 = scmp.ne.s32.totalorder %s181, %s195
      %p197 = scmp.eq.s32.totalorder %s21, 0
      %p198 = por %p196, %p197
      %s199 = ssub.s32 %s22, %s34
      %p200 = scmp.eq.s32.totalorder %s199, 0
      %s202 = sadd.s32 %s201, 1
      %s203 = scalar_select %p200, %s201, %s202
      %p206 = pneg %p200
      %p207 = scmp.eq.s32.totalorder %s15, 1
      %p208 = por %p206, %p207
      %p209 = scmp.ne.s32.totalorder %s201, %s204
      %p210 = scmp.eq.s32.totalorder %s15, 0
      %p211 = por %p209, %p210
      %p212 = scmp.ne.s32.totalorder %s201, %s204
      %p213 = scmp.eq.s32.totalorder %s20, 1
      %p214 = por %p212, %p213
      %p215 = scmp.ne.s32.totalorder %s204, %s205
      %p216 = scmp.eq.s32.totalorder %s20, 0
      %p217 = por %p215, %p216
      %p218 = scmp.ne.s32.totalorder %s204, %s205
      %p219 = scmp.eq.s32.totalorder %s21, 1
      %p220 = por %p218, %p219
      %p222 = scmp.ne.s32.totalorder %s205, %s221
      %p223 = scmp.eq.s32.totalorder %s21, 0
      %p224 = por %p222, %p223
      %s226 = sadd.s32 %s225, 1
      %p229 = scmp.eq.s32.totalorder %s15, 1
      %p230 = scmp.ne.s32.totalorder %s225, %s227
      %p231 = scmp.eq.s32.totalorder %s15, 0
      %p232 = por %p230, %p231
      %p233 = scmp.ne.s32.totalorder %s225, %s227
      %p234 = scmp.eq.s32.totalorder %s20, 1
      %p235 = por %p233, %p234
      %p236 = scmp.ne.s32.totalorder %s227, %s228
      %p237 = scmp.eq.s32.totalorder %s20, 0
      %p238 = por %p236, %p237
      %p239 = scmp.ne.s32.totalorder %s227, %s228
      %p240 = scmp.eq.s32.totalorder %s21, 1
      %p241 = por %p239, %p240
      %p243 = scmp.ne.s32.totalorder %s228, %s242
      %p244 = scmp.eq.s32.totalorder %s21, 0
      %p245 = por %p243, %p244
      %s246 = ssub.s32 %s22, %s34
      %s247 = ssub.s32 %s23, %s30
      %s248 = sor.u32 %s246, %s247
      %p249 = scmp.eq.s32.totalorder %s248, 0
      %s251 = sadd.s32 %s250, 1
      %s252 = scalar_select %p249, %s250, %s251
      %p255 = pneg %p249
      %p256 = scmp.eq.s32.totalorder %s15, 1
      %p257 = por %p255, %p256
      %p258 = scmp.ne.s32.totalorder %s250, %s253
      %p259 = scmp.eq.s32.totalorder %s15, 0
      %p260 = por %p258, %p259
      %p261 = scmp.ne.s32.totalorder %s250, %s253
      %p262 = scmp.eq.s32.totalorder %s20, 1
      %p263 = por %p261, %p262
      %p264 = scmp.ne.s32.totalorder %s253, %s254
      %p265 = scmp.eq.s32.totalorder %s20, 0
      %p266 = por %p264, %p265
      %p267 = scmp.ne.s32.totalorder %s253, %s254
      %p268 = scmp.eq.s32.totalorder %s21, 1
      %p269 = por %p267, %p268
      %p271 = scmp.ne.s32.totalorder %s254, %s270
      %p272 = scmp.eq.s32.totalorder %s21, 0
      %p273 = por %p271, %p272
      %p274 = scmp.le.s32.totalorder 1, %s15
      %p275 = scmp.lt.s32.totalorder %s15, 3
      %p276 = pnand %p274, %p275
      %p277 = pneg %p276
      // Predicated region
      $region9: #{_lambda_.3} parent=5 // pred_check
        _
      $region10: #{_lambda_.3} parent=5 // pred_check_branch
        %279 = sbr.rel (%p276) target = $region12
      $region11: #{_lambda_.3} parent=5 // pred_region
        %s280 = ssub.s32 %s15, 1
        // Predicated region
        $region13: #{_lambda_.3} parent=11 // pred_check
          %p281 = pneg %p76
        $region14: #{_lambda_.3} parent=11 // pred_check_branch
          %283 = sbr.rel (%p281) target = $region16
        $region15: #{_lambda_.3} parent=11 // pred_region
          _
        $region16: #{_lambda_.3} parent=11 // pred_fallthru
          _
        // Predicated region
        $region17: #{_lambda_.3} parent=11 // pred_check
          %p284 = pneg %p97
        $region18: #{_lambda_.3} parent=11 // pred_check_branch
          %286 = sbr.rel (%p284) target = $region20
        $region19: #{_lambda_.3} parent=11 // pred_region
          _
        $region20: #{_lambda_.3} parent=11 // pred_fallthru
          _
        // Predicated region
        $region21: #{_lambda_.3} parent=11 // pred_check
          %p287 = pneg %p144
        $region22: #{_lambda_.3} parent=11 // pred_check_branch
          %289 = sbr.rel (%p287) target = $region24
        $region23: #{_lambda_.3} parent=11 // pred_region
          _
        $region24: #{_lambda_.3} parent=11 // pred_fallthru
          _
        // Predicated region
        $region25: #{_lambda_.3} parent=11 // pred_check
          %p290 = pneg %p191
        $region26: #{_lambda_.3} parent=11 // pred_check_branch
          %292 = sbr.rel (%p290) target = $region28
        $region27: #{_lambda_.3} parent=11 // pred_region
          _
        $region28: #{_lambda_.3} parent=11 // pred_fallthru
          _
        // Predicated region
        $region29: #{_lambda_.3} parent=11 // pred_check
          %p293 = pneg %p238
        $region30: #{_lambda_.3} parent=11 // pred_check_branch
          %295 = sbr.rel (%p293) target = $region32
        $region31: #{_lambda_.3} parent=11 // pred_region
          _
        $region32: #{_lambda_.3} parent=11 // pred_fallthru
          _
      $region12: #{_lambda_.3} parent=5 // pred_fallthru
        _
      %p296 = scmp.lt.s32.totalorder %s15, 2
      // Predicated region
      $region33: #{_lambda_.3} parent=5 // pred_check
        %p297 = pneg %p296
      $region34: #{_lambda_.3} parent=5 // pred_check_branch
        %299 = sbr.rel (%p297) target = $region36
      $region35: #{_lambda_.3} parent=5 // pred_region
        // Predicated region
        $region37: #{_lambda_.3} parent=35 // pred_check
          %p300 = pneg %p49
        $region38: #{_lambda_.3} parent=35 // pred_check_branch
          %302 = sbr.rel (%p300) target = $region40
        $region39: #{_lambda_.3} parent=35 // pred_region
          %s303 = smul.u32 32, %s23
          %p304 = scmp.lt.s32.totalorder %s22, 1
          %s305 = scalar_select %p304, %s22, 1
          %p306 = scmp.lt.s32.totalorder %s303, 31
          %s307 = scalar_select %p306, %s303, 31
          %s308 = smul.addr %s305, 32
          %s309 = sadd.s32 %s307, %s308
          %s310 = smul.addr %s309, 8
          %s311 = scalar_lea.vmem %s0, %s310
          %s312 = smul.u32 32, %s23
        $region40: #{_lambda_.3} parent=35 // pred_fallthru
          _
        // Predicated region
        $region41: #{_lambda_.3} parent=35 // pred_check
          %p313 = pneg %p117
        $region42: #{_lambda_.3} parent=35 // pred_check_branch
          %315 = sbr.rel (%p313) target = $region44
        $region43: #{_lambda_.3} parent=35 // pred_region
          %p316 = scmp.lt.s32.totalorder %s22, 1
          %s317 = scalar_select %p316, %s22, 1
          %s318 = smul.addr %s317, 4
          %s319 = smul.addr %s318, 4
          %s320 = scalar_lea.vmem %s3, %s319
        $region44: #{_lambda_.3} parent=35 // pred_fallthru
          _
        // Predicated region
        $region45: #{_lambda_.3} parent=35 // pred_check
          %p321 = pneg %p164
        $region46: #{_lambda_.3} parent=35 // pred_check_branch
          %323 = sbr.rel (%p321) target = $region48
        $region47: #{_lambda_.3} parent=35 // pred_region
          %s324 = sand.u32 %s154, 1
          %s325 = sand.u32 %s154, 1
          %s326 = smul.addr %s325, 192
          %s327 = scalar_lea.vmem [#allocation2], %s326
          %s328 = smul.addr %s22, 8
          %s329 = smul.addr %s328, 4
          %s330 = scalar_lea.vmem %s5, %s329
          // Predicated region
          $region49: #{_lambda_.3} parent=47 // pred_check
            _
          $region50: #{_lambda_.3} parent=47 // pred_check_branch
            %332 = sbr.rel (0) target = $region52
          $region51: #{_lambda_.3} parent=47 // pred_region
            // Predicated region
            $region53: #{_lambda_.3} parent=51 // pred_check
              _
            $region54: #{_lambda_.3} parent=51 // pred_check_branch
              %334 = sbr.rel target = $region56
            $region55: #{_lambda_.3} parent=51 // pred_region
              // Predicated region
              $region68: #{_lambda_.3} parent=55 // pred_check
                _
              $region69: #{_lambda_.3} parent=55 // pred_check_branch
                %444 = sbr.rel (0) target = $region71
              $region70: #{_lambda_.3} parent=55 // pred_region
                loop: start=0, step=1, limit=1
                $region72: #{_lambda_.3} parent=70 // loop_pre_header
                  _
                $region73: #{_lambda_.3} parent=70 // loop_header
                  %s446 = sphi 0, %s450
                  %p447 = scmp.ge.s32.totalorder %s446, 1
                  %s451 = sphi %s330, %s330
                  %s452 = sphi %s327, %s327
                $region74: #{_lambda_.3} parent=70 // loop_header_branch
                  %449 = sbr.rel (%p447) target = $region78
                $region75: #{_lambda_.3} parent=70 // loop_body
                  _
                $region76: #{_lambda_.3} parent=70 // loop_footer
                  %s450 = sadd.s32 1, %s446
                $region77: #{_lambda_.3} parent=70 // loop_footer_branch
                  %445 = sbr.rel target = $region73
                $region78: #{_lambda_.3} parent=70 // loop_exit
                  _
                %s454 = ssub.s32 16, 1
                loop: start=0, step=1, limit=1
                $region79: #{_lambda_.3} parent=70 // loop_pre_header
                  _
                $region80: #{_lambda_.3} parent=70 // loop_header
                  %s456 = sphi 0, %s460
                  %p457 = scmp.ge.s32.totalorder %s456, 1
                  %s461 = sphi %s330, %s330
                  %s462 = sphi %s327, %s327
                $region81: #{_lambda_.3} parent=70 // loop_header_branch
                  %459 = sbr.rel (%p457) target = $region85
                $region82: #{_lambda_.3} parent=70 // loop_body
                  %v463 = vld [vmem:[%s461] sm:%s454]
                  %464 = vst [vmem:[%s462] sm:%s454] %v463
                  %v465 = vld [vmem:[%s461 + $0x4] sm:%s454]
                  %466 = vst [vmem:[%s462 + $0x4] sm:%s454] %v465
                  %v467 = vld [vmem:[%s461 + $0x8] sm:%s454]
                  %468 = vst [vmem:[%s462 + $0x8] sm:%s454] %v467
                  %v469 = vld [vmem:[%s461 + $0xc] sm:%s454]
                  %470 = vst [vmem:[%s462 + $0xc] sm:%s454] %v469
                  %v471 = vld [vmem:[%s461 + $0x10] sm:%s454]
                  %472 = vst [vmem:[%s462 + $0x10] sm:%s454] %v471
                  %v473 = vld [vmem:[%s461 + $0x14] sm:%s454]
                  %474 = vst [vmem:[%s462 + $0x14] sm:%s454] %v473
                  %v475 = vld [vmem:[%s461 + $0x18] sm:%s454]
                  %476 = vst [vmem:[%s462 + $0x18] sm:%s454] %v475
                  %v477 = vld [vmem:[%s461 + $0x1c] sm:%s454]
                  %478 = vst [vmem:[%s462 + $0x1c] sm:%s454] %v477
                  %v479 = vld [vmem:[%s461 + $0x40] sm:%s454]
                  %480 = vst [vmem:[%s462 + $0x20] sm:%s454] %v479
                  %v481 = vld [vmem:[%s461 + $0x44] sm:%s454]
                  %482 = vst [vmem:[%s462 + $0x24] sm:%s454] %v481
                  %v483 = vld [vmem:[%s461 + $0x48] sm:%s454]
                  %484 = vst [vmem:[%s462 + $0x28] sm:%s454] %v483
                  %v485 = vld [vmem:[%s461 + $0x4c] sm:%s454]
                  %486 = vst [vmem:[%s462 + $0x2c] sm:%s454] %v485
                  %v487 = vld [vmem:[%s461 + $0x50] sm:%s454]
                  %488 = vst [vmem:[%s462 + $0x30] sm:%s454] %v487
                  %v489 = vld [vmem:[%s461 + $0x54] sm:%s454]
                  %490 = vst [vmem:[%s462 + $0x34] sm:%s454] %v489
                  %v491 = vld [vmem:[%s461 + $0x58] sm:%s454]
                  %492 = vst [vmem:[%s462 + $0x38] sm:%s454] %v491
                  %v493 = vld [vmem:[%s461 + $0x5c] sm:%s454]
                  %494 = vst [vmem:[%s462 + $0x3c] sm:%s454] %v493
                  %v495 = vld [vmem:[%s461 + $0x80] sm:%s454]
                  %496 = vst [vmem:[%s462 + $0x40] sm:%s454] %v495
                  %v497 = vld [vmem:[%s461 + $0x84] sm:%s454]
                  %498 = vst [vmem:[%s462 + $0x44] sm:%s454] %v497
                  %v499 = vld [vmem:[%s461 + $0x88] sm:%s454]
                  %500 = vst [vmem:[%s462 + $0x48] sm:%s454] %v499
                  %v501 = vld [vmem:[%s461 + $0x8c] sm:%s454]
                  %502 = vst [vmem:[%s462 + $0x4c] sm:%s454] %v501
                  %v503 = vld [vmem:[%s461 + $0x90] sm:%s454]
                  %504 = vst [vmem:[%s462 + $0x50] sm:%s454] %v503
                  %v505 = vld [vmem:[%s461 + $0x94] sm:%s454]
                  %506 = vst [vmem:[%s462 + $0x54] sm:%s454] %v505
                  %v507 = vld [vmem:[%s461 + $0x98] sm:%s454]
                  %508 = vst [vmem:[%s462 + $0x58] sm:%s454] %v507
                  %v509 = vld [vmem:[%s461 + $0x9c] sm:%s454]
                  %510 = vst [vmem:[%s462 + $0x5c] sm:%s454] %v509
                  %v511 = vld [vmem:[%s461 + $0xc0] sm:%s454]
                  %512 = vst [vmem:[%s462 + $0x60] sm:%s454] %v511
                  %v513 = vld [vmem:[%s461 + $0xc4] sm:%s454]
                  %514 = vst [vmem:[%s462 + $0x64] sm:%s454] %v513
                  %v515 = vld [vmem:[%s461 + $0xc8] sm:%s454]
                  %516 = vst [vmem:[%s462 + $0x68] sm:%s454] %v515
                  %v517 = vld [vmem:[%s461 + $0xcc] sm:%s454]
                  %518 = vst [vmem:[%s462 + $0x6c] sm:%s454] %v517
                  %v519 = vld [vmem:[%s461 + $0xd0] sm:%s454]
                  %520 = vst [vmem:[%s462 + $0x70] sm:%s454] %v519
                  %v521 = vld [vmem:[%s461 + $0xd4] sm:%s454]
                  %522 = vst [vmem:[%s462 + $0x74] sm:%s454] %v521
                  %v523 = vld [vmem:[%s461 + $0xd8] sm:%s454]
                  %524 = vst [vmem:[%s462 + $0x78] sm:%s454] %v523
                  %v525 = vld [vmem:[%s461 + $0xdc] sm:%s454]
                  %526 = vst [vmem:[%s462 + $0x7c] sm:%s454] %v525
                  %v527 = vld [vmem:[%s461 + $0x100] sm:%s454]
                  %528 = vst [vmem:[%s462 + $0x80] sm:%s454] %v527
                  %v529 = vld [vmem:[%s461 + $0x104] sm:%s454]
                  %530 = vst [vmem:[%s462 + $0x84] sm:%s454] %v529
                  %v531 = vld [vmem:[%s461 + $0x108] sm:%s454]
                  %532 = vst [vmem:[%s462 + $0x88] sm:%s454] %v531
                  %v533 = vld [vmem:[%s461 + $0x10c] sm:%s454]
                  %534 = vst [vmem:[%s462 + $0x8c] sm:%s454] %v533
                  %v535 = vld [vmem:[%s461 + $0x110] sm:%s454]
                  %536 = vst [vmem:[%s462 + $0x90] sm:%s454] %v535
                  %v537 = vld [vmem:[%s461 + $0x114] sm:%s454]
                  %538 = vst [vmem:[%s462 + $0x94] sm:%s454] %v537
                  %v539 = vld [vmem:[%s461 + $0x118] sm:%s454]
                  %540 = vst [vmem:[%s462 + $0x98] sm:%s454] %v539
                  %v541 = vld [vmem:[%s461 + $0x11c] sm:%s454]
                  %542 = vst [vmem:[%s462 + $0x9c] sm:%s454] %v541
                  %v543 = vld [vmem:[%s461 + $0x140] sm:%s454]
                  %544 = vst [vmem:[%s462 + $0xa0] sm:%s454] %v543
                  %v545 = vld [vmem:[%s461 + $0x144] sm:%s454]
                  %546 = vst [vmem:[%s462 + $0xa4] sm:%s454] %v545
                  %v547 = vld [vmem:[%s461 + $0x148] sm:%s454]
                  %548 = vst [vmem:[%s462 + $0xa8] sm:%s454] %v547
                  %v549 = vld [vmem:[%s461 + $0x14c] sm:%s454]
                  %550 = vst [vmem:[%s462 + $0xac] sm:%s454] %v549
                  %v551 = vld [vmem:[%s461 + $0x150] sm:%s454]
                  %552 = vst [vmem:[%s462 + $0xb0] sm:%s454] %v551
                  %v553 = vld [vmem:[%s461 + $0x154] sm:%s454]
                  %554 = vst [vmem:[%s462 + $0xb4] sm:%s454] %v553
                  %v555 = vld [vmem:[%s461 + $0x158] sm:%s454]
                  %556 = vst [vmem:[%s462 + $0xb8] sm:%s454] %v555
                  %v557 = vld [vmem:[%s461 + $0x15c] sm:%s454]
                  %558 = vst [vmem:[%s462 + $0xbc] sm:%s454] %v557
                $region83: #{_lambda_.3} parent=70 // loop_footer
                  %s460 = sadd.s32 1, %s456
                $region84: #{_lambda_.3} parent=70 // loop_footer_branch
                  %455 = sbr.rel target = $region80
                $region85: #{_lambda_.3} parent=70 // loop_exit
                  _
              $region71: #{_lambda_.3} parent=55 // pred_fallthru
                _
            $region56: #{_lambda_.3} parent=51 // pred_fallthru
              _
            // Predicated region
            $region57: #{_lambda_.3} parent=51 // pred_check
              _
            $region58: #{_lambda_.3} parent=51 // pred_check_branch
              %336 = sbr.rel (0) target = $region60
            $region59: #{_lambda_.3} parent=51 // pred_region
              %s338 = ssub.s32 16, 1
              loop: start=0, step=1, limit=1
              $region61: #{_lambda_.3} parent=59 // loop_pre_header
                _
              $region62: #{_lambda_.3} parent=59 // loop_header
                %s340 = sphi 0, %s344
                %p341 = scmp.ge.s32.totalorder %s340, 1
                %s345 = sphi %s330, %s330
                %s346 = sphi %s327, %s327
              $region63: #{_lambda_.3} parent=59 // loop_header_branch
                %343 = sbr.rel (%p341) target = $region67
              $region64: #{_lambda_.3} parent=59 // loop_body
                %v347 = vld [vmem:[%s345] sm:%s338]
                %348 = vst [vmem:[%s346] sm:%s338] %v347
                %v349 = vld [vmem:[%s345 + $0x4] sm:%s338]
                %350 = vst [vmem:[%s346 + $0x4] sm:%s338] %v349
                %v351 = vld [vmem:[%s345 + $0x8] sm:%s338]
                %352 = vst [vmem:[%s346 + $0x8] sm:%s338] %v351
                %v353 = vld [vmem:[%s345 + $0xc] sm:%s338]
                %354 = vst [vmem:[%s346 + $0xc] sm:%s338] %v353
                %v355 = vld [vmem:[%s345 + $0x10] sm:%s338]
                %356 = vst [vmem:[%s346 + $0x10] sm:%s338] %v355
                %v357 = vld [vmem:[%s345 + $0x14] sm:%s338]
                %358 = vst [vmem:[%s346 + $0x14] sm:%s338] %v357
                %v359 = vld [vmem:[%s345 + $0x18] sm:%s338]
                %360 = vst [vmem:[%s346 + $0x18] sm:%s338] %v359
                %v361 = vld [vmem:[%s345 + $0x1c] sm:%s338]
                %362 = vst [vmem:[%s346 + $0x1c] sm:%s338] %v361
                %v363 = vld [vmem:[%s345 + $0x40] sm:%s338]
                %364 = vst [vmem:[%s346 + $0x20] sm:%s338] %v363
                %v365 = vld [vmem:[%s345 + $0x44] sm:%s338]
                %366 = vst [vmem:[%s346 + $0x24] sm:%s338] %v365
                %v367 = vld [vmem:[%s345 + $0x48] sm:%s338]
                %368 = vst [vmem:[%s346 + $0x28] sm:%s338] %v367
                %v369 = vld [vmem:[%s345 + $0x4c] sm:%s338]
                %370 = vst [vmem:[%s346 + $0x2c] sm:%s338] %v369
                %v371 = vld [vmem:[%s345 + $0x50] sm:%s338]
                %372 = vst [vmem:[%s346 + $0x30] sm:%s338] %v371
                %v373 = vld [vmem:[%s345 + $0x54] sm:%s338]
                %374 = vst [vmem:[%s346 + $0x34] sm:%s338] %v373
                %v375 = vld [vmem:[%s345 + $0x58] sm:%s338]
                %376 = vst [vmem:[%s346 + $0x38] sm:%s338] %v375
                %v377 = vld [vmem:[%s345 + $0x5c] sm:%s338]
                %378 = vst [vmem:[%s346 + $0x3c] sm:%s338] %v377
                %v379 = vld [vmem:[%s345 + $0x80] sm:%s338]
                %380 = vst [vmem:[%s346 + $0x40] sm:%s338] %v379
                %v381 = vld [vmem:[%s345 + $0x84] sm:%s338]
                %382 = vst [vmem:[%s346 + $0x44] sm:%s338] %v381
                %v383 = vld [vmem:[%s345 + $0x88] sm:%s338]
                %384 = vst [vmem:[%s346 + $0x48] sm:%s338] %v383
                %v385 = vld [vmem:[%s345 + $0x8c] sm:%s338]
                %386 = vst [vmem:[%s346 + $0x4c] sm:%s338] %v385
                %v387 = vld [vmem:[%s345 + $0x90] sm:%s338]
                %388 = vst [vmem:[%s346 + $0x50] sm:%s338] %v387
                %v389 = vld [vmem:[%s345 + $0x94] sm:%s338]
                %390 = vst [vmem:[%s346 + $0x54] sm:%s338] %v389
                %v391 = vld [vmem:[%s345 + $0x98] sm:%s338]
                %392 = vst [vmem:[%s346 + $0x58] sm:%s338] %v391
                %v393 = vld [vmem:[%s345 + $0x9c] sm:%s338]
                %394 = vst [vmem:[%s346 + $0x5c] sm:%s338] %v393
                %v395 = vld [vmem:[%s345 + $0xc0] sm:%s338]
                %396 = vst [vmem:[%s346 + $0x60] sm:%s338] %v395
                %v397 = vld [vmem:[%s345 + $0xc4] sm:%s338]
                %398 = vst [vmem:[%s346 + $0x64] sm:%s338] %v397
                %v399 = vld [vmem:[%s345 + $0xc8] sm:%s338]
                %400 = vst [vmem:[%s346 + $0x68] sm:%s338] %v399
                %v401 = vld [vmem:[%s345 + $0xcc] sm:%s338]
                %402 = vst [vmem:[%s346 + $0x6c] sm:%s338] %v401
                %v403 = vld [vmem:[%s345 + $0xd0] sm:%s338]
                %404 = vst [vmem:[%s346 + $0x70] sm:%s338] %v403
                %v405 = vld [vmem:[%s345 + $0xd4] sm:%s338]
                %406 = vst [vmem:[%s346 + $0x74] sm:%s338] %v405
                %v407 = vld [vmem:[%s345 + $0xd8] sm:%s338]
                %408 = vst [vmem:[%s346 + $0x78] sm:%s338] %v407
                %v409 = vld [vmem:[%s345 + $0xdc] sm:%s338]
                %410 = vst [vmem:[%s346 + $0x7c] sm:%s338] %v409
                %v411 = vld [vmem:[%s345 + $0x100] sm:%s338]
                %412 = vst [vmem:[%s346 + $0x80] sm:%s338] %v411
                %v413 = vld [vmem:[%s345 + $0x104] sm:%s338]
                %414 = vst [vmem:[%s346 + $0x84] sm:%s338] %v413
                %v415 = vld [vmem:[%s345 + $0x108] sm:%s338]
                %416 = vst [vmem:[%s346 + $0x88] sm:%s338] %v415
                %v417 = vld [vmem:[%s345 + $0x10c] sm:%s338]
                %418 = vst [vmem:[%s346 + $0x8c] sm:%s338] %v417
                %v419 = vld [vmem:[%s345 + $0x110] sm:%s338]
                %420 = vst [vmem:[%s346 + $0x90] sm:%s338] %v419
                %v421 = vld [vmem:[%s345 + $0x114] sm:%s338]
                %422 = vst [vmem:[%s346 + $0x94] sm:%s338] %v421
                %v423 = vld [vmem:[%s345 + $0x118] sm:%s338]
                %424 = vst [vmem:[%s346 + $0x98] sm:%s338] %v423
                %v425 = vld [vmem:[%s345 + $0x11c] sm:%s338]
                %426 = vst [vmem:[%s346 + $0x9c] sm:%s338] %v425
                %v427 = vld [vmem:[%s345 + $0x140] sm:%s338]
                %428 = vst [vmem:[%s346 + $0xa0] sm:%s338] %v427
                %v429 = vld [vmem:[%s345 + $0x144] sm:%s338]
                %430 = vst [vmem:[%s346 + $0xa4] sm:%s338] %v429
                %v431 = vld [vmem:[%s345 + $0x148] sm:%s338]
                %432 = vst [vmem:[%s346 + $0xa8] sm:%s338] %v431
                %v433 = vld [vmem:[%s345 + $0x14c] sm:%s338]
                %434 = vst [vmem:[%s346 + $0xac] sm:%s338] %v433
                %v435 = vld [vmem:[%s345 + $0x150] sm:%s338]
                %436 = vst [vmem:[%s346 + $0xb0] sm:%s338] %v435
                %v437 = vld [vmem:[%s345 + $0x154] sm:%s338]
                %438 = vst [vmem:[%s346 + $0xb4] sm:%s338] %v437
                %v439 = vld [vmem:[%s345 + $0x158] sm:%s338]
                %440 = vst [vmem:[%s346 + $0xb8] sm:%s338] %v439
                %v441 = vld [vmem:[%s345 + $0x15c] sm:%s338]
                %442 = vst [vmem:[%s346 + $0xbc] sm:%s338] %v441
              $region65: #{_lambda_.3} parent=59 // loop_footer
                %s344 = sadd.s32 1, %s340
              $region66: #{_lambda_.3} parent=59 // loop_footer_branch
                %339 = sbr.rel target = $region62
              $region67: #{_lambda_.3} parent=59 // loop_exit
                _
            $region60: #{_lambda_.3} parent=51 // pred_fallthru
              _
          $region52: #{_lambda_.3} parent=47 // pred_fallthru
            _
          %559 = vnop
        $region48: #{_lambda_.3} parent=35 // pred_fallthru
          _
        // Predicated region
        $region86: #{_lambda_.3} parent=35 // pred_check
          %p560 = pneg %p211
        $region87: #{_lambda_.3} parent=35 // pred_check_branch
          %562 = sbr.rel (%p560) target = $region89
        $region88: #{_lambda_.3} parent=35 // pred_region
          %s563 = sand.u32 %s201, 1
          %s564 = sand.u32 %s201, 1
          %s565 = smul.addr %s564, 6
          %s566 = scalar_lea.vmem [#allocation3], %s565
          %s567 = smul.addr %s22, 2
          %s568 = scalar_lea.vmem %s7, %s567
          // Predicated region
          $region90: #{_lambda_.3} parent=88 // pred_check
            _
          $region91: #{_lambda_.3} parent=88 // pred_check_branch
            %570 = sbr.rel (0) target = $region93
          $region92: #{_lambda_.3} parent=88 // pred_region
            // Predicated region
            $region94: #{_lambda_.3} parent=92 // pred_check
              _
            $region95: #{_lambda_.3} parent=92 // pred_check_branch
              %572 = sbr.rel target = $region97
            $region96: #{_lambda_.3} parent=92 // pred_region
              // Predicated region
              $region109: #{_lambda_.3} parent=96 // pred_check
                _
              $region110: #{_lambda_.3} parent=96 // pred_check_branch
                %592 = sbr.rel (0) target = $region112
              $region111: #{_lambda_.3} parent=96 // pred_region
                %s594 = ssub.s32 4, 1
                loop: start=0, step=1, limit=1
                $region113: #{_lambda_.3} parent=111 // loop_pre_header
                  _
                $region114: #{_lambda_.3} parent=111 // loop_header
                  %s596 = sphi 0, %s600
                  %p597 = scmp.ge.s32.totalorder %s596, 1
                  %s601 = sphi %s568, %s568
                  %s602 = sphi %s566, %s566
                $region115: #{_lambda_.3} parent=111 // loop_header_branch
                  %599 = sbr.rel (%p597) target = $region119
                $region116: #{_lambda_.3} parent=111 // loop_body
                  %v603 = vld [vmem:[%s601] sm:%s594]
                  %604 = vst [vmem:[%s602] sm:%s594] %v603
                  %v605 = vld [vmem:[%s601 + $0x4] sm:%s594]
                  %606 = vst [vmem:[%s602 + $0x2] sm:%s594] %v605
                  %v607 = vld [vmem:[%s601 + $0x8] sm:%s594]
                  %608 = vst [vmem:[%s602 + $0x4] sm:%s594] %v607
                $region117: #{_lambda_.3} parent=111 // loop_footer
                  %s600 = sadd.s32 1, %s596
                $region118: #{_lambda_.3} parent=111 // loop_footer_branch
                  %595 = sbr.rel target = $region114
                $region119: #{_lambda_.3} parent=111 // loop_exit
                  _
              $region112: #{_lambda_.3} parent=96 // pred_fallthru
                _
            $region97: #{_lambda_.3} parent=92 // pred_fallthru
              _
            // Predicated region
            $region98: #{_lambda_.3} parent=92 // pred_check
              _
            $region99: #{_lambda_.3} parent=92 // pred_check_branch
              %574 = sbr.rel (0) target = $region101
            $region100: #{_lambda_.3} parent=92 // pred_region
              %s576 = ssub.s32 4, 1
              loop: start=0, step=1, limit=1
              $region102: #{_lambda_.3} parent=100 // loop_pre_header
                _
              $region103: #{_lambda_.3} parent=100 // loop_header
                %s578 = sphi 0, %s582
                %p579 = scmp.ge.s32.totalorder %s578, 1
                %s583 = sphi %s568, %s568
                %s584 = sphi %s566, %s566
              $region104: #{_lambda_.3} parent=100 // loop_header_branch
                %581 = sbr.rel (%p579) target = $region108
              $region105: #{_lambda_.3} parent=100 // loop_body
                %v585 = vld [vmem:[%s583] sm:%s576]
                %586 = vst [vmem:[%s584] sm:%s576] %v585
                %v587 = vld [vmem:[%s583 + $0x4] sm:%s576]
                %588 = vst [vmem:[%s584 + $0x2] sm:%s576] %v587
                %v589 = vld [vmem:[%s583 + $0x8] sm:%s576]
                %590 = vst [vmem:[%s584 + $0x4] sm:%s576] %v589
              $region106: #{_lambda_.3} parent=100 // loop_footer
                %s582 = sadd.s32 1, %s578
              $region107: #{_lambda_.3} parent=100 // loop_footer_branch
                %577 = sbr.rel target = $region103
              $region108: #{_lambda_.3} parent=100 // loop_exit
                _
            $region101: #{_lambda_.3} parent=92 // pred_fallthru
              _
          $region93: #{_lambda_.3} parent=88 // pred_fallthru
            _
          %609 = vnop
        $region89: #{_lambda_.3} parent=35 // pred_fallthru
          _
      $region36: #{_lambda_.3} parent=5 // pred_fallthru
        _
      %p610 = scmp.le.s32.totalorder 1, %s15
      %p611 = scmp.lt.s32.totalorder %s15, 3
      %p612 = pnand %p610, %p611
      %p613 = pneg %p612
      // Predicated region
      $region120: #{_lambda_.3} parent=5 // pred_check
        _
      $region121: #{_lambda_.3} parent=5 // pred_check_branch
        %615 = sbr.rel (%p612) target = $region123
      $region122: #{_lambda_.3} parent=5 // pred_region
        %s616 = ssub.s32 %s15, 1
        %s617 = sand.u32 %s157, 1
        %s618 = sand.u32 %s157, 1
        %s619 = smul.addr %s618, 192
        %s620 = scalar_lea.vmem [#allocation2], %s619
        // Predicated region
        $region124: #{_lambda_.3} parent=122 // pred_check
          %p621 = pneg %p170
        $region125: #{_lambda_.3} parent=122 // pred_check_branch
          %623 = sbr.rel (%p621) target = $region127
        $region126: #{_lambda_.3} parent=122 // pred_region
          _
        $region127: #{_lambda_.3} parent=122 // pred_fallthru
          _
        %s624 = sand.u32 %s204, 1
        %s625 = sand.u32 %s204, 1
        %s626 = smul.addr %s625, 6
        %s627 = scalar_lea.vmem [#allocation3], %s626
        // Predicated region
        $region128: #{_lambda_.3} parent=122 // pred_check
          %p628 = pneg %p217
        $region129: #{_lambda_.3} parent=122 // pred_check_branch
          %630 = sbr.rel (%p628) target = $region131
        $region130: #{_lambda_.3} parent=122 // pred_region
          _
        $region131: #{_lambda_.3} parent=122 // pred_fallthru
          _
        %s631 = smul.u32 32, %s25
        %p632 = scmp.lt.s32.totalorder %s24, 1
        %s633 = scalar_select %p632, %s24, 1
        %p634 = scmp.lt.s32.totalorder %s631, 31
        %s635 = scalar_select %p634, %s631, 31
        %s636 = smul.addr %s633, 32
        %s637 = sadd.s32 %s635, %s636
        %s638 = smul.addr %s637, 8
        %s639 = scalar_lea.vmem %s0, %s638
        %p640 = pneg %p55
        %p641 = pneg %p52
        %p642 = pneg %p76
        %p643 = pneg %p73
        %p644 = pneg %p97
        %p645 = pneg %p94
        %p646 = scmp.lt.s32.totalorder %s24, 1
        %s647 = scalar_select %p646, %s24, 1
        %s648 = smul.addr %s647, 4
        %s649 = smul.addr %s648, 4
        %s650 = scalar_lea.vmem %s3, %s649
        %p651 = pneg %p123
        %p652 = pneg %p120
        %p653 = pneg %p144
        %p654 = pneg %p141
        %s655 = sand.u32 %s157, 1
        %s656 = sand.u32 %s157, 1
        %s657 = smul.addr %s656, 192
        %s658 = scalar_lea.vmem [#allocation2], %s657
        %p659 = pneg %p170
        %p660 = pneg %p167
        %p661 = pneg %p191
        %p662 = pneg %p188
        %s663 = sand.u32 %s204, 1
        %s664 = sand.u32 %s204, 1
        %s665 = smul.addr %s664, 6
        %s666 = scalar_lea.vmem [#allocation3], %s665
        %p667 = pneg %p217
        %p668 = pneg %p214
        %p669 = pneg %p238
        %p670 = pneg %p235
        %p671 = pneg %p266
        %p672 = pneg %p263
        %s673 = smul.u32 2, %s25
        %p674 = scmp.lt.s32.totalorder %s24, 1
        %s675 = scalar_select %p674, %s24, 1
        %p676 = scmp.lt.s32.totalorder %s673, 1
        %s677 = scalar_select %p676, %s673, 1
        %s678 = smul.addr %s675, 2
        %s679 = sadd.s32 %s677, %s678
        %s680 = smul.addr %s679, 4
        %s681 = scalar_lea.vmem %s9, %s680
        %s682 = smul.u32 32, %s25
        %p683 = scmp.lt.s32.totalorder %s24, 1
        %s684 = scalar_select %p683, %s24, 1
        %p685 = scmp.lt.s32.totalorder %s682, 31
        %s686 = scalar_select %p685, %s682, 31
        %s687 = smul.addr %s684, 32
        %s688 = sadd.s32 %s686, %s687
        %s689 = smul.addr %s688, 8
        %s690 = scalar_lea.vmem %s0, %s689
        %s691 = smul.u32 32, %s25
        %p692 = scmp.lt.s32.totalorder %s24, 1
        %s693 = scalar_select %p692, %s24, 1
        %s694 = smul.addr %s693, 4
        %s695 = smul.addr %s694, 4
        %s696 = scalar_lea.vmem %s3, %s695
        %s697 = smul.u32 2, %s25
        %p698 = scmp.lt.s32.totalorder %s24, 1
        %s699 = scalar_select %p698, %s24, 1
        %p700 = scmp.lt.s32.totalorder %s697, 1
        %s701 = scalar_select %p700, %s697, 1
        %s702 = smul.addr %s699, 2
        %s703 = sadd.s32 %s701, %s702
        %s704 = smul.addr %s703, 4
        %s705 = scalar_lea.vmem %s9, %s704
        %s706 = smul.u32 2, %s25
        %v708 = vld [vmem:[%s690] sm:$0xff]
        %v709 = vld [vmem:[%s690 + $0x8] sm:$0xff]
        %v710 = vld [vmem:[%s690 + $0x10] sm:$0xff]
        %v711 = vld [vmem:[%s690 + $0x18] sm:$0xff]
        %v712 = vld [vmem:[%s690 + $0x20] sm:$0xff]
        %v713 = vld [vmem:[%s690 + $0x28] sm:$0xff]
        %v714 = vld [vmem:[%s690 + $0x30] sm:$0xff]
        %v715 = vld [vmem:[%s690 + $0x38] sm:$0xff]
        %v716 = vld [vmem:[%s690 + $0x40] sm:$0xff]
        %v717 = vld [vmem:[%s690 + $0x48] sm:$0xff]
        %v718 = vld [vmem:[%s690 + $0x50] sm:$0xff]
        %v719 = vld [vmem:[%s690 + $0x58] sm:$0xff]
        %v720 = vld [vmem:[%s690 + $0x60] sm:$0xff]
        %v721 = vld [vmem:[%s690 + $0x68] sm:$0xff]
        %v722 = vld [vmem:[%s690 + $0x70] sm:$0xff]
        %v723 = vld [vmem:[%s690 + $0x78] sm:$0xff]
        %v724 = vld [vmem:[%s690 + $0x80] sm:$0xff]
        %v725 = vld [vmem:[%s690 + $0x88] sm:$0xff]
        %v726 = vld [vmem:[%s690 + $0x90] sm:$0xff]
        %v727 = vld [vmem:[%s690 + $0x98] sm:$0xff]
        %v728 = vld [vmem:[%s690 + $0xa0] sm:$0xff]
        %v729 = vld [vmem:[%s690 + $0xa8] sm:$0xff]
        %v730 = vld [vmem:[%s690 + $0xb0] sm:$0xff]
        %v731 = vld [vmem:[%s690 + $0xb8] sm:$0xff]
        %v732 = vld [vmem:[%s690 + $0xc0] sm:$0xff]
        %v733 = vld [vmem:[%s690 + $0xc8] sm:$0xff]
        %v734 = vld [vmem:[%s690 + $0xd0] sm:$0xff]
        %v735 = vld [vmem:[%s690 + $0xd8] sm:$0xff]
        %v736 = vld [vmem:[%s690 + $0xe0] sm:$0xff]
        %v737 = vld [vmem:[%s690 + $0xe8] sm:$0xff]
        %v738 = vld [vmem:[%s690 + $0xf0] sm:$0xff]
        %v739 = vld [vmem:[%s690 + $0xf8] sm:$0xff]
        %v740 = vld [vmem:[%s1] sm:$0x3]
        %742 = vset.pattern.permute.xlu0 0
        %743 = vperm.xlu0 %742, %v708
        %v744 = vpop.permute.xlu0 %743
        %747 = vset.pattern.permute.xlu0 0
        %748 = vperm.xlu0 %747, %v709
        %v749 = vpop.permute.xlu0 %748
        %752 = vset.pattern.permute.xlu0 0
        %753 = vperm.xlu0 %752, %v710
        %v754 = vpop.permute.xlu0 %753
        %757 = vset.pattern.permute.xlu0 0
        %758 = vperm.xlu0 %757, %v711
        %v759 = vpop.permute.xlu0 %758
        %762 = vset.pattern.permute.xlu0 0
        %763 = vperm.xlu0 %762, %v712
        %v764 = vpop.permute.xlu0 %763
        %767 = vset.pattern.permute.xlu0 0
        %768 = vperm.xlu0 %767, %v713
        %v769 = vpop.permute.xlu0 %768
        %772 = vset.pattern.permute.xlu0 0
        %773 = vperm.xlu0 %772, %v714
        %v774 = vpop.permute.xlu0 %773
        %777 = vset.pattern.permute.xlu0 0
        %778 = vperm.xlu0 %777, %v715
        %v779 = vpop.permute.xlu0 %778
        %782 = vset.pattern.permute.xlu0 0
        %783 = vperm.xlu0 %782, %v716
        %v784 = vpop.permute.xlu0 %783
        %787 = vset.pattern.permute.xlu0 0
        %788 = vperm.xlu0 %787, %v717
        %v789 = vpop.permute.xlu0 %788
        %792 = vset.pattern.permute.xlu0 0
        %793 = vperm.xlu0 %792, %v718
        %v794 = vpop.permute.xlu0 %793
        %797 = vset.pattern.permute.xlu0 0
        %798 = vperm.xlu0 %797, %v719
        %v799 = vpop.permute.xlu0 %798
        %802 = vset.pattern.permute.xlu0 0
        %803 = vperm.xlu0 %802, %v720
        %v804 = vpop.permute.xlu0 %803
        %807 = vset.pattern.permute.xlu0 0
        %808 = vperm.xlu0 %807, %v721
        %v809 = vpop.permute.xlu0 %808
        %812 = vset.pattern.permute.xlu0 0
        %813 = vperm.xlu0 %812, %v722
        %v814 = vpop.permute.xlu0 %813
        %817 = vset.pattern.permute.xlu0 0
        %818 = vperm.xlu0 %817, %v723
        %v819 = vpop.permute.xlu0 %818
        %822 = vset.pattern.permute.xlu0 0
        %823 = vperm.xlu0 %822, %v724
        %v824 = vpop.permute.xlu0 %823
        %827 = vset.pattern.permute.xlu0 0
        %828 = vperm.xlu0 %827, %v725
        %v829 = vpop.permute.xlu0 %828
        %832 = vset.pattern.permute.xlu0 0
        %833 = vperm.xlu0 %832, %v726
        %v834 = vpop.permute.xlu0 %833
        %837 = vset.pattern.permute.xlu0 0
        %838 = vperm.xlu0 %837, %v727
        %v839 = vpop.permute.xlu0 %838
        %842 = vset.pattern.permute.xlu0 0
        %843 = vperm.xlu0 %842, %v728
        %v844 = vpop.permute.xlu0 %843
        %847 = vset.pattern.permute.xlu0 0
        %848 = vperm.xlu0 %847, %v729
        %v849 = vpop.permute.xlu0 %848
        %852 = vset.pattern.permute.xlu0 0
        %853 = vperm.xlu0 %852, %v730
        %v854 = vpop.permute.xlu0 %853
        %857 = vset.pattern.permute.xlu0 0
        %858 = vperm.xlu0 %857, %v731
        %v859 = vpop.permute.xlu0 %858
        %862 = vset.pattern.permute.xlu0 0
        %863 = vperm.xlu0 %862, %v732
        %v864 = vpop.permute.xlu0 %863
        %867 = vset.pattern.permute.xlu0 0
        %868 = vperm.xlu0 %867, %v733
        %v869 = vpop.permute.xlu0 %868
        %872 = vset.pattern.permute.xlu0 0
        %873 = vperm.xlu0 %872, %v734
        %v874 = vpop.permute.xlu0 %873
        %877 = vset.pattern.permute.xlu0 0
        %878 = vperm.xlu0 %877, %v735
        %v879 = vpop.permute.xlu0 %878
        %882 = vset.pattern.permute.xlu0 0
        %883 = vperm.xlu0 %882, %v736
        %v884 = vpop.permute.xlu0 %883
        %887 = vset.pattern.permute.xlu0 0
        %888 = vperm.xlu0 %887, %v737
        %v889 = vpop.permute.xlu0 %888
        %892 = vset.pattern.permute.xlu0 0
        %893 = vperm.xlu0 %892, %v738
        %v894 = vpop.permute.xlu0 %893
        %897 = vset.pattern.permute.xlu0 0
        %898 = vperm.xlu0 %897, %v739
        %v899 = vpop.permute.xlu0 %898
        %v901 = vlaneseq
        %v902 = vshrl.u32 %v901, 7
        %v903 = vsub.s32 0, %v902
        %v904 = vrot.slane %v740, %v903
        %v905 = vmul.f32 %v744, %v904
        %v906 = vmul.f32 %v749, %v904
        %v907 = vmul.f32 %v754, %v904
        %v908 = vmul.f32 %v759, %v904
        %v909 = vmul.f32 %v764, %v904
        %v910 = vmul.f32 %v769, %v904
        %v911 = vmul.f32 %v774, %v904
        %v912 = vmul.f32 %v779, %v904
        %v913 = vmul.f32 %v784, %v904
        %v914 = vmul.f32 %v789, %v904
        %v915 = vmul.f32 %v794, %v904
        %v916 = vmul.f32 %v799, %v904
        %v917 = vmul.f32 %v804, %v904
        %v918 = vmul.f32 %v809, %v904
        %v919 = vmul.f32 %v814, %v904
        %v920 = vmul.f32 %v819, %v904
        %v921 = vmul.f32 %v824, %v904
        %v922 = vmul.f32 %v829, %v904
        %v923 = vmul.f32 %v834, %v904
        %v924 = vmul.f32 %v839, %v904
        %v925 = vmul.f32 %v844, %v904
        %v926 = vmul.f32 %v849, %v904
        %v927 = vmul.f32 %v854, %v904
        %v928 = vmul.f32 %v859, %v904
        %v929 = vmul.f32 %v864, %v904
        %v930 = vmul.f32 %v869, %v904
        %v931 = vmul.f32 %v874, %v904
        %v932 = vmul.f32 %v879, %v904
        %v933 = vmul.f32 %v884, %v904
        %v934 = vmul.f32 %v889, %v904
        %v935 = vmul.f32 %v894, %v904
        %v936 = vmul.f32 %v899, %v904
        %937 = vset.pattern.permute.xlu0 1
        %938 = vperm.xlu0 %937, %v708
        %v939 = vpop.permute.xlu0 %938
        %941 = vset.pattern.permute.xlu0 1
        %942 = vperm.xlu0 %941, %v709
        %v943 = vpop.permute.xlu0 %942
        %945 = vset.pattern.permute.xlu0 1
        %946 = vperm.xlu0 %945, %v710
        %v947 = vpop.permute.xlu0 %946
        %949 = vset.pattern.permute.xlu0 1
        %950 = vperm.xlu0 %949, %v711
        %v951 = vpop.permute.xlu0 %950
        %953 = vset.pattern.permute.xlu0 1
        %954 = vperm.xlu0 %953, %v712
        %v955 = vpop.permute.xlu0 %954
        %957 = vset.pattern.permute.xlu0 1
        %958 = vperm.xlu0 %957, %v713
        %v959 = vpop.permute.xlu0 %958
        %961 = vset.pattern.permute.xlu0 1
        %962 = vperm.xlu0 %961, %v714
        %v963 = vpop.permute.xlu0 %962
        %965 = vset.pattern.permute.xlu0 1
        %966 = vperm.xlu0 %965, %v715
        %v967 = vpop.permute.xlu0 %966
        %969 = vset.pattern.permute.xlu0 1
        %970 = vperm.xlu0 %969, %v716
        %v971 = vpop.permute.xlu0 %970
        %973 = vset.pattern.permute.xlu0 1
        %974 = vperm.xlu0 %973, %v717
        %v975 = vpop.permute.xlu0 %974
        %977 = vset.pattern.permute.xlu0 1
        %978 = vperm.xlu0 %977, %v718
        %v979 = vpop.permute.xlu0 %978
        %981 = vset.pattern.permute.xlu0 1
        %982 = vperm.xlu0 %981, %v719
        %v983 = vpop.permute.xlu0 %982
        %985 = vset.pattern.permute.xlu0 1
        %986 = vperm.xlu0 %985, %v720
        %v987 = vpop.permute.xlu0 %986
        %989 = vset.pattern.permute.xlu0 1
        %990 = vperm.xlu0 %989, %v721
        %v991 = vpop.permute.xlu0 %990
        %993 = vset.pattern.permute.xlu0 1
        %994 = vperm.xlu0 %993, %v722
        %v995 = vpop.permute.xlu0 %994
        %997 = vset.pattern.permute.xlu0 1
        %998 = vperm.xlu0 %997, %v723
        %v999 = vpop.permute.xlu0 %998
        %1001 = vset.pattern.permute.xlu0 1
        %1002 = vperm.xlu0 %1001, %v724
        %v1003 = vpop.permute.xlu0 %1002
        %1005 = vset.pattern.permute.xlu0 1
        %1006 = vperm.xlu0 %1005, %v725
        %v1007 = vpop.permute.xlu0 %1006
        %1009 = vset.pattern.permute.xlu0 1
        %1010 = vperm.xlu0 %1009, %v726
        %v1011 = vpop.permute.xlu0 %1010
        %1013 = vset.pattern.permute.xlu0 1
        %1014 = vperm.xlu0 %1013, %v727
        %v1015 = vpop.permute.xlu0 %1014
        %1017 = vset.pattern.permute.xlu0 1
        %1018 = vperm.xlu0 %1017, %v728
        %v1019 = vpop.permute.xlu0 %1018
        %1021 = vset.pattern.permute.xlu0 1
        %1022 = vperm.xlu0 %1021, %v729
        %v1023 = vpop.permute.xlu0 %1022
        %1025 = vset.pattern.permute.xlu0 1
        %1026 = vperm.xlu0 %1025, %v730
        %v1027 = vpop.permute.xlu0 %1026
        %1029 = vset.pattern.permute.xlu0 1
        %1030 = vperm.xlu0 %1029, %v731
        %v1031 = vpop.permute.xlu0 %1030
        %1033 = vset.pattern.permute.xlu0 1
        %1034 = vperm.xlu0 %1033, %v732
        %v1035 = vpop.permute.xlu0 %1034
        %1037 = vset.pattern.permute.xlu0 1
        %1038 = vperm.xlu0 %1037, %v733
        %v1039 = vpop.permute.xlu0 %1038
        %1041 = vset.pattern.permute.xlu0 1
        %1042 = vperm.xlu0 %1041, %v734
        %v1043 = vpop.permute.xlu0 %1042
        %1045 = vset.pattern.permute.xlu0 1
        %1046 = vperm.xlu0 %1045, %v735
        %v1047 = vpop.permute.xlu0 %1046
        %1049 = vset.pattern.permute.xlu0 1
        %1050 = vperm.xlu0 %1049, %v736
        %v1051 = vpop.permute.xlu0 %1050
        %1053 = vset.pattern.permute.xlu0 1
        %1054 = vperm.xlu0 %1053, %v737
        %v1055 = vpop.permute.xlu0 %1054
        %1057 = vset.pattern.permute.xlu0 1
        %1058 = vperm.xlu0 %1057, %v738
        %v1059 = vpop.permute.xlu0 %1058
        %1061 = vset.pattern.permute.xlu0 1
        %1062 = vperm.xlu0 %1061, %v739
        %v1063 = vpop.permute.xlu0 %1062
        %v1065 = vlaneseq
        %v1066 = vshrl.u32 %v1065, 7
        %v1067 = vsub.s32 1, %v1066
        %v1068 = vrot.slane %v740, %v1067
        %v1069 = vmul.f32 %v939, %v1068
        %v1070 = vmul.f32 %v943, %v1068
        %v1071 = vmul.f32 %v947, %v1068
        %v1072 = vmul.f32 %v951, %v1068
        %v1073 = vmul.f32 %v955, %v1068
        %v1074 = vmul.f32 %v959, %v1068
        %v1075 = vmul.f32 %v963, %v1068
        %v1076 = vmul.f32 %v967, %v1068
        %v1077 = vmul.f32 %v971, %v1068
        %v1078 = vmul.f32 %v975, %v1068
        %v1079 = vmul.f32 %v979, %v1068
        %v1080 = vmul.f32 %v983, %v1068
        %v1081 = vmul.f32 %v987, %v1068
        %v1082 = vmul.f32 %v991, %v1068
        %v1083 = vmul.f32 %v995, %v1068
        %v1084 = vmul.f32 %v999, %v1068
        %v1085 = vmul.f32 %v1003, %v1068
        %v1086 = vmul.f32 %v1007, %v1068
        %v1087 = vmul.f32 %v1011, %v1068
        %v1088 = vmul.f32 %v1015, %v1068
        %v1089 = vmul.f32 %v1019, %v1068
        %v1090 = vmul.f32 %v1023, %v1068
        %v1091 = vmul.f32 %v1027, %v1068
        %v1092 = vmul.f32 %v1031, %v1068
        %v1093 = vmul.f32 %v1035, %v1068
        %v1094 = vmul.f32 %v1039, %v1068
        %v1095 = vmul.f32 %v1043, %v1068
        %v1096 = vmul.f32 %v1047, %v1068
        %v1097 = vmul.f32 %v1051, %v1068
        %v1098 = vmul.f32 %v1055, %v1068
        %v1099 = vmul.f32 %v1059, %v1068
        %v1100 = vmul.f32 %v1063, %v1068
        %v1101 = vadd.f32 %v905, %v1069
        %v1102 = vadd.f32 %v906, %v1070
        %v1103 = vadd.f32 %v907, %v1071
        %v1104 = vadd.f32 %v908, %v1072
        %v1105 = vadd.f32 %v909, %v1073
        %v1106 = vadd.f32 %v910, %v1074
        %v1107 = vadd.f32 %v911, %v1075
        %v1108 = vadd.f32 %v912, %v1076
        %v1109 = vadd.f32 %v913, %v1077
        %v1110 = vadd.f32 %v914, %v1078
        %v1111 = vadd.f32 %v915, %v1079
        %v1112 = vadd.f32 %v916, %v1080
        %v1113 = vadd.f32 %v917, %v1081
        %v1114 = vadd.f32 %v918, %v1082
        %v1115 = vadd.f32 %v919, %v1083
        %v1116 = vadd.f32 %v920, %v1084
        %v1117 = vadd.f32 %v921, %v1085
        %v1118 = vadd.f32 %v922, %v1086
        %v1119 = vadd.f32 %v923, %v1087
        %v1120 = vadd.f32 %v924, %v1088
        %v1121 = vadd.f32 %v925, %v1089
        %v1122 = vadd.f32 %v926, %v1090
        %v1123 = vadd.f32 %v927, %v1091
        %v1124 = vadd.f32 %v928, %v1092
        %v1125 = vadd.f32 %v929, %v1093
        %v1126 = vadd.f32 %v930, %v1094
        %v1127 = vadd.f32 %v931, %v1095
        %v1128 = vadd.f32 %v932, %v1096
        %v1129 = vadd.f32 %v933, %v1097
        %v1130 = vadd.f32 %v934, %v1098
        %v1131 = vadd.f32 %v935, %v1099
        %v1132 = vadd.f32 %v936, %v1100
        %v1133 = vld [vmem:[%s2] sm:$0x1]
        %v1135 = vlaneseq
        %v1136 = vshrl.u32 %v1135, 7
        %v1137 = vsub.s32 0, %v1136
        %v1138 = vrot.slane %v1133, %v1137
        %v1140 = vadd.f32 %v1101, %v1138
        %v1141 = vadd.f32 %v1102, %v1138
        %v1142 = vadd.f32 %v1103, %v1138
        %v1143 = vadd.f32 %v1104, %v1138
        %v1144 = vadd.f32 %v1105, %v1138
        %v1145 = vadd.f32 %v1106, %v1138
        %v1146 = vadd.f32 %v1107, %v1138
        %v1147 = vadd.f32 %v1108, %v1138
        %v1148 = vadd.f32 %v1109, %v1138
        %v1149 = vadd.f32 %v1110, %v1138
        %v1150 = vadd.f32 %v1111, %v1138
        %v1151 = vadd.f32 %v1112, %v1138
        %v1152 = vadd.f32 %v1113, %v1138
        %v1153 = vadd.f32 %v1114, %v1138
        %v1154 = vadd.f32 %v1115, %v1138
        %v1155 = vadd.f32 %v1116, %v1138
        %v1156 = vadd.f32 %v1117, %v1138
        %v1157 = vadd.f32 %v1118, %v1138
        %v1158 = vadd.f32 %v1119, %v1138
        %v1159 = vadd.f32 %v1120, %v1138
        %v1160 = vadd.f32 %v1121, %v1138
        %v1161 = vadd.f32 %v1122, %v1138
        %v1162 = vadd.f32 %v1123, %v1138
        %v1163 = vadd.f32 %v1124, %v1138
        %v1164 = vadd.f32 %v1125, %v1138
        %v1165 = vadd.f32 %v1126, %v1138
        %v1166 = vadd.f32 %v1127, %v1138
        %v1167 = vadd.f32 %v1128, %v1138
        %v1168 = vadd.f32 %v1129, %v1138
        %v1169 = vadd.f32 %v1130, %v1138
        %v1170 = vadd.f32 %v1131, %v1138
        %v1171 = vadd.f32 %v1132, %v1138
        %v1172 = vand.u32 2147483647, %v1140
        %vm1173 = vcmp.le.f32.partialorder %v1172, 0.7853982
        %vm1174 = vcmp.lt.s32.totalorder %v1140, 0
        %v1175 = vand.u32 %v1140, 2139095040
        %v1176 = vshrl.u32 %v1175, 23
        %v1177 = vsub.s32 %v1176, 127
        %v1178 = vand.u32 2147483647, %v1140
        %v1179 = vand.u32 %v1178, 8388607
        %v1180 = vor.u32 %v1179, 8388608
        %v1181 = vsub.s32 0, %v1180
        %v1182 = vadd.s32 %v1177, 1
        %vm1183 = vcmp.gt.s32.totalorder %v1182, 0
        %v1184 = vsel %vm1183, %v1182, 0
        %v1185 = vshrl.u32 %v1184, 5
        %v1186 = vand.u32 %v1184, 31
        %v1187 = vsub.s32 32, %v1186
        %v1188 = vshrl.u32 683565275, %v1187
        %v1189 = vshll.u32 683565275, %v1186
        %v1190 = vshrl.u32 2475754826, %v1187
        %v1191 = vor.u32 %v1189, %v1190
        %v1192 = vshll.u32 2475754826, %v1186
        %v1193 = vshrl.u32 2131351028, %v1187
        %v1194 = vor.u32 %v1192, %v1193
        %v1195 = vshll.u32 2131351028, %v1186
        %v1196 = vshrl.u32 2102212464, %v1187
        %v1197 = vor.u32 %v1195, %v1196
        %v1198 = vshll.u32 2102212464, %v1186
        %v1199 = vshrl.u32 920167782, %v1187
        %v1200 = vor.u32 %v1198, %v1199
        %v1201 = vshll.u32 920167782, %v1186
        %v1202 = vshrl.u32 1326507024, %v1187
        %v1203 = vor.u32 %v1201, %v1202
        %vm1204 = vcmp.lt.s32.totalorder %v1185, 1
        %vm1205 = vcmp.lt.s32.totalorder %v1185, 2
        %vm1206 = vcmp.lt.s32.totalorder %v1185, 3
        %vm1207 = vcmp.lt.s32.totalorder %v1185, 4
        %v1208 = vsel %vm1204, %v1188, %v1191
        %v1209 = vsel %vm1207, %v1197, 2102212464
        %v1210 = vsel %vm1206, %v1194, %v1209
        %v1211 = vsel %vm1205, %v1208, %v1210
        %v1212 = vsel %vm1204, %v1191, %v1194
        %v1213 = vsel %vm1207, %v1200, 920167782
        %v1214 = vsel %vm1206, %v1197, %v1213
        %v1215 = vsel %vm1205, %v1212, %v1214
        %v1216 = vsel %vm1204, %v1194, %v1197
        %v1217 = vsel %vm1207, %v1203, 1326507024
        %v1218 = vsel %vm1206, %v1200, %v1217
        %v1219 = vsel %vm1205, %v1216, %v1218
        %v1220 = vshll.u32 %v1180, 8
        %v1221 = vmul.u32.u64.compose %v1220, %v1219
        %v1222 = vextract.low.u32 %v1221
        %v1223 = vextract.high.u32 %v1221
        %v1224 = vmul.u32.u64.compose %v1220, %v1215
        %v1225 = vextract.low.u32 %v1224
        %v1226 = vextract.high.u32 %v1224
        %v1227 = vmul.u32 %v1220, %v1211
        %v1228 = vadd.s32 %v1223, %v1225
        %vm1229 = vc.u32 %v1223, %v1225
        %v1230 = vadd.s32 %v1226, 1
        %v1231 = vsel %vm1229, %v1230, %v1226
        %v1232 = vadd.s32 %v1227, %v1231
        %v1233 = vadd.s32 %v1232, 536870912
        %v1234 = vshrl.u32 %v1233, 30
        %v1235 = vshll.u32 %v1234, 30
        %v1236 = vsub.s32 %v1232, %v1235
        %vm1237 = vcmp.lt.s32.totalorder %v1236, 0
        %v1238 = vsub.s32 0, %v1236
        %v1239 = vsel %vm1237, %v1238, %v1236
        %v1240 = vclz %v1239
        %v1241 = vsub.s32 %v1240, 2
        %vm1242 = vcmp.gt.s32.totalorder 0, %v1241
        %v1243 = vsel %vm1242, 0, %v1241
        %v1244 = vsub.s32 32, %v1243
        %v1245 = vshll.u32 %v1236, %v1243
        %v1246 = vshrl.u32 %v1228, %v1244
        %v1247 = vor.u32 %v1245, %v1246
        %v1248 = vsub.s32 4294967266, %v1243
        %v1249 = vadd.s32 %v1248, 127
        %v1250 = vshll.u32 %v1249, 23
        %v1251 = vor.u32 4788187, %v1250
        %v1252 = vand.u32 2147483647, %v1251
        %v1254 = vcvt.s32.f32 %v1247
        %v1255 = vmul.f32 %v1254, %v1252
        %v1256 = vxor.u32 %v1255, 2147483648
        %v1257 = vsel %vm1174, %v1256, %v1255
        %v1258 = vsub.s32 4, %v1234
        %v1259 = vsel %vm1174, %v1258, %v1234
        %v1260 = vsel %vm1173, %v1140, %v1257
        %v1261 = vsel %vm1173, 0, %v1259
        %v1262 = vcosq.f32.pop %v1260
        %v1263 = vsinq.f32.pop %v1260
        %vm1264 = vweird.f32 %v1140
        %v1265 = vadd.s32 %v1261, 3
        %v1266 = vand.u32 %v1265, 3
        %vm1267 = vcmp.lt.s32.totalorder %v1266, 2
        %vm1268 = vcmp.eq.s32.totalorder %v1266, 0
        %v1269 = vxor.u32 %v1263, 2147483648
        %v1270 = vsel %vm1268, %v1262, %v1269
        %vm1271 = vcmp.eq.s32.totalorder %v1266, 2
        %v1272 = vxor.u32 %v1262, 2147483648
        %v1273 = vsel %vm1271, %v1272, %v1263
        %v1274 = vsel %vm1267, %v1270, %v1273
        %v1275 = vsel %vm1264, nan, %v1274
        %v1276 = vand.u32 2147483647, %v1141
        %vm1277 = vcmp.le.f32.partialorder %v1276, 0.7853982
        %vm1278 = vcmp.lt.s32.totalorder %v1141, 0
        %v1279 = vand.u32 %v1141, 2139095040
        %v1280 = vshrl.u32 %v1279, 23
        %v1281 = vsub.s32 %v1280, 127
        %v1282 = vand.u32 2147483647, %v1141
        %v1283 = vand.u32 %v1282, 8388607
        %v1284 = vor.u32 %v1283, 8388608
        %v1285 = vsub.s32 0, %v1284
        %v1286 = vadd.s32 %v1281, 1
        %vm1287 = vcmp.gt.s32.totalorder %v1286, 0
        %v1288 = vsel %vm1287, %v1286, 0
        %v1289 = vshrl.u32 %v1288, 5
        %v1290 = vand.u32 %v1288, 31
        %v1291 = vsub.s32 32, %v1290
        %v1292 = vshrl.u32 683565275, %v1291
        %v1293 = vshll.u32 683565275, %v1290
        %v1294 = vshrl.u32 2475754826, %v1291
        %v1295 = vor.u32 %v1293, %v1294
        %v1296 = vshll.u32 2475754826, %v1290
        %v1297 = vshrl.u32 2131351028, %v1291
        %v1298 = vor.u32 %v1296, %v1297
        %v1299 = vshll.u32 2131351028, %v1290
        %v1300 = vshrl.u32 2102212464, %v1291
        %v1301 = vor.u32 %v1299, %v1300
        %v1302 = vshll.u32 2102212464, %v1290
        %v1303 = vshrl.u32 920167782, %v1291
        %v1304 = vor.u32 %v1302, %v1303
        %v1305 = vshll.u32 920167782, %v1290
        %v1306 = vshrl.u32 1326507024, %v1291
        %v1307 = vor.u32 %v1305, %v1306
        %vm1308 = vcmp.lt.s32.totalorder %v1289, 1
        %vm1309 = vcmp.lt.s32.totalorder %v1289, 2
        %vm1310 = vcmp.lt.s32.totalorder %v1289, 3
        %vm1311 = vcmp.lt.s32.totalorder %v1289, 4
        %v1312 = vsel %vm1308, %v1292, %v1295
        %v1313 = vsel %vm1311, %v1301, 2102212464
        %v1314 = vsel %vm1310, %v1298, %v1313
        %v1315 = vsel %vm1309, %v1312, %v1314
        %v1316 = vsel %vm1308, %v1295, %v1298
        %v1317 = vsel %vm1311, %v1304, 920167782
        %v1318 = vsel %vm1310, %v1301, %v1317
        %v1319 = vsel %vm1309, %v1316, %v1318
        %v1320 = vsel %vm1308, %v1298, %v1301
        %v1321 = vsel %vm1311, %v1307, 1326507024
        %v1322 = vsel %vm1310, %v1304, %v1321
        %v1323 = vsel %vm1309, %v1320, %v1322
        %v1324 = vshll.u32 %v1284, 8
        %v1325 = vmul.u32.u64.compose %v1324, %v1323
        %v1326 = vextract.low.u32 %v1325
        %v1327 = vextract.high.u32 %v1325
        %v1328 = vmul.u32.u64.compose %v1324, %v1319
        %v1329 = vextract.low.u32 %v1328
        %v1330 = vextract.high.u32 %v1328
        %v1331 = vmul.u32 %v1324, %v1315
        %v1332 = vadd.s32 %v1327, %v1329
        %vm1333 = vc.u32 %v1327, %v1329
        %v1334 = vadd.s32 %v1330, 1
        %v1335 = vsel %vm1333, %v1334, %v1330
        %v1336 = vadd.s32 %v1331, %v1335
        %v1337 = vadd.s32 %v1336, 536870912
        %v1338 = vshrl.u32 %v1337, 30
        %v1339 = vshll.u32 %v1338, 30
        %v1340 = vsub.s32 %v1336, %v1339
        %vm1341 = vcmp.lt.s32.totalorder %v1340, 0
        %v1342 = vsub.s32 0, %v1340
        %v1343 = vsel %vm1341, %v1342, %v1340
        %v1344 = vclz %v1343
        %v1345 = vsub.s32 %v1344, 2
        %vm1346 = vcmp.gt.s32.totalorder 0, %v1345
        %v1347 = vsel %vm1346, 0, %v1345
        %v1348 = vsub.s32 32, %v1347
        %v1349 = vshll.u32 %v1340, %v1347
        %v1350 = vshrl.u32 %v1332, %v1348
        %v1351 = vor.u32 %v1349, %v1350
        %v1352 = vsub.s32 4294967266, %v1347
        %v1353 = vadd.s32 %v1352, 127
        %v1354 = vshll.u32 %v1353, 23
        %v1355 = vor.u32 4788187, %v1354
        %v1356 = vand.u32 2147483647, %v1355
        %v1358 = vcvt.s32.f32 %v1351
        %v1359 = vmul.f32 %v1358, %v1356
        %v1360 = vxor.u32 %v1359, 2147483648
        %v1361 = vsel %vm1278, %v1360, %v1359
        %v1362 = vsub.s32 4, %v1338
        %v1363 = vsel %vm1278, %v1362, %v1338
        %v1364 = vsel %vm1277, %v1141, %v1361
        %v1365 = vsel %vm1277, 0, %v1363
        %v1366 = vcosq.f32.pop %v1364
        %v1367 = vsinq.f32.pop %v1364
        %vm1368 = vweird.f32 %v1141
        %v1369 = vadd.s32 %v1365, 3
        %v1370 = vand.u32 %v1369, 3
        %vm1371 = vcmp.lt.s32.totalorder %v1370, 2
        %vm1372 = vcmp.eq.s32.totalorder %v1370, 0
        %v1373 = vxor.u32 %v1367, 2147483648
        %v1374 = vsel %vm1372, %v1366, %v1373
        %vm1375 = vcmp.eq.s32.totalorder %v1370, 2
        %v1376 = vxor.u32 %v1366, 2147483648
        %v1377 = vsel %vm1375, %v1376, %v1367
        %v1378 = vsel %vm1371, %v1374, %v1377
        %v1379 = vsel %vm1368, nan, %v1378
        %v1380 = vand.u32 2147483647, %v1142
        %vm1381 = vcmp.le.f32.partialorder %v1380, 0.7853982
        %vm1382 = vcmp.lt.s32.totalorder %v1142, 0
        %v1383 = vand.u32 %v1142, 2139095040
        %v1384 = vshrl.u32 %v1383, 23
        %v1385 = vsub.s32 %v1384, 127
        %v1386 = vand.u32 2147483647, %v1142
        %v1387 = vand.u32 %v1386, 8388607
        %v1388 = vor.u32 %v1387, 8388608
        %v1389 = vsub.s32 0, %v1388
        %v1390 = vadd.s32 %v1385, 1
        %vm1391 = vcmp.gt.s32.totalorder %v1390, 0
        %v1392 = vsel %vm1391, %v1390, 0
        %v1393 = vshrl.u32 %v1392, 5
        %v1394 = vand.u32 %v1392, 31
        %v1395 = vsub.s32 32, %v1394
        %v1396 = vshrl.u32 683565275, %v1395
        %v1397 = vshll.u32 683565275, %v1394
        %v1398 = vshrl.u32 2475754826, %v1395
        %v1399 = vor.u32 %v1397, %v1398
        %v1400 = vshll.u32 2475754826, %v1394
        %v1401 = vshrl.u32 2131351028, %v1395
        %v1402 = vor.u32 %v1400, %v1401
        %v1403 = vshll.u32 2131351028, %v1394
        %v1404 = vshrl.u32 2102212464, %v1395
        %v1405 = vor.u32 %v1403, %v1404
        %v1406 = vshll.u32 2102212464, %v1394
        %v1407 = vshrl.u32 920167782, %v1395
        %v1408 = vor.u32 %v1406, %v1407
        %v1409 = vshll.u32 920167782, %v1394
        %v1410 = vshrl.u32 1326507024, %v1395
        %v1411 = vor.u32 %v1409, %v1410
        %vm1412 = vcmp.lt.s32.totalorder %v1393, 1
        %vm1413 = vcmp.lt.s32.totalorder %v1393, 2
        %vm1414 = vcmp.lt.s32.totalorder %v1393, 3
        %vm1415 = vcmp.lt.s32.totalorder %v1393, 4
        %v1416 = vsel %vm1412, %v1396, %v1399
        %v1417 = vsel %vm1415, %v1405, 2102212464
        %v1418 = vsel %vm1414, %v1402, %v1417
        %v1419 = vsel %vm1413, %v1416, %v1418
        %v1420 = vsel %vm1412, %v1399, %v1402
        %v1421 = vsel %vm1415, %v1408, 920167782
        %v1422 = vsel %vm1414, %v1405, %v1421
        %v1423 = vsel %vm1413, %v1420, %v1422
        %v1424 = vsel %vm1412, %v1402, %v1405
        %v1425 = vsel %vm1415, %v1411, 1326507024
        %v1426 = vsel %vm1414, %v1408, %v1425
        %v1427 = vsel %vm1413, %v1424, %v1426
        %v1428 = vshll.u32 %v1388, 8
        %v1429 = vmul.u32.u64.compose %v1428, %v1427
        %v1430 = vextract.low.u32 %v1429
        %v1431 = vextract.high.u32 %v1429
        %v1432 = vmul.u32.u64.compose %v1428, %v1423
        %v1433 = vextract.low.u32 %v1432
        %v1434 = vextract.high.u32 %v1432
        %v1435 = vmul.u32 %v1428, %v1419
        %v1436 = vadd.s32 %v1431, %v1433
        %vm1437 = vc.u32 %v1431, %v1433
        %v1438 = vadd.s32 %v1434, 1
        %v1439 = vsel %vm1437, %v1438, %v1434
        %v1440 = vadd.s32 %v1435, %v1439
        %v1441 = vadd.s32 %v1440, 536870912
        %v1442 = vshrl.u32 %v1441, 30
        %v1443 = vshll.u32 %v1442, 30
        %v1444 = vsub.s32 %v1440, %v1443
        %vm1445 = vcmp.lt.s32.totalorder %v1444, 0
        %v1446 = vsub.s32 0, %v1444
        %v1447 = vsel %vm1445, %v1446, %v1444
        %v1448 = vclz %v1447
        %v1449 = vsub.s32 %v1448, 2
        %vm1450 = vcmp.gt.s32.totalorder 0, %v1449
        %v1451 = vsel %vm1450, 0, %v1449
        %v1452 = vsub.s32 32, %v1451
        %v1453 = vshll.u32 %v1444, %v1451
        %v1454 = vshrl.u32 %v1436, %v1452
        %v1455 = vor.u32 %v1453, %v1454
        %v1456 = vsub.s32 4294967266, %v1451
        %v1457 = vadd.s32 %v1456, 127
        %v1458 = vshll.u32 %v1457, 23
        %v1459 = vor.u32 4788187, %v1458
        %v1460 = vand.u32 2147483647, %v1459
        %v1462 = vcvt.s32.f32 %v1455
        %v1463 = vmul.f32 %v1462, %v1460
        %v1464 = vxor.u32 %v1463, 2147483648
        %v1465 = vsel %vm1382, %v1464, %v1463
        %v1466 = vsub.s32 4, %v1442
        %v1467 = vsel %vm1382, %v1466, %v1442
        %v1468 = vsel %vm1381, %v1142, %v1465
        %v1469 = vsel %vm1381, 0, %v1467
        %v1470 = vcosq.f32.pop %v1468
        %v1471 = vsinq.f32.pop %v1468
        %vm1472 = vweird.f32 %v1142
        %v1473 = vadd.s32 %v1469, 3
        %v1474 = vand.u32 %v1473, 3
        %vm1475 = vcmp.lt.s32.totalorder %v1474, 2
        %vm1476 = vcmp.eq.s32.totalorder %v1474, 0
        %v1477 = vxor.u32 %v1471, 2147483648
        %v1478 = vsel %vm1476, %v1470, %v1477
        %vm1479 = vcmp.eq.s32.totalorder %v1474, 2
        %v1480 = vxor.u32 %v1470, 2147483648
        %v1481 = vsel %vm1479, %v1480, %v1471
        %v1482 = vsel %vm1475, %v1478, %v1481
        %v1483 = vsel %vm1472, nan, %v1482
        %v1484 = vand.u32 2147483647, %v1143
        %vm1485 = vcmp.le.f32.partialorder %v1484, 0.7853982
        %vm1486 = vcmp.lt.s32.totalorder %v1143, 0
        %v1487 = vand.u32 %v1143, 2139095040
        %v1488 = vshrl.u32 %v1487, 23
        %v1489 = vsub.s32 %v1488, 127
        %v1490 = vand.u32 2147483647, %v1143
        %v1491 = vand.u32 %v1490, 8388607
        %v1492 = vor.u32 %v1491, 8388608
        %v1493 = vsub.s32 0, %v1492
        %v1494 = vadd.s32 %v1489, 1
        %vm1495 = vcmp.gt.s32.totalorder %v1494, 0
        %v1496 = vsel %vm1495, %v1494, 0
        %v1497 = vshrl.u32 %v1496, 5
        %v1498 = vand.u32 %v1496, 31
        %v1499 = vsub.s32 32, %v1498
        %v1500 = vshrl.u32 683565275, %v1499
        %v1501 = vshll.u32 683565275, %v1498
        %v1502 = vshrl.u32 2475754826, %v1499
        %v1503 = vor.u32 %v1501, %v1502
        %v1504 = vshll.u32 2475754826, %v1498
        %v1505 = vshrl.u32 2131351028, %v1499
        %v1506 = vor.u32 %v1504, %v1505
        %v1507 = vshll.u32 2131351028, %v1498
        %v1508 = vshrl.u32 2102212464, %v1499
        %v1509 = vor.u32 %v1507, %v1508
        %v1510 = vshll.u32 2102212464, %v1498
        %v1511 = vshrl.u32 920167782, %v1499
        %v1512 = vor.u32 %v1510, %v1511
        %v1513 = vshll.u32 920167782, %v1498
        %v1514 = vshrl.u32 1326507024, %v1499
        %v1515 = vor.u32 %v1513, %v1514
        %vm1516 = vcmp.lt.s32.totalorder %v1497, 1
        %vm1517 = vcmp.lt.s32.totalorder %v1497, 2
        %vm1518 = vcmp.lt.s32.totalorder %v1497, 3
        %vm1519 = vcmp.lt.s32.totalorder %v1497, 4
        %v1520 = vsel %vm1516, %v1500, %v1503
        %v1521 = vsel %vm1519, %v1509, 2102212464
        %v1522 = vsel %vm1518, %v1506, %v1521
        %v1523 = vsel %vm1517, %v1520, %v1522
        %v1524 = vsel %vm1516, %v1503, %v1506
        %v1525 = vsel %vm1519, %v1512, 920167782
        %v1526 = vsel %vm1518, %v1509, %v1525
        %v1527 = vsel %vm1517, %v1524, %v1526
        %v1528 = vsel %vm1516, %v1506, %v1509
        %v1529 = vsel %vm1519, %v1515, 1326507024
        %v1530 = vsel %vm1518, %v1512, %v1529
        %v1531 = vsel %vm1517, %v1528, %v1530
        %v1532 = vshll.u32 %v1492, 8
        %v1533 = vmul.u32.u64.compose %v1532, %v1531
        %v1534 = vextract.low.u32 %v1533
        %v1535 = vextract.high.u32 %v1533
        %v1536 = vmul.u32.u64.compose %v1532, %v1527
        %v1537 = vextract.low.u32 %v1536
        %v1538 = vextract.high.u32 %v1536
        %v1539 = vmul.u32 %v1532, %v1523
        %v1540 = vadd.s32 %v1535, %v1537
        %vm1541 = vc.u32 %v1535, %v1537
        %v1542 = vadd.s32 %v1538, 1
        %v1543 = vsel %vm1541, %v1542, %v1538
        %v1544 = vadd.s32 %v1539, %v1543
        %v1545 = vadd.s32 %v1544, 536870912
        %v1546 = vshrl.u32 %v1545, 30
        %v1547 = vshll.u32 %v1546, 30
        %v1548 = vsub.s32 %v1544, %v1547
        %vm1549 = vcmp.lt.s32.totalorder %v1548, 0
        %v1550 = vsub.s32 0, %v1548
        %v1551 = vsel %vm1549, %v1550, %v1548
        %v1552 = vclz %v1551
        %v1553 = vsub.s32 %v1552, 2
        %vm1554 = vcmp.gt.s32.totalorder 0, %v1553
        %v1555 = vsel %vm1554, 0, %v1553
        %v1556 = vsub.s32 32, %v1555
        %v1557 = vshll.u32 %v1548, %v1555
        %v1558 = vshrl.u32 %v1540, %v1556
        %v1559 = vor.u32 %v1557, %v1558
        %v1560 = vsub.s32 4294967266, %v1555
        %v1561 = vadd.s32 %v1560, 127
        %v1562 = vshll.u32 %v1561, 23
        %v1563 = vor.u32 4788187, %v1562
        %v1564 = vand.u32 2147483647, %v1563
        %v1566 = vcvt.s32.f32 %v1559
        %v1567 = vmul.f32 %v1566, %v1564
        %v1568 = vxor.u32 %v1567, 2147483648
        %v1569 = vsel %vm1486, %v1568, %v1567
        %v1570 = vsub.s32 4, %v1546
        %v1571 = vsel %vm1486, %v1570, %v1546
        %v1572 = vsel %vm1485, %v1143, %v1569
        %v1573 = vsel %vm1485, 0, %v1571
        %v1574 = vcosq.f32.pop %v1572
        %v1575 = vsinq.f32.pop %v1572
        %vm1576 = vweird.f32 %v1143
        %v1577 = vadd.s32 %v1573, 3
        %v1578 = vand.u32 %v1577, 3
        %vm1579 = vcmp.lt.s32.totalorder %v1578, 2
        %vm1580 = vcmp.eq.s32.totalorder %v1578, 0
        %v1581 = vxor.u32 %v1575, 2147483648
        %v1582 = vsel %vm1580, %v1574, %v1581
        %vm1583 = vcmp.eq.s32.totalorder %v1578, 2
        %v1584 = vxor.u32 %v1574, 2147483648
        %v1585 = vsel %vm1583, %v1584, %v1575
        %v1586 = vsel %vm1579, %v1582, %v1585
        %v1587 = vsel %vm1576, nan, %v1586
        %v1588 = vand.u32 2147483647, %v1144
        %vm1589 = vcmp.le.f32.partialorder %v1588, 0.7853982
        %vm1590 = vcmp.lt.s32.totalorder %v1144, 0
        %v1591 = vand.u32 %v1144, 2139095040
        %v1592 = vshrl.u32 %v1591, 23
        %v1593 = vsub.s32 %v1592, 127
        %v1594 = vand.u32 2147483647, %v1144
        %v1595 = vand.u32 %v1594, 8388607
        %v1596 = vor.u32 %v1595, 8388608
        %v1597 = vsub.s32 0, %v1596
        %v1598 = vadd.s32 %v1593, 1
        %vm1599 = vcmp.gt.s32.totalorder %v1598, 0
        %v1600 = vsel %vm1599, %v1598, 0
        %v1601 = vshrl.u32 %v1600, 5
        %v1602 = vand.u32 %v1600, 31
        %v1603 = vsub.s32 32, %v1602
        %v1604 = vshrl.u32 683565275, %v1603
        %v1605 = vshll.u32 683565275, %v1602
        %v1606 = vshrl.u32 2475754826, %v1603
        %v1607 = vor.u32 %v1605, %v1606
        %v1608 = vshll.u32 2475754826, %v1602
        %v1609 = vshrl.u32 2131351028, %v1603
        %v1610 = vor.u32 %v1608, %v1609
        %v1611 = vshll.u32 2131351028, %v1602
        %v1612 = vshrl.u32 2102212464, %v1603
        %v1613 = vor.u32 %v1611, %v1612
        %v1614 = vshll.u32 2102212464, %v1602
        %v1615 = vshrl.u32 920167782, %v1603
        %v1616 = vor.u32 %v1614, %v1615
        %v1617 = vshll.u32 920167782, %v1602
        %v1618 = vshrl.u32 1326507024, %v1603
        %v1619 = vor.u32 %v1617, %v1618
        %vm1620 = vcmp.lt.s32.totalorder %v1601, 1
        %vm1621 = vcmp.lt.s32.totalorder %v1601, 2
        %vm1622 = vcmp.lt.s32.totalorder %v1601, 3
        %vm1623 = vcmp.lt.s32.totalorder %v1601, 4
        %v1624 = vsel %vm1620, %v1604, %v1607
        %v1625 = vsel %vm1623, %v1613, 2102212464
        %v1626 = vsel %vm1622, %v1610, %v1625
        %v1627 = vsel %vm1621, %v1624, %v1626
        %v1628 = vsel %vm1620, %v1607, %v1610
        %v1629 = vsel %vm1623, %v1616, 920167782
        %v1630 = vsel %vm1622, %v1613, %v1629
        %v1631 = vsel %vm1621, %v1628, %v1630
        %v1632 = vsel %vm1620, %v1610, %v1613
        %v1633 = vsel %vm1623, %v1619, 1326507024
        %v1634 = vsel %vm1622, %v1616, %v1633
        %v1635 = vsel %vm1621, %v1632, %v1634
        %v1636 = vshll.u32 %v1596, 8
        %v1637 = vmul.u32.u64.compose %v1636, %v1635
        %v1638 = vextract.low.u32 %v1637
        %v1639 = vextract.high.u32 %v1637
        %v1640 = vmul.u32.u64.compose %v1636, %v1631
        %v1641 = vextract.low.u32 %v1640
        %v1642 = vextract.high.u32 %v1640
        %v1643 = vmul.u32 %v1636, %v1627
        %v1644 = vadd.s32 %v1639, %v1641
        %vm1645 = vc.u32 %v1639, %v1641
        %v1646 = vadd.s32 %v1642, 1
        %v1647 = vsel %vm1645, %v1646, %v1642
        %v1648 = vadd.s32 %v1643, %v1647
        %v1649 = vadd.s32 %v1648, 536870912
        %v1650 = vshrl.u32 %v1649, 30
        %v1651 = vshll.u32 %v1650, 30
        %v1652 = vsub.s32 %v1648, %v1651
        %vm1653 = vcmp.lt.s32.totalorder %v1652, 0
        %v1654 = vsub.s32 0, %v1652
        %v1655 = vsel %vm1653, %v1654, %v1652
        %v1656 = vclz %v1655
        %v1657 = vsub.s32 %v1656, 2
        %vm1658 = vcmp.gt.s32.totalorder 0, %v1657
        %v1659 = vsel %vm1658, 0, %v1657
        %v1660 = vsub.s32 32, %v1659
        %v1661 = vshll.u32 %v1652, %v1659
        %v1662 = vshrl.u32 %v1644, %v1660
        %v1663 = vor.u32 %v1661, %v1662
        %v1664 = vsub.s32 4294967266, %v1659
        %v1665 = vadd.s32 %v1664, 127
        %v1666 = vshll.u32 %v1665, 23
        %v1667 = vor.u32 4788187, %v1666
        %v1668 = vand.u32 2147483647, %v1667
        %v1670 = vcvt.s32.f32 %v1663
        %v1671 = vmul.f32 %v1670, %v1668
        %v1672 = vxor.u32 %v1671, 2147483648
        %v1673 = vsel %vm1590, %v1672, %v1671
        %v1674 = vsub.s32 4, %v1650
        %v1675 = vsel %vm1590, %v1674, %v1650
        %v1676 = vsel %vm1589, %v1144, %v1673
        %v1677 = vsel %vm1589, 0, %v1675
        %v1678 = vcosq.f32.pop %v1676
        %v1679 = vsinq.f32.pop %v1676
        %vm1680 = vweird.f32 %v1144
        %v1681 = vadd.s32 %v1677, 3
        %v1682 = vand.u32 %v1681, 3
        %vm1683 = vcmp.lt.s32.totalorder %v1682, 2
        %vm1684 = vcmp.eq.s32.totalorder %v1682, 0
        %v1685 = vxor.u32 %v1679, 2147483648
        %v1686 = vsel %vm1684, %v1678, %v1685
        %vm1687 = vcmp.eq.s32.totalorder %v1682, 2
        %v1688 = vxor.u32 %v1678, 2147483648
        %v1689 = vsel %vm1687, %v1688, %v1679
        %v1690 = vsel %vm1683, %v1686, %v1689
        %v1691 = vsel %vm1680, nan, %v1690
        %v1692 = vand.u32 2147483647, %v1145
        %vm1693 = vcmp.le.f32.partialorder %v1692, 0.7853982
        %vm1694 = vcmp.lt.s32.totalorder %v1145, 0
        %v1695 = vand.u32 %v1145, 2139095040
        %v1696 = vshrl.u32 %v1695, 23
        %v1697 = vsub.s32 %v1696, 127
        %v1698 = vand.u32 2147483647, %v1145
        %v1699 = vand.u32 %v1698, 8388607
        %v1700 = vor.u32 %v1699, 8388608
        %v1701 = vsub.s32 0, %v1700
        %v1702 = vadd.s32 %v1697, 1
        %vm1703 = vcmp.gt.s32.totalorder %v1702, 0
        %v1704 = vsel %vm1703, %v1702, 0
        %v1705 = vshrl.u32 %v1704, 5
        %v1706 = vand.u32 %v1704, 31
        %v1707 = vsub.s32 32, %v1706
        %v1708 = vshrl.u32 683565275, %v1707
        %v1709 = vshll.u32 683565275, %v1706
        %v1710 = vshrl.u32 2475754826, %v1707
        %v1711 = vor.u32 %v1709, %v1710
        %v1712 = vshll.u32 2475754826, %v1706
        %v1713 = vshrl.u32 2131351028, %v1707
        %v1714 = vor.u32 %v1712, %v1713
        %v1715 = vshll.u32 2131351028, %v1706
        %v1716 = vshrl.u32 2102212464, %v1707
        %v1717 = vor.u32 %v1715, %v1716
        %v1718 = vshll.u32 2102212464, %v1706
        %v1719 = vshrl.u32 920167782, %v1707
        %v1720 = vor.u32 %v1718, %v1719
        %v1721 = vshll.u32 920167782, %v1706
        %v1722 = vshrl.u32 1326507024, %v1707
        %v1723 = vor.u32 %v1721, %v1722
        %vm1724 = vcmp.lt.s32.totalorder %v1705, 1
        %vm1725 = vcmp.lt.s32.totalorder %v1705, 2
        %vm1726 = vcmp.lt.s32.totalorder %v1705, 3
        %vm1727 = vcmp.lt.s32.totalorder %v1705, 4
        %v1728 = vsel %vm1724, %v1708, %v1711
        %v1729 = vsel %vm1727, %v1717, 2102212464
        %v1730 = vsel %vm1726, %v1714, %v1729
        %v1731 = vsel %vm1725, %v1728, %v1730
        %v1732 = vsel %vm1724, %v1711, %v1714
        %v1733 = vsel %vm1727, %v1720, 920167782
        %v1734 = vsel %vm1726, %v1717, %v1733
        %v1735 = vsel %vm1725, %v1732, %v1734
        %v1736 = vsel %vm1724, %v1714, %v1717
        %v1737 = vsel %vm1727, %v1723, 1326507024
        %v1738 = vsel %vm1726, %v1720, %v1737
        %v1739 = vsel %vm1725, %v1736, %v1738
        %v1740 = vshll.u32 %v1700, 8
        %v1741 = vmul.u32.u64.compose %v1740, %v1739
        %v1742 = vextract.low.u32 %v1741
        %v1743 = vextract.high.u32 %v1741
        %v1744 = vmul.u32.u64.compose %v1740, %v1735
        %v1745 = vextract.low.u32 %v1744
        %v1746 = vextract.high.u32 %v1744
        %v1747 = vmul.u32 %v1740, %v1731
        %v1748 = vadd.s32 %v1743, %v1745
        %vm1749 = vc.u32 %v1743, %v1745
        %v1750 = vadd.s32 %v1746, 1
        %v1751 = vsel %vm1749, %v1750, %v1746
        %v1752 = vadd.s32 %v1747, %v1751
        %v1753 = vadd.s32 %v1752, 536870912
        %v1754 = vshrl.u32 %v1753, 30
        %v1755 = vshll.u32 %v1754, 30
        %v1756 = vsub.s32 %v1752, %v1755
        %vm1757 = vcmp.lt.s32.totalorder %v1756, 0
        %v1758 = vsub.s32 0, %v1756
        %v1759 = vsel %vm1757, %v1758, %v1756
        %v1760 = vclz %v1759
        %v1761 = vsub.s32 %v1760, 2
        %vm1762 = vcmp.gt.s32.totalorder 0, %v1761
        %v1763 = vsel %vm1762, 0, %v1761
        %v1764 = vsub.s32 32, %v1763
        %v1765 = vshll.u32 %v1756, %v1763
        %v1766 = vshrl.u32 %v1748, %v1764
        %v1767 = vor.u32 %v1765, %v1766
        %v1768 = vsub.s32 4294967266, %v1763
        %v1769 = vadd.s32 %v1768, 127
        %v1770 = vshll.u32 %v1769, 23
        %v1771 = vor.u32 4788187, %v1770
        %v1772 = vand.u32 2147483647, %v1771
        %v1774 = vcvt.s32.f32 %v1767
        %v1775 = vmul.f32 %v1774, %v1772
        %v1776 = vxor.u32 %v1775, 2147483648
        %v1777 = vsel %vm1694, %v1776, %v1775
        %v1778 = vsub.s32 4, %v1754
        %v1779 = vsel %vm1694, %v1778, %v1754
        %v1780 = vsel %vm1693, %v1145, %v1777
        %v1781 = vsel %vm1693, 0, %v1779
        %v1782 = vcosq.f32.pop %v1780
        %v1783 = vsinq.f32.pop %v1780
        %vm1784 = vweird.f32 %v1145
        %v1785 = vadd.s32 %v1781, 3
        %v1786 = vand.u32 %v1785, 3
        %vm1787 = vcmp.lt.s32.totalorder %v1786, 2
        %vm1788 = vcmp.eq.s32.totalorder %v1786, 0
        %v1789 = vxor.u32 %v1783, 2147483648
        %v1790 = vsel %vm1788, %v1782, %v1789
        %vm1791 = vcmp.eq.s32.totalorder %v1786, 2
        %v1792 = vxor.u32 %v1782, 2147483648
        %v1793 = vsel %vm1791, %v1792, %v1783
        %v1794 = vsel %vm1787, %v1790, %v1793
        %v1795 = vsel %vm1784, nan, %v1794
        %v1796 = vand.u32 2147483647, %v1146
        %vm1797 = vcmp.le.f32.partialorder %v1796, 0.7853982
        %vm1798 = vcmp.lt.s32.totalorder %v1146, 0
        %v1799 = vand.u32 %v1146, 2139095040
        %v1800 = vshrl.u32 %v1799, 23
        %v1801 = vsub.s32 %v1800, 127
        %v1802 = vand.u32 2147483647, %v1146
        %v1803 = vand.u32 %v1802, 8388607
        %v1804 = vor.u32 %v1803, 8388608
        %v1805 = vsub.s32 0, %v1804
        %v1806 = vadd.s32 %v1801, 1
        %vm1807 = vcmp.gt.s32.totalorder %v1806, 0
        %v1808 = vsel %vm1807, %v1806, 0
        %v1809 = vshrl.u32 %v1808, 5
        %v1810 = vand.u32 %v1808, 31
        %v1811 = vsub.s32 32, %v1810
        %v1812 = vshrl.u32 683565275, %v1811
        %v1813 = vshll.u32 683565275, %v1810
        %v1814 = vshrl.u32 2475754826, %v1811
        %v1815 = vor.u32 %v1813, %v1814
        %v1816 = vshll.u32 2475754826, %v1810
        %v1817 = vshrl.u32 2131351028, %v1811
        %v1818 = vor.u32 %v1816, %v1817
        %v1819 = vshll.u32 2131351028, %v1810
        %v1820 = vshrl.u32 2102212464, %v1811
        %v1821 = vor.u32 %v1819, %v1820
        %v1822 = vshll.u32 2102212464, %v1810
        %v1823 = vshrl.u32 920167782, %v1811
        %v1824 = vor.u32 %v1822, %v1823
        %v1825 = vshll.u32 920167782, %v1810
        %v1826 = vshrl.u32 1326507024, %v1811
        %v1827 = vor.u32 %v1825, %v1826
        %vm1828 = vcmp.lt.s32.totalorder %v1809, 1
        %vm1829 = vcmp.lt.s32.totalorder %v1809, 2
        %vm1830 = vcmp.lt.s32.totalorder %v1809, 3
        %vm1831 = vcmp.lt.s32.totalorder %v1809, 4
        %v1832 = vsel %vm1828, %v1812, %v1815
        %v1833 = vsel %vm1831, %v1821, 2102212464
        %v1834 = vsel %vm1830, %v1818, %v1833
        %v1835 = vsel %vm1829, %v1832, %v1834
        %v1836 = vsel %vm1828, %v1815, %v1818
        %v1837 = vsel %vm1831, %v1824, 920167782
        %v1838 = vsel %vm1830, %v1821, %v1837
        %v1839 = vsel %vm1829, %v1836, %v1838
        %v1840 = vsel %vm1828, %v1818, %v1821
        %v1841 = vsel %vm1831, %v1827, 1326507024
        %v1842 = vsel %vm1830, %v1824, %v1841
        %v1843 = vsel %vm1829, %v1840, %v1842
        %v1844 = vshll.u32 %v1804, 8
        %v1845 = vmul.u32.u64.compose %v1844, %v1843
        %v1846 = vextract.low.u32 %v1845
        %v1847 = vextract.high.u32 %v1845
        %v1848 = vmul.u32.u64.compose %v1844, %v1839
        %v1849 = vextract.low.u32 %v1848
        %v1850 = vextract.high.u32 %v1848
        %v1851 = vmul.u32 %v1844, %v1835
        %v1852 = vadd.s32 %v1847, %v1849
        %vm1853 = vc.u32 %v1847, %v1849
        %v1854 = vadd.s32 %v1850, 1
        %v1855 = vsel %vm1853, %v1854, %v1850
        %v1856 = vadd.s32 %v1851, %v1855
        %v1857 = vadd.s32 %v1856, 536870912
        %v1858 = vshrl.u32 %v1857, 30
        %v1859 = vshll.u32 %v1858, 30
        %v1860 = vsub.s32 %v1856, %v1859
        %vm1861 = vcmp.lt.s32.totalorder %v1860, 0
        %v1862 = vsub.s32 0, %v1860
        %v1863 = vsel %vm1861, %v1862, %v1860
        %v1864 = vclz %v1863
        %v1865 = vsub.s32 %v1864, 2
        %vm1866 = vcmp.gt.s32.totalorder 0, %v1865
        %v1867 = vsel %vm1866, 0, %v1865
        %v1868 = vsub.s32 32, %v1867
        %v1869 = vshll.u32 %v1860, %v1867
        %v1870 = vshrl.u32 %v1852, %v1868
        %v1871 = vor.u32 %v1869, %v1870
        %v1872 = vsub.s32 4294967266, %v1867
        %v1873 = vadd.s32 %v1872, 127
        %v1874 = vshll.u32 %v1873, 23
        %v1875 = vor.u32 4788187, %v1874
        %v1876 = vand.u32 2147483647, %v1875
        %v1878 = vcvt.s32.f32 %v1871
        %v1879 = vmul.f32 %v1878, %v1876
        %v1880 = vxor.u32 %v1879, 2147483648
        %v1881 = vsel %vm1798, %v1880, %v1879
        %v1882 = vsub.s32 4, %v1858
        %v1883 = vsel %vm1798, %v1882, %v1858
        %v1884 = vsel %vm1797, %v1146, %v1881
        %v1885 = vsel %vm1797, 0, %v1883
        %v1886 = vcosq.f32.pop %v1884
        %v1887 = vsinq.f32.pop %v1884
        %vm1888 = vweird.f32 %v1146
        %v1889 = vadd.s32 %v1885, 3
        %v1890 = vand.u32 %v1889, 3
        %vm1891 = vcmp.lt.s32.totalorder %v1890, 2
        %vm1892 = vcmp.eq.s32.totalorder %v1890, 0
        %v1893 = vxor.u32 %v1887, 2147483648
        %v1894 = vsel %vm1892, %v1886, %v1893
        %vm1895 = vcmp.eq.s32.totalorder %v1890, 2
        %v1896 = vxor.u32 %v1886, 2147483648
        %v1897 = vsel %vm1895, %v1896, %v1887
        %v1898 = vsel %vm1891, %v1894, %v1897
        %v1899 = vsel %vm1888, nan, %v1898
        %v1900 = vand.u32 2147483647, %v1147
        %vm1901 = vcmp.le.f32.partialorder %v1900, 0.7853982
        %vm1902 = vcmp.lt.s32.totalorder %v1147, 0
        %v1903 = vand.u32 %v1147, 2139095040
        %v1904 = vshrl.u32 %v1903, 23
        %v1905 = vsub.s32 %v1904, 127
        %v1906 = vand.u32 2147483647, %v1147
        %v1907 = vand.u32 %v1906, 8388607
        %v1908 = vor.u32 %v1907, 8388608
        %v1909 = vsub.s32 0, %v1908
        %v1910 = vadd.s32 %v1905, 1
        %vm1911 = vcmp.gt.s32.totalorder %v1910, 0
        %v1912 = vsel %vm1911, %v1910, 0
        %v1913 = vshrl.u32 %v1912, 5
        %v1914 = vand.u32 %v1912, 31
        %v1915 = vsub.s32 32, %v1914
        %v1916 = vshrl.u32 683565275, %v1915
        %v1917 = vshll.u32 683565275, %v1914
        %v1918 = vshrl.u32 2475754826, %v1915
        %v1919 = vor.u32 %v1917, %v1918
        %v1920 = vshll.u32 2475754826, %v1914
        %v1921 = vshrl.u32 2131351028, %v1915
        %v1922 = vor.u32 %v1920, %v1921
        %v1923 = vshll.u32 2131351028, %v1914
        %v1924 = vshrl.u32 2102212464, %v1915
        %v1925 = vor.u32 %v1923, %v1924
        %v1926 = vshll.u32 2102212464, %v1914
        %v1927 = vshrl.u32 920167782, %v1915
        %v1928 = vor.u32 %v1926, %v1927
        %v1929 = vshll.u32 920167782, %v1914
        %v1930 = vshrl.u32 1326507024, %v1915
        %v1931 = vor.u32 %v1929, %v1930
        %vm1932 = vcmp.lt.s32.totalorder %v1913, 1
        %vm1933 = vcmp.lt.s32.totalorder %v1913, 2
        %vm1934 = vcmp.lt.s32.totalorder %v1913, 3
        %vm1935 = vcmp.lt.s32.totalorder %v1913, 4
        %v1936 = vsel %vm1932, %v1916, %v1919
        %v1937 = vsel %vm1935, %v1925, 2102212464
        %v1938 = vsel %vm1934, %v1922, %v1937
        %v1939 = vsel %vm1933, %v1936, %v1938
        %v1940 = vsel %vm1932, %v1919, %v1922
        %v1941 = vsel %vm1935, %v1928, 920167782
        %v1942 = vsel %vm1934, %v1925, %v1941
        %v1943 = vsel %vm1933, %v1940, %v1942
        %v1944 = vsel %vm1932, %v1922, %v1925
        %v1945 = vsel %vm1935, %v1931, 1326507024
        %v1946 = vsel %vm1934, %v1928, %v1945
        %v1947 = vsel %vm1933, %v1944, %v1946
        %v1948 = vshll.u32 %v1908, 8
        %v1949 = vmul.u32.u64.compose %v1948, %v1947
        %v1950 = vextract.low.u32 %v1949
        %v1951 = vextract.high.u32 %v1949
        %v1952 = vmul.u32.u64.compose %v1948, %v1943
        %v1953 = vextract.low.u32 %v1952
        %v1954 = vextract.high.u32 %v1952
        %v1955 = vmul.u32 %v1948, %v1939
        %v1956 = vadd.s32 %v1951, %v1953
        %vm1957 = vc.u32 %v1951, %v1953
        %v1958 = vadd.s32 %v1954, 1
        %v1959 = vsel %vm1957, %v1958, %v1954
        %v1960 = vadd.s32 %v1955, %v1959
        %v1961 = vadd.s32 %v1960, 536870912
        %v1962 = vshrl.u32 %v1961, 30
        %v1963 = vshll.u32 %v1962, 30
        %v1964 = vsub.s32 %v1960, %v1963
        %vm1965 = vcmp.lt.s32.totalorder %v1964, 0
        %v1966 = vsub.s32 0, %v1964
        %v1967 = vsel %vm1965, %v1966, %v1964
        %v1968 = vclz %v1967
        %v1969 = vsub.s32 %v1968, 2
        %vm1970 = vcmp.gt.s32.totalorder 0, %v1969
        %v1971 = vsel %vm1970, 0, %v1969
        %v1972 = vsub.s32 32, %v1971
        %v1973 = vshll.u32 %v1964, %v1971
        %v1974 = vshrl.u32 %v1956, %v1972
        %v1975 = vor.u32 %v1973, %v1974
        %v1976 = vsub.s32 4294967266, %v1971
        %v1977 = vadd.s32 %v1976, 127
        %v1978 = vshll.u32 %v1977, 23
        %v1979 = vor.u32 4788187, %v1978
        %v1980 = vand.u32 2147483647, %v1979
        %v1982 = vcvt.s32.f32 %v1975
        %v1983 = vmul.f32 %v1982, %v1980
        %v1984 = vxor.u32 %v1983, 2147483648
        %v1985 = vsel %vm1902, %v1984, %v1983
        %v1986 = vsub.s32 4, %v1962
        %v1987 = vsel %vm1902, %v1986, %v1962
        %v1988 = vsel %vm1901, %v1147, %v1985
        %v1989 = vsel %vm1901, 0, %v1987
        %v1990 = vcosq.f32.pop %v1988
        %v1991 = vsinq.f32.pop %v1988
        %vm1992 = vweird.f32 %v1147
        %v1993 = vadd.s32 %v1989, 3
        %v1994 = vand.u32 %v1993, 3
        %vm1995 = vcmp.lt.s32.totalorder %v1994, 2
        %vm1996 = vcmp.eq.s32.totalorder %v1994, 0
        %v1997 = vxor.u32 %v1991, 2147483648
        %v1998 = vsel %vm1996, %v1990, %v1997
        %vm1999 = vcmp.eq.s32.totalorder %v1994, 2
        %v2000 = vxor.u32 %v1990, 2147483648
        %v2001 = vsel %vm1999, %v2000, %v1991
        %v2002 = vsel %vm1995, %v1998, %v2001
        %v2003 = vsel %vm1992, nan, %v2002
        %v2004 = vand.u32 2147483647, %v1148
        %vm2005 = vcmp.le.f32.partialorder %v2004, 0.7853982
        %vm2006 = vcmp.lt.s32.totalorder %v1148, 0
        %v2007 = vand.u32 %v1148, 2139095040
        %v2008 = vshrl.u32 %v2007, 23
        %v2009 = vsub.s32 %v2008, 127
        %v2010 = vand.u32 2147483647, %v1148
        %v2011 = vand.u32 %v2010, 8388607
        %v2012 = vor.u32 %v2011, 8388608
        %v2013 = vsub.s32 0, %v2012
        %v2014 = vadd.s32 %v2009, 1
        %vm2015 = vcmp.gt.s32.totalorder %v2014, 0
        %v2016 = vsel %vm2015, %v2014, 0
        %v2017 = vshrl.u32 %v2016, 5
        %v2018 = vand.u32 %v2016, 31
        %v2019 = vsub.s32 32, %v2018
        %v2020 = vshrl.u32 683565275, %v2019
        %v2021 = vshll.u32 683565275, %v2018
        %v2022 = vshrl.u32 2475754826, %v2019
        %v2023 = vor.u32 %v2021, %v2022
        %v2024 = vshll.u32 2475754826, %v2018
        %v2025 = vshrl.u32 2131351028, %v2019
        %v2026 = vor.u32 %v2024, %v2025
        %v2027 = vshll.u32 2131351028, %v2018
        %v2028 = vshrl.u32 2102212464, %v2019
        %v2029 = vor.u32 %v2027, %v2028
        %v2030 = vshll.u32 2102212464, %v2018
        %v2031 = vshrl.u32 920167782, %v2019
        %v2032 = vor.u32 %v2030, %v2031
        %v2033 = vshll.u32 920167782, %v2018
        %v2034 = vshrl.u32 1326507024, %v2019
        %v2035 = vor.u32 %v2033, %v2034
        %vm2036 = vcmp.lt.s32.totalorder %v2017, 1
        %vm2037 = vcmp.lt.s32.totalorder %v2017, 2
        %vm2038 = vcmp.lt.s32.totalorder %v2017, 3
        %vm2039 = vcmp.lt.s32.totalorder %v2017, 4
        %v2040 = vsel %vm2036, %v2020, %v2023
        %v2041 = vsel %vm2039, %v2029, 2102212464
        %v2042 = vsel %vm2038, %v2026, %v2041
        %v2043 = vsel %vm2037, %v2040, %v2042
        %v2044 = vsel %vm2036, %v2023, %v2026
        %v2045 = vsel %vm2039, %v2032, 920167782
        %v2046 = vsel %vm2038, %v2029, %v2045
        %v2047 = vsel %vm2037, %v2044, %v2046
        %v2048 = vsel %vm2036, %v2026, %v2029
        %v2049 = vsel %vm2039, %v2035, 1326507024
        %v2050 = vsel %vm2038, %v2032, %v2049
        %v2051 = vsel %vm2037, %v2048, %v2050
        %v2052 = vshll.u32 %v2012, 8
        %v2053 = vmul.u32.u64.compose %v2052, %v2051
        %v2054 = vextract.low.u32 %v2053
        %v2055 = vextract.high.u32 %v2053
        %v2056 = vmul.u32.u64.compose %v2052, %v2047
        %v2057 = vextract.low.u32 %v2056
        %v2058 = vextract.high.u32 %v2056
        %v2059 = vmul.u32 %v2052, %v2043
        %v2060 = vadd.s32 %v2055, %v2057
        %vm2061 = vc.u32 %v2055, %v2057
        %v2062 = vadd.s32 %v2058, 1
        %v2063 = vsel %vm2061, %v2062, %v2058
        %v2064 = vadd.s32 %v2059, %v2063
        %v2065 = vadd.s32 %v2064, 536870912
        %v2066 = vshrl.u32 %v2065, 30
        %v2067 = vshll.u32 %v2066, 30
        %v2068 = vsub.s32 %v2064, %v2067
        %vm2069 = vcmp.lt.s32.totalorder %v2068, 0
        %v2070 = vsub.s32 0, %v2068
        %v2071 = vsel %vm2069, %v2070, %v2068
        %v2072 = vclz %v2071
        %v2073 = vsub.s32 %v2072, 2
        %vm2074 = vcmp.gt.s32.totalorder 0, %v2073
        %v2075 = vsel %vm2074, 0, %v2073
        %v2076 = vsub.s32 32, %v2075
        %v2077 = vshll.u32 %v2068, %v2075
        %v2078 = vshrl.u32 %v2060, %v2076
        %v2079 = vor.u32 %v2077, %v2078
        %v2080 = vsub.s32 4294967266, %v2075
        %v2081 = vadd.s32 %v2080, 127
        %v2082 = vshll.u32 %v2081, 23
        %v2083 = vor.u32 4788187, %v2082
        %v2084 = vand.u32 2147483647, %v2083
        %v2086 = vcvt.s32.f32 %v2079
        %v2087 = vmul.f32 %v2086, %v2084
        %v2088 = vxor.u32 %v2087, 2147483648
        %v2089 = vsel %vm2006, %v2088, %v2087
        %v2090 = vsub.s32 4, %v2066
        %v2091 = vsel %vm2006, %v2090, %v2066
        %v2092 = vsel %vm2005, %v1148, %v2089
        %v2093 = vsel %vm2005, 0, %v2091
        %v2094 = vcosq.f32.pop %v2092
        %v2095 = vsinq.f32.pop %v2092
        %vm2096 = vweird.f32 %v1148
        %v2097 = vadd.s32 %v2093, 3
        %v2098 = vand.u32 %v2097, 3
        %vm2099 = vcmp.lt.s32.totalorder %v2098, 2
        %vm2100 = vcmp.eq.s32.totalorder %v2098, 0
        %v2101 = vxor.u32 %v2095, 2147483648
        %v2102 = vsel %vm2100, %v2094, %v2101
        %vm2103 = vcmp.eq.s32.totalorder %v2098, 2
        %v2104 = vxor.u32 %v2094, 2147483648
        %v2105 = vsel %vm2103, %v2104, %v2095
        %v2106 = vsel %vm2099, %v2102, %v2105
        %v2107 = vsel %vm2096, nan, %v2106
        %v2108 = vand.u32 2147483647, %v1149
        %vm2109 = vcmp.le.f32.partialorder %v2108, 0.7853982
        %vm2110 = vcmp.lt.s32.totalorder %v1149, 0
        %v2111 = vand.u32 %v1149, 2139095040
        %v2112 = vshrl.u32 %v2111, 23
        %v2113 = vsub.s32 %v2112, 127
        %v2114 = vand.u32 2147483647, %v1149
        %v2115 = vand.u32 %v2114, 8388607
        %v2116 = vor.u32 %v2115, 8388608
        %v2117 = vsub.s32 0, %v2116
        %v2118 = vadd.s32 %v2113, 1
        %vm2119 = vcmp.gt.s32.totalorder %v2118, 0
        %v2120 = vsel %vm2119, %v2118, 0
        %v2121 = vshrl.u32 %v2120, 5
        %v2122 = vand.u32 %v2120, 31
        %v2123 = vsub.s32 32, %v2122
        %v2124 = vshrl.u32 683565275, %v2123
        %v2125 = vshll.u32 683565275, %v2122
        %v2126 = vshrl.u32 2475754826, %v2123
        %v2127 = vor.u32 %v2125, %v2126
        %v2128 = vshll.u32 2475754826, %v2122
        %v2129 = vshrl.u32 2131351028, %v2123
        %v2130 = vor.u32 %v2128, %v2129
        %v2131 = vshll.u32 2131351028, %v2122
        %v2132 = vshrl.u32 2102212464, %v2123
        %v2133 = vor.u32 %v2131, %v2132
        %v2134 = vshll.u32 2102212464, %v2122
        %v2135 = vshrl.u32 920167782, %v2123
        %v2136 = vor.u32 %v2134, %v2135
        %v2137 = vshll.u32 920167782, %v2122
        %v2138 = vshrl.u32 1326507024, %v2123
        %v2139 = vor.u32 %v2137, %v2138
        %vm2140 = vcmp.lt.s32.totalorder %v2121, 1
        %vm2141 = vcmp.lt.s32.totalorder %v2121, 2
        %vm2142 = vcmp.lt.s32.totalorder %v2121, 3
        %vm2143 = vcmp.lt.s32.totalorder %v2121, 4
        %v2144 = vsel %vm2140, %v2124, %v2127
        %v2145 = vsel %vm2143, %v2133, 2102212464
        %v2146 = vsel %vm2142, %v2130, %v2145
        %v2147 = vsel %vm2141, %v2144, %v2146
        %v2148 = vsel %vm2140, %v2127, %v2130
        %v2149 = vsel %vm2143, %v2136, 920167782
        %v2150 = vsel %vm2142, %v2133, %v2149
        %v2151 = vsel %vm2141, %v2148, %v2150
        %v2152 = vsel %vm2140, %v2130, %v2133
        %v2153 = vsel %vm2143, %v2139, 1326507024
        %v2154 = vsel %vm2142, %v2136, %v2153
        %v2155 = vsel %vm2141, %v2152, %v2154
        %v2156 = vshll.u32 %v2116, 8
        %v2157 = vmul.u32.u64.compose %v2156, %v2155
        %v2158 = vextract.low.u32 %v2157
        %v2159 = vextract.high.u32 %v2157
        %v2160 = vmul.u32.u64.compose %v2156, %v2151
        %v2161 = vextract.low.u32 %v2160
        %v2162 = vextract.high.u32 %v2160
        %v2163 = vmul.u32 %v2156, %v2147
        %v2164 = vadd.s32 %v2159, %v2161
        %vm2165 = vc.u32 %v2159, %v2161
        %v2166 = vadd.s32 %v2162, 1
        %v2167 = vsel %vm2165, %v2166, %v2162
        %v2168 = vadd.s32 %v2163, %v2167
        %v2169 = vadd.s32 %v2168, 536870912
        %v2170 = vshrl.u32 %v2169, 30
        %v2171 = vshll.u32 %v2170, 30
        %v2172 = vsub.s32 %v2168, %v2171
        %vm2173 = vcmp.lt.s32.totalorder %v2172, 0
        %v2174 = vsub.s32 0, %v2172
        %v2175 = vsel %vm2173, %v2174, %v2172
        %v2176 = vclz %v2175
        %v2177 = vsub.s32 %v2176, 2
        %vm2178 = vcmp.gt.s32.totalorder 0, %v2177
        %v2179 = vsel %vm2178, 0, %v2177
        %v2180 = vsub.s32 32, %v2179
        %v2181 = vshll.u32 %v2172, %v2179
        %v2182 = vshrl.u32 %v2164, %v2180
        %v2183 = vor.u32 %v2181, %v2182
        %v2184 = vsub.s32 4294967266, %v2179
        %v2185 = vadd.s32 %v2184, 127
        %v2186 = vshll.u32 %v2185, 23
        %v2187 = vor.u32 4788187, %v2186
        %v2188 = vand.u32 2147483647, %v2187
        %v2190 = vcvt.s32.f32 %v2183
        %v2191 = vmul.f32 %v2190, %v2188
        %v2192 = vxor.u32 %v2191, 2147483648
        %v2193 = vsel %vm2110, %v2192, %v2191
        %v2194 = vsub.s32 4, %v2170
        %v2195 = vsel %vm2110, %v2194, %v2170
        %v2196 = vsel %vm2109, %v1149, %v2193
        %v2197 = vsel %vm2109, 0, %v2195
        %v2198 = vcosq.f32.pop %v2196
        %v2199 = vsinq.f32.pop %v2196
        %vm2200 = vweird.f32 %v1149
        %v2201 = vadd.s32 %v2197, 3
        %v2202 = vand.u32 %v2201, 3
        %vm2203 = vcmp.lt.s32.totalorder %v2202, 2
        %vm2204 = vcmp.eq.s32.totalorder %v2202, 0
        %v2205 = vxor.u32 %v2199, 2147483648
        %v2206 = vsel %vm2204, %v2198, %v2205
        %vm2207 = vcmp.eq.s32.totalorder %v2202, 2
        %v2208 = vxor.u32 %v2198, 2147483648
        %v2209 = vsel %vm2207, %v2208, %v2199
        %v2210 = vsel %vm2203, %v2206, %v2209
        %v2211 = vsel %vm2200, nan, %v2210
        %v2212 = vand.u32 2147483647, %v1150
        %vm2213 = vcmp.le.f32.partialorder %v2212, 0.7853982
        %vm2214 = vcmp.lt.s32.totalorder %v1150, 0
        %v2215 = vand.u32 %v1150, 2139095040
        %v2216 = vshrl.u32 %v2215, 23
        %v2217 = vsub.s32 %v2216, 127
        %v2218 = vand.u32 2147483647, %v1150
        %v2219 = vand.u32 %v2218, 8388607
        %v2220 = vor.u32 %v2219, 8388608
        %v2221 = vsub.s32 0, %v2220
        %v2222 = vadd.s32 %v2217, 1
        %vm2223 = vcmp.gt.s32.totalorder %v2222, 0
        %v2224 = vsel %vm2223, %v2222, 0
        %v2225 = vshrl.u32 %v2224, 5
        %v2226 = vand.u32 %v2224, 31
        %v2227 = vsub.s32 32, %v2226
        %v2228 = vshrl.u32 683565275, %v2227
        %v2229 = vshll.u32 683565275, %v2226
        %v2230 = vshrl.u32 2475754826, %v2227
        %v2231 = vor.u32 %v2229, %v2230
        %v2232 = vshll.u32 2475754826, %v2226
        %v2233 = vshrl.u32 2131351028, %v2227
        %v2234 = vor.u32 %v2232, %v2233
        %v2235 = vshll.u32 2131351028, %v2226
        %v2236 = vshrl.u32 2102212464, %v2227
        %v2237 = vor.u32 %v2235, %v2236
        %v2238 = vshll.u32 2102212464, %v2226
        %v2239 = vshrl.u32 920167782, %v2227
        %v2240 = vor.u32 %v2238, %v2239
        %v2241 = vshll.u32 920167782, %v2226
        %v2242 = vshrl.u32 1326507024, %v2227
        %v2243 = vor.u32 %v2241, %v2242
        %vm2244 = vcmp.lt.s32.totalorder %v2225, 1
        %vm2245 = vcmp.lt.s32.totalorder %v2225, 2
        %vm2246 = vcmp.lt.s32.totalorder %v2225, 3
        %vm2247 = vcmp.lt.s32.totalorder %v2225, 4
        %v2248 = vsel %vm2244, %v2228, %v2231
        %v2249 = vsel %vm2247, %v2237, 2102212464
        %v2250 = vsel %vm2246, %v2234, %v2249
        %v2251 = vsel %vm2245, %v2248, %v2250
        %v2252 = vsel %vm2244, %v2231, %v2234
        %v2253 = vsel %vm2247, %v2240, 920167782
        %v2254 = vsel %vm2246, %v2237, %v2253
        %v2255 = vsel %vm2245, %v2252, %v2254
        %v2256 = vsel %vm2244, %v2234, %v2237
        %v2257 = vsel %vm2247, %v2243, 1326507024
        %v2258 = vsel %vm2246, %v2240, %v2257
        %v2259 = vsel %vm2245, %v2256, %v2258
        %v2260 = vshll.u32 %v2220, 8
        %v2261 = vmul.u32.u64.compose %v2260, %v2259
        %v2262 = vextract.low.u32 %v2261
        %v2263 = vextract.high.u32 %v2261
        %v2264 = vmul.u32.u64.compose %v2260, %v2255
        %v2265 = vextract.low.u32 %v2264
        %v2266 = vextract.high.u32 %v2264
        %v2267 = vmul.u32 %v2260, %v2251
        %v2268 = vadd.s32 %v2263, %v2265
        %vm2269 = vc.u32 %v2263, %v2265
        %v2270 = vadd.s32 %v2266, 1
        %v2271 = vsel %vm2269, %v2270, %v2266
        %v2272 = vadd.s32 %v2267, %v2271
        %v2273 = vadd.s32 %v2272, 536870912
        %v2274 = vshrl.u32 %v2273, 30
        %v2275 = vshll.u32 %v2274, 30
        %v2276 = vsub.s32 %v2272, %v2275
        %vm2277 = vcmp.lt.s32.totalorder %v2276, 0
        %v2278 = vsub.s32 0, %v2276
        %v2279 = vsel %vm2277, %v2278, %v2276
        %v2280 = vclz %v2279
        %v2281 = vsub.s32 %v2280, 2
        %vm2282 = vcmp.gt.s32.totalorder 0, %v2281
        %v2283 = vsel %vm2282, 0, %v2281
        %v2284 = vsub.s32 32, %v2283
        %v2285 = vshll.u32 %v2276, %v2283
        %v2286 = vshrl.u32 %v2268, %v2284
        %v2287 = vor.u32 %v2285, %v2286
        %v2288 = vsub.s32 4294967266, %v2283
        %v2289 = vadd.s32 %v2288, 127
        %v2290 = vshll.u32 %v2289, 23
        %v2291 = vor.u32 4788187, %v2290
        %v2292 = vand.u32 2147483647, %v2291
        %v2294 = vcvt.s32.f32 %v2287
        %v2295 = vmul.f32 %v2294, %v2292
        %v2296 = vxor.u32 %v2295, 2147483648
        %v2297 = vsel %vm2214, %v2296, %v2295
        %v2298 = vsub.s32 4, %v2274
        %v2299 = vsel %vm2214, %v2298, %v2274
        %v2300 = vsel %vm2213, %v1150, %v2297
        %v2301 = vsel %vm2213, 0, %v2299
        %v2302 = vcosq.f32.pop %v2300
        %v2303 = vsinq.f32.pop %v2300
        %vm2304 = vweird.f32 %v1150
        %v2305 = vadd.s32 %v2301, 3
        %v2306 = vand.u32 %v2305, 3
        %vm2307 = vcmp.lt.s32.totalorder %v2306, 2
        %vm2308 = vcmp.eq.s32.totalorder %v2306, 0
        %v2309 = vxor.u32 %v2303, 2147483648
        %v2310 = vsel %vm2308, %v2302, %v2309
        %vm2311 = vcmp.eq.s32.totalorder %v2306, 2
        %v2312 = vxor.u32 %v2302, 2147483648
        %v2313 = vsel %vm2311, %v2312, %v2303
        %v2314 = vsel %vm2307, %v2310, %v2313
        %v2315 = vsel %vm2304, nan, %v2314
        %v2316 = vand.u32 2147483647, %v1151
        %vm2317 = vcmp.le.f32.partialorder %v2316, 0.7853982
        %vm2318 = vcmp.lt.s32.totalorder %v1151, 0
        %v2319 = vand.u32 %v1151, 2139095040
        %v2320 = vshrl.u32 %v2319, 23
        %v2321 = vsub.s32 %v2320, 127
        %v2322 = vand.u32 2147483647, %v1151
        %v2323 = vand.u32 %v2322, 8388607
        %v2324 = vor.u32 %v2323, 8388608
        %v2325 = vsub.s32 0, %v2324
        %v2326 = vadd.s32 %v2321, 1
        %vm2327 = vcmp.gt.s32.totalorder %v2326, 0
        %v2328 = vsel %vm2327, %v2326, 0
        %v2329 = vshrl.u32 %v2328, 5
        %v2330 = vand.u32 %v2328, 31
        %v2331 = vsub.s32 32, %v2330
        %v2332 = vshrl.u32 683565275, %v2331
        %v2333 = vshll.u32 683565275, %v2330
        %v2334 = vshrl.u32 2475754826, %v2331
        %v2335 = vor.u32 %v2333, %v2334
        %v2336 = vshll.u32 2475754826, %v2330
        %v2337 = vshrl.u32 2131351028, %v2331
        %v2338 = vor.u32 %v2336, %v2337
        %v2339 = vshll.u32 2131351028, %v2330
        %v2340 = vshrl.u32 2102212464, %v2331
        %v2341 = vor.u32 %v2339, %v2340
        %v2342 = vshll.u32 2102212464, %v2330
        %v2343 = vshrl.u32 920167782, %v2331
        %v2344 = vor.u32 %v2342, %v2343
        %v2345 = vshll.u32 920167782, %v2330
        %v2346 = vshrl.u32 1326507024, %v2331
        %v2347 = vor.u32 %v2345, %v2346
        %vm2348 = vcmp.lt.s32.totalorder %v2329, 1
        %vm2349 = vcmp.lt.s32.totalorder %v2329, 2
        %vm2350 = vcmp.lt.s32.totalorder %v2329, 3
        %vm2351 = vcmp.lt.s32.totalorder %v2329, 4
        %v2352 = vsel %vm2348, %v2332, %v2335
        %v2353 = vsel %vm2351, %v2341, 2102212464
        %v2354 = vsel %vm2350, %v2338, %v2353
        %v2355 = vsel %vm2349, %v2352, %v2354
        %v2356 = vsel %vm2348, %v2335, %v2338
        %v2357 = vsel %vm2351, %v2344, 920167782
        %v2358 = vsel %vm2350, %v2341, %v2357
        %v2359 = vsel %vm2349, %v2356, %v2358
        %v2360 = vsel %vm2348, %v2338, %v2341
        %v2361 = vsel %vm2351, %v2347, 1326507024
        %v2362 = vsel %vm2350, %v2344, %v2361
        %v2363 = vsel %vm2349, %v2360, %v2362
        %v2364 = vshll.u32 %v2324, 8
        %v2365 = vmul.u32.u64.compose %v2364, %v2363
        %v2366 = vextract.low.u32 %v2365
        %v2367 = vextract.high.u32 %v2365
        %v2368 = vmul.u32.u64.compose %v2364, %v2359
        %v2369 = vextract.low.u32 %v2368
        %v2370 = vextract.high.u32 %v2368
        %v2371 = vmul.u32 %v2364, %v2355
        %v2372 = vadd.s32 %v2367, %v2369
        %vm2373 = vc.u32 %v2367, %v2369
        %v2374 = vadd.s32 %v2370, 1
        %v2375 = vsel %vm2373, %v2374, %v2370
        %v2376 = vadd.s32 %v2371, %v2375
        %v2377 = vadd.s32 %v2376, 536870912
        %v2378 = vshrl.u32 %v2377, 30
        %v2379 = vshll.u32 %v2378, 30
        %v2380 = vsub.s32 %v2376, %v2379
        %vm2381 = vcmp.lt.s32.totalorder %v2380, 0
        %v2382 = vsub.s32 0, %v2380
        %v2383 = vsel %vm2381, %v2382, %v2380
        %v2384 = vclz %v2383
        %v2385 = vsub.s32 %v2384, 2
        %vm2386 = vcmp.gt.s32.totalorder 0, %v2385
        %v2387 = vsel %vm2386, 0, %v2385
        %v2388 = vsub.s32 32, %v2387
        %v2389 = vshll.u32 %v2380, %v2387
        %v2390 = vshrl.u32 %v2372, %v2388
        %v2391 = vor.u32 %v2389, %v2390
        %v2392 = vsub.s32 4294967266, %v2387
        %v2393 = vadd.s32 %v2392, 127
        %v2394 = vshll.u32 %v2393, 23
        %v2395 = vor.u32 4788187, %v2394
        %v2396 = vand.u32 2147483647, %v2395
        %v2398 = vcvt.s32.f32 %v2391
        %v2399 = vmul.f32 %v2398, %v2396
        %v2400 = vxor.u32 %v2399, 2147483648
        %v2401 = vsel %vm2318, %v2400, %v2399
        %v2402 = vsub.s32 4, %v2378
        %v2403 = vsel %vm2318, %v2402, %v2378
        %v2404 = vsel %vm2317, %v1151, %v2401
        %v2405 = vsel %vm2317, 0, %v2403
        %v2406 = vcosq.f32.pop %v2404
        %v2407 = vsinq.f32.pop %v2404
        %vm2408 = vweird.f32 %v1151
        %v2409 = vadd.s32 %v2405, 3
        %v2410 = vand.u32 %v2409, 3
        %vm2411 = vcmp.lt.s32.totalorder %v2410, 2
        %vm2412 = vcmp.eq.s32.totalorder %v2410, 0
        %v2413 = vxor.u32 %v2407, 2147483648
        %v2414 = vsel %vm2412, %v2406, %v2413
        %vm2415 = vcmp.eq.s32.totalorder %v2410, 2
        %v2416 = vxor.u32 %v2406, 2147483648
        %v2417 = vsel %vm2415, %v2416, %v2407
        %v2418 = vsel %vm2411, %v2414, %v2417
        %v2419 = vsel %vm2408, nan, %v2418
        %v2420 = vand.u32 2147483647, %v1152
        %vm2421 = vcmp.le.f32.partialorder %v2420, 0.7853982
        %vm2422 = vcmp.lt.s32.totalorder %v1152, 0
        %v2423 = vand.u32 %v1152, 2139095040
        %v2424 = vshrl.u32 %v2423, 23
        %v2425 = vsub.s32 %v2424, 127
        %v2426 = vand.u32 2147483647, %v1152
        %v2427 = vand.u32 %v2426, 8388607
        %v2428 = vor.u32 %v2427, 8388608
        %v2429 = vsub.s32 0, %v2428
        %v2430 = vadd.s32 %v2425, 1
        %vm2431 = vcmp.gt.s32.totalorder %v2430, 0
        %v2432 = vsel %vm2431, %v2430, 0
        %v2433 = vshrl.u32 %v2432, 5
        %v2434 = vand.u32 %v2432, 31
        %v2435 = vsub.s32 32, %v2434
        %v2436 = vshrl.u32 683565275, %v2435
        %v2437 = vshll.u32 683565275, %v2434
        %v2438 = vshrl.u32 2475754826, %v2435
        %v2439 = vor.u32 %v2437, %v2438
        %v2440 = vshll.u32 2475754826, %v2434
        %v2441 = vshrl.u32 2131351028, %v2435
        %v2442 = vor.u32 %v2440, %v2441
        %v2443 = vshll.u32 2131351028, %v2434
        %v2444 = vshrl.u32 2102212464, %v2435
        %v2445 = vor.u32 %v2443, %v2444
        %v2446 = vshll.u32 2102212464, %v2434
        %v2447 = vshrl.u32 920167782, %v2435
        %v2448 = vor.u32 %v2446, %v2447
        %v2449 = vshll.u32 920167782, %v2434
        %v2450 = vshrl.u32 1326507024, %v2435
        %v2451 = vor.u32 %v2449, %v2450
        %vm2452 = vcmp.lt.s32.totalorder %v2433, 1
        %vm2453 = vcmp.lt.s32.totalorder %v2433, 2
        %vm2454 = vcmp.lt.s32.totalorder %v2433, 3
        %vm2455 = vcmp.lt.s32.totalorder %v2433, 4
        %v2456 = vsel %vm2452, %v2436, %v2439
        %v2457 = vsel %vm2455, %v2445, 2102212464
        %v2458 = vsel %vm2454, %v2442, %v2457
        %v2459 = vsel %vm2453, %v2456, %v2458
        %v2460 = vsel %vm2452, %v2439, %v2442
        %v2461 = vsel %vm2455, %v2448, 920167782
        %v2462 = vsel %vm2454, %v2445, %v2461
        %v2463 = vsel %vm2453, %v2460, %v2462
        %v2464 = vsel %vm2452, %v2442, %v2445
        %v2465 = vsel %vm2455, %v2451, 1326507024
        %v2466 = vsel %vm2454, %v2448, %v2465
        %v2467 = vsel %vm2453, %v2464, %v2466
        %v2468 = vshll.u32 %v2428, 8
        %v2469 = vmul.u32.u64.compose %v2468, %v2467
        %v2470 = vextract.low.u32 %v2469
        %v2471 = vextract.high.u32 %v2469
        %v2472 = vmul.u32.u64.compose %v2468, %v2463
        %v2473 = vextract.low.u32 %v2472
        %v2474 = vextract.high.u32 %v2472
        %v2475 = vmul.u32 %v2468, %v2459
        %v2476 = vadd.s32 %v2471, %v2473
        %vm2477 = vc.u32 %v2471, %v2473
        %v2478 = vadd.s32 %v2474, 1
        %v2479 = vsel %vm2477, %v2478, %v2474
        %v2480 = vadd.s32 %v2475, %v2479
        %v2481 = vadd.s32 %v2480, 536870912
        %v2482 = vshrl.u32 %v2481, 30
        %v2483 = vshll.u32 %v2482, 30
        %v2484 = vsub.s32 %v2480, %v2483
        %vm2485 = vcmp.lt.s32.totalorder %v2484, 0
        %v2486 = vsub.s32 0, %v2484
        %v2487 = vsel %vm2485, %v2486, %v2484
        %v2488 = vclz %v2487
        %v2489 = vsub.s32 %v2488, 2
        %vm2490 = vcmp.gt.s32.totalorder 0, %v2489
        %v2491 = vsel %vm2490, 0, %v2489
        %v2492 = vsub.s32 32, %v2491
        %v2493 = vshll.u32 %v2484, %v2491
        %v2494 = vshrl.u32 %v2476, %v2492
        %v2495 = vor.u32 %v2493, %v2494
        %v2496 = vsub.s32 4294967266, %v2491
        %v2497 = vadd.s32 %v2496, 127
        %v2498 = vshll.u32 %v2497, 23
        %v2499 = vor.u32 4788187, %v2498
        %v2500 = vand.u32 2147483647, %v2499
        %v2502 = vcvt.s32.f32 %v2495
        %v2503 = vmul.f32 %v2502, %v2500
        %v2504 = vxor.u32 %v2503, 2147483648
        %v2505 = vsel %vm2422, %v2504, %v2503
        %v2506 = vsub.s32 4, %v2482
        %v2507 = vsel %vm2422, %v2506, %v2482
        %v2508 = vsel %vm2421, %v1152, %v2505
        %v2509 = vsel %vm2421, 0, %v2507
        %v2510 = vcosq.f32.pop %v2508
        %v2511 = vsinq.f32.pop %v2508
        %vm2512 = vweird.f32 %v1152
        %v2513 = vadd.s32 %v2509, 3
        %v2514 = vand.u32 %v2513, 3
        %vm2515 = vcmp.lt.s32.totalorder %v2514, 2
        %vm2516 = vcmp.eq.s32.totalorder %v2514, 0
        %v2517 = vxor.u32 %v2511, 2147483648
        %v2518 = vsel %vm2516, %v2510, %v2517
        %vm2519 = vcmp.eq.s32.totalorder %v2514, 2
        %v2520 = vxor.u32 %v2510, 2147483648
        %v2521 = vsel %vm2519, %v2520, %v2511
        %v2522 = vsel %vm2515, %v2518, %v2521
        %v2523 = vsel %vm2512, nan, %v2522
        %v2524 = vand.u32 2147483647, %v1153
        %vm2525 = vcmp.le.f32.partialorder %v2524, 0.7853982
        %vm2526 = vcmp.lt.s32.totalorder %v1153, 0
        %v2527 = vand.u32 %v1153, 2139095040
        %v2528 = vshrl.u32 %v2527, 23
        %v2529 = vsub.s32 %v2528, 127
        %v2530 = vand.u32 2147483647, %v1153
        %v2531 = vand.u32 %v2530, 8388607
        %v2532 = vor.u32 %v2531, 8388608
        %v2533 = vsub.s32 0, %v2532
        %v2534 = vadd.s32 %v2529, 1
        %vm2535 = vcmp.gt.s32.totalorder %v2534, 0
        %v2536 = vsel %vm2535, %v2534, 0
        %v2537 = vshrl.u32 %v2536, 5
        %v2538 = vand.u32 %v2536, 31
        %v2539 = vsub.s32 32, %v2538
        %v2540 = vshrl.u32 683565275, %v2539
        %v2541 = vshll.u32 683565275, %v2538
        %v2542 = vshrl.u32 2475754826, %v2539
        %v2543 = vor.u32 %v2541, %v2542
        %v2544 = vshll.u32 2475754826, %v2538
        %v2545 = vshrl.u32 2131351028, %v2539
        %v2546 = vor.u32 %v2544, %v2545
        %v2547 = vshll.u32 2131351028, %v2538
        %v2548 = vshrl.u32 2102212464, %v2539
        %v2549 = vor.u32 %v2547, %v2548
        %v2550 = vshll.u32 2102212464, %v2538
        %v2551 = vshrl.u32 920167782, %v2539
        %v2552 = vor.u32 %v2550, %v2551
        %v2553 = vshll.u32 920167782, %v2538
        %v2554 = vshrl.u32 1326507024, %v2539
        %v2555 = vor.u32 %v2553, %v2554
        %vm2556 = vcmp.lt.s32.totalorder %v2537, 1
        %vm2557 = vcmp.lt.s32.totalorder %v2537, 2
        %vm2558 = vcmp.lt.s32.totalorder %v2537, 3
        %vm2559 = vcmp.lt.s32.totalorder %v2537, 4
        %v2560 = vsel %vm2556, %v2540, %v2543
        %v2561 = vsel %vm2559, %v2549, 2102212464
        %v2562 = vsel %vm2558, %v2546, %v2561
        %v2563 = vsel %vm2557, %v2560, %v2562
        %v2564 = vsel %vm2556, %v2543, %v2546
        %v2565 = vsel %vm2559, %v2552, 920167782
        %v2566 = vsel %vm2558, %v2549, %v2565
        %v2567 = vsel %vm2557, %v2564, %v2566
        %v2568 = vsel %vm2556, %v2546, %v2549
        %v2569 = vsel %vm2559, %v2555, 1326507024
        %v2570 = vsel %vm2558, %v2552, %v2569
        %v2571 = vsel %vm2557, %v2568, %v2570
        %v2572 = vshll.u32 %v2532, 8
        %v2573 = vmul.u32.u64.compose %v2572, %v2571
        %v2574 = vextract.low.u32 %v2573
        %v2575 = vextract.high.u32 %v2573
        %v2576 = vmul.u32.u64.compose %v2572, %v2567
        %v2577 = vextract.low.u32 %v2576
        %v2578 = vextract.high.u32 %v2576
        %v2579 = vmul.u32 %v2572, %v2563
        %v2580 = vadd.s32 %v2575, %v2577
        %vm2581 = vc.u32 %v2575, %v2577
        %v2582 = vadd.s32 %v2578, 1
        %v2583 = vsel %vm2581, %v2582, %v2578
        %v2584 = vadd.s32 %v2579, %v2583
        %v2585 = vadd.s32 %v2584, 536870912
        %v2586 = vshrl.u32 %v2585, 30
        %v2587 = vshll.u32 %v2586, 30
        %v2588 = vsub.s32 %v2584, %v2587
        %vm2589 = vcmp.lt.s32.totalorder %v2588, 0
        %v2590 = vsub.s32 0, %v2588
        %v2591 = vsel %vm2589, %v2590, %v2588
        %v2592 = vclz %v2591
        %v2593 = vsub.s32 %v2592, 2
        %vm2594 = vcmp.gt.s32.totalorder 0, %v2593
        %v2595 = vsel %vm2594, 0, %v2593
        %v2596 = vsub.s32 32, %v2595
        %v2597 = vshll.u32 %v2588, %v2595
        %v2598 = vshrl.u32 %v2580, %v2596
        %v2599 = vor.u32 %v2597, %v2598
        %v2600 = vsub.s32 4294967266, %v2595
        %v2601 = vadd.s32 %v2600, 127
        %v2602 = vshll.u32 %v2601, 23
        %v2603 = vor.u32 4788187, %v2602
        %v2604 = vand.u32 2147483647, %v2603
        %v2606 = vcvt.s32.f32 %v2599
        %v2607 = vmul.f32 %v2606, %v2604
        %v2608 = vxor.u32 %v2607, 2147483648
        %v2609 = vsel %vm2526, %v2608, %v2607
        %v2610 = vsub.s32 4, %v2586
        %v2611 = vsel %vm2526, %v2610, %v2586
        %v2612 = vsel %vm2525, %v1153, %v2609
        %v2613 = vsel %vm2525, 0, %v2611
        %v2614 = vcosq.f32.pop %v2612
        %v2615 = vsinq.f32.pop %v2612
        %vm2616 = vweird.f32 %v1153
        %v2617 = vadd.s32 %v2613, 3
        %v2618 = vand.u32 %v2617, 3
        %vm2619 = vcmp.lt.s32.totalorder %v2618, 2
        %vm2620 = vcmp.eq.s32.totalorder %v2618, 0
        %v2621 = vxor.u32 %v2615, 2147483648
        %v2622 = vsel %vm2620, %v2614, %v2621
        %vm2623 = vcmp.eq.s32.totalorder %v2618, 2
        %v2624 = vxor.u32 %v2614, 2147483648
        %v2625 = vsel %vm2623, %v2624, %v2615
        %v2626 = vsel %vm2619, %v2622, %v2625
        %v2627 = vsel %vm2616, nan, %v2626
        %v2628 = vand.u32 2147483647, %v1154
        %vm2629 = vcmp.le.f32.partialorder %v2628, 0.7853982
        %vm2630 = vcmp.lt.s32.totalorder %v1154, 0
        %v2631 = vand.u32 %v1154, 2139095040
        %v2632 = vshrl.u32 %v2631, 23
        %v2633 = vsub.s32 %v2632, 127
        %v2634 = vand.u32 2147483647, %v1154
        %v2635 = vand.u32 %v2634, 8388607
        %v2636 = vor.u32 %v2635, 8388608
        %v2637 = vsub.s32 0, %v2636
        %v2638 = vadd.s32 %v2633, 1
        %vm2639 = vcmp.gt.s32.totalorder %v2638, 0
        %v2640 = vsel %vm2639, %v2638, 0
        %v2641 = vshrl.u32 %v2640, 5
        %v2642 = vand.u32 %v2640, 31
        %v2643 = vsub.s32 32, %v2642
        %v2644 = vshrl.u32 683565275, %v2643
        %v2645 = vshll.u32 683565275, %v2642
        %v2646 = vshrl.u32 2475754826, %v2643
        %v2647 = vor.u32 %v2645, %v2646
        %v2648 = vshll.u32 2475754826, %v2642
        %v2649 = vshrl.u32 2131351028, %v2643
        %v2650 = vor.u32 %v2648, %v2649
        %v2651 = vshll.u32 2131351028, %v2642
        %v2652 = vshrl.u32 2102212464, %v2643
        %v2653 = vor.u32 %v2651, %v2652
        %v2654 = vshll.u32 2102212464, %v2642
        %v2655 = vshrl.u32 920167782, %v2643
        %v2656 = vor.u32 %v2654, %v2655
        %v2657 = vshll.u32 920167782, %v2642
        %v2658 = vshrl.u32 1326507024, %v2643
        %v2659 = vor.u32 %v2657, %v2658
        %vm2660 = vcmp.lt.s32.totalorder %v2641, 1
        %vm2661 = vcmp.lt.s32.totalorder %v2641, 2
        %vm2662 = vcmp.lt.s32.totalorder %v2641, 3
        %vm2663 = vcmp.lt.s32.totalorder %v2641, 4
        %v2664 = vsel %vm2660, %v2644, %v2647
        %v2665 = vsel %vm2663, %v2653, 2102212464
        %v2666 = vsel %vm2662, %v2650, %v2665
        %v2667 = vsel %vm2661, %v2664, %v2666
        %v2668 = vsel %vm2660, %v2647, %v2650
        %v2669 = vsel %vm2663, %v2656, 920167782
        %v2670 = vsel %vm2662, %v2653, %v2669
        %v2671 = vsel %vm2661, %v2668, %v2670
        %v2672 = vsel %vm2660, %v2650, %v2653
        %v2673 = vsel %vm2663, %v2659, 1326507024
        %v2674 = vsel %vm2662, %v2656, %v2673
        %v2675 = vsel %vm2661, %v2672, %v2674
        %v2676 = vshll.u32 %v2636, 8
        %v2677 = vmul.u32.u64.compose %v2676, %v2675
        %v2678 = vextract.low.u32 %v2677
        %v2679 = vextract.high.u32 %v2677
        %v2680 = vmul.u32.u64.compose %v2676, %v2671
        %v2681 = vextract.low.u32 %v2680
        %v2682 = vextract.high.u32 %v2680
        %v2683 = vmul.u32 %v2676, %v2667
        %v2684 = vadd.s32 %v2679, %v2681
        %vm2685 = vc.u32 %v2679, %v2681
        %v2686 = vadd.s32 %v2682, 1
        %v2687 = vsel %vm2685, %v2686, %v2682
        %v2688 = vadd.s32 %v2683, %v2687
        %v2689 = vadd.s32 %v2688, 536870912
        %v2690 = vshrl.u32 %v2689, 30
        %v2691 = vshll.u32 %v2690, 30
        %v2692 = vsub.s32 %v2688, %v2691
        %vm2693 = vcmp.lt.s32.totalorder %v2692, 0
        %v2694 = vsub.s32 0, %v2692
        %v2695 = vsel %vm2693, %v2694, %v2692
        %v2696 = vclz %v2695
        %v2697 = vsub.s32 %v2696, 2
        %vm2698 = vcmp.gt.s32.totalorder 0, %v2697
        %v2699 = vsel %vm2698, 0, %v2697
        %v2700 = vsub.s32 32, %v2699
        %v2701 = vshll.u32 %v2692, %v2699
        %v2702 = vshrl.u32 %v2684, %v2700
        %v2703 = vor.u32 %v2701, %v2702
        %v2704 = vsub.s32 4294967266, %v2699
        %v2705 = vadd.s32 %v2704, 127
        %v2706 = vshll.u32 %v2705, 23
        %v2707 = vor.u32 4788187, %v2706
        %v2708 = vand.u32 2147483647, %v2707
        %v2710 = vcvt.s32.f32 %v2703
        %v2711 = vmul.f32 %v2710, %v2708
        %v2712 = vxor.u32 %v2711, 2147483648
        %v2713 = vsel %vm2630, %v2712, %v2711
        %v2714 = vsub.s32 4, %v2690
        %v2715 = vsel %vm2630, %v2714, %v2690
        %v2716 = vsel %vm2629, %v1154, %v2713
        %v2717 = vsel %vm2629, 0, %v2715
        %v2718 = vcosq.f32.pop %v2716
        %v2719 = vsinq.f32.pop %v2716
        %vm2720 = vweird.f32 %v1154
        %v2721 = vadd.s32 %v2717, 3
        %v2722 = vand.u32 %v2721, 3
        %vm2723 = vcmp.lt.s32.totalorder %v2722, 2
        %vm2724 = vcmp.eq.s32.totalorder %v2722, 0
        %v2725 = vxor.u32 %v2719, 2147483648
        %v2726 = vsel %vm2724, %v2718, %v2725
        %vm2727 = vcmp.eq.s32.totalorder %v2722, 2
        %v2728 = vxor.u32 %v2718, 2147483648
        %v2729 = vsel %vm2727, %v2728, %v2719
        %v2730 = vsel %vm2723, %v2726, %v2729
        %v2731 = vsel %vm2720, nan, %v2730
        %v2732 = vand.u32 2147483647, %v1155
        %vm2733 = vcmp.le.f32.partialorder %v2732, 0.7853982
        %vm2734 = vcmp.lt.s32.totalorder %v1155, 0
        %v2735 = vand.u32 %v1155, 2139095040
        %v2736 = vshrl.u32 %v2735, 23
        %v2737 = vsub.s32 %v2736, 127
        %v2738 = vand.u32 2147483647, %v1155
        %v2739 = vand.u32 %v2738, 8388607
        %v2740 = vor.u32 %v2739, 8388608
        %v2741 = vsub.s32 0, %v2740
        %v2742 = vadd.s32 %v2737, 1
        %vm2743 = vcmp.gt.s32.totalorder %v2742, 0
        %v2744 = vsel %vm2743, %v2742, 0
        %v2745 = vshrl.u32 %v2744, 5
        %v2746 = vand.u32 %v2744, 31
        %v2747 = vsub.s32 32, %v2746
        %v2748 = vshrl.u32 683565275, %v2747
        %v2749 = vshll.u32 683565275, %v2746
        %v2750 = vshrl.u32 2475754826, %v2747
        %v2751 = vor.u32 %v2749, %v2750
        %v2752 = vshll.u32 2475754826, %v2746
        %v2753 = vshrl.u32 2131351028, %v2747
        %v2754 = vor.u32 %v2752, %v2753
        %v2755 = vshll.u32 2131351028, %v2746
        %v2756 = vshrl.u32 2102212464, %v2747
        %v2757 = vor.u32 %v2755, %v2756
        %v2758 = vshll.u32 2102212464, %v2746
        %v2759 = vshrl.u32 920167782, %v2747
        %v2760 = vor.u32 %v2758, %v2759
        %v2761 = vshll.u32 920167782, %v2746
        %v2762 = vshrl.u32 1326507024, %v2747
        %v2763 = vor.u32 %v2761, %v2762
        %vm2764 = vcmp.lt.s32.totalorder %v2745, 1
        %vm2765 = vcmp.lt.s32.totalorder %v2745, 2
        %vm2766 = vcmp.lt.s32.totalorder %v2745, 3
        %vm2767 = vcmp.lt.s32.totalorder %v2745, 4
        %v2768 = vsel %vm2764, %v2748, %v2751
        %v2769 = vsel %vm2767, %v2757, 2102212464
        %v2770 = vsel %vm2766, %v2754, %v2769
        %v2771 = vsel %vm2765, %v2768, %v2770
        %v2772 = vsel %vm2764, %v2751, %v2754
        %v2773 = vsel %vm2767, %v2760, 920167782
        %v2774 = vsel %vm2766, %v2757, %v2773
        %v2775 = vsel %vm2765, %v2772, %v2774
        %v2776 = vsel %vm2764, %v2754, %v2757
        %v2777 = vsel %vm2767, %v2763, 1326507024
        %v2778 = vsel %vm2766, %v2760, %v2777
        %v2779 = vsel %vm2765, %v2776, %v2778
        %v2780 = vshll.u32 %v2740, 8
        %v2781 = vmul.u32.u64.compose %v2780, %v2779
        %v2782 = vextract.low.u32 %v2781
        %v2783 = vextract.high.u32 %v2781
        %v2784 = vmul.u32.u64.compose %v2780, %v2775
        %v2785 = vextract.low.u32 %v2784
        %v2786 = vextract.high.u32 %v2784
        %v2787 = vmul.u32 %v2780, %v2771
        %v2788 = vadd.s32 %v2783, %v2785
        %vm2789 = vc.u32 %v2783, %v2785
        %v2790 = vadd.s32 %v2786, 1
        %v2791 = vsel %vm2789, %v2790, %v2786
        %v2792 = vadd.s32 %v2787, %v2791
        %v2793 = vadd.s32 %v2792, 536870912
        %v2794 = vshrl.u32 %v2793, 30
        %v2795 = vshll.u32 %v2794, 30
        %v2796 = vsub.s32 %v2792, %v2795
        %vm2797 = vcmp.lt.s32.totalorder %v2796, 0
        %v2798 = vsub.s32 0, %v2796
        %v2799 = vsel %vm2797, %v2798, %v2796
        %v2800 = vclz %v2799
        %v2801 = vsub.s32 %v2800, 2
        %vm2802 = vcmp.gt.s32.totalorder 0, %v2801
        %v2803 = vsel %vm2802, 0, %v2801
        %v2804 = vsub.s32 32, %v2803
        %v2805 = vshll.u32 %v2796, %v2803
        %v2806 = vshrl.u32 %v2788, %v2804
        %v2807 = vor.u32 %v2805, %v2806
        %v2808 = vsub.s32 4294967266, %v2803
        %v2809 = vadd.s32 %v2808, 127
        %v2810 = vshll.u32 %v2809, 23
        %v2811 = vor.u32 4788187, %v2810
        %v2812 = vand.u32 2147483647, %v2811
        %v2814 = vcvt.s32.f32 %v2807
        %v2815 = vmul.f32 %v2814, %v2812
        %v2816 = vxor.u32 %v2815, 2147483648
        %v2817 = vsel %vm2734, %v2816, %v2815
        %v2818 = vsub.s32 4, %v2794
        %v2819 = vsel %vm2734, %v2818, %v2794
        %v2820 = vsel %vm2733, %v1155, %v2817
        %v2821 = vsel %vm2733, 0, %v2819
        %v2822 = vcosq.f32.pop %v2820
        %v2823 = vsinq.f32.pop %v2820
        %vm2824 = vweird.f32 %v1155
        %v2825 = vadd.s32 %v2821, 3
        %v2826 = vand.u32 %v2825, 3
        %vm2827 = vcmp.lt.s32.totalorder %v2826, 2
        %vm2828 = vcmp.eq.s32.totalorder %v2826, 0
        %v2829 = vxor.u32 %v2823, 2147483648
        %v2830 = vsel %vm2828, %v2822, %v2829
        %vm2831 = vcmp.eq.s32.totalorder %v2826, 2
        %v2832 = vxor.u32 %v2822, 2147483648
        %v2833 = vsel %vm2831, %v2832, %v2823
        %v2834 = vsel %vm2827, %v2830, %v2833
        %v2835 = vsel %vm2824, nan, %v2834
        %v2836 = vand.u32 2147483647, %v1156
        %vm2837 = vcmp.le.f32.partialorder %v2836, 0.7853982
        %vm2838 = vcmp.lt.s32.totalorder %v1156, 0
        %v2839 = vand.u32 %v1156, 2139095040
        %v2840 = vshrl.u32 %v2839, 23
        %v2841 = vsub.s32 %v2840, 127
        %v2842 = vand.u32 2147483647, %v1156
        %v2843 = vand.u32 %v2842, 8388607
        %v2844 = vor.u32 %v2843, 8388608
        %v2845 = vsub.s32 0, %v2844
        %v2846 = vadd.s32 %v2841, 1
        %vm2847 = vcmp.gt.s32.totalorder %v2846, 0
        %v2848 = vsel %vm2847, %v2846, 0
        %v2849 = vshrl.u32 %v2848, 5
        %v2850 = vand.u32 %v2848, 31
        %v2851 = vsub.s32 32, %v2850
        %v2852 = vshrl.u32 683565275, %v2851
        %v2853 = vshll.u32 683565275, %v2850
        %v2854 = vshrl.u32 2475754826, %v2851
        %v2855 = vor.u32 %v2853, %v2854
        %v2856 = vshll.u32 2475754826, %v2850
        %v2857 = vshrl.u32 2131351028, %v2851
        %v2858 = vor.u32 %v2856, %v2857
        %v2859 = vshll.u32 2131351028, %v2850
        %v2860 = vshrl.u32 2102212464, %v2851
        %v2861 = vor.u32 %v2859, %v2860
        %v2862 = vshll.u32 2102212464, %v2850
        %v2863 = vshrl.u32 920167782, %v2851
        %v2864 = vor.u32 %v2862, %v2863
        %v2865 = vshll.u32 920167782, %v2850
        %v2866 = vshrl.u32 1326507024, %v2851
        %v2867 = vor.u32 %v2865, %v2866
        %vm2868 = vcmp.lt.s32.totalorder %v2849, 1
        %vm2869 = vcmp.lt.s32.totalorder %v2849, 2
        %vm2870 = vcmp.lt.s32.totalorder %v2849, 3
        %vm2871 = vcmp.lt.s32.totalorder %v2849, 4
        %v2872 = vsel %vm2868, %v2852, %v2855
        %v2873 = vsel %vm2871, %v2861, 2102212464
        %v2874 = vsel %vm2870, %v2858, %v2873
        %v2875 = vsel %vm2869, %v2872, %v2874
        %v2876 = vsel %vm2868, %v2855, %v2858
        %v2877 = vsel %vm2871, %v2864, 920167782
        %v2878 = vsel %vm2870, %v2861, %v2877
        %v2879 = vsel %vm2869, %v2876, %v2878
        %v2880 = vsel %vm2868, %v2858, %v2861
        %v2881 = vsel %vm2871, %v2867, 1326507024
        %v2882 = vsel %vm2870, %v2864, %v2881
        %v2883 = vsel %vm2869, %v2880, %v2882
        %v2884 = vshll.u32 %v2844, 8
        %v2885 = vmul.u32.u64.compose %v2884, %v2883
        %v2886 = vextract.low.u32 %v2885
        %v2887 = vextract.high.u32 %v2885
        %v2888 = vmul.u32.u64.compose %v2884, %v2879
        %v2889 = vextract.low.u32 %v2888
        %v2890 = vextract.high.u32 %v2888
        %v2891 = vmul.u32 %v2884, %v2875
        %v2892 = vadd.s32 %v2887, %v2889
        %vm2893 = vc.u32 %v2887, %v2889
        %v2894 = vadd.s32 %v2890, 1
        %v2895 = vsel %vm2893, %v2894, %v2890
        %v2896 = vadd.s32 %v2891, %v2895
        %v2897 = vadd.s32 %v2896, 536870912
        %v2898 = vshrl.u32 %v2897, 30
        %v2899 = vshll.u32 %v2898, 30
        %v2900 = vsub.s32 %v2896, %v2899
        %vm2901 = vcmp.lt.s32.totalorder %v2900, 0
        %v2902 = vsub.s32 0, %v2900
        %v2903 = vsel %vm2901, %v2902, %v2900
        %v2904 = vclz %v2903
        %v2905 = vsub.s32 %v2904, 2
        %vm2906 = vcmp.gt.s32.totalorder 0, %v2905
        %v2907 = vsel %vm2906, 0, %v2905
        %v2908 = vsub.s32 32, %v2907
        %v2909 = vshll.u32 %v2900, %v2907
        %v2910 = vshrl.u32 %v2892, %v2908
        %v2911 = vor.u32 %v2909, %v2910
        %v2912 = vsub.s32 4294967266, %v2907
        %v2913 = vadd.s32 %v2912, 127
        %v2914 = vshll.u32 %v2913, 23
        %v2915 = vor.u32 4788187, %v2914
        %v2916 = vand.u32 2147483647, %v2915
        %v2918 = vcvt.s32.f32 %v2911
        %v2919 = vmul.f32 %v2918, %v2916
        %v2920 = vxor.u32 %v2919, 2147483648
        %v2921 = vsel %vm2838, %v2920, %v2919
        %v2922 = vsub.s32 4, %v2898
        %v2923 = vsel %vm2838, %v2922, %v2898
        %v2924 = vsel %vm2837, %v1156, %v2921
        %v2925 = vsel %vm2837, 0, %v2923
        %v2926 = vcosq.f32.pop %v2924
        %v2927 = vsinq.f32.pop %v2924
        %vm2928 = vweird.f32 %v1156
        %v2929 = vadd.s32 %v2925, 3
        %v2930 = vand.u32 %v2929, 3
        %vm2931 = vcmp.lt.s32.totalorder %v2930, 2
        %vm2932 = vcmp.eq.s32.totalorder %v2930, 0
        %v2933 = vxor.u32 %v2927, 2147483648
        %v2934 = vsel %vm2932, %v2926, %v2933
        %vm2935 = vcmp.eq.s32.totalorder %v2930, 2
        %v2936 = vxor.u32 %v2926, 2147483648
        %v2937 = vsel %vm2935, %v2936, %v2927
        %v2938 = vsel %vm2931, %v2934, %v2937
        %v2939 = vsel %vm2928, nan, %v2938
        %v2940 = vand.u32 2147483647, %v1157
        %vm2941 = vcmp.le.f32.partialorder %v2940, 0.7853982
        %vm2942 = vcmp.lt.s32.totalorder %v1157, 0
        %v2943 = vand.u32 %v1157, 2139095040
        %v2944 = vshrl.u32 %v2943, 23
        %v2945 = vsub.s32 %v2944, 127
        %v2946 = vand.u32 2147483647, %v1157
        %v2947 = vand.u32 %v2946, 8388607
        %v2948 = vor.u32 %v2947, 8388608
        %v2949 = vsub.s32 0, %v2948
        %v2950 = vadd.s32 %v2945, 1
        %vm2951 = vcmp.gt.s32.totalorder %v2950, 0
        %v2952 = vsel %vm2951, %v2950, 0
        %v2953 = vshrl.u32 %v2952, 5
        %v2954 = vand.u32 %v2952, 31
        %v2955 = vsub.s32 32, %v2954
        %v2956 = vshrl.u32 683565275, %v2955
        %v2957 = vshll.u32 683565275, %v2954
        %v2958 = vshrl.u32 2475754826, %v2955
        %v2959 = vor.u32 %v2957, %v2958
        %v2960 = vshll.u32 2475754826, %v2954
        %v2961 = vshrl.u32 2131351028, %v2955
        %v2962 = vor.u32 %v2960, %v2961
        %v2963 = vshll.u32 2131351028, %v2954
        %v2964 = vshrl.u32 2102212464, %v2955
        %v2965 = vor.u32 %v2963, %v2964
        %v2966 = vshll.u32 2102212464, %v2954
        %v2967 = vshrl.u32 920167782, %v2955
        %v2968 = vor.u32 %v2966, %v2967
        %v2969 = vshll.u32 920167782, %v2954
        %v2970 = vshrl.u32 1326507024, %v2955
        %v2971 = vor.u32 %v2969, %v2970
        %vm2972 = vcmp.lt.s32.totalorder %v2953, 1
        %vm2973 = vcmp.lt.s32.totalorder %v2953, 2
        %vm2974 = vcmp.lt.s32.totalorder %v2953, 3
        %vm2975 = vcmp.lt.s32.totalorder %v2953, 4
        %v2976 = vsel %vm2972, %v2956, %v2959
        %v2977 = vsel %vm2975, %v2965, 2102212464
        %v2978 = vsel %vm2974, %v2962, %v2977
        %v2979 = vsel %vm2973, %v2976, %v2978
        %v2980 = vsel %vm2972, %v2959, %v2962
        %v2981 = vsel %vm2975, %v2968, 920167782
        %v2982 = vsel %vm2974, %v2965, %v2981
        %v2983 = vsel %vm2973, %v2980, %v2982
        %v2984 = vsel %vm2972, %v2962, %v2965
        %v2985 = vsel %vm2975, %v2971, 1326507024
        %v2986 = vsel %vm2974, %v2968, %v2985
        %v2987 = vsel %vm2973, %v2984, %v2986
        %v2988 = vshll.u32 %v2948, 8
        %v2989 = vmul.u32.u64.compose %v2988, %v2987
        %v2990 = vextract.low.u32 %v2989
        %v2991 = vextract.high.u32 %v2989
        %v2992 = vmul.u32.u64.compose %v2988, %v2983
        %v2993 = vextract.low.u32 %v2992
        %v2994 = vextract.high.u32 %v2992
        %v2995 = vmul.u32 %v2988, %v2979
        %v2996 = vadd.s32 %v2991, %v2993
        %vm2997 = vc.u32 %v2991, %v2993
        %v2998 = vadd.s32 %v2994, 1
        %v2999 = vsel %vm2997, %v2998, %v2994
        %v3000 = vadd.s32 %v2995, %v2999
        %v3001 = vadd.s32 %v3000, 536870912
        %v3002 = vshrl.u32 %v3001, 30
        %v3003 = vshll.u32 %v3002, 30
        %v3004 = vsub.s32 %v3000, %v3003
        %vm3005 = vcmp.lt.s32.totalorder %v3004, 0
        %v3006 = vsub.s32 0, %v3004
        %v3007 = vsel %vm3005, %v3006, %v3004
        %v3008 = vclz %v3007
        %v3009 = vsub.s32 %v3008, 2
        %vm3010 = vcmp.gt.s32.totalorder 0, %v3009
        %v3011 = vsel %vm3010, 0, %v3009
        %v3012 = vsub.s32 32, %v3011
        %v3013 = vshll.u32 %v3004, %v3011
        %v3014 = vshrl.u32 %v2996, %v3012
        %v3015 = vor.u32 %v3013, %v3014
        %v3016 = vsub.s32 4294967266, %v3011
        %v3017 = vadd.s32 %v3016, 127
        %v3018 = vshll.u32 %v3017, 23
        %v3019 = vor.u32 4788187, %v3018
        %v3020 = vand.u32 2147483647, %v3019
        %v3022 = vcvt.s32.f32 %v3015
        %v3023 = vmul.f32 %v3022, %v3020
        %v3024 = vxor.u32 %v3023, 2147483648
        %v3025 = vsel %vm2942, %v3024, %v3023
        %v3026 = vsub.s32 4, %v3002
        %v3027 = vsel %vm2942, %v3026, %v3002
        %v3028 = vsel %vm2941, %v1157, %v3025
        %v3029 = vsel %vm2941, 0, %v3027
        %v3030 = vcosq.f32.pop %v3028
        %v3031 = vsinq.f32.pop %v3028
        %vm3032 = vweird.f32 %v1157
        %v3033 = vadd.s32 %v3029, 3
        %v3034 = vand.u32 %v3033, 3
        %vm3035 = vcmp.lt.s32.totalorder %v3034, 2
        %vm3036 = vcmp.eq.s32.totalorder %v3034, 0
        %v3037 = vxor.u32 %v3031, 2147483648
        %v3038 = vsel %vm3036, %v3030, %v3037
        %vm3039 = vcmp.eq.s32.totalorder %v3034, 2
        %v3040 = vxor.u32 %v3030, 2147483648
        %v3041 = vsel %vm3039, %v3040, %v3031
        %v3042 = vsel %vm3035, %v3038, %v3041
        %v3043 = vsel %vm3032, nan, %v3042
        %v3044 = vand.u32 2147483647, %v1158
        %vm3045 = vcmp.le.f32.partialorder %v3044, 0.7853982
        %vm3046 = vcmp.lt.s32.totalorder %v1158, 0
        %v3047 = vand.u32 %v1158, 2139095040
        %v3048 = vshrl.u32 %v3047, 23
        %v3049 = vsub.s32 %v3048, 127
        %v3050 = vand.u32 2147483647, %v1158
        %v3051 = vand.u32 %v3050, 8388607
        %v3052 = vor.u32 %v3051, 8388608
        %v3053 = vsub.s32 0, %v3052
        %v3054 = vadd.s32 %v3049, 1
        %vm3055 = vcmp.gt.s32.totalorder %v3054, 0
        %v3056 = vsel %vm3055, %v3054, 0
        %v3057 = vshrl.u32 %v3056, 5
        %v3058 = vand.u32 %v3056, 31
        %v3059 = vsub.s32 32, %v3058
        %v3060 = vshrl.u32 683565275, %v3059
        %v3061 = vshll.u32 683565275, %v3058
        %v3062 = vshrl.u32 2475754826, %v3059
        %v3063 = vor.u32 %v3061, %v3062
        %v3064 = vshll.u32 2475754826, %v3058
        %v3065 = vshrl.u32 2131351028, %v3059
        %v3066 = vor.u32 %v3064, %v3065
        %v3067 = vshll.u32 2131351028, %v3058
        %v3068 = vshrl.u32 2102212464, %v3059
        %v3069 = vor.u32 %v3067, %v3068
        %v3070 = vshll.u32 2102212464, %v3058
        %v3071 = vshrl.u32 920167782, %v3059
        %v3072 = vor.u32 %v3070, %v3071
        %v3073 = vshll.u32 920167782, %v3058
        %v3074 = vshrl.u32 1326507024, %v3059
        %v3075 = vor.u32 %v3073, %v3074
        %vm3076 = vcmp.lt.s32.totalorder %v3057, 1
        %vm3077 = vcmp.lt.s32.totalorder %v3057, 2
        %vm3078 = vcmp.lt.s32.totalorder %v3057, 3
        %vm3079 = vcmp.lt.s32.totalorder %v3057, 4
        %v3080 = vsel %vm3076, %v3060, %v3063
        %v3081 = vsel %vm3079, %v3069, 2102212464
        %v3082 = vsel %vm3078, %v3066, %v3081
        %v3083 = vsel %vm3077, %v3080, %v3082
        %v3084 = vsel %vm3076, %v3063, %v3066
        %v3085 = vsel %vm3079, %v3072, 920167782
        %v3086 = vsel %vm3078, %v3069, %v3085
        %v3087 = vsel %vm3077, %v3084, %v3086
        %v3088 = vsel %vm3076, %v3066, %v3069
        %v3089 = vsel %vm3079, %v3075, 1326507024
        %v3090 = vsel %vm3078, %v3072, %v3089
        %v3091 = vsel %vm3077, %v3088, %v3090
        %v3092 = vshll.u32 %v3052, 8
        %v3093 = vmul.u32.u64.compose %v3092, %v3091
        %v3094 = vextract.low.u32 %v3093
        %v3095 = vextract.high.u32 %v3093
        %v3096 = vmul.u32.u64.compose %v3092, %v3087
        %v3097 = vextract.low.u32 %v3096
        %v3098 = vextract.high.u32 %v3096
        %v3099 = vmul.u32 %v3092, %v3083
        %v3100 = vadd.s32 %v3095, %v3097
        %vm3101 = vc.u32 %v3095, %v3097
        %v3102 = vadd.s32 %v3098, 1
        %v3103 = vsel %vm3101, %v3102, %v3098
        %v3104 = vadd.s32 %v3099, %v3103
        %v3105 = vadd.s32 %v3104, 536870912
        %v3106 = vshrl.u32 %v3105, 30
        %v3107 = vshll.u32 %v3106, 30
        %v3108 = vsub.s32 %v3104, %v3107
        %vm3109 = vcmp.lt.s32.totalorder %v3108, 0
        %v3110 = vsub.s32 0, %v3108
        %v3111 = vsel %vm3109, %v3110, %v3108
        %v3112 = vclz %v3111
        %v3113 = vsub.s32 %v3112, 2
        %vm3114 = vcmp.gt.s32.totalorder 0, %v3113
        %v3115 = vsel %vm3114, 0, %v3113
        %v3116 = vsub.s32 32, %v3115
        %v3117 = vshll.u32 %v3108, %v3115
        %v3118 = vshrl.u32 %v3100, %v3116
        %v3119 = vor.u32 %v3117, %v3118
        %v3120 = vsub.s32 4294967266, %v3115
        %v3121 = vadd.s32 %v3120, 127
        %v3122 = vshll.u32 %v3121, 23
        %v3123 = vor.u32 4788187, %v3122
        %v3124 = vand.u32 2147483647, %v3123
        %v3126 = vcvt.s32.f32 %v3119
        %v3127 = vmul.f32 %v3126, %v3124
        %v3128 = vxor.u32 %v3127, 2147483648
        %v3129 = vsel %vm3046, %v3128, %v3127
        %v3130 = vsub.s32 4, %v3106
        %v3131 = vsel %vm3046, %v3130, %v3106
        %v3132 = vsel %vm3045, %v1158, %v3129
        %v3133 = vsel %vm3045, 0, %v3131
        %v3134 = vcosq.f32.pop %v3132
        %v3135 = vsinq.f32.pop %v3132
        %vm3136 = vweird.f32 %v1158
        %v3137 = vadd.s32 %v3133, 3
        %v3138 = vand.u32 %v3137, 3
        %vm3139 = vcmp.lt.s32.totalorder %v3138, 2
        %vm3140 = vcmp.eq.s32.totalorder %v3138, 0
        %v3141 = vxor.u32 %v3135, 2147483648
        %v3142 = vsel %vm3140, %v3134, %v3141
        %vm3143 = vcmp.eq.s32.totalorder %v3138, 2
        %v3144 = vxor.u32 %v3134, 2147483648
        %v3145 = vsel %vm3143, %v3144, %v3135
        %v3146 = vsel %vm3139, %v3142, %v3145
        %v3147 = vsel %vm3136, nan, %v3146
        %v3148 = vand.u32 2147483647, %v1159
        %vm3149 = vcmp.le.f32.partialorder %v3148, 0.7853982
        %vm3150 = vcmp.lt.s32.totalorder %v1159, 0
        %v3151 = vand.u32 %v1159, 2139095040
        %v3152 = vshrl.u32 %v3151, 23
        %v3153 = vsub.s32 %v3152, 127
        %v3154 = vand.u32 2147483647, %v1159
        %v3155 = vand.u32 %v3154, 8388607
        %v3156 = vor.u32 %v3155, 8388608
        %v3157 = vsub.s32 0, %v3156
        %v3158 = vadd.s32 %v3153, 1
        %vm3159 = vcmp.gt.s32.totalorder %v3158, 0
        %v3160 = vsel %vm3159, %v3158, 0
        %v3161 = vshrl.u32 %v3160, 5
        %v3162 = vand.u32 %v3160, 31
        %v3163 = vsub.s32 32, %v3162
        %v3164 = vshrl.u32 683565275, %v3163
        %v3165 = vshll.u32 683565275, %v3162
        %v3166 = vshrl.u32 2475754826, %v3163
        %v3167 = vor.u32 %v3165, %v3166
        %v3168 = vshll.u32 2475754826, %v3162
        %v3169 = vshrl.u32 2131351028, %v3163
        %v3170 = vor.u32 %v3168, %v3169
        %v3171 = vshll.u32 2131351028, %v3162
        %v3172 = vshrl.u32 2102212464, %v3163
        %v3173 = vor.u32 %v3171, %v3172
        %v3174 = vshll.u32 2102212464, %v3162
        %v3175 = vshrl.u32 920167782, %v3163
        %v3176 = vor.u32 %v3174, %v3175
        %v3177 = vshll.u32 920167782, %v3162
        %v3178 = vshrl.u32 1326507024, %v3163
        %v3179 = vor.u32 %v3177, %v3178
        %vm3180 = vcmp.lt.s32.totalorder %v3161, 1
        %vm3181 = vcmp.lt.s32.totalorder %v3161, 2
        %vm3182 = vcmp.lt.s32.totalorder %v3161, 3
        %vm3183 = vcmp.lt.s32.totalorder %v3161, 4
        %v3184 = vsel %vm3180, %v3164, %v3167
        %v3185 = vsel %vm3183, %v3173, 2102212464
        %v3186 = vsel %vm3182, %v3170, %v3185
        %v3187 = vsel %vm3181, %v3184, %v3186
        %v3188 = vsel %vm3180, %v3167, %v3170
        %v3189 = vsel %vm3183, %v3176, 920167782
        %v3190 = vsel %vm3182, %v3173, %v3189
        %v3191 = vsel %vm3181, %v3188, %v3190
        %v3192 = vsel %vm3180, %v3170, %v3173
        %v3193 = vsel %vm3183, %v3179, 1326507024
        %v3194 = vsel %vm3182, %v3176, %v3193
        %v3195 = vsel %vm3181, %v3192, %v3194
        %v3196 = vshll.u32 %v3156, 8
        %v3197 = vmul.u32.u64.compose %v3196, %v3195
        %v3198 = vextract.low.u32 %v3197
        %v3199 = vextract.high.u32 %v3197
        %v3200 = vmul.u32.u64.compose %v3196, %v3191
        %v3201 = vextract.low.u32 %v3200
        %v3202 = vextract.high.u32 %v3200
        %v3203 = vmul.u32 %v3196, %v3187
        %v3204 = vadd.s32 %v3199, %v3201
        %vm3205 = vc.u32 %v3199, %v3201
        %v3206 = vadd.s32 %v3202, 1
        %v3207 = vsel %vm3205, %v3206, %v3202
        %v3208 = vadd.s32 %v3203, %v3207
        %v3209 = vadd.s32 %v3208, 536870912
        %v3210 = vshrl.u32 %v3209, 30
        %v3211 = vshll.u32 %v3210, 30
        %v3212 = vsub.s32 %v3208, %v3211
        %vm3213 = vcmp.lt.s32.totalorder %v3212, 0
        %v3214 = vsub.s32 0, %v3212
        %v3215 = vsel %vm3213, %v3214, %v3212
        %v3216 = vclz %v3215
        %v3217 = vsub.s32 %v3216, 2
        %vm3218 = vcmp.gt.s32.totalorder 0, %v3217
        %v3219 = vsel %vm3218, 0, %v3217
        %v3220 = vsub.s32 32, %v3219
        %v3221 = vshll.u32 %v3212, %v3219
        %v3222 = vshrl.u32 %v3204, %v3220
        %v3223 = vor.u32 %v3221, %v3222
        %v3224 = vsub.s32 4294967266, %v3219
        %v3225 = vadd.s32 %v3224, 127
        %v3226 = vshll.u32 %v3225, 23
        %v3227 = vor.u32 4788187, %v3226
        %v3228 = vand.u32 2147483647, %v3227
        %v3230 = vcvt.s32.f32 %v3223
        %v3231 = vmul.f32 %v3230, %v3228
        %v3232 = vxor.u32 %v3231, 2147483648
        %v3233 = vsel %vm3150, %v3232, %v3231
        %v3234 = vsub.s32 4, %v3210
        %v3235 = vsel %vm3150, %v3234, %v3210
        %v3236 = vsel %vm3149, %v1159, %v3233
        %v3237 = vsel %vm3149, 0, %v3235
        %v3238 = vcosq.f32.pop %v3236
        %v3239 = vsinq.f32.pop %v3236
        %vm3240 = vweird.f32 %v1159
        %v3241 = vadd.s32 %v3237, 3
        %v3242 = vand.u32 %v3241, 3
        %vm3243 = vcmp.lt.s32.totalorder %v3242, 2
        %vm3244 = vcmp.eq.s32.totalorder %v3242, 0
        %v3245 = vxor.u32 %v3239, 2147483648
        %v3246 = vsel %vm3244, %v3238, %v3245
        %vm3247 = vcmp.eq.s32.totalorder %v3242, 2
        %v3248 = vxor.u32 %v3238, 2147483648
        %v3249 = vsel %vm3247, %v3248, %v3239
        %v3250 = vsel %vm3243, %v3246, %v3249
        %v3251 = vsel %vm3240, nan, %v3250
        %v3252 = vand.u32 2147483647, %v1160
        %vm3253 = vcmp.le.f32.partialorder %v3252, 0.7853982
        %vm3254 = vcmp.lt.s32.totalorder %v1160, 0
        %v3255 = vand.u32 %v1160, 2139095040
        %v3256 = vshrl.u32 %v3255, 23
        %v3257 = vsub.s32 %v3256, 127
        %v3258 = vand.u32 2147483647, %v1160
        %v3259 = vand.u32 %v3258, 8388607
        %v3260 = vor.u32 %v3259, 8388608
        %v3261 = vsub.s32 0, %v3260
        %v3262 = vadd.s32 %v3257, 1
        %vm3263 = vcmp.gt.s32.totalorder %v3262, 0
        %v3264 = vsel %vm3263, %v3262, 0
        %v3265 = vshrl.u32 %v3264, 5
        %v3266 = vand.u32 %v3264, 31
        %v3267 = vsub.s32 32, %v3266
        %v3268 = vshrl.u32 683565275, %v3267
        %v3269 = vshll.u32 683565275, %v3266
        %v3270 = vshrl.u32 2475754826, %v3267
        %v3271 = vor.u32 %v3269, %v3270
        %v3272 = vshll.u32 2475754826, %v3266
        %v3273 = vshrl.u32 2131351028, %v3267
        %v3274 = vor.u32 %v3272, %v3273
        %v3275 = vshll.u32 2131351028, %v3266
        %v3276 = vshrl.u32 2102212464, %v3267
        %v3277 = vor.u32 %v3275, %v3276
        %v3278 = vshll.u32 2102212464, %v3266
        %v3279 = vshrl.u32 920167782, %v3267
        %v3280 = vor.u32 %v3278, %v3279
        %v3281 = vshll.u32 920167782, %v3266
        %v3282 = vshrl.u32 1326507024, %v3267
        %v3283 = vor.u32 %v3281, %v3282
        %vm3284 = vcmp.lt.s32.totalorder %v3265, 1
        %vm3285 = vcmp.lt.s32.totalorder %v3265, 2
        %vm3286 = vcmp.lt.s32.totalorder %v3265, 3
        %vm3287 = vcmp.lt.s32.totalorder %v3265, 4
        %v3288 = vsel %vm3284, %v3268, %v3271
        %v3289 = vsel %vm3287, %v3277, 2102212464
        %v3290 = vsel %vm3286, %v3274, %v3289
        %v3291 = vsel %vm3285, %v3288, %v3290
        %v3292 = vsel %vm3284, %v3271, %v3274
        %v3293 = vsel %vm3287, %v3280, 920167782
        %v3294 = vsel %vm3286, %v3277, %v3293
        %v3295 = vsel %vm3285, %v3292, %v3294
        %v3296 = vsel %vm3284, %v3274, %v3277
        %v3297 = vsel %vm3287, %v3283, 1326507024
        %v3298 = vsel %vm3286, %v3280, %v3297
        %v3299 = vsel %vm3285, %v3296, %v3298
        %v3300 = vshll.u32 %v3260, 8
        %v3301 = vmul.u32.u64.compose %v3300, %v3299
        %v3302 = vextract.low.u32 %v3301
        %v3303 = vextract.high.u32 %v3301
        %v3304 = vmul.u32.u64.compose %v3300, %v3295
        %v3305 = vextract.low.u32 %v3304
        %v3306 = vextract.high.u32 %v3304
        %v3307 = vmul.u32 %v3300, %v3291
        %v3308 = vadd.s32 %v3303, %v3305
        %vm3309 = vc.u32 %v3303, %v3305
        %v3310 = vadd.s32 %v3306, 1
        %v3311 = vsel %vm3309, %v3310, %v3306
        %v3312 = vadd.s32 %v3307, %v3311
        %v3313 = vadd.s32 %v3312, 536870912
        %v3314 = vshrl.u32 %v3313, 30
        %v3315 = vshll.u32 %v3314, 30
        %v3316 = vsub.s32 %v3312, %v3315
        %vm3317 = vcmp.lt.s32.totalorder %v3316, 0
        %v3318 = vsub.s32 0, %v3316
        %v3319 = vsel %vm3317, %v3318, %v3316
        %v3320 = vclz %v3319
        %v3321 = vsub.s32 %v3320, 2
        %vm3322 = vcmp.gt.s32.totalorder 0, %v3321
        %v3323 = vsel %vm3322, 0, %v3321
        %v3324 = vsub.s32 32, %v3323
        %v3325 = vshll.u32 %v3316, %v3323
        %v3326 = vshrl.u32 %v3308, %v3324
        %v3327 = vor.u32 %v3325, %v3326
        %v3328 = vsub.s32 4294967266, %v3323
        %v3329 = vadd.s32 %v3328, 127
        %v3330 = vshll.u32 %v3329, 23
        %v3331 = vor.u32 4788187, %v3330
        %v3332 = vand.u32 2147483647, %v3331
        %v3334 = vcvt.s32.f32 %v3327
        %v3335 = vmul.f32 %v3334, %v3332
        %v3336 = vxor.u32 %v3335, 2147483648
        %v3337 = vsel %vm3254, %v3336, %v3335
        %v3338 = vsub.s32 4, %v3314
        %v3339 = vsel %vm3254, %v3338, %v3314
        %v3340 = vsel %vm3253, %v1160, %v3337
        %v3341 = vsel %vm3253, 0, %v3339
        %v3342 = vcosq.f32.pop %v3340
        %v3343 = vsinq.f32.pop %v3340
        %vm3344 = vweird.f32 %v1160
        %v3345 = vadd.s32 %v3341, 3
        %v3346 = vand.u32 %v3345, 3
        %vm3347 = vcmp.lt.s32.totalorder %v3346, 2
        %vm3348 = vcmp.eq.s32.totalorder %v3346, 0
        %v3349 = vxor.u32 %v3343, 2147483648
        %v3350 = vsel %vm3348, %v3342, %v3349
        %vm3351 = vcmp.eq.s32.totalorder %v3346, 2
        %v3352 = vxor.u32 %v3342, 2147483648
        %v3353 = vsel %vm3351, %v3352, %v3343
        %v3354 = vsel %vm3347, %v3350, %v3353
        %v3355 = vsel %vm3344, nan, %v3354
        %v3356 = vand.u32 2147483647, %v1161
        %vm3357 = vcmp.le.f32.partialorder %v3356, 0.7853982
        %vm3358 = vcmp.lt.s32.totalorder %v1161, 0
        %v3359 = vand.u32 %v1161, 2139095040
        %v3360 = vshrl.u32 %v3359, 23
        %v3361 = vsub.s32 %v3360, 127
        %v3362 = vand.u32 2147483647, %v1161
        %v3363 = vand.u32 %v3362, 8388607
        %v3364 = vor.u32 %v3363, 8388608
        %v3365 = vsub.s32 0, %v3364
        %v3366 = vadd.s32 %v3361, 1
        %vm3367 = vcmp.gt.s32.totalorder %v3366, 0
        %v3368 = vsel %vm3367, %v3366, 0
        %v3369 = vshrl.u32 %v3368, 5
        %v3370 = vand.u32 %v3368, 31
        %v3371 = vsub.s32 32, %v3370
        %v3372 = vshrl.u32 683565275, %v3371
        %v3373 = vshll.u32 683565275, %v3370
        %v3374 = vshrl.u32 2475754826, %v3371
        %v3375 = vor.u32 %v3373, %v3374
        %v3376 = vshll.u32 2475754826, %v3370
        %v3377 = vshrl.u32 2131351028, %v3371
        %v3378 = vor.u32 %v3376, %v3377
        %v3379 = vshll.u32 2131351028, %v3370
        %v3380 = vshrl.u32 2102212464, %v3371
        %v3381 = vor.u32 %v3379, %v3380
        %v3382 = vshll.u32 2102212464, %v3370
        %v3383 = vshrl.u32 920167782, %v3371
        %v3384 = vor.u32 %v3382, %v3383
        %v3385 = vshll.u32 920167782, %v3370
        %v3386 = vshrl.u32 1326507024, %v3371
        %v3387 = vor.u32 %v3385, %v3386
        %vm3388 = vcmp.lt.s32.totalorder %v3369, 1
        %vm3389 = vcmp.lt.s32.totalorder %v3369, 2
        %vm3390 = vcmp.lt.s32.totalorder %v3369, 3
        %vm3391 = vcmp.lt.s32.totalorder %v3369, 4
        %v3392 = vsel %vm3388, %v3372, %v3375
        %v3393 = vsel %vm3391, %v3381, 2102212464
        %v3394 = vsel %vm3390, %v3378, %v3393
        %v3395 = vsel %vm3389, %v3392, %v3394
        %v3396 = vsel %vm3388, %v3375, %v3378
        %v3397 = vsel %vm3391, %v3384, 920167782
        %v3398 = vsel %vm3390, %v3381, %v3397
        %v3399 = vsel %vm3389, %v3396, %v3398
        %v3400 = vsel %vm3388, %v3378, %v3381
        %v3401 = vsel %vm3391, %v3387, 1326507024
        %v3402 = vsel %vm3390, %v3384, %v3401
        %v3403 = vsel %vm3389, %v3400, %v3402
        %v3404 = vshll.u32 %v3364, 8
        %v3405 = vmul.u32.u64.compose %v3404, %v3403
        %v3406 = vextract.low.u32 %v3405
        %v3407 = vextract.high.u32 %v3405
        %v3408 = vmul.u32.u64.compose %v3404, %v3399
        %v3409 = vextract.low.u32 %v3408
        %v3410 = vextract.high.u32 %v3408
        %v3411 = vmul.u32 %v3404, %v3395
        %v3412 = vadd.s32 %v3407, %v3409
        %vm3413 = vc.u32 %v3407, %v3409
        %v3414 = vadd.s32 %v3410, 1
        %v3415 = vsel %vm3413, %v3414, %v3410
        %v3416 = vadd.s32 %v3411, %v3415
        %v3417 = vadd.s32 %v3416, 536870912
        %v3418 = vshrl.u32 %v3417, 30
        %v3419 = vshll.u32 %v3418, 30
        %v3420 = vsub.s32 %v3416, %v3419
        %vm3421 = vcmp.lt.s32.totalorder %v3420, 0
        %v3422 = vsub.s32 0, %v3420
        %v3423 = vsel %vm3421, %v3422, %v3420
        %v3424 = vclz %v3423
        %v3425 = vsub.s32 %v3424, 2
        %vm3426 = vcmp.gt.s32.totalorder 0, %v3425
        %v3427 = vsel %vm3426, 0, %v3425
        %v3428 = vsub.s32 32, %v3427
        %v3429 = vshll.u32 %v3420, %v3427
        %v3430 = vshrl.u32 %v3412, %v3428
        %v3431 = vor.u32 %v3429, %v3430
        %v3432 = vsub.s32 4294967266, %v3427
        %v3433 = vadd.s32 %v3432, 127
        %v3434 = vshll.u32 %v3433, 23
        %v3435 = vor.u32 4788187, %v3434
        %v3436 = vand.u32 2147483647, %v3435
        %v3438 = vcvt.s32.f32 %v3431
        %v3439 = vmul.f32 %v3438, %v3436
        %v3440 = vxor.u32 %v3439, 2147483648
        %v3441 = vsel %vm3358, %v3440, %v3439
        %v3442 = vsub.s32 4, %v3418
        %v3443 = vsel %vm3358, %v3442, %v3418
        %v3444 = vsel %vm3357, %v1161, %v3441
        %v3445 = vsel %vm3357, 0, %v3443
        %v3446 = vcosq.f32.pop %v3444
        %v3447 = vsinq.f32.pop %v3444
        %vm3448 = vweird.f32 %v1161
        %v3449 = vadd.s32 %v3445, 3
        %v3450 = vand.u32 %v3449, 3
        %vm3451 = vcmp.lt.s32.totalorder %v3450, 2
        %vm3452 = vcmp.eq.s32.totalorder %v3450, 0
        %v3453 = vxor.u32 %v3447, 2147483648
        %v3454 = vsel %vm3452, %v3446, %v3453
        %vm3455 = vcmp.eq.s32.totalorder %v3450, 2
        %v3456 = vxor.u32 %v3446, 2147483648
        %v3457 = vsel %vm3455, %v3456, %v3447
        %v3458 = vsel %vm3451, %v3454, %v3457
        %v3459 = vsel %vm3448, nan, %v3458
        %v3460 = vand.u32 2147483647, %v1162
        %vm3461 = vcmp.le.f32.partialorder %v3460, 0.7853982
        %vm3462 = vcmp.lt.s32.totalorder %v1162, 0
        %v3463 = vand.u32 %v1162, 2139095040
        %v3464 = vshrl.u32 %v3463, 23
        %v3465 = vsub.s32 %v3464, 127
        %v3466 = vand.u32 2147483647, %v1162
        %v3467 = vand.u32 %v3466, 8388607
        %v3468 = vor.u32 %v3467, 8388608
        %v3469 = vsub.s32 0, %v3468
        %v3470 = vadd.s32 %v3465, 1
        %vm3471 = vcmp.gt.s32.totalorder %v3470, 0
        %v3472 = vsel %vm3471, %v3470, 0
        %v3473 = vshrl.u32 %v3472, 5
        %v3474 = vand.u32 %v3472, 31
        %v3475 = vsub.s32 32, %v3474
        %v3476 = vshrl.u32 683565275, %v3475
        %v3477 = vshll.u32 683565275, %v3474
        %v3478 = vshrl.u32 2475754826, %v3475
        %v3479 = vor.u32 %v3477, %v3478
        %v3480 = vshll.u32 2475754826, %v3474
        %v3481 = vshrl.u32 2131351028, %v3475
        %v3482 = vor.u32 %v3480, %v3481
        %v3483 = vshll.u32 2131351028, %v3474
        %v3484 = vshrl.u32 2102212464, %v3475
        %v3485 = vor.u32 %v3483, %v3484
        %v3486 = vshll.u32 2102212464, %v3474
        %v3487 = vshrl.u32 920167782, %v3475
        %v3488 = vor.u32 %v3486, %v3487
        %v3489 = vshll.u32 920167782, %v3474
        %v3490 = vshrl.u32 1326507024, %v3475
        %v3491 = vor.u32 %v3489, %v3490
        %vm3492 = vcmp.lt.s32.totalorder %v3473, 1
        %vm3493 = vcmp.lt.s32.totalorder %v3473, 2
        %vm3494 = vcmp.lt.s32.totalorder %v3473, 3
        %vm3495 = vcmp.lt.s32.totalorder %v3473, 4
        %v3496 = vsel %vm3492, %v3476, %v3479
        %v3497 = vsel %vm3495, %v3485, 2102212464
        %v3498 = vsel %vm3494, %v3482, %v3497
        %v3499 = vsel %vm3493, %v3496, %v3498
        %v3500 = vsel %vm3492, %v3479, %v3482
        %v3501 = vsel %vm3495, %v3488, 920167782
        %v3502 = vsel %vm3494, %v3485, %v3501
        %v3503 = vsel %vm3493, %v3500, %v3502
        %v3504 = vsel %vm3492, %v3482, %v3485
        %v3505 = vsel %vm3495, %v3491, 1326507024
        %v3506 = vsel %vm3494, %v3488, %v3505
        %v3507 = vsel %vm3493, %v3504, %v3506
        %v3508 = vshll.u32 %v3468, 8
        %v3509 = vmul.u32.u64.compose %v3508, %v3507
        %v3510 = vextract.low.u32 %v3509
        %v3511 = vextract.high.u32 %v3509
        %v3512 = vmul.u32.u64.compose %v3508, %v3503
        %v3513 = vextract.low.u32 %v3512
        %v3514 = vextract.high.u32 %v3512
        %v3515 = vmul.u32 %v3508, %v3499
        %v3516 = vadd.s32 %v3511, %v3513
        %vm3517 = vc.u32 %v3511, %v3513
        %v3518 = vadd.s32 %v3514, 1
        %v3519 = vsel %vm3517, %v3518, %v3514
        %v3520 = vadd.s32 %v3515, %v3519
        %v3521 = vadd.s32 %v3520, 536870912
        %v3522 = vshrl.u32 %v3521, 30
        %v3523 = vshll.u32 %v3522, 30
        %v3524 = vsub.s32 %v3520, %v3523
        %vm3525 = vcmp.lt.s32.totalorder %v3524, 0
        %v3526 = vsub.s32 0, %v3524
        %v3527 = vsel %vm3525, %v3526, %v3524
        %v3528 = vclz %v3527
        %v3529 = vsub.s32 %v3528, 2
        %vm3530 = vcmp.gt.s32.totalorder 0, %v3529
        %v3531 = vsel %vm3530, 0, %v3529
        %v3532 = vsub.s32 32, %v3531
        %v3533 = vshll.u32 %v3524, %v3531
        %v3534 = vshrl.u32 %v3516, %v3532
        %v3535 = vor.u32 %v3533, %v3534
        %v3536 = vsub.s32 4294967266, %v3531
        %v3537 = vadd.s32 %v3536, 127
        %v3538 = vshll.u32 %v3537, 23
        %v3539 = vor.u32 4788187, %v3538
        %v3540 = vand.u32 2147483647, %v3539
        %v3542 = vcvt.s32.f32 %v3535
        %v3543 = vmul.f32 %v3542, %v3540
        %v3544 = vxor.u32 %v3543, 2147483648
        %v3545 = vsel %vm3462, %v3544, %v3543
        %v3546 = vsub.s32 4, %v3522
        %v3547 = vsel %vm3462, %v3546, %v3522
        %v3548 = vsel %vm3461, %v1162, %v3545
        %v3549 = vsel %vm3461, 0, %v3547
        %v3550 = vcosq.f32.pop %v3548
        %v3551 = vsinq.f32.pop %v3548
        %vm3552 = vweird.f32 %v1162
        %v3553 = vadd.s32 %v3549, 3
        %v3554 = vand.u32 %v3553, 3
        %vm3555 = vcmp.lt.s32.totalorder %v3554, 2
        %vm3556 = vcmp.eq.s32.totalorder %v3554, 0
        %v3557 = vxor.u32 %v3551, 2147483648
        %v3558 = vsel %vm3556, %v3550, %v3557
        %vm3559 = vcmp.eq.s32.totalorder %v3554, 2
        %v3560 = vxor.u32 %v3550, 2147483648
        %v3561 = vsel %vm3559, %v3560, %v3551
        %v3562 = vsel %vm3555, %v3558, %v3561
        %v3563 = vsel %vm3552, nan, %v3562
        %v3564 = vand.u32 2147483647, %v1163
        %vm3565 = vcmp.le.f32.partialorder %v3564, 0.7853982
        %vm3566 = vcmp.lt.s32.totalorder %v1163, 0
        %v3567 = vand.u32 %v1163, 2139095040
        %v3568 = vshrl.u32 %v3567, 23
        %v3569 = vsub.s32 %v3568, 127
        %v3570 = vand.u32 2147483647, %v1163
        %v3571 = vand.u32 %v3570, 8388607
        %v3572 = vor.u32 %v3571, 8388608
        %v3573 = vsub.s32 0, %v3572
        %v3574 = vadd.s32 %v3569, 1
        %vm3575 = vcmp.gt.s32.totalorder %v3574, 0
        %v3576 = vsel %vm3575, %v3574, 0
        %v3577 = vshrl.u32 %v3576, 5
        %v3578 = vand.u32 %v3576, 31
        %v3579 = vsub.s32 32, %v3578
        %v3580 = vshrl.u32 683565275, %v3579
        %v3581 = vshll.u32 683565275, %v3578
        %v3582 = vshrl.u32 2475754826, %v3579
        %v3583 = vor.u32 %v3581, %v3582
        %v3584 = vshll.u32 2475754826, %v3578
        %v3585 = vshrl.u32 2131351028, %v3579
        %v3586 = vor.u32 %v3584, %v3585
        %v3587 = vshll.u32 2131351028, %v3578
        %v3588 = vshrl.u32 2102212464, %v3579
        %v3589 = vor.u32 %v3587, %v3588
        %v3590 = vshll.u32 2102212464, %v3578
        %v3591 = vshrl.u32 920167782, %v3579
        %v3592 = vor.u32 %v3590, %v3591
        %v3593 = vshll.u32 920167782, %v3578
        %v3594 = vshrl.u32 1326507024, %v3579
        %v3595 = vor.u32 %v3593, %v3594
        %vm3596 = vcmp.lt.s32.totalorder %v3577, 1
        %vm3597 = vcmp.lt.s32.totalorder %v3577, 2
        %vm3598 = vcmp.lt.s32.totalorder %v3577, 3
        %vm3599 = vcmp.lt.s32.totalorder %v3577, 4
        %v3600 = vsel %vm3596, %v3580, %v3583
        %v3601 = vsel %vm3599, %v3589, 2102212464
        %v3602 = vsel %vm3598, %v3586, %v3601
        %v3603 = vsel %vm3597, %v3600, %v3602
        %v3604 = vsel %vm3596, %v3583, %v3586
        %v3605 = vsel %vm3599, %v3592, 920167782
        %v3606 = vsel %vm3598, %v3589, %v3605
        %v3607 = vsel %vm3597, %v3604, %v3606
        %v3608 = vsel %vm3596, %v3586, %v3589
        %v3609 = vsel %vm3599, %v3595, 1326507024
        %v3610 = vsel %vm3598, %v3592, %v3609
        %v3611 = vsel %vm3597, %v3608, %v3610
        %v3612 = vshll.u32 %v3572, 8
        %v3613 = vmul.u32.u64.compose %v3612, %v3611
        %v3614 = vextract.low.u32 %v3613
        %v3615 = vextract.high.u32 %v3613
        %v3616 = vmul.u32.u64.compose %v3612, %v3607
        %v3617 = vextract.low.u32 %v3616
        %v3618 = vextract.high.u32 %v3616
        %v3619 = vmul.u32 %v3612, %v3603
        %v3620 = vadd.s32 %v3615, %v3617
        %vm3621 = vc.u32 %v3615, %v3617
        %v3622 = vadd.s32 %v3618, 1
        %v3623 = vsel %vm3621, %v3622, %v3618
        %v3624 = vadd.s32 %v3619, %v3623
        %v3625 = vadd.s32 %v3624, 536870912
        %v3626 = vshrl.u32 %v3625, 30
        %v3627 = vshll.u32 %v3626, 30
        %v3628 = vsub.s32 %v3624, %v3627
        %vm3629 = vcmp.lt.s32.totalorder %v3628, 0
        %v3630 = vsub.s32 0, %v3628
        %v3631 = vsel %vm3629, %v3630, %v3628
        %v3632 = vclz %v3631
        %v3633 = vsub.s32 %v3632, 2
        %vm3634 = vcmp.gt.s32.totalorder 0, %v3633
        %v3635 = vsel %vm3634, 0, %v3633
        %v3636 = vsub.s32 32, %v3635
        %v3637 = vshll.u32 %v3628, %v3635
        %v3638 = vshrl.u32 %v3620, %v3636
        %v3639 = vor.u32 %v3637, %v3638
        %v3640 = vsub.s32 4294967266, %v3635
        %v3641 = vadd.s32 %v3640, 127
        %v3642 = vshll.u32 %v3641, 23
        %v3643 = vor.u32 4788187, %v3642
        %v3644 = vand.u32 2147483647, %v3643
        %v3646 = vcvt.s32.f32 %v3639
        %v3647 = vmul.f32 %v3646, %v3644
        %v3648 = vxor.u32 %v3647, 2147483648
        %v3649 = vsel %vm3566, %v3648, %v3647
        %v3650 = vsub.s32 4, %v3626
        %v3651 = vsel %vm3566, %v3650, %v3626
        %v3652 = vsel %vm3565, %v1163, %v3649
        %v3653 = vsel %vm3565, 0, %v3651
        %v3654 = vcosq.f32.pop %v3652
        %v3655 = vsinq.f32.pop %v3652
        %vm3656 = vweird.f32 %v1163
        %v3657 = vadd.s32 %v3653, 3
        %v3658 = vand.u32 %v3657, 3
        %vm3659 = vcmp.lt.s32.totalorder %v3658, 2
        %vm3660 = vcmp.eq.s32.totalorder %v3658, 0
        %v3661 = vxor.u32 %v3655, 2147483648
        %v3662 = vsel %vm3660, %v3654, %v3661
        %vm3663 = vcmp.eq.s32.totalorder %v3658, 2
        %v3664 = vxor.u32 %v3654, 2147483648
        %v3665 = vsel %vm3663, %v3664, %v3655
        %v3666 = vsel %vm3659, %v3662, %v3665
        %v3667 = vsel %vm3656, nan, %v3666
        %v3668 = vand.u32 2147483647, %v1164
        %vm3669 = vcmp.le.f32.partialorder %v3668, 0.7853982
        %vm3670 = vcmp.lt.s32.totalorder %v1164, 0
        %v3671 = vand.u32 %v1164, 2139095040
        %v3672 = vshrl.u32 %v3671, 23
        %v3673 = vsub.s32 %v3672, 127
        %v3674 = vand.u32 2147483647, %v1164
        %v3675 = vand.u32 %v3674, 8388607
        %v3676 = vor.u32 %v3675, 8388608
        %v3677 = vsub.s32 0, %v3676
        %v3678 = vadd.s32 %v3673, 1
        %vm3679 = vcmp.gt.s32.totalorder %v3678, 0
        %v3680 = vsel %vm3679, %v3678, 0
        %v3681 = vshrl.u32 %v3680, 5
        %v3682 = vand.u32 %v3680, 31
        %v3683 = vsub.s32 32, %v3682
        %v3684 = vshrl.u32 683565275, %v3683
        %v3685 = vshll.u32 683565275, %v3682
        %v3686 = vshrl.u32 2475754826, %v3683
        %v3687 = vor.u32 %v3685, %v3686
        %v3688 = vshll.u32 2475754826, %v3682
        %v3689 = vshrl.u32 2131351028, %v3683
        %v3690 = vor.u32 %v3688, %v3689
        %v3691 = vshll.u32 2131351028, %v3682
        %v3692 = vshrl.u32 2102212464, %v3683
        %v3693 = vor.u32 %v3691, %v3692
        %v3694 = vshll.u32 2102212464, %v3682
        %v3695 = vshrl.u32 920167782, %v3683
        %v3696 = vor.u32 %v3694, %v3695
        %v3697 = vshll.u32 920167782, %v3682
        %v3698 = vshrl.u32 1326507024, %v3683
        %v3699 = vor.u32 %v3697, %v3698
        %vm3700 = vcmp.lt.s32.totalorder %v3681, 1
        %vm3701 = vcmp.lt.s32.totalorder %v3681, 2
        %vm3702 = vcmp.lt.s32.totalorder %v3681, 3
        %vm3703 = vcmp.lt.s32.totalorder %v3681, 4
        %v3704 = vsel %vm3700, %v3684, %v3687
        %v3705 = vsel %vm3703, %v3693, 2102212464
        %v3706 = vsel %vm3702, %v3690, %v3705
        %v3707 = vsel %vm3701, %v3704, %v3706
        %v3708 = vsel %vm3700, %v3687, %v3690
        %v3709 = vsel %vm3703, %v3696, 920167782
        %v3710 = vsel %vm3702, %v3693, %v3709
        %v3711 = vsel %vm3701, %v3708, %v3710
        %v3712 = vsel %vm3700, %v3690, %v3693
        %v3713 = vsel %vm3703, %v3699, 1326507024
        %v3714 = vsel %vm3702, %v3696, %v3713
        %v3715 = vsel %vm3701, %v3712, %v3714
        %v3716 = vshll.u32 %v3676, 8
        %v3717 = vmul.u32.u64.compose %v3716, %v3715
        %v3718 = vextract.low.u32 %v3717
        %v3719 = vextract.high.u32 %v3717
        %v3720 = vmul.u32.u64.compose %v3716, %v3711
        %v3721 = vextract.low.u32 %v3720
        %v3722 = vextract.high.u32 %v3720
        %v3723 = vmul.u32 %v3716, %v3707
        %v3724 = vadd.s32 %v3719, %v3721
        %vm3725 = vc.u32 %v3719, %v3721
        %v3726 = vadd.s32 %v3722, 1
        %v3727 = vsel %vm3725, %v3726, %v3722
        %v3728 = vadd.s32 %v3723, %v3727
        %v3729 = vadd.s32 %v3728, 536870912
        %v3730 = vshrl.u32 %v3729, 30
        %v3731 = vshll.u32 %v3730, 30
        %v3732 = vsub.s32 %v3728, %v3731
        %vm3733 = vcmp.lt.s32.totalorder %v3732, 0
        %v3734 = vsub.s32 0, %v3732
        %v3735 = vsel %vm3733, %v3734, %v3732
        %v3736 = vclz %v3735
        %v3737 = vsub.s32 %v3736, 2
        %vm3738 = vcmp.gt.s32.totalorder 0, %v3737
        %v3739 = vsel %vm3738, 0, %v3737
        %v3740 = vsub.s32 32, %v3739
        %v3741 = vshll.u32 %v3732, %v3739
        %v3742 = vshrl.u32 %v3724, %v3740
        %v3743 = vor.u32 %v3741, %v3742
        %v3744 = vsub.s32 4294967266, %v3739
        %v3745 = vadd.s32 %v3744, 127
        %v3746 = vshll.u32 %v3745, 23
        %v3747 = vor.u32 4788187, %v3746
        %v3748 = vand.u32 2147483647, %v3747
        %v3750 = vcvt.s32.f32 %v3743
        %v3751 = vmul.f32 %v3750, %v3748
        %v3752 = vxor.u32 %v3751, 2147483648
        %v3753 = vsel %vm3670, %v3752, %v3751
        %v3754 = vsub.s32 4, %v3730
        %v3755 = vsel %vm3670, %v3754, %v3730
        %v3756 = vsel %vm3669, %v1164, %v3753
        %v3757 = vsel %vm3669, 0, %v3755
        %v3758 = vcosq.f32.pop %v3756
        %v3759 = vsinq.f32.pop %v3756
        %vm3760 = vweird.f32 %v1164
        %v3761 = vadd.s32 %v3757, 3
        %v3762 = vand.u32 %v3761, 3
        %vm3763 = vcmp.lt.s32.totalorder %v3762, 2
        %vm3764 = vcmp.eq.s32.totalorder %v3762, 0
        %v3765 = vxor.u32 %v3759, 2147483648
        %v3766 = vsel %vm3764, %v3758, %v3765
        %vm3767 = vcmp.eq.s32.totalorder %v3762, 2
        %v3768 = vxor.u32 %v3758, 2147483648
        %v3769 = vsel %vm3767, %v3768, %v3759
        %v3770 = vsel %vm3763, %v3766, %v3769
        %v3771 = vsel %vm3760, nan, %v3770
        %v3772 = vand.u32 2147483647, %v1165
        %vm3773 = vcmp.le.f32.partialorder %v3772, 0.7853982
        %vm3774 = vcmp.lt.s32.totalorder %v1165, 0
        %v3775 = vand.u32 %v1165, 2139095040
        %v3776 = vshrl.u32 %v3775, 23
        %v3777 = vsub.s32 %v3776, 127
        %v3778 = vand.u32 2147483647, %v1165
        %v3779 = vand.u32 %v3778, 8388607
        %v3780 = vor.u32 %v3779, 8388608
        %v3781 = vsub.s32 0, %v3780
        %v3782 = vadd.s32 %v3777, 1
        %vm3783 = vcmp.gt.s32.totalorder %v3782, 0
        %v3784 = vsel %vm3783, %v3782, 0
        %v3785 = vshrl.u32 %v3784, 5
        %v3786 = vand.u32 %v3784, 31
        %v3787 = vsub.s32 32, %v3786
        %v3788 = vshrl.u32 683565275, %v3787
        %v3789 = vshll.u32 683565275, %v3786
        %v3790 = vshrl.u32 2475754826, %v3787
        %v3791 = vor.u32 %v3789, %v3790
        %v3792 = vshll.u32 2475754826, %v3786
        %v3793 = vshrl.u32 2131351028, %v3787
        %v3794 = vor.u32 %v3792, %v3793
        %v3795 = vshll.u32 2131351028, %v3786
        %v3796 = vshrl.u32 2102212464, %v3787
        %v3797 = vor.u32 %v3795, %v3796
        %v3798 = vshll.u32 2102212464, %v3786
        %v3799 = vshrl.u32 920167782, %v3787
        %v3800 = vor.u32 %v3798, %v3799
        %v3801 = vshll.u32 920167782, %v3786
        %v3802 = vshrl.u32 1326507024, %v3787
        %v3803 = vor.u32 %v3801, %v3802
        %vm3804 = vcmp.lt.s32.totalorder %v3785, 1
        %vm3805 = vcmp.lt.s32.totalorder %v3785, 2
        %vm3806 = vcmp.lt.s32.totalorder %v3785, 3
        %vm3807 = vcmp.lt.s32.totalorder %v3785, 4
        %v3808 = vsel %vm3804, %v3788, %v3791
        %v3809 = vsel %vm3807, %v3797, 2102212464
        %v3810 = vsel %vm3806, %v3794, %v3809
        %v3811 = vsel %vm3805, %v3808, %v3810
        %v3812 = vsel %vm3804, %v3791, %v3794
        %v3813 = vsel %vm3807, %v3800, 920167782
        %v3814 = vsel %vm3806, %v3797, %v3813
        %v3815 = vsel %vm3805, %v3812, %v3814
        %v3816 = vsel %vm3804, %v3794, %v3797
        %v3817 = vsel %vm3807, %v3803, 1326507024
        %v3818 = vsel %vm3806, %v3800, %v3817
        %v3819 = vsel %vm3805, %v3816, %v3818
        %v3820 = vshll.u32 %v3780, 8
        %v3821 = vmul.u32.u64.compose %v3820, %v3819
        %v3822 = vextract.low.u32 %v3821
        %v3823 = vextract.high.u32 %v3821
        %v3824 = vmul.u32.u64.compose %v3820, %v3815
        %v3825 = vextract.low.u32 %v3824
        %v3826 = vextract.high.u32 %v3824
        %v3827 = vmul.u32 %v3820, %v3811
        %v3828 = vadd.s32 %v3823, %v3825
        %vm3829 = vc.u32 %v3823, %v3825
        %v3830 = vadd.s32 %v3826, 1
        %v3831 = vsel %vm3829, %v3830, %v3826
        %v3832 = vadd.s32 %v3827, %v3831
        %v3833 = vadd.s32 %v3832, 536870912
        %v3834 = vshrl.u32 %v3833, 30
        %v3835 = vshll.u32 %v3834, 30
        %v3836 = vsub.s32 %v3832, %v3835
        %vm3837 = vcmp.lt.s32.totalorder %v3836, 0
        %v3838 = vsub.s32 0, %v3836
        %v3839 = vsel %vm3837, %v3838, %v3836
        %v3840 = vclz %v3839
        %v3841 = vsub.s32 %v3840, 2
        %vm3842 = vcmp.gt.s32.totalorder 0, %v3841
        %v3843 = vsel %vm3842, 0, %v3841
        %v3844 = vsub.s32 32, %v3843
        %v3845 = vshll.u32 %v3836, %v3843
        %v3846 = vshrl.u32 %v3828, %v3844
        %v3847 = vor.u32 %v3845, %v3846
        %v3848 = vsub.s32 4294967266, %v3843
        %v3849 = vadd.s32 %v3848, 127
        %v3850 = vshll.u32 %v3849, 23
        %v3851 = vor.u32 4788187, %v3850
        %v3852 = vand.u32 2147483647, %v3851
        %v3854 = vcvt.s32.f32 %v3847
        %v3855 = vmul.f32 %v3854, %v3852
        %v3856 = vxor.u32 %v3855, 2147483648
        %v3857 = vsel %vm3774, %v3856, %v3855
        %v3858 = vsub.s32 4, %v3834
        %v3859 = vsel %vm3774, %v3858, %v3834
        %v3860 = vsel %vm3773, %v1165, %v3857
        %v3861 = vsel %vm3773, 0, %v3859
        %v3862 = vcosq.f32.pop %v3860
        %v3863 = vsinq.f32.pop %v3860
        %vm3864 = vweird.f32 %v1165
        %v3865 = vadd.s32 %v3861, 3
        %v3866 = vand.u32 %v3865, 3
        %vm3867 = vcmp.lt.s32.totalorder %v3866, 2
        %vm3868 = vcmp.eq.s32.totalorder %v3866, 0
        %v3869 = vxor.u32 %v3863, 2147483648
        %v3870 = vsel %vm3868, %v3862, %v3869
        %vm3871 = vcmp.eq.s32.totalorder %v3866, 2
        %v3872 = vxor.u32 %v3862, 2147483648
        %v3873 = vsel %vm3871, %v3872, %v3863
        %v3874 = vsel %vm3867, %v3870, %v3873
        %v3875 = vsel %vm3864, nan, %v3874
        %v3876 = vand.u32 2147483647, %v1166
        %vm3877 = vcmp.le.f32.partialorder %v3876, 0.7853982
        %vm3878 = vcmp.lt.s32.totalorder %v1166, 0
        %v3879 = vand.u32 %v1166, 2139095040
        %v3880 = vshrl.u32 %v3879, 23
        %v3881 = vsub.s32 %v3880, 127
        %v3882 = vand.u32 2147483647, %v1166
        %v3883 = vand.u32 %v3882, 8388607
        %v3884 = vor.u32 %v3883, 8388608
        %v3885 = vsub.s32 0, %v3884
        %v3886 = vadd.s32 %v3881, 1
        %vm3887 = vcmp.gt.s32.totalorder %v3886, 0
        %v3888 = vsel %vm3887, %v3886, 0
        %v3889 = vshrl.u32 %v3888, 5
        %v3890 = vand.u32 %v3888, 31
        %v3891 = vsub.s32 32, %v3890
        %v3892 = vshrl.u32 683565275, %v3891
        %v3893 = vshll.u32 683565275, %v3890
        %v3894 = vshrl.u32 2475754826, %v3891
        %v3895 = vor.u32 %v3893, %v3894
        %v3896 = vshll.u32 2475754826, %v3890
        %v3897 = vshrl.u32 2131351028, %v3891
        %v3898 = vor.u32 %v3896, %v3897
        %v3899 = vshll.u32 2131351028, %v3890
        %v3900 = vshrl.u32 2102212464, %v3891
        %v3901 = vor.u32 %v3899, %v3900
        %v3902 = vshll.u32 2102212464, %v3890
        %v3903 = vshrl.u32 920167782, %v3891
        %v3904 = vor.u32 %v3902, %v3903
        %v3905 = vshll.u32 920167782, %v3890
        %v3906 = vshrl.u32 1326507024, %v3891
        %v3907 = vor.u32 %v3905, %v3906
        %vm3908 = vcmp.lt.s32.totalorder %v3889, 1
        %vm3909 = vcmp.lt.s32.totalorder %v3889, 2
        %vm3910 = vcmp.lt.s32.totalorder %v3889, 3
        %vm3911 = vcmp.lt.s32.totalorder %v3889, 4
        %v3912 = vsel %vm3908, %v3892, %v3895
        %v3913 = vsel %vm3911, %v3901, 2102212464
        %v3914 = vsel %vm3910, %v3898, %v3913
        %v3915 = vsel %vm3909, %v3912, %v3914
        %v3916 = vsel %vm3908, %v3895, %v3898
        %v3917 = vsel %vm3911, %v3904, 920167782
        %v3918 = vsel %vm3910, %v3901, %v3917
        %v3919 = vsel %vm3909, %v3916, %v3918
        %v3920 = vsel %vm3908, %v3898, %v3901
        %v3921 = vsel %vm3911, %v3907, 1326507024
        %v3922 = vsel %vm3910, %v3904, %v3921
        %v3923 = vsel %vm3909, %v3920, %v3922
        %v3924 = vshll.u32 %v3884, 8
        %v3925 = vmul.u32.u64.compose %v3924, %v3923
        %v3926 = vextract.low.u32 %v3925
        %v3927 = vextract.high.u32 %v3925
        %v3928 = vmul.u32.u64.compose %v3924, %v3919
        %v3929 = vextract.low.u32 %v3928
        %v3930 = vextract.high.u32 %v3928
        %v3931 = vmul.u32 %v3924, %v3915
        %v3932 = vadd.s32 %v3927, %v3929
        %vm3933 = vc.u32 %v3927, %v3929
        %v3934 = vadd.s32 %v3930, 1
        %v3935 = vsel %vm3933, %v3934, %v3930
        %v3936 = vadd.s32 %v3931, %v3935
        %v3937 = vadd.s32 %v3936, 536870912
        %v3938 = vshrl.u32 %v3937, 30
        %v3939 = vshll.u32 %v3938, 30
        %v3940 = vsub.s32 %v3936, %v3939
        %vm3941 = vcmp.lt.s32.totalorder %v3940, 0
        %v3942 = vsub.s32 0, %v3940
        %v3943 = vsel %vm3941, %v3942, %v3940
        %v3944 = vclz %v3943
        %v3945 = vsub.s32 %v3944, 2
        %vm3946 = vcmp.gt.s32.totalorder 0, %v3945
        %v3947 = vsel %vm3946, 0, %v3945
        %v3948 = vsub.s32 32, %v3947
        %v3949 = vshll.u32 %v3940, %v3947
        %v3950 = vshrl.u32 %v3932, %v3948
        %v3951 = vor.u32 %v3949, %v3950
        %v3952 = vsub.s32 4294967266, %v3947
        %v3953 = vadd.s32 %v3952, 127
        %v3954 = vshll.u32 %v3953, 23
        %v3955 = vor.u32 4788187, %v3954
        %v3956 = vand.u32 2147483647, %v3955
        %v3958 = vcvt.s32.f32 %v3951
        %v3959 = vmul.f32 %v3958, %v3956
        %v3960 = vxor.u32 %v3959, 2147483648
        %v3961 = vsel %vm3878, %v3960, %v3959
        %v3962 = vsub.s32 4, %v3938
        %v3963 = vsel %vm3878, %v3962, %v3938
        %v3964 = vsel %vm3877, %v1166, %v3961
        %v3965 = vsel %vm3877, 0, %v3963
        %v3966 = vcosq.f32.pop %v3964
        %v3967 = vsinq.f32.pop %v3964
        %vm3968 = vweird.f32 %v1166
        %v3969 = vadd.s32 %v3965, 3
        %v3970 = vand.u32 %v3969, 3
        %vm3971 = vcmp.lt.s32.totalorder %v3970, 2
        %vm3972 = vcmp.eq.s32.totalorder %v3970, 0
        %v3973 = vxor.u32 %v3967, 2147483648
        %v3974 = vsel %vm3972, %v3966, %v3973
        %vm3975 = vcmp.eq.s32.totalorder %v3970, 2
        %v3976 = vxor.u32 %v3966, 2147483648
        %v3977 = vsel %vm3975, %v3976, %v3967
        %v3978 = vsel %vm3971, %v3974, %v3977
        %v3979 = vsel %vm3968, nan, %v3978
        %v3980 = vand.u32 2147483647, %v1167
        %vm3981 = vcmp.le.f32.partialorder %v3980, 0.7853982
        %vm3982 = vcmp.lt.s32.totalorder %v1167, 0
        %v3983 = vand.u32 %v1167, 2139095040
        %v3984 = vshrl.u32 %v3983, 23
        %v3985 = vsub.s32 %v3984, 127
        %v3986 = vand.u32 2147483647, %v1167
        %v3987 = vand.u32 %v3986, 8388607
        %v3988 = vor.u32 %v3987, 8388608
        %v3989 = vsub.s32 0, %v3988
        %v3990 = vadd.s32 %v3985, 1
        %vm3991 = vcmp.gt.s32.totalorder %v3990, 0
        %v3992 = vsel %vm3991, %v3990, 0
        %v3993 = vshrl.u32 %v3992, 5
        %v3994 = vand.u32 %v3992, 31
        %v3995 = vsub.s32 32, %v3994
        %v3996 = vshrl.u32 683565275, %v3995
        %v3997 = vshll.u32 683565275, %v3994
        %v3998 = vshrl.u32 2475754826, %v3995
        %v3999 = vor.u32 %v3997, %v3998
        %v4000 = vshll.u32 2475754826, %v3994
        %v4001 = vshrl.u32 2131351028, %v3995
        %v4002 = vor.u32 %v4000, %v4001
        %v4003 = vshll.u32 2131351028, %v3994
        %v4004 = vshrl.u32 2102212464, %v3995
        %v4005 = vor.u32 %v4003, %v4004
        %v4006 = vshll.u32 2102212464, %v3994
        %v4007 = vshrl.u32 920167782, %v3995
        %v4008 = vor.u32 %v4006, %v4007
        %v4009 = vshll.u32 920167782, %v3994
        %v4010 = vshrl.u32 1326507024, %v3995
        %v4011 = vor.u32 %v4009, %v4010
        %vm4012 = vcmp.lt.s32.totalorder %v3993, 1
        %vm4013 = vcmp.lt.s32.totalorder %v3993, 2
        %vm4014 = vcmp.lt.s32.totalorder %v3993, 3
        %vm4015 = vcmp.lt.s32.totalorder %v3993, 4
        %v4016 = vsel %vm4012, %v3996, %v3999
        %v4017 = vsel %vm4015, %v4005, 2102212464
        %v4018 = vsel %vm4014, %v4002, %v4017
        %v4019 = vsel %vm4013, %v4016, %v4018
        %v4020 = vsel %vm4012, %v3999, %v4002
        %v4021 = vsel %vm4015, %v4008, 920167782
        %v4022 = vsel %vm4014, %v4005, %v4021
        %v4023 = vsel %vm4013, %v4020, %v4022
        %v4024 = vsel %vm4012, %v4002, %v4005
        %v4025 = vsel %vm4015, %v4011, 1326507024
        %v4026 = vsel %vm4014, %v4008, %v4025
        %v4027 = vsel %vm4013, %v4024, %v4026
        %v4028 = vshll.u32 %v3988, 8
        %v4029 = vmul.u32.u64.compose %v4028, %v4027
        %v4030 = vextract.low.u32 %v4029
        %v4031 = vextract.high.u32 %v4029
        %v4032 = vmul.u32.u64.compose %v4028, %v4023
        %v4033 = vextract.low.u32 %v4032
        %v4034 = vextract.high.u32 %v4032
        %v4035 = vmul.u32 %v4028, %v4019
        %v4036 = vadd.s32 %v4031, %v4033
        %vm4037 = vc.u32 %v4031, %v4033
        %v4038 = vadd.s32 %v4034, 1
        %v4039 = vsel %vm4037, %v4038, %v4034
        %v4040 = vadd.s32 %v4035, %v4039
        %v4041 = vadd.s32 %v4040, 536870912
        %v4042 = vshrl.u32 %v4041, 30
        %v4043 = vshll.u32 %v4042, 30
        %v4044 = vsub.s32 %v4040, %v4043
        %vm4045 = vcmp.lt.s32.totalorder %v4044, 0
        %v4046 = vsub.s32 0, %v4044
        %v4047 = vsel %vm4045, %v4046, %v4044
        %v4048 = vclz %v4047
        %v4049 = vsub.s32 %v4048, 2
        %vm4050 = vcmp.gt.s32.totalorder 0, %v4049
        %v4051 = vsel %vm4050, 0, %v4049
        %v4052 = vsub.s32 32, %v4051
        %v4053 = vshll.u32 %v4044, %v4051
        %v4054 = vshrl.u32 %v4036, %v4052
        %v4055 = vor.u32 %v4053, %v4054
        %v4056 = vsub.s32 4294967266, %v4051
        %v4057 = vadd.s32 %v4056, 127
        %v4058 = vshll.u32 %v4057, 23
        %v4059 = vor.u32 4788187, %v4058
        %v4060 = vand.u32 2147483647, %v4059
        %v4062 = vcvt.s32.f32 %v4055
        %v4063 = vmul.f32 %v4062, %v4060
        %v4064 = vxor.u32 %v4063, 2147483648
        %v4065 = vsel %vm3982, %v4064, %v4063
        %v4066 = vsub.s32 4, %v4042
        %v4067 = vsel %vm3982, %v4066, %v4042
        %v4068 = vsel %vm3981, %v1167, %v4065
        %v4069 = vsel %vm3981, 0, %v4067
        %v4070 = vcosq.f32.pop %v4068
        %v4071 = vsinq.f32.pop %v4068
        %vm4072 = vweird.f32 %v1167
        %v4073 = vadd.s32 %v4069, 3
        %v4074 = vand.u32 %v4073, 3
        %vm4075 = vcmp.lt.s32.totalorder %v4074, 2
        %vm4076 = vcmp.eq.s32.totalorder %v4074, 0
        %v4077 = vxor.u32 %v4071, 2147483648
        %v4078 = vsel %vm4076, %v4070, %v4077
        %vm4079 = vcmp.eq.s32.totalorder %v4074, 2
        %v4080 = vxor.u32 %v4070, 2147483648
        %v4081 = vsel %vm4079, %v4080, %v4071
        %v4082 = vsel %vm4075, %v4078, %v4081
        %v4083 = vsel %vm4072, nan, %v4082
        %v4084 = vand.u32 2147483647, %v1168
        %vm4085 = vcmp.le.f32.partialorder %v4084, 0.7853982
        %vm4086 = vcmp.lt.s32.totalorder %v1168, 0
        %v4087 = vand.u32 %v1168, 2139095040
        %v4088 = vshrl.u32 %v4087, 23
        %v4089 = vsub.s32 %v4088, 127
        %v4090 = vand.u32 2147483647, %v1168
        %v4091 = vand.u32 %v4090, 8388607
        %v4092 = vor.u32 %v4091, 8388608
        %v4093 = vsub.s32 0, %v4092
        %v4094 = vadd.s32 %v4089, 1
        %vm4095 = vcmp.gt.s32.totalorder %v4094, 0
        %v4096 = vsel %vm4095, %v4094, 0
        %v4097 = vshrl.u32 %v4096, 5
        %v4098 = vand.u32 %v4096, 31
        %v4099 = vsub.s32 32, %v4098
        %v4100 = vshrl.u32 683565275, %v4099
        %v4101 = vshll.u32 683565275, %v4098
        %v4102 = vshrl.u32 2475754826, %v4099
        %v4103 = vor.u32 %v4101, %v4102
        %v4104 = vshll.u32 2475754826, %v4098
        %v4105 = vshrl.u32 2131351028, %v4099
        %v4106 = vor.u32 %v4104, %v4105
        %v4107 = vshll.u32 2131351028, %v4098
        %v4108 = vshrl.u32 2102212464, %v4099
        %v4109 = vor.u32 %v4107, %v4108
        %v4110 = vshll.u32 2102212464, %v4098
        %v4111 = vshrl.u32 920167782, %v4099
        %v4112 = vor.u32 %v4110, %v4111
        %v4113 = vshll.u32 920167782, %v4098
        %v4114 = vshrl.u32 1326507024, %v4099
        %v4115 = vor.u32 %v4113, %v4114
        %vm4116 = vcmp.lt.s32.totalorder %v4097, 1
        %vm4117 = vcmp.lt.s32.totalorder %v4097, 2
        %vm4118 = vcmp.lt.s32.totalorder %v4097, 3
        %vm4119 = vcmp.lt.s32.totalorder %v4097, 4
        %v4120 = vsel %vm4116, %v4100, %v4103
        %v4121 = vsel %vm4119, %v4109, 2102212464
        %v4122 = vsel %vm4118, %v4106, %v4121
        %v4123 = vsel %vm4117, %v4120, %v4122
        %v4124 = vsel %vm4116, %v4103, %v4106
        %v4125 = vsel %vm4119, %v4112, 920167782
        %v4126 = vsel %vm4118, %v4109, %v4125
        %v4127 = vsel %vm4117, %v4124, %v4126
        %v4128 = vsel %vm4116, %v4106, %v4109
        %v4129 = vsel %vm4119, %v4115, 1326507024
        %v4130 = vsel %vm4118, %v4112, %v4129
        %v4131 = vsel %vm4117, %v4128, %v4130
        %v4132 = vshll.u32 %v4092, 8
        %v4133 = vmul.u32.u64.compose %v4132, %v4131
        %v4134 = vextract.low.u32 %v4133
        %v4135 = vextract.high.u32 %v4133
        %v4136 = vmul.u32.u64.compose %v4132, %v4127
        %v4137 = vextract.low.u32 %v4136
        %v4138 = vextract.high.u32 %v4136
        %v4139 = vmul.u32 %v4132, %v4123
        %v4140 = vadd.s32 %v4135, %v4137
        %vm4141 = vc.u32 %v4135, %v4137
        %v4142 = vadd.s32 %v4138, 1
        %v4143 = vsel %vm4141, %v4142, %v4138
        %v4144 = vadd.s32 %v4139, %v4143
        %v4145 = vadd.s32 %v4144, 536870912
        %v4146 = vshrl.u32 %v4145, 30
        %v4147 = vshll.u32 %v4146, 30
        %v4148 = vsub.s32 %v4144, %v4147
        %vm4149 = vcmp.lt.s32.totalorder %v4148, 0
        %v4150 = vsub.s32 0, %v4148
        %v4151 = vsel %vm4149, %v4150, %v4148
        %v4152 = vclz %v4151
        %v4153 = vsub.s32 %v4152, 2
        %vm4154 = vcmp.gt.s32.totalorder 0, %v4153
        %v4155 = vsel %vm4154, 0, %v4153
        %v4156 = vsub.s32 32, %v4155
        %v4157 = vshll.u32 %v4148, %v4155
        %v4158 = vshrl.u32 %v4140, %v4156
        %v4159 = vor.u32 %v4157, %v4158
        %v4160 = vsub.s32 4294967266, %v4155
        %v4161 = vadd.s32 %v4160, 127
        %v4162 = vshll.u32 %v4161, 23
        %v4163 = vor.u32 4788187, %v4162
        %v4164 = vand.u32 2147483647, %v4163
        %v4166 = vcvt.s32.f32 %v4159
        %v4167 = vmul.f32 %v4166, %v4164
        %v4168 = vxor.u32 %v4167, 2147483648
        %v4169 = vsel %vm4086, %v4168, %v4167
        %v4170 = vsub.s32 4, %v4146
        %v4171 = vsel %vm4086, %v4170, %v4146
        %v4172 = vsel %vm4085, %v1168, %v4169
        %v4173 = vsel %vm4085, 0, %v4171
        %v4174 = vcosq.f32.pop %v4172
        %v4175 = vsinq.f32.pop %v4172
        %vm4176 = vweird.f32 %v1168
        %v4177 = vadd.s32 %v4173, 3
        %v4178 = vand.u32 %v4177, 3
        %vm4179 = vcmp.lt.s32.totalorder %v4178, 2
        %vm4180 = vcmp.eq.s32.totalorder %v4178, 0
        %v4181 = vxor.u32 %v4175, 2147483648
        %v4182 = vsel %vm4180, %v4174, %v4181
        %vm4183 = vcmp.eq.s32.totalorder %v4178, 2
        %v4184 = vxor.u32 %v4174, 2147483648
        %v4185 = vsel %vm4183, %v4184, %v4175
        %v4186 = vsel %vm4179, %v4182, %v4185
        %v4187 = vsel %vm4176, nan, %v4186
        %v4188 = vand.u32 2147483647, %v1169
        %vm4189 = vcmp.le.f32.partialorder %v4188, 0.7853982
        %vm4190 = vcmp.lt.s32.totalorder %v1169, 0
        %v4191 = vand.u32 %v1169, 2139095040
        %v4192 = vshrl.u32 %v4191, 23
        %v4193 = vsub.s32 %v4192, 127
        %v4194 = vand.u32 2147483647, %v1169
        %v4195 = vand.u32 %v4194, 8388607
        %v4196 = vor.u32 %v4195, 8388608
        %v4197 = vsub.s32 0, %v4196
        %v4198 = vadd.s32 %v4193, 1
        %vm4199 = vcmp.gt.s32.totalorder %v4198, 0
        %v4200 = vsel %vm4199, %v4198, 0
        %v4201 = vshrl.u32 %v4200, 5
        %v4202 = vand.u32 %v4200, 31
        %v4203 = vsub.s32 32, %v4202
        %v4204 = vshrl.u32 683565275, %v4203
        %v4205 = vshll.u32 683565275, %v4202
        %v4206 = vshrl.u32 2475754826, %v4203
        %v4207 = vor.u32 %v4205, %v4206
        %v4208 = vshll.u32 2475754826, %v4202
        %v4209 = vshrl.u32 2131351028, %v4203
        %v4210 = vor.u32 %v4208, %v4209
        %v4211 = vshll.u32 2131351028, %v4202
        %v4212 = vshrl.u32 2102212464, %v4203
        %v4213 = vor.u32 %v4211, %v4212
        %v4214 = vshll.u32 2102212464, %v4202
        %v4215 = vshrl.u32 920167782, %v4203
        %v4216 = vor.u32 %v4214, %v4215
        %v4217 = vshll.u32 920167782, %v4202
        %v4218 = vshrl.u32 1326507024, %v4203
        %v4219 = vor.u32 %v4217, %v4218
        %vm4220 = vcmp.lt.s32.totalorder %v4201, 1
        %vm4221 = vcmp.lt.s32.totalorder %v4201, 2
        %vm4222 = vcmp.lt.s32.totalorder %v4201, 3
        %vm4223 = vcmp.lt.s32.totalorder %v4201, 4
        %v4224 = vsel %vm4220, %v4204, %v4207
        %v4225 = vsel %vm4223, %v4213, 2102212464
        %v4226 = vsel %vm4222, %v4210, %v4225
        %v4227 = vsel %vm4221, %v4224, %v4226
        %v4228 = vsel %vm4220, %v4207, %v4210
        %v4229 = vsel %vm4223, %v4216, 920167782
        %v4230 = vsel %vm4222, %v4213, %v4229
        %v4231 = vsel %vm4221, %v4228, %v4230
        %v4232 = vsel %vm4220, %v4210, %v4213
        %v4233 = vsel %vm4223, %v4219, 1326507024
        %v4234 = vsel %vm4222, %v4216, %v4233
        %v4235 = vsel %vm4221, %v4232, %v4234
        %v4236 = vshll.u32 %v4196, 8
        %v4237 = vmul.u32.u64.compose %v4236, %v4235
        %v4238 = vextract.low.u32 %v4237
        %v4239 = vextract.high.u32 %v4237
        %v4240 = vmul.u32.u64.compose %v4236, %v4231
        %v4241 = vextract.low.u32 %v4240
        %v4242 = vextract.high.u32 %v4240
        %v4243 = vmul.u32 %v4236, %v4227
        %v4244 = vadd.s32 %v4239, %v4241
        %vm4245 = vc.u32 %v4239, %v4241
        %v4246 = vadd.s32 %v4242, 1
        %v4247 = vsel %vm4245, %v4246, %v4242
        %v4248 = vadd.s32 %v4243, %v4247
        %v4249 = vadd.s32 %v4248, 536870912
        %v4250 = vshrl.u32 %v4249, 30
        %v4251 = vshll.u32 %v4250, 30
        %v4252 = vsub.s32 %v4248, %v4251
        %vm4253 = vcmp.lt.s32.totalorder %v4252, 0
        %v4254 = vsub.s32 0, %v4252
        %v4255 = vsel %vm4253, %v4254, %v4252
        %v4256 = vclz %v4255
        %v4257 = vsub.s32 %v4256, 2
        %vm4258 = vcmp.gt.s32.totalorder 0, %v4257
        %v4259 = vsel %vm4258, 0, %v4257
        %v4260 = vsub.s32 32, %v4259
        %v4261 = vshll.u32 %v4252, %v4259
        %v4262 = vshrl.u32 %v4244, %v4260
        %v4263 = vor.u32 %v4261, %v4262
        %v4264 = vsub.s32 4294967266, %v4259
        %v4265 = vadd.s32 %v4264, 127
        %v4266 = vshll.u32 %v4265, 23
        %v4267 = vor.u32 4788187, %v4266
        %v4268 = vand.u32 2147483647, %v4267
        %v4270 = vcvt.s32.f32 %v4263
        %v4271 = vmul.f32 %v4270, %v4268
        %v4272 = vxor.u32 %v4271, 2147483648
        %v4273 = vsel %vm4190, %v4272, %v4271
        %v4274 = vsub.s32 4, %v4250
        %v4275 = vsel %vm4190, %v4274, %v4250
        %v4276 = vsel %vm4189, %v1169, %v4273
        %v4277 = vsel %vm4189, 0, %v4275
        %v4278 = vcosq.f32.pop %v4276
        %v4279 = vsinq.f32.pop %v4276
        %vm4280 = vweird.f32 %v1169
        %v4281 = vadd.s32 %v4277, 3
        %v4282 = vand.u32 %v4281, 3
        %vm4283 = vcmp.lt.s32.totalorder %v4282, 2
        %vm4284 = vcmp.eq.s32.totalorder %v4282, 0
        %v4285 = vxor.u32 %v4279, 2147483648
        %v4286 = vsel %vm4284, %v4278, %v4285
        %vm4287 = vcmp.eq.s32.totalorder %v4282, 2
        %v4288 = vxor.u32 %v4278, 2147483648
        %v4289 = vsel %vm4287, %v4288, %v4279
        %v4290 = vsel %vm4283, %v4286, %v4289
        %v4291 = vsel %vm4280, nan, %v4290
        %v4292 = vand.u32 2147483647, %v1170
        %vm4293 = vcmp.le.f32.partialorder %v4292, 0.7853982
        %vm4294 = vcmp.lt.s32.totalorder %v1170, 0
        %v4295 = vand.u32 %v1170, 2139095040
        %v4296 = vshrl.u32 %v4295, 23
        %v4297 = vsub.s32 %v4296, 127
        %v4298 = vand.u32 2147483647, %v1170
        %v4299 = vand.u32 %v4298, 8388607
        %v4300 = vor.u32 %v4299, 8388608
        %v4301 = vsub.s32 0, %v4300
        %v4302 = vadd.s32 %v4297, 1
        %vm4303 = vcmp.gt.s32.totalorder %v4302, 0
        %v4304 = vsel %vm4303, %v4302, 0
        %v4305 = vshrl.u32 %v4304, 5
        %v4306 = vand.u32 %v4304, 31
        %v4307 = vsub.s32 32, %v4306
        %v4308 = vshrl.u32 683565275, %v4307
        %v4309 = vshll.u32 683565275, %v4306
        %v4310 = vshrl.u32 2475754826, %v4307
        %v4311 = vor.u32 %v4309, %v4310
        %v4312 = vshll.u32 2475754826, %v4306
        %v4313 = vshrl.u32 2131351028, %v4307
        %v4314 = vor.u32 %v4312, %v4313
        %v4315 = vshll.u32 2131351028, %v4306
        %v4316 = vshrl.u32 2102212464, %v4307
        %v4317 = vor.u32 %v4315, %v4316
        %v4318 = vshll.u32 2102212464, %v4306
        %v4319 = vshrl.u32 920167782, %v4307
        %v4320 = vor.u32 %v4318, %v4319
        %v4321 = vshll.u32 920167782, %v4306
        %v4322 = vshrl.u32 1326507024, %v4307
        %v4323 = vor.u32 %v4321, %v4322
        %vm4324 = vcmp.lt.s32.totalorder %v4305, 1
        %vm4325 = vcmp.lt.s32.totalorder %v4305, 2
        %vm4326 = vcmp.lt.s32.totalorder %v4305, 3
        %vm4327 = vcmp.lt.s32.totalorder %v4305, 4
        %v4328 = vsel %vm4324, %v4308, %v4311
        %v4329 = vsel %vm4327, %v4317, 2102212464
        %v4330 = vsel %vm4326, %v4314, %v4329
        %v4331 = vsel %vm4325, %v4328, %v4330
        %v4332 = vsel %vm4324, %v4311, %v4314
        %v4333 = vsel %vm4327, %v4320, 920167782
        %v4334 = vsel %vm4326, %v4317, %v4333
        %v4335 = vsel %vm4325, %v4332, %v4334
        %v4336 = vsel %vm4324, %v4314, %v4317
        %v4337 = vsel %vm4327, %v4323, 1326507024
        %v4338 = vsel %vm4326, %v4320, %v4337
        %v4339 = vsel %vm4325, %v4336, %v4338
        %v4340 = vshll.u32 %v4300, 8
        %v4341 = vmul.u32.u64.compose %v4340, %v4339
        %v4342 = vextract.low.u32 %v4341
        %v4343 = vextract.high.u32 %v4341
        %v4344 = vmul.u32.u64.compose %v4340, %v4335
        %v4345 = vextract.low.u32 %v4344
        %v4346 = vextract.high.u32 %v4344
        %v4347 = vmul.u32 %v4340, %v4331
        %v4348 = vadd.s32 %v4343, %v4345
        %vm4349 = vc.u32 %v4343, %v4345
        %v4350 = vadd.s32 %v4346, 1
        %v4351 = vsel %vm4349, %v4350, %v4346
        %v4352 = vadd.s32 %v4347, %v4351
        %v4353 = vadd.s32 %v4352, 536870912
        %v4354 = vshrl.u32 %v4353, 30
        %v4355 = vshll.u32 %v4354, 30
        %v4356 = vsub.s32 %v4352, %v4355
        %vm4357 = vcmp.lt.s32.totalorder %v4356, 0
        %v4358 = vsub.s32 0, %v4356
        %v4359 = vsel %vm4357, %v4358, %v4356
        %v4360 = vclz %v4359
        %v4361 = vsub.s32 %v4360, 2
        %vm4362 = vcmp.gt.s32.totalorder 0, %v4361
        %v4363 = vsel %vm4362, 0, %v4361
        %v4364 = vsub.s32 32, %v4363
        %v4365 = vshll.u32 %v4356, %v4363
        %v4366 = vshrl.u32 %v4348, %v4364
        %v4367 = vor.u32 %v4365, %v4366
        %v4368 = vsub.s32 4294967266, %v4363
        %v4369 = vadd.s32 %v4368, 127
        %v4370 = vshll.u32 %v4369, 23
        %v4371 = vor.u32 4788187, %v4370
        %v4372 = vand.u32 2147483647, %v4371
        %v4374 = vcvt.s32.f32 %v4367
        %v4375 = vmul.f32 %v4374, %v4372
        %v4376 = vxor.u32 %v4375, 2147483648
        %v4377 = vsel %vm4294, %v4376, %v4375
        %v4378 = vsub.s32 4, %v4354
        %v4379 = vsel %vm4294, %v4378, %v4354
        %v4380 = vsel %vm4293, %v1170, %v4377
        %v4381 = vsel %vm4293, 0, %v4379
        %v4382 = vcosq.f32.pop %v4380
        %v4383 = vsinq.f32.pop %v4380
        %vm4384 = vweird.f32 %v1170
        %v4385 = vadd.s32 %v4381, 3
        %v4386 = vand.u32 %v4385, 3
        %vm4387 = vcmp.lt.s32.totalorder %v4386, 2
        %vm4388 = vcmp.eq.s32.totalorder %v4386, 0
        %v4389 = vxor.u32 %v4383, 2147483648
        %v4390 = vsel %vm4388, %v4382, %v4389
        %vm4391 = vcmp.eq.s32.totalorder %v4386, 2
        %v4392 = vxor.u32 %v4382, 2147483648
        %v4393 = vsel %vm4391, %v4392, %v4383
        %v4394 = vsel %vm4387, %v4390, %v4393
        %v4395 = vsel %vm4384, nan, %v4394
        %v4396 = vand.u32 2147483647, %v1171
        %vm4397 = vcmp.le.f32.partialorder %v4396, 0.7853982
        %vm4398 = vcmp.lt.s32.totalorder %v1171, 0
        %v4399 = vand.u32 %v1171, 2139095040
        %v4400 = vshrl.u32 %v4399, 23
        %v4401 = vsub.s32 %v4400, 127
        %v4402 = vand.u32 2147483647, %v1171
        %v4403 = vand.u32 %v4402, 8388607
        %v4404 = vor.u32 %v4403, 8388608
        %v4405 = vsub.s32 0, %v4404
        %v4406 = vadd.s32 %v4401, 1
        %vm4407 = vcmp.gt.s32.totalorder %v4406, 0
        %v4408 = vsel %vm4407, %v4406, 0
        %v4409 = vshrl.u32 %v4408, 5
        %v4410 = vand.u32 %v4408, 31
        %v4411 = vsub.s32 32, %v4410
        %v4412 = vshrl.u32 683565275, %v4411
        %v4413 = vshll.u32 683565275, %v4410
        %v4414 = vshrl.u32 2475754826, %v4411
        %v4415 = vor.u32 %v4413, %v4414
        %v4416 = vshll.u32 2475754826, %v4410
        %v4417 = vshrl.u32 2131351028, %v4411
        %v4418 = vor.u32 %v4416, %v4417
        %v4419 = vshll.u32 2131351028, %v4410
        %v4420 = vshrl.u32 2102212464, %v4411
        %v4421 = vor.u32 %v4419, %v4420
        %v4422 = vshll.u32 2102212464, %v4410
        %v4423 = vshrl.u32 920167782, %v4411
        %v4424 = vor.u32 %v4422, %v4423
        %v4425 = vshll.u32 920167782, %v4410
        %v4426 = vshrl.u32 1326507024, %v4411
        %v4427 = vor.u32 %v4425, %v4426
        %vm4428 = vcmp.lt.s32.totalorder %v4409, 1
        %vm4429 = vcmp.lt.s32.totalorder %v4409, 2
        %vm4430 = vcmp.lt.s32.totalorder %v4409, 3
        %vm4431 = vcmp.lt.s32.totalorder %v4409, 4
        %v4432 = vsel %vm4428, %v4412, %v4415
        %v4433 = vsel %vm4431, %v4421, 2102212464
        %v4434 = vsel %vm4430, %v4418, %v4433
        %v4435 = vsel %vm4429, %v4432, %v4434
        %v4436 = vsel %vm4428, %v4415, %v4418
        %v4437 = vsel %vm4431, %v4424, 920167782
        %v4438 = vsel %vm4430, %v4421, %v4437
        %v4439 = vsel %vm4429, %v4436, %v4438
        %v4440 = vsel %vm4428, %v4418, %v4421
        %v4441 = vsel %vm4431, %v4427, 1326507024
        %v4442 = vsel %vm4430, %v4424, %v4441
        %v4443 = vsel %vm4429, %v4440, %v4442
        %v4444 = vshll.u32 %v4404, 8
        %v4445 = vmul.u32.u64.compose %v4444, %v4443
        %v4446 = vextract.low.u32 %v4445
        %v4447 = vextract.high.u32 %v4445
        %v4448 = vmul.u32.u64.compose %v4444, %v4439
        %v4449 = vextract.low.u32 %v4448
        %v4450 = vextract.high.u32 %v4448
        %v4451 = vmul.u32 %v4444, %v4435
        %v4452 = vadd.s32 %v4447, %v4449
        %vm4453 = vc.u32 %v4447, %v4449
        %v4454 = vadd.s32 %v4450, 1
        %v4455 = vsel %vm4453, %v4454, %v4450
        %v4456 = vadd.s32 %v4451, %v4455
        %v4457 = vadd.s32 %v4456, 536870912
        %v4458 = vshrl.u32 %v4457, 30
        %v4459 = vshll.u32 %v4458, 30
        %v4460 = vsub.s32 %v4456, %v4459
        %vm4461 = vcmp.lt.s32.totalorder %v4460, 0
        %v4462 = vsub.s32 0, %v4460
        %v4463 = vsel %vm4461, %v4462, %v4460
        %v4464 = vclz %v4463
        %v4465 = vsub.s32 %v4464, 2
        %vm4466 = vcmp.gt.s32.totalorder 0, %v4465
        %v4467 = vsel %vm4466, 0, %v4465
        %v4468 = vsub.s32 32, %v4467
        %v4469 = vshll.u32 %v4460, %v4467
        %v4470 = vshrl.u32 %v4452, %v4468
        %v4471 = vor.u32 %v4469, %v4470
        %v4472 = vsub.s32 4294967266, %v4467
        %v4473 = vadd.s32 %v4472, 127
        %v4474 = vshll.u32 %v4473, 23
        %v4475 = vor.u32 4788187, %v4474
        %v4476 = vand.u32 2147483647, %v4475
        %v4478 = vcvt.s32.f32 %v4471
        %v4479 = vmul.f32 %v4478, %v4476
        %v4480 = vxor.u32 %v4479, 2147483648
        %v4481 = vsel %vm4398, %v4480, %v4479
        %v4482 = vsub.s32 4, %v4458
        %v4483 = vsel %vm4398, %v4482, %v4458
        %v4484 = vsel %vm4397, %v1171, %v4481
        %v4485 = vsel %vm4397, 0, %v4483
        %v4486 = vcosq.f32.pop %v4484
        %v4487 = vsinq.f32.pop %v4484
        %vm4488 = vweird.f32 %v1171
        %v4489 = vadd.s32 %v4485, 3
        %v4490 = vand.u32 %v4489, 3
        %vm4491 = vcmp.lt.s32.totalorder %v4490, 2
        %vm4492 = vcmp.eq.s32.totalorder %v4490, 0
        %v4493 = vxor.u32 %v4487, 2147483648
        %v4494 = vsel %vm4492, %v4486, %v4493
        %vm4495 = vcmp.eq.s32.totalorder %v4490, 2
        %v4496 = vxor.u32 %v4486, 2147483648
        %v4497 = vsel %vm4495, %v4496, %v4487
        %v4498 = vsel %vm4491, %v4494, %v4497
        %v4499 = vsel %vm4488, nan, %v4498
        %v4500 = vpack.c.bf16 %v1379, %v1275
        %v4501 = vpack.c.bf16 %v1587, %v1483
        %v4502 = vpack.c.bf16 %v1795, %v1691
        %v4503 = vpack.c.bf16 %v2003, %v1899
        %v4504 = vpack.c.bf16 %v2211, %v2107
        %v4505 = vpack.c.bf16 %v2419, %v2315
        %v4506 = vpack.c.bf16 %v2627, %v2523
        %v4507 = vpack.c.bf16 %v2835, %v2731
        %v4508 = vpack.c.bf16 %v3043, %v2939
        %v4509 = vpack.c.bf16 %v3251, %v3147
        %v4510 = vpack.c.bf16 %v3459, %v3355
        %v4511 = vpack.c.bf16 %v3667, %v3563
        %v4512 = vpack.c.bf16 %v3875, %v3771
        %v4513 = vpack.c.bf16 %v4083, %v3979
        %v4514 = vpack.c.bf16 %v4291, %v4187
        %v4515 = vpack.c.bf16 %v4499, %v4395
        %v4516 = vld [vmem:[%s696] sm:$0xf]
        %v4517 = vld [vmem:[%s696 + $0x4] sm:$0xf]
        %v4518 = vld [vmem:[%s696 + $0x8] sm:$0xf]
        %v4519 = vld [vmem:[%s696 + $0xc] sm:$0xf]
        %v4520 = vld [vmem:[%s4] sm:$0x1]
        %v4522 = vlaneseq
        %v4523 = vshrl.u32 %v4522, 7
        %v4524 = vsub.s32 0, %v4523
        %v4525 = vrot.slane %v4520, %v4524
        %v4531 = vunpack.c.l.b16 %v4516
        %v4532 = vunpack.c.l.b16 %v4517
        %v4533 = vunpack.c.l.b16 %v4518
        %v4534 = vunpack.c.l.b16 %v4519
        %v4535 = vpack.c.b16 %v4532, %v4531
        %v4536 = vpack.c.b16 %v4534, %v4533
        %vm4539 = vcmask 261120
        %v4541 = vsel %vm4539, %v4500, 0
        %v4544 = vsel %vm4539, %v4501, 0
        %v4547 = vsel %vm4539, %v4502, 0
        %v4550 = vsel %vm4539, %v4503, 0
        %v4553 = vsel %vm4539, %v4504, 0
        %v4556 = vsel %vm4539, %v4505, 0
        %v4559 = vsel %vm4539, %v4506, 0
        %v4562 = vsel %vm4539, %v4507, 0
        %v4565 = vsel %vm4539, %v4508, 0
        %v4568 = vsel %vm4539, %v4509, 0
        %v4571 = vsel %vm4539, %v4510, 0
        %v4574 = vsel %vm4539, %v4511, 0
        %v4577 = vsel %vm4539, %v4512, 0
        %v4580 = vsel %vm4539, %v4513, 0
        %v4583 = vsel %vm4539, %v4514, 0
        %v4586 = vsel %vm4539, %v4515, 0
        %4588 = vmatprep.subr.bf16.mxu0 0
        %4589 = vmatpush1.bf16.msra.mxu0 0
        %4590 = vmatprep.subr.bf16.mxu0 0
        %4591 = vmatpush1.bf16.msra.mxu0 0
        %4592 = vmatprep.subr.bf16.mxu0 0
        %4593 = vmatpush1.bf16.msra.mxu0 0
        %4594 = vmatprep.subr.bf16.mxu0 0
        %4595 = vmatpush1.bf16.msra.mxu0 0
        %4596 = vmatprep.subr.bf16.mxu0 0
        %4597 = vmatpush1.bf16.msra.mxu0 0
        %4598 = vmatprep.subr.bf16.mxu0 0
        %4599 = vmatpush1.bf16.msra.mxu0 0
        %4600 = vmatprep.subr.bf16.mxu0 0
        %4601 = vmatpush1.bf16.msra.mxu0 %v4536
        %4602 = vmatprep.subr.bf16.mxu0 0
        %4603 = vmatpush1.bf16.msra.mxu0 %v4535
        %4604 = vmatprep.subr.bf16.mxu0 0
        %4605 = vmatpush2.bf16.msra.mxu0 0
        %4606 = vmatprep.subr.bf16.mxu0 0
        %4607 = vmatpush2.bf16.msra.mxu0 0
        %4608 = vmatprep.subr.bf16.mxu0 0
        %4609 = vmatpush2.bf16.msra.mxu0 0
        %4610 = vmatprep.subr.bf16.mxu0 0
        %4611 = vmatpush2.bf16.msra.mxu0 0
        %4612 = vmatprep.subr.bf16.mxu0 0
        %4613 = vmatpush2.bf16.msra.mxu0 0
        %4614 = vmatprep.subr.bf16.mxu0 0
        %4615 = vmatpush2.bf16.msra.mxu0 0
        %4616 = vmatprep.subr.bf16.mxu0 0
        %4617 = vmatpush2.bf16.msra.mxu0 0
        %4618 = vmatprep.subr.bf16.mxu0 0
        %4619 = vmatpush2.bf16.msra.mxu0 0
        %4620 = vmatprep.mubr.bf16.mxu0 0
        %4621 = vmatmul.mubr.bf16.gmra.mxu0 %v4541
        %v4622 = vpop.f32.mrf.mxu0
        %v4623 = vadd.f32 %v4525, %v4622
        %v4624 = vpop.f32.mrf.mxu0
        %v4625 = vpop.f32.mrf.mxu0
        %v4626 = vadd.f32 %v4525, %v4625
        %v4627 = vpop.f32.mrf.mxu0
        %4628 = vmatprep.mubr.bf16.mxu0 0
        %4629 = vmatmul.mubr.bf16.gmra.mxu0 %v4544
        %v4630 = vpop.f32.mrf.mxu0
        %v4631 = vadd.f32 %v4525, %v4630
        %v4632 = vpop.f32.mrf.mxu0
        %v4633 = vpop.f32.mrf.mxu0
        %v4634 = vadd.f32 %v4525, %v4633
        %v4635 = vpop.f32.mrf.mxu0
        %4636 = vmatprep.mubr.bf16.mxu0 0
        %4637 = vmatmul.mubr.bf16.gmra.mxu0 %v4547
        %v4638 = vpop.f32.mrf.mxu0
        %v4639 = vadd.f32 %v4525, %v4638
        %v4640 = vpop.f32.mrf.mxu0
        %v4641 = vpop.f32.mrf.mxu0
        %v4642 = vadd.f32 %v4525, %v4641
        %v4643 = vpop.f32.mrf.mxu0
        %4644 = vmatprep.mubr.bf16.mxu0 0
        %4645 = vmatmul.mubr.bf16.gmra.mxu0 %v4550
        %v4646 = vpop.f32.mrf.mxu0
        %v4647 = vadd.f32 %v4525, %v4646
        %v4648 = vpop.f32.mrf.mxu0
        %v4649 = vpop.f32.mrf.mxu0
        %v4650 = vadd.f32 %v4525, %v4649
        %v4651 = vpop.f32.mrf.mxu0
        %4652 = vmatprep.mubr.bf16.mxu0 0
        %4653 = vmatmul.mubr.bf16.gmra.mxu0 %v4553
        %v4654 = vpop.f32.mrf.mxu0
        %v4655 = vadd.f32 %v4525, %v4654
        %v4656 = vpop.f32.mrf.mxu0
        %v4657 = vpop.f32.mrf.mxu0
        %v4658 = vadd.f32 %v4525, %v4657
        %v4659 = vpop.f32.mrf.mxu0
        %4660 = vmatprep.mubr.bf16.mxu0 0
        %4661 = vmatmul.mubr.bf16.gmra.mxu0 %v4556
        %v4662 = vpop.f32.mrf.mxu0
        %v4663 = vadd.f32 %v4525, %v4662
        %v4664 = vpop.f32.mrf.mxu0
        %v4665 = vpop.f32.mrf.mxu0
        %v4666 = vadd.f32 %v4525, %v4665
        %v4667 = vpop.f32.mrf.mxu0
        %4668 = vmatprep.mubr.bf16.mxu0 0
        %4669 = vmatmul.mubr.bf16.gmra.mxu0 %v4559
        %v4670 = vpop.f32.mrf.mxu0
        %v4671 = vadd.f32 %v4525, %v4670
        %v4672 = vpop.f32.mrf.mxu0
        %v4673 = vpop.f32.mrf.mxu0
        %v4674 = vadd.f32 %v4525, %v4673
        %v4675 = vpop.f32.mrf.mxu0
        %4676 = vmatprep.mubr.bf16.mxu0 0
        %4677 = vmatmul.mubr.bf16.gmra.mxu0 %v4562
        %v4678 = vpop.f32.mrf.mxu0
        %v4679 = vadd.f32 %v4525, %v4678
        %v4680 = vpop.f32.mrf.mxu0
        %v4681 = vpop.f32.mrf.mxu0
        %v4682 = vadd.f32 %v4525, %v4681
        %v4683 = vpop.f32.mrf.mxu0
        %4684 = vmatprep.mubr.bf16.mxu0 0
        %4685 = vmatmul.mubr.bf16.gmra.mxu0 %v4565
        %v4686 = vpop.f32.mrf.mxu0
        %v4687 = vadd.f32 %v4525, %v4686
        %v4688 = vpop.f32.mrf.mxu0
        %v4689 = vpop.f32.mrf.mxu0
        %v4690 = vadd.f32 %v4525, %v4689
        %v4691 = vpop.f32.mrf.mxu0
        %4692 = vmatprep.mubr.bf16.mxu0 0
        %4693 = vmatmul.mubr.bf16.gmra.mxu0 %v4568
        %v4694 = vpop.f32.mrf.mxu0
        %v4695 = vadd.f32 %v4525, %v4694
        %v4696 = vpop.f32.mrf.mxu0
        %v4697 = vpop.f32.mrf.mxu0
        %v4698 = vadd.f32 %v4525, %v4697
        %v4699 = vpop.f32.mrf.mxu0
        %4700 = vmatprep.mubr.bf16.mxu0 0
        %4701 = vmatmul.mubr.bf16.gmra.mxu0 %v4571
        %v4702 = vpop.f32.mrf.mxu0
        %v4703 = vadd.f32 %v4525, %v4702
        %v4704 = vpop.f32.mrf.mxu0
        %v4705 = vpop.f32.mrf.mxu0
        %v4706 = vadd.f32 %v4525, %v4705
        %v4707 = vpop.f32.mrf.mxu0
        %4708 = vmatprep.mubr.bf16.mxu0 0
        %4709 = vmatmul.mubr.bf16.gmra.mxu0 %v4574
        %v4710 = vpop.f32.mrf.mxu0
        %v4711 = vadd.f32 %v4525, %v4710
        %v4712 = vpop.f32.mrf.mxu0
        %v4713 = vpop.f32.mrf.mxu0
        %v4714 = vadd.f32 %v4525, %v4713
        %v4715 = vpop.f32.mrf.mxu0
        %4716 = vmatprep.mubr.bf16.mxu0 0
        %4717 = vmatmul.mubr.bf16.gmra.mxu0 %v4577
        %v4718 = vpop.f32.mrf.mxu0
        %v4719 = vadd.f32 %v4525, %v4718
        %v4720 = vpop.f32.mrf.mxu0
        %v4721 = vpop.f32.mrf.mxu0
        %v4722 = vadd.f32 %v4525, %v4721
        %v4723 = vpop.f32.mrf.mxu0
        %4724 = vmatprep.mubr.bf16.mxu0 0
        %4725 = vmatmul.mubr.bf16.gmra.mxu0 %v4580
        %v4726 = vpop.f32.mrf.mxu0
        %v4727 = vadd.f32 %v4525, %v4726
        %v4728 = vpop.f32.mrf.mxu0
        %v4729 = vpop.f32.mrf.mxu0
        %v4730 = vadd.f32 %v4525, %v4729
        %v4731 = vpop.f32.mrf.mxu0
        %4732 = vmatprep.mubr.bf16.mxu0 0
        %4733 = vmatmul.mubr.bf16.gmra.mxu0 %v4583
        %v4734 = vpop.f32.mrf.mxu0
        %v4735 = vadd.f32 %v4525, %v4734
        %v4736 = vpop.f32.mrf.mxu0
        %v4737 = vpop.f32.mrf.mxu0
        %v4738 = vadd.f32 %v4525, %v4737
        %v4739 = vpop.f32.mrf.mxu0
        %4740 = vmatprep.mubr.bf16.mxu0 0
        %4741 = vmatmul.mubr.bf16.gmra.mxu0 %v4586
        %v4742 = vpop.f32.mrf.mxu0
        %v4743 = vadd.f32 %v4525, %v4742
        %v4744 = vpop.f32.mrf.mxu0
        %v4745 = vpop.f32.mrf.mxu0
        %v4746 = vadd.f32 %v4525, %v4745
        %v4747 = vpop.f32.mrf.mxu0
        %4748 = vdwg.mxu0
        %vm4749 = vcmp.ge.f32.partialorder %v4623, 0.0
        %vm4750 = vcmp.ge.f32.partialorder %v4626, 0.0
        %vm4751 = vcmp.ge.f32.partialorder %v4631, 0.0
        %vm4752 = vcmp.ge.f32.partialorder %v4634, 0.0
        %vm4753 = vcmp.ge.f32.partialorder %v4639, 0.0
        %vm4754 = vcmp.ge.f32.partialorder %v4642, 0.0
        %vm4755 = vcmp.ge.f32.partialorder %v4647, 0.0
        %vm4756 = vcmp.ge.f32.partialorder %v4650, 0.0
        %vm4757 = vcmp.ge.f32.partialorder %v4655, 0.0
        %vm4758 = vcmp.ge.f32.partialorder %v4658, 0.0
        %vm4759 = vcmp.ge.f32.partialorder %v4663, 0.0
        %vm4760 = vcmp.ge.f32.partialorder %v4666, 0.0
        %vm4761 = vcmp.ge.f32.partialorder %v4671, 0.0
        %vm4762 = vcmp.ge.f32.partialorder %v4674, 0.0
        %vm4763 = vcmp.ge.f32.partialorder %v4679, 0.0
        %vm4764 = vcmp.ge.f32.partialorder %v4682, 0.0
        %vm4765 = vcmp.ge.f32.partialorder %v4687, 0.0
        %vm4766 = vcmp.ge.f32.partialorder %v4690, 0.0
        %vm4767 = vcmp.ge.f32.partialorder %v4695, 0.0
        %vm4768 = vcmp.ge.f32.partialorder %v4698, 0.0
        %vm4769 = vcmp.ge.f32.partialorder %v4703, 0.0
        %vm4770 = vcmp.ge.f32.partialorder %v4706, 0.0
        %vm4771 = vcmp.ge.f32.partialorder %v4711, 0.0
        %vm4772 = vcmp.ge.f32.partialorder %v4714, 0.0
        %vm4773 = vcmp.ge.f32.partialorder %v4719, 0.0
        %vm4774 = vcmp.ge.f32.partialorder %v4722, 0.0
        %vm4775 = vcmp.ge.f32.partialorder %v4727, 0.0
        %vm4776 = vcmp.ge.f32.partialorder %v4730, 0.0
        %vm4777 = vcmp.ge.f32.partialorder %v4735, 0.0
        %vm4778 = vcmp.ge.f32.partialorder %v4738, 0.0
        %vm4779 = vcmp.ge.f32.partialorder %v4743, 0.0
        %vm4780 = vcmp.ge.f32.partialorder %v4746, 0.0
        %v4781 = vmul.f32 %v4623, 0.2
        %v4782 = vmul.f32 %v4626, 0.2
        %v4783 = vmul.f32 %v4631, 0.2
        %v4784 = vmul.f32 %v4634, 0.2
        %v4785 = vmul.f32 %v4639, 0.2
        %v4786 = vmul.f32 %v4642, 0.2
        %v4787 = vmul.f32 %v4647, 0.2
        %v4788 = vmul.f32 %v4650, 0.2
        %v4789 = vmul.f32 %v4655, 0.2
        %v4790 = vmul.f32 %v4658, 0.2
        %v4791 = vmul.f32 %v4663, 0.2
        %v4792 = vmul.f32 %v4666, 0.2
        %v4793 = vmul.f32 %v4671, 0.2
        %v4794 = vmul.f32 %v4674, 0.2
        %v4795 = vmul.f32 %v4679, 0.2
        %v4796 = vmul.f32 %v4682, 0.2
        %v4797 = vmul.f32 %v4687, 0.2
        %v4798 = vmul.f32 %v4690, 0.2
        %v4799 = vmul.f32 %v4695, 0.2
        %v4800 = vmul.f32 %v4698, 0.2
        %v4801 = vmul.f32 %v4703, 0.2
        %v4802 = vmul.f32 %v4706, 0.2
        %v4803 = vmul.f32 %v4711, 0.2
        %v4804 = vmul.f32 %v4714, 0.2
        %v4805 = vmul.f32 %v4719, 0.2
        %v4806 = vmul.f32 %v4722, 0.2
        %v4807 = vmul.f32 %v4727, 0.2
        %v4808 = vmul.f32 %v4730, 0.2
        %v4809 = vmul.f32 %v4735, 0.2
        %v4810 = vmul.f32 %v4738, 0.2
        %v4811 = vmul.f32 %v4743, 0.2
        %v4812 = vmul.f32 %v4746, 0.2
        %v4813 = vsel %vm4749, %v4623, %v4781
        %v4814 = vsel %vm4750, %v4626, %v4782
        %v4815 = vsel %vm4751, %v4631, %v4783
        %v4816 = vsel %vm4752, %v4634, %v4784
        %v4817 = vsel %vm4753, %v4639, %v4785
        %v4818 = vsel %vm4754, %v4642, %v4786
        %v4819 = vsel %vm4755, %v4647, %v4787
        %v4820 = vsel %vm4756, %v4650, %v4788
        %v4821 = vsel %vm4757, %v4655, %v4789
        %v4822 = vsel %vm4758, %v4658, %v4790
        %v4823 = vsel %vm4759, %v4663, %v4791
        %v4824 = vsel %vm4760, %v4666, %v4792
        %v4825 = vsel %vm4761, %v4671, %v4793
        %v4826 = vsel %vm4762, %v4674, %v4794
        %v4827 = vsel %vm4763, %v4679, %v4795
        %v4828 = vsel %vm4764, %v4682, %v4796
        %v4829 = vsel %vm4765, %v4687, %v4797
        %v4830 = vsel %vm4766, %v4690, %v4798
        %v4831 = vsel %vm4767, %v4695, %v4799
        %v4832 = vsel %vm4768, %v4698, %v4800
        %v4833 = vsel %vm4769, %v4703, %v4801
        %v4834 = vsel %vm4770, %v4706, %v4802
        %v4835 = vsel %vm4771, %v4711, %v4803
        %v4836 = vsel %vm4772, %v4714, %v4804
        %v4837 = vsel %vm4773, %v4719, %v4805
        %v4838 = vsel %vm4774, %v4722, %v4806
        %v4839 = vsel %vm4775, %v4727, %v4807
        %v4840 = vsel %vm4776, %v4730, %v4808
        %v4841 = vsel %vm4777, %v4735, %v4809
        %v4842 = vsel %vm4778, %v4738, %v4810
        %v4843 = vsel %vm4779, %v4743, %v4811
        %v4844 = vsel %vm4780, %v4746, %v4812
        %v4845 = vmul.f32 %v4813, 1.4142135
        %v4846 = vmul.f32 %v4814, 1.4142135
        %v4847 = vmul.f32 %v4815, 1.4142135
        %v4848 = vmul.f32 %v4816, 1.4142135
        %v4849 = vmul.f32 %v4817, 1.4142135
        %v4850 = vmul.f32 %v4818, 1.4142135
        %v4851 = vmul.f32 %v4819, 1.4142135
        %v4852 = vmul.f32 %v4820, 1.4142135
        %v4853 = vmul.f32 %v4821, 1.4142135
        %v4854 = vmul.f32 %v4822, 1.4142135
        %v4855 = vmul.f32 %v4823, 1.4142135
        %v4856 = vmul.f32 %v4824, 1.4142135
        %v4857 = vmul.f32 %v4825, 1.4142135
        %v4858 = vmul.f32 %v4826, 1.4142135
        %v4859 = vmul.f32 %v4827, 1.4142135
        %v4860 = vmul.f32 %v4828, 1.4142135
        %v4861 = vmul.f32 %v4829, 1.4142135
        %v4862 = vmul.f32 %v4830, 1.4142135
        %v4863 = vmul.f32 %v4831, 1.4142135
        %v4864 = vmul.f32 %v4832, 1.4142135
        %v4865 = vmul.f32 %v4833, 1.4142135
        %v4866 = vmul.f32 %v4834, 1.4142135
        %v4867 = vmul.f32 %v4835, 1.4142135
        %v4868 = vmul.f32 %v4836, 1.4142135
        %v4869 = vmul.f32 %v4837, 1.4142135
        %v4870 = vmul.f32 %v4838, 1.4142135
        %v4871 = vmul.f32 %v4839, 1.4142135
        %v4872 = vmul.f32 %v4840, 1.4142135
        %v4873 = vmul.f32 %v4841, 1.4142135
        %v4874 = vmul.f32 %v4842, 1.4142135
        %v4875 = vmul.f32 %v4843, 1.4142135
        %v4876 = vmul.f32 %v4844, 1.4142135
        %v4877 = vld [vmem:[%s6] sm:$0x3f]
        %v4878 = vpack.c.bf16 %v4846, %v4845
        %v4879 = vpack.c.bf16 %v4848, %v4847
        %v4880 = vpack.c.bf16 %v4850, %v4849
        %v4881 = vpack.c.bf16 %v4852, %v4851
        %v4882 = vpack.c.bf16 %v4854, %v4853
        %v4883 = vpack.c.bf16 %v4856, %v4855
        %v4884 = vpack.c.bf16 %v4858, %v4857
        %v4885 = vpack.c.bf16 %v4860, %v4859
        %v4886 = vpack.c.bf16 %v4862, %v4861
        %v4887 = vpack.c.bf16 %v4864, %v4863
        %v4888 = vpack.c.bf16 %v4866, %v4865
        %v4889 = vpack.c.bf16 %v4868, %v4867
        %v4890 = vpack.c.bf16 %v4870, %v4869
        %v4891 = vpack.c.bf16 %v4872, %v4871
        %v4892 = vpack.c.bf16 %v4874, %v4873
        %v4893 = vpack.c.bf16 %v4876, %v4875
        %v4894 = vld [vmem:[%s620] sm:$0xf]
        %v4895 = vld [vmem:[%s620 + $0x4] sm:$0xf]
        %v4896 = vld [vmem:[%s620 + $0x8] sm:$0xf]
        %v4897 = vld [vmem:[%s620 + $0xc] sm:$0xf]
        %v4898 = vld [vmem:[%s620 + $0x10] sm:$0xf]
        %v4899 = vld [vmem:[%s620 + $0x14] sm:$0xf]
        %v4900 = vld [vmem:[%s620 + $0x18] sm:$0xf]
        %v4901 = vld [vmem:[%s620 + $0x1c] sm:$0xf]
        %v4902 = vlaneseq
        %v4903 = vshrl.u32 %v4902, 7
        %v4904 = vsub.s32 0, %v4903
        %v4905 = vrot.slane %v4877, %v4904
        %v4914 = vunpack.c.l.b16 %v4894
        %v4915 = vunpack.c.l.b16 %v4895
        %v4916 = vunpack.c.l.b16 %v4896
        %v4917 = vunpack.c.l.b16 %v4897
        %v4918 = vunpack.c.l.b16 %v4898
        %v4919 = vunpack.c.l.b16 %v4899
        %v4920 = vunpack.c.l.b16 %v4900
        %v4921 = vunpack.c.l.b16 %v4901
        %v4922 = vpack.c.b16 %v4915, %v4914
        %v4923 = vpack.c.b16 %v4917, %v4916
        %v4924 = vpack.c.b16 %v4919, %v4918
        %v4925 = vpack.c.b16 %v4921, %v4920
        %vm4930 = vcmask 523264
        %v4932 = vsel %vm4930, %v4878, 0
        %v4935 = vsel %vm4930, %v4879, 0
        %v4938 = vsel %vm4930, %v4880, 0
        %v4941 = vsel %vm4930, %v4881, 0
        %v4944 = vsel %vm4930, %v4882, 0
        %v4947 = vsel %vm4930, %v4883, 0
        %v4950 = vsel %vm4930, %v4884, 0
        %v4953 = vsel %vm4930, %v4885, 0
        %v4956 = vsel %vm4930, %v4886, 0
        %v4959 = vsel %vm4930, %v4887, 0
        %v4962 = vsel %vm4930, %v4888, 0
        %v4965 = vsel %vm4930, %v4889, 0
        %v4968 = vsel %vm4930, %v4890, 0
        %v4971 = vsel %vm4930, %v4891, 0
        %v4974 = vsel %vm4930, %v4892, 0
        %v4977 = vsel %vm4930, %v4893, 0
        %4979 = vmatprep.subr.bf16.mxu0 0
        %4980 = vmatpush1.bf16.msra.mxu0 0
        %4981 = vmatprep.subr.bf16.mxu0 0
        %4982 = vmatpush1.bf16.msra.mxu0 0
        %4983 = vmatprep.subr.bf16.mxu0 0
        %4984 = vmatpush1.bf16.msra.mxu0 0
        %4985 = vmatprep.subr.bf16.mxu0 0
        %4986 = vmatpush1.bf16.msra.mxu0 0
        %4987 = vmatprep.subr.bf16.mxu0 0
        %4988 = vmatpush1.bf16.msra.mxu0 %v4925
        %4989 = vmatprep.subr.bf16.mxu0 0
        %4990 = vmatpush1.bf16.msra.mxu0 %v4924
        %4991 = vmatprep.subr.bf16.mxu0 0
        %4992 = vmatpush1.bf16.msra.mxu0 %v4923
        %4993 = vmatprep.subr.bf16.mxu0 0
        %4994 = vmatpush1.bf16.msra.mxu0 %v4922
        %4995 = vmatprep.subr.bf16.mxu0 0
        %4996 = vmatpush2.bf16.msra.mxu0 0
        %4997 = vmatprep.subr.bf16.mxu0 0
        %4998 = vmatpush2.bf16.msra.mxu0 0
        %4999 = vmatprep.subr.bf16.mxu0 0
        %5000 = vmatpush2.bf16.msra.mxu0 0
        %5001 = vmatprep.subr.bf16.mxu0 0
        %5002 = vmatpush2.bf16.msra.mxu0 0
        %5003 = vmatprep.subr.bf16.mxu0 0
        %5004 = vmatpush2.bf16.msra.mxu0 0
        %5005 = vmatprep.subr.bf16.mxu0 0
        %5006 = vmatpush2.bf16.msra.mxu0 0
        %5007 = vmatprep.subr.bf16.mxu0 0
        %5008 = vmatpush2.bf16.msra.mxu0 0
        %5009 = vmatprep.subr.bf16.mxu0 0
        %5010 = vmatpush2.bf16.msra.mxu0 0
        %5011 = vmatprep.mubr.bf16.mxu0 0
        %5012 = vmatmul.mubr.bf16.gmra.mxu0 %v4932
        %v5013 = vpop.f32.mrf.mxu0
        %v5014 = vadd.f32 %v4905, %v5013
        %v5015 = vpop.f32.mrf.mxu0
        %v5016 = vpop.f32.mrf.mxu0
        %v5017 = vadd.f32 %v4905, %v5016
        %v5018 = vpop.f32.mrf.mxu0
        %5019 = vmatprep.mubr.bf16.mxu0 0
        %5020 = vmatmul.mubr.bf16.gmra.mxu0 %v4935
        %v5021 = vpop.f32.mrf.mxu0
        %v5022 = vadd.f32 %v4905, %v5021
        %v5023 = vpop.f32.mrf.mxu0
        %v5024 = vpop.f32.mrf.mxu0
        %v5025 = vadd.f32 %v4905, %v5024
        %v5026 = vpop.f32.mrf.mxu0
        %5027 = vmatprep.mubr.bf16.mxu0 0
        %5028 = vmatmul.mubr.bf16.gmra.mxu0 %v4938
        %v5029 = vpop.f32.mrf.mxu0
        %v5030 = vadd.f32 %v4905, %v5029
        %v5031 = vpop.f32.mrf.mxu0
        %v5032 = vpop.f32.mrf.mxu0
        %v5033 = vadd.f32 %v4905, %v5032
        %v5034 = vpop.f32.mrf.mxu0
        %5035 = vmatprep.mubr.bf16.mxu0 0
        %5036 = vmatmul.mubr.bf16.gmra.mxu0 %v4941
        %v5037 = vpop.f32.mrf.mxu0
        %v5038 = vadd.f32 %v4905, %v5037
        %v5039 = vpop.f32.mrf.mxu0
        %v5040 = vpop.f32.mrf.mxu0
        %v5041 = vadd.f32 %v4905, %v5040
        %v5042 = vpop.f32.mrf.mxu0
        %5043 = vmatprep.mubr.bf16.mxu0 0
        %5044 = vmatmul.mubr.bf16.gmra.mxu0 %v4944
        %v5045 = vpop.f32.mrf.mxu0
        %v5046 = vadd.f32 %v4905, %v5045
        %v5047 = vpop.f32.mrf.mxu0
        %v5048 = vpop.f32.mrf.mxu0
        %v5049 = vadd.f32 %v4905, %v5048
        %v5050 = vpop.f32.mrf.mxu0
        %5051 = vmatprep.mubr.bf16.mxu0 0
        %5052 = vmatmul.mubr.bf16.gmra.mxu0 %v4947
        %v5053 = vpop.f32.mrf.mxu0
        %v5054 = vadd.f32 %v4905, %v5053
        %v5055 = vpop.f32.mrf.mxu0
        %v5056 = vpop.f32.mrf.mxu0
        %v5057 = vadd.f32 %v4905, %v5056
        %v5058 = vpop.f32.mrf.mxu0
        %5059 = vmatprep.mubr.bf16.mxu0 0
        %5060 = vmatmul.mubr.bf16.gmra.mxu0 %v4950
        %v5061 = vpop.f32.mrf.mxu0
        %v5062 = vadd.f32 %v4905, %v5061
        %v5063 = vpop.f32.mrf.mxu0
        %v5064 = vpop.f32.mrf.mxu0
        %v5065 = vadd.f32 %v4905, %v5064
        %v5066 = vpop.f32.mrf.mxu0
        %5067 = vmatprep.mubr.bf16.mxu0 0
        %5068 = vmatmul.mubr.bf16.gmra.mxu0 %v4953
        %v5069 = vpop.f32.mrf.mxu0
        %v5070 = vadd.f32 %v4905, %v5069
        %v5071 = vpop.f32.mrf.mxu0
        %v5072 = vpop.f32.mrf.mxu0
        %v5073 = vadd.f32 %v4905, %v5072
        %v5074 = vpop.f32.mrf.mxu0
        %5075 = vmatprep.mubr.bf16.mxu0 0
        %5076 = vmatmul.mubr.bf16.gmra.mxu0 %v4956
        %v5077 = vpop.f32.mrf.mxu0
        %v5078 = vadd.f32 %v4905, %v5077
        %v5079 = vpop.f32.mrf.mxu0
        %v5080 = vpop.f32.mrf.mxu0
        %v5081 = vadd.f32 %v4905, %v5080
        %v5082 = vpop.f32.mrf.mxu0
        %5083 = vmatprep.mubr.bf16.mxu0 0
        %5084 = vmatmul.mubr.bf16.gmra.mxu0 %v4959
        %v5085 = vpop.f32.mrf.mxu0
        %v5086 = vadd.f32 %v4905, %v5085
        %v5087 = vpop.f32.mrf.mxu0
        %v5088 = vpop.f32.mrf.mxu0
        %v5089 = vadd.f32 %v4905, %v5088
        %v5090 = vpop.f32.mrf.mxu0
        %5091 = vmatprep.mubr.bf16.mxu0 0
        %5092 = vmatmul.mubr.bf16.gmra.mxu0 %v4962
        %v5093 = vpop.f32.mrf.mxu0
        %v5094 = vadd.f32 %v4905, %v5093
        %v5095 = vpop.f32.mrf.mxu0
        %v5096 = vpop.f32.mrf.mxu0
        %v5097 = vadd.f32 %v4905, %v5096
        %v5098 = vpop.f32.mrf.mxu0
        %5099 = vmatprep.mubr.bf16.mxu0 0
        %5100 = vmatmul.mubr.bf16.gmra.mxu0 %v4965
        %v5101 = vpop.f32.mrf.mxu0
        %v5102 = vadd.f32 %v4905, %v5101
        %v5103 = vpop.f32.mrf.mxu0
        %v5104 = vpop.f32.mrf.mxu0
        %v5105 = vadd.f32 %v4905, %v5104
        %v5106 = vpop.f32.mrf.mxu0
        %5107 = vmatprep.mubr.bf16.mxu0 0
        %5108 = vmatmul.mubr.bf16.gmra.mxu0 %v4968
        %v5109 = vpop.f32.mrf.mxu0
        %v5110 = vadd.f32 %v4905, %v5109
        %v5111 = vpop.f32.mrf.mxu0
        %v5112 = vpop.f32.mrf.mxu0
        %v5113 = vadd.f32 %v4905, %v5112
        %v5114 = vpop.f32.mrf.mxu0
        %5115 = vmatprep.mubr.bf16.mxu0 0
        %5116 = vmatmul.mubr.bf16.gmra.mxu0 %v4971
        %v5117 = vpop.f32.mrf.mxu0
        %v5118 = vadd.f32 %v4905, %v5117
        %v5119 = vpop.f32.mrf.mxu0
        %v5120 = vpop.f32.mrf.mxu0
        %v5121 = vadd.f32 %v4905, %v5120
        %v5122 = vpop.f32.mrf.mxu0
        %5123 = vmatprep.mubr.bf16.mxu0 0
        %5124 = vmatmul.mubr.bf16.gmra.mxu0 %v4974
        %v5125 = vpop.f32.mrf.mxu0
        %v5126 = vadd.f32 %v4905, %v5125
        %v5127 = vpop.f32.mrf.mxu0
        %v5128 = vpop.f32.mrf.mxu0
        %v5129 = vadd.f32 %v4905, %v5128
        %v5130 = vpop.f32.mrf.mxu0
        %5131 = vmatprep.mubr.bf16.mxu0 0
        %5132 = vmatmul.mubr.bf16.gmra.mxu0 %v4977
        %v5133 = vpop.f32.mrf.mxu0
        %v5134 = vadd.f32 %v4905, %v5133
        %v5135 = vpop.f32.mrf.mxu0
        %v5136 = vpop.f32.mrf.mxu0
        %v5137 = vadd.f32 %v4905, %v5136
        %v5138 = vpop.f32.mrf.mxu0
        %5139 = vdwg.mxu0
        %vm5140 = vcmp.ge.f32.partialorder %v5014, 0.0
        %vm5141 = vcmp.ge.f32.partialorder %v5017, 0.0
        %vm5142 = vcmp.ge.f32.partialorder %v5022, 0.0
        %vm5143 = vcmp.ge.f32.partialorder %v5025, 0.0
        %vm5144 = vcmp.ge.f32.partialorder %v5030, 0.0
        %vm5145 = vcmp.ge.f32.partialorder %v5033, 0.0
        %vm5146 = vcmp.ge.f32.partialorder %v5038, 0.0
        %vm5147 = vcmp.ge.f32.partialorder %v5041, 0.0
        %vm5148 = vcmp.ge.f32.partialorder %v5046, 0.0
        %vm5149 = vcmp.ge.f32.partialorder %v5049, 0.0
        %vm5150 = vcmp.ge.f32.partialorder %v5054, 0.0
        %vm5151 = vcmp.ge.f32.partialorder %v5057, 0.0
        %vm5152 = vcmp.ge.f32.partialorder %v5062, 0.0
        %vm5153 = vcmp.ge.f32.partialorder %v5065, 0.0
        %vm5154 = vcmp.ge.f32.partialorder %v5070, 0.0
        %vm5155 = vcmp.ge.f32.partialorder %v5073, 0.0
        %vm5156 = vcmp.ge.f32.partialorder %v5078, 0.0
        %vm5157 = vcmp.ge.f32.partialorder %v5081, 0.0
        %vm5158 = vcmp.ge.f32.partialorder %v5086, 0.0
        %vm5159 = vcmp.ge.f32.partialorder %v5089, 0.0
        %vm5160 = vcmp.ge.f32.partialorder %v5094, 0.0
        %vm5161 = vcmp.ge.f32.partialorder %v5097, 0.0
        %vm5162 = vcmp.ge.f32.partialorder %v5102, 0.0
        %vm5163 = vcmp.ge.f32.partialorder %v5105, 0.0
        %vm5164 = vcmp.ge.f32.partialorder %v5110, 0.0
        %vm5165 = vcmp.ge.f32.partialorder %v5113, 0.0
        %vm5166 = vcmp.ge.f32.partialorder %v5118, 0.0
        %vm5167 = vcmp.ge.f32.partialorder %v5121, 0.0
        %vm5168 = vcmp.ge.f32.partialorder %v5126, 0.0
        %vm5169 = vcmp.ge.f32.partialorder %v5129, 0.0
        %vm5170 = vcmp.ge.f32.partialorder %v5134, 0.0
        %vm5171 = vcmp.ge.f32.partialorder %v5137, 0.0
        %v5172 = vmul.f32 %v5014, 0.2
        %v5173 = vmul.f32 %v5017, 0.2
        %v5174 = vmul.f32 %v5022, 0.2
        %v5175 = vmul.f32 %v5025, 0.2
        %v5176 = vmul.f32 %v5030, 0.2
        %v5177 = vmul.f32 %v5033, 0.2
        %v5178 = vmul.f32 %v5038, 0.2
        %v5179 = vmul.f32 %v5041, 0.2
        %v5180 = vmul.f32 %v5046, 0.2
        %v5181 = vmul.f32 %v5049, 0.2
        %v5182 = vmul.f32 %v5054, 0.2
        %v5183 = vmul.f32 %v5057, 0.2
        %v5184 = vmul.f32 %v5062, 0.2
        %v5185 = vmul.f32 %v5065, 0.2
        %v5186 = vmul.f32 %v5070, 0.2
        %v5187 = vmul.f32 %v5073, 0.2
        %v5188 = vmul.f32 %v5078, 0.2
        %v5189 = vmul.f32 %v5081, 0.2
        %v5190 = vmul.f32 %v5086, 0.2
        %v5191 = vmul.f32 %v5089, 0.2
        %v5192 = vmul.f32 %v5094, 0.2
        %v5193 = vmul.f32 %v5097, 0.2
        %v5194 = vmul.f32 %v5102, 0.2
        %v5195 = vmul.f32 %v5105, 0.2
        %v5196 = vmul.f32 %v5110, 0.2
        %v5197 = vmul.f32 %v5113, 0.2
        %v5198 = vmul.f32 %v5118, 0.2
        %v5199 = vmul.f32 %v5121, 0.2
        %v5200 = vmul.f32 %v5126, 0.2
        %v5201 = vmul.f32 %v5129, 0.2
        %v5202 = vmul.f32 %v5134, 0.2
        %v5203 = vmul.f32 %v5137, 0.2
        %v5204 = vsel %vm5140, %v5014, %v5172
        %v5205 = vsel %vm5141, %v5017, %v5173
        %v5206 = vsel %vm5142, %v5022, %v5174
        %v5207 = vsel %vm5143, %v5025, %v5175
        %v5208 = vsel %vm5144, %v5030, %v5176
        %v5209 = vsel %vm5145, %v5033, %v5177
        %v5210 = vsel %vm5146, %v5038, %v5178
        %v5211 = vsel %vm5147, %v5041, %v5179
        %v5212 = vsel %vm5148, %v5046, %v5180
        %v5213 = vsel %vm5149, %v5049, %v5181
        %v5214 = vsel %vm5150, %v5054, %v5182
        %v5215 = vsel %vm5151, %v5057, %v5183
        %v5216 = vsel %vm5152, %v5062, %v5184
        %v5217 = vsel %vm5153, %v5065, %v5185
        %v5218 = vsel %vm5154, %v5070, %v5186
        %v5219 = vsel %vm5155, %v5073, %v5187
        %v5220 = vsel %vm5156, %v5078, %v5188
        %v5221 = vsel %vm5157, %v5081, %v5189
        %v5222 = vsel %vm5158, %v5086, %v5190
        %v5223 = vsel %vm5159, %v5089, %v5191
        %v5224 = vsel %vm5160, %v5094, %v5192
        %v5225 = vsel %vm5161, %v5097, %v5193
        %v5226 = vsel %vm5162, %v5102, %v5194
        %v5227 = vsel %vm5163, %v5105, %v5195
        %v5228 = vsel %vm5164, %v5110, %v5196
        %v5229 = vsel %vm5165, %v5113, %v5197
        %v5230 = vsel %vm5166, %v5118, %v5198
        %v5231 = vsel %vm5167, %v5121, %v5199
        %v5232 = vsel %vm5168, %v5126, %v5200
        %v5233 = vsel %vm5169, %v5129, %v5201
        %v5234 = vsel %vm5170, %v5134, %v5202
        %v5235 = vsel %vm5171, %v5137, %v5203
        %v5236 = vmul.f32 %v5204, 1.4142135
        %v5237 = vmul.f32 %v5205, 1.4142135
        %v5238 = vmul.f32 %v5206, 1.4142135
        %v5239 = vmul.f32 %v5207, 1.4142135
        %v5240 = vmul.f32 %v5208, 1.4142135
        %v5241 = vmul.f32 %v5209, 1.4142135
        %v5242 = vmul.f32 %v5210, 1.4142135
        %v5243 = vmul.f32 %v5211, 1.4142135
        %v5244 = vmul.f32 %v5212, 1.4142135
        %v5245 = vmul.f32 %v5213, 1.4142135
        %v5246 = vmul.f32 %v5214, 1.4142135
        %v5247 = vmul.f32 %v5215, 1.4142135
        %v5248 = vmul.f32 %v5216, 1.4142135
        %v5249 = vmul.f32 %v5217, 1.4142135
        %v5250 = vmul.f32 %v5218, 1.4142135
        %v5251 = vmul.f32 %v5219, 1.4142135
        %v5252 = vmul.f32 %v5220, 1.4142135
        %v5253 = vmul.f32 %v5221, 1.4142135
        %v5254 = vmul.f32 %v5222, 1.4142135
        %v5255 = vmul.f32 %v5223, 1.4142135
        %v5256 = vmul.f32 %v5224, 1.4142135
        %v5257 = vmul.f32 %v5225, 1.4142135
        %v5258 = vmul.f32 %v5226, 1.4142135
        %v5259 = vmul.f32 %v5227, 1.4142135
        %v5260 = vmul.f32 %v5228, 1.4142135
        %v5261 = vmul.f32 %v5229, 1.4142135
        %v5262 = vmul.f32 %v5230, 1.4142135
        %v5263 = vmul.f32 %v5231, 1.4142135
        %v5264 = vmul.f32 %v5232, 1.4142135
        %v5265 = vmul.f32 %v5233, 1.4142135
        %v5266 = vmul.f32 %v5234, 1.4142135
        %v5267 = vmul.f32 %v5235, 1.4142135
        %v5268 = vpack.c.bf16 %v5237, %v5236
        %v5269 = vpack.c.bf16 %v5239, %v5238
        %v5270 = vpack.c.bf16 %v5241, %v5240
        %v5271 = vpack.c.bf16 %v5243, %v5242
        %v5272 = vpack.c.bf16 %v5245, %v5244
        %v5273 = vpack.c.bf16 %v5247, %v5246
        %v5274 = vpack.c.bf16 %v5249, %v5248
        %v5275 = vpack.c.bf16 %v5251, %v5250
        %v5276 = vpack.c.bf16 %v5253, %v5252
        %v5277 = vpack.c.bf16 %v5255, %v5254
        %v5278 = vpack.c.bf16 %v5257, %v5256
        %v5279 = vpack.c.bf16 %v5259, %v5258
        %v5280 = vpack.c.bf16 %v5261, %v5260
        %v5281 = vpack.c.bf16 %v5263, %v5262
        %v5282 = vpack.c.bf16 %v5265, %v5264
        %v5283 = vpack.c.bf16 %v5267, %v5266
        %s5284 = scalar_lea.vmem %s620, 32 [#allocation2]
        %v5285 = vld [vmem:[%s5284] sm:$0xf]
        %v5286 = vld [vmem:[%s5284 + $0x4] sm:$0xf]
        %v5287 = vld [vmem:[%s5284 + $0x8] sm:$0xf]
        %v5288 = vld [vmem:[%s5284 + $0xc] sm:$0xf]
        %v5289 = vld [vmem:[%s5284 + $0x10] sm:$0xf]
        %v5290 = vld [vmem:[%s5284 + $0x14] sm:$0xf]
        %v5291 = vld [vmem:[%s5284 + $0x18] sm:$0xf]
        %v5292 = vld [vmem:[%s5284 + $0x1c] sm:$0xf]
        %v5293 = vlaneseq
        %v5294 = vshrl.u32 %v5293, 7
        %v5295 = vsub.s32 1, %v5294
        %v5296 = vrot.slane %v4877, %v5295
        %v5305 = vunpack.c.l.b16 %v5285
        %v5306 = vunpack.c.l.b16 %v5286
        %v5307 = vunpack.c.l.b16 %v5287
        %v5308 = vunpack.c.l.b16 %v5288
        %v5309 = vunpack.c.l.b16 %v5289
        %v5310 = vunpack.c.l.b16 %v5290
        %v5311 = vunpack.c.l.b16 %v5291
        %v5312 = vunpack.c.l.b16 %v5292
        %v5313 = vpack.c.b16 %v5306, %v5305
        %v5314 = vpack.c.b16 %v5308, %v5307
        %v5315 = vpack.c.b16 %v5310, %v5309
        %v5316 = vpack.c.b16 %v5312, %v5311
        %v5322 = vsel %vm4930, %v5268, 0
        %v5325 = vsel %vm4930, %v5269, 0
        %v5328 = vsel %vm4930, %v5270, 0
        %v5331 = vsel %vm4930, %v5271, 0
        %v5334 = vsel %vm4930, %v5272, 0
        %v5337 = vsel %vm4930, %v5273, 0
        %v5340 = vsel %vm4930, %v5274, 0
        %v5343 = vsel %vm4930, %v5275, 0
        %v5346 = vsel %vm4930, %v5276, 0
        %v5349 = vsel %vm4930, %v5277, 0
        %v5352 = vsel %vm4930, %v5278, 0
        %v5355 = vsel %vm4930, %v5279, 0
        %v5358 = vsel %vm4930, %v5280, 0
        %v5361 = vsel %vm4930, %v5281, 0
        %v5364 = vsel %vm4930, %v5282, 0
        %v5367 = vsel %vm4930, %v5283, 0
        %5369 = vmatprep.subr.bf16.mxu0 0
        %5370 = vmatpush1.bf16.msra.mxu0 0
        %5371 = vmatprep.subr.bf16.mxu0 0
        %5372 = vmatpush1.bf16.msra.mxu0 0
        %5373 = vmatprep.subr.bf16.mxu0 0
        %5374 = vmatpush1.bf16.msra.mxu0 0
        %5375 = vmatprep.subr.bf16.mxu0 0
        %5376 = vmatpush1.bf16.msra.mxu0 0
        %5377 = vmatprep.subr.bf16.mxu0 0
        %5378 = vmatpush1.bf16.msra.mxu0 %v5316
        %5379 = vmatprep.subr.bf16.mxu0 0
        %5380 = vmatpush1.bf16.msra.mxu0 %v5315
        %5381 = vmatprep.subr.bf16.mxu0 0
        %5382 = vmatpush1.bf16.msra.mxu0 %v5314
        %5383 = vmatprep.subr.bf16.mxu0 0
        %5384 = vmatpush1.bf16.msra.mxu0 %v5313
        %5385 = vmatprep.subr.bf16.mxu0 0
        %5386 = vmatpush2.bf16.msra.mxu0 0
        %5387 = vmatprep.subr.bf16.mxu0 0
        %5388 = vmatpush2.bf16.msra.mxu0 0
        %5389 = vmatprep.subr.bf16.mxu0 0
        %5390 = vmatpush2.bf16.msra.mxu0 0
        %5391 = vmatprep.subr.bf16.mxu0 0
        %5392 = vmatpush2.bf16.msra.mxu0 0
        %5393 = vmatprep.subr.bf16.mxu0 0
        %5394 = vmatpush2.bf16.msra.mxu0 0
        %5395 = vmatprep.subr.bf16.mxu0 0
        %5396 = vmatpush2.bf16.msra.mxu0 0
        %5397 = vmatprep.subr.bf16.mxu0 0
        %5398 = vmatpush2.bf16.msra.mxu0 0
        %5399 = vmatprep.subr.bf16.mxu0 0
        %5400 = vmatpush2.bf16.msra.mxu0 0
        %5401 = vmatprep.mubr.bf16.mxu0 0
        %5402 = vmatmul.mubr.bf16.gmra.mxu0 %v5322
        %v5403 = vpop.f32.mrf.mxu0
        %v5404 = vadd.f32 %v5296, %v5403
        %v5405 = vpop.f32.mrf.mxu0
        %v5406 = vpop.f32.mrf.mxu0
        %v5407 = vadd.f32 %v5296, %v5406
        %v5408 = vpop.f32.mrf.mxu0
        %5409 = vmatprep.mubr.bf16.mxu0 0
        %5410 = vmatmul.mubr.bf16.gmra.mxu0 %v5325
        %v5411 = vpop.f32.mrf.mxu0
        %v5412 = vadd.f32 %v5296, %v5411
        %v5413 = vpop.f32.mrf.mxu0
        %v5414 = vpop.f32.mrf.mxu0
        %v5415 = vadd.f32 %v5296, %v5414
        %v5416 = vpop.f32.mrf.mxu0
        %5417 = vmatprep.mubr.bf16.mxu0 0
        %5418 = vmatmul.mubr.bf16.gmra.mxu0 %v5328
        %v5419 = vpop.f32.mrf.mxu0
        %v5420 = vadd.f32 %v5296, %v5419
        %v5421 = vpop.f32.mrf.mxu0
        %v5422 = vpop.f32.mrf.mxu0
        %v5423 = vadd.f32 %v5296, %v5422
        %v5424 = vpop.f32.mrf.mxu0
        %5425 = vmatprep.mubr.bf16.mxu0 0
        %5426 = vmatmul.mubr.bf16.gmra.mxu0 %v5331
        %v5427 = vpop.f32.mrf.mxu0
        %v5428 = vadd.f32 %v5296, %v5427
        %v5429 = vpop.f32.mrf.mxu0
        %v5430 = vpop.f32.mrf.mxu0
        %v5431 = vadd.f32 %v5296, %v5430
        %v5432 = vpop.f32.mrf.mxu0
        %5433 = vmatprep.mubr.bf16.mxu0 0
        %5434 = vmatmul.mubr.bf16.gmra.mxu0 %v5334
        %v5435 = vpop.f32.mrf.mxu0
        %v5436 = vadd.f32 %v5296, %v5435
        %v5437 = vpop.f32.mrf.mxu0
        %v5438 = vpop.f32.mrf.mxu0
        %v5439 = vadd.f32 %v5296, %v5438
        %v5440 = vpop.f32.mrf.mxu0
        %5441 = vmatprep.mubr.bf16.mxu0 0
        %5442 = vmatmul.mubr.bf16.gmra.mxu0 %v5337
        %v5443 = vpop.f32.mrf.mxu0
        %v5444 = vadd.f32 %v5296, %v5443
        %v5445 = vpop.f32.mrf.mxu0
        %v5446 = vpop.f32.mrf.mxu0
        %v5447 = vadd.f32 %v5296, %v5446
        %v5448 = vpop.f32.mrf.mxu0
        %5449 = vmatprep.mubr.bf16.mxu0 0
        %5450 = vmatmul.mubr.bf16.gmra.mxu0 %v5340
        %v5451 = vpop.f32.mrf.mxu0
        %v5452 = vadd.f32 %v5296, %v5451
        %v5453 = vpop.f32.mrf.mxu0
        %v5454 = vpop.f32.mrf.mxu0
        %v5455 = vadd.f32 %v5296, %v5454
        %v5456 = vpop.f32.mrf.mxu0
        %5457 = vmatprep.mubr.bf16.mxu0 0
        %5458 = vmatmul.mubr.bf16.gmra.mxu0 %v5343
        %v5459 = vpop.f32.mrf.mxu0
        %v5460 = vadd.f32 %v5296, %v5459
        %v5461 = vpop.f32.mrf.mxu0
        %v5462 = vpop.f32.mrf.mxu0
        %v5463 = vadd.f32 %v5296, %v5462
        %v5464 = vpop.f32.mrf.mxu0
        %5465 = vmatprep.mubr.bf16.mxu0 0
        %5466 = vmatmul.mubr.bf16.gmra.mxu0 %v5346
        %v5467 = vpop.f32.mrf.mxu0
        %v5468 = vadd.f32 %v5296, %v5467
        %v5469 = vpop.f32.mrf.mxu0
        %v5470 = vpop.f32.mrf.mxu0
        %v5471 = vadd.f32 %v5296, %v5470
        %v5472 = vpop.f32.mrf.mxu0
        %5473 = vmatprep.mubr.bf16.mxu0 0
        %5474 = vmatmul.mubr.bf16.gmra.mxu0 %v5349
        %v5475 = vpop.f32.mrf.mxu0
        %v5476 = vadd.f32 %v5296, %v5475
        %v5477 = vpop.f32.mrf.mxu0
        %v5478 = vpop.f32.mrf.mxu0
        %v5479 = vadd.f32 %v5296, %v5478
        %v5480 = vpop.f32.mrf.mxu0
        %5481 = vmatprep.mubr.bf16.mxu0 0
        %5482 = vmatmul.mubr.bf16.gmra.mxu0 %v5352
        %v5483 = vpop.f32.mrf.mxu0
        %v5484 = vadd.f32 %v5296, %v5483
        %v5485 = vpop.f32.mrf.mxu0
        %v5486 = vpop.f32.mrf.mxu0
        %v5487 = vadd.f32 %v5296, %v5486
        %v5488 = vpop.f32.mrf.mxu0
        %5489 = vmatprep.mubr.bf16.mxu0 0
        %5490 = vmatmul.mubr.bf16.gmra.mxu0 %v5355
        %v5491 = vpop.f32.mrf.mxu0
        %v5492 = vadd.f32 %v5296, %v5491
        %v5493 = vpop.f32.mrf.mxu0
        %v5494 = vpop.f32.mrf.mxu0
        %v5495 = vadd.f32 %v5296, %v5494
        %v5496 = vpop.f32.mrf.mxu0
        %5497 = vmatprep.mubr.bf16.mxu0 0
        %5498 = vmatmul.mubr.bf16.gmra.mxu0 %v5358
        %v5499 = vpop.f32.mrf.mxu0
        %v5500 = vadd.f32 %v5296, %v5499
        %v5501 = vpop.f32.mrf.mxu0
        %v5502 = vpop.f32.mrf.mxu0
        %v5503 = vadd.f32 %v5296, %v5502
        %v5504 = vpop.f32.mrf.mxu0
        %5505 = vmatprep.mubr.bf16.mxu0 0
        %5506 = vmatmul.mubr.bf16.gmra.mxu0 %v5361
        %v5507 = vpop.f32.mrf.mxu0
        %v5508 = vadd.f32 %v5296, %v5507
        %v5509 = vpop.f32.mrf.mxu0
        %v5510 = vpop.f32.mrf.mxu0
        %v5511 = vadd.f32 %v5296, %v5510
        %v5512 = vpop.f32.mrf.mxu0
        %5513 = vmatprep.mubr.bf16.mxu0 0
        %5514 = vmatmul.mubr.bf16.gmra.mxu0 %v5364
        %v5515 = vpop.f32.mrf.mxu0
        %v5516 = vadd.f32 %v5296, %v5515
        %v5517 = vpop.f32.mrf.mxu0
        %v5518 = vpop.f32.mrf.mxu0
        %v5519 = vadd.f32 %v5296, %v5518
        %v5520 = vpop.f32.mrf.mxu0
        %5521 = vmatprep.mubr.bf16.mxu0 0
        %5522 = vmatmul.mubr.bf16.gmra.mxu0 %v5367
        %v5523 = vpop.f32.mrf.mxu0
        %v5524 = vadd.f32 %v5296, %v5523
        %v5525 = vpop.f32.mrf.mxu0
        %v5526 = vpop.f32.mrf.mxu0
        %v5527 = vadd.f32 %v5296, %v5526
        %v5528 = vpop.f32.mrf.mxu0
        %5529 = vdwg.mxu0
        %vm5530 = vcmp.ge.f32.partialorder %v5404, 0.0
        %vm5531 = vcmp.ge.f32.partialorder %v5407, 0.0
        %vm5532 = vcmp.ge.f32.partialorder %v5412, 0.0
        %vm5533 = vcmp.ge.f32.partialorder %v5415, 0.0
        %vm5534 = vcmp.ge.f32.partialorder %v5420, 0.0
        %vm5535 = vcmp.ge.f32.partialorder %v5423, 0.0
        %vm5536 = vcmp.ge.f32.partialorder %v5428, 0.0
        %vm5537 = vcmp.ge.f32.partialorder %v5431, 0.0
        %vm5538 = vcmp.ge.f32.partialorder %v5436, 0.0
        %vm5539 = vcmp.ge.f32.partialorder %v5439, 0.0
        %vm5540 = vcmp.ge.f32.partialorder %v5444, 0.0
        %vm5541 = vcmp.ge.f32.partialorder %v5447, 0.0
        %vm5542 = vcmp.ge.f32.partialorder %v5452, 0.0
        %vm5543 = vcmp.ge.f32.partialorder %v5455, 0.0
        %vm5544 = vcmp.ge.f32.partialorder %v5460, 0.0
        %vm5545 = vcmp.ge.f32.partialorder %v5463, 0.0
        %vm5546 = vcmp.ge.f32.partialorder %v5468, 0.0
        %vm5547 = vcmp.ge.f32.partialorder %v5471, 0.0
        %vm5548 = vcmp.ge.f32.partialorder %v5476, 0.0
        %vm5549 = vcmp.ge.f32.partialorder %v5479, 0.0
        %vm5550 = vcmp.ge.f32.partialorder %v5484, 0.0
        %vm5551 = vcmp.ge.f32.partialorder %v5487, 0.0
        %vm5552 = vcmp.ge.f32.partialorder %v5492, 0.0
        %vm5553 = vcmp.ge.f32.partialorder %v5495, 0.0
        %vm5554 = vcmp.ge.f32.partialorder %v5500, 0.0
        %vm5555 = vcmp.ge.f32.partialorder %v5503, 0.0
        %vm5556 = vcmp.ge.f32.partialorder %v5508, 0.0
        %vm5557 = vcmp.ge.f32.partialorder %v5511, 0.0
        %vm5558 = vcmp.ge.f32.partialorder %v5516, 0.0
        %vm5559 = vcmp.ge.f32.partialorder %v5519, 0.0
        %vm5560 = vcmp.ge.f32.partialorder %v5524, 0.0
        %vm5561 = vcmp.ge.f32.partialorder %v5527, 0.0
        %v5562 = vmul.f32 %v5404, 0.2
        %v5563 = vmul.f32 %v5407, 0.2
        %v5564 = vmul.f32 %v5412, 0.2
        %v5565 = vmul.f32 %v5415, 0.2
        %v5566 = vmul.f32 %v5420, 0.2
        %v5567 = vmul.f32 %v5423, 0.2
        %v5568 = vmul.f32 %v5428, 0.2
        %v5569 = vmul.f32 %v5431, 0.2
        %v5570 = vmul.f32 %v5436, 0.2
        %v5571 = vmul.f32 %v5439, 0.2
        %v5572 = vmul.f32 %v5444, 0.2
        %v5573 = vmul.f32 %v5447, 0.2
        %v5574 = vmul.f32 %v5452, 0.2
        %v5575 = vmul.f32 %v5455, 0.2
        %v5576 = vmul.f32 %v5460, 0.2
        %v5577 = vmul.f32 %v5463, 0.2
        %v5578 = vmul.f32 %v5468, 0.2
        %v5579 = vmul.f32 %v5471, 0.2
        %v5580 = vmul.f32 %v5476, 0.2
        %v5581 = vmul.f32 %v5479, 0.2
        %v5582 = vmul.f32 %v5484, 0.2
        %v5583 = vmul.f32 %v5487, 0.2
        %v5584 = vmul.f32 %v5492, 0.2
        %v5585 = vmul.f32 %v5495, 0.2
        %v5586 = vmul.f32 %v5500, 0.2
        %v5587 = vmul.f32 %v5503, 0.2
        %v5588 = vmul.f32 %v5508, 0.2
        %v5589 = vmul.f32 %v5511, 0.2
        %v5590 = vmul.f32 %v5516, 0.2
        %v5591 = vmul.f32 %v5519, 0.2
        %v5592 = vmul.f32 %v5524, 0.2
        %v5593 = vmul.f32 %v5527, 0.2
        %v5594 = vsel %vm5530, %v5404, %v5562
        %v5595 = vsel %vm5531, %v5407, %v5563
        %v5596 = vsel %vm5532, %v5412, %v5564
        %v5597 = vsel %vm5533, %v5415, %v5565
        %v5598 = vsel %vm5534, %v5420, %v5566
        %v5599 = vsel %vm5535, %v5423, %v5567
        %v5600 = vsel %vm5536, %v5428, %v5568
        %v5601 = vsel %vm5537, %v5431, %v5569
        %v5602 = vsel %vm5538, %v5436, %v5570
        %v5603 = vsel %vm5539, %v5439, %v5571
        %v5604 = vsel %vm5540, %v5444, %v5572
        %v5605 = vsel %vm5541, %v5447, %v5573
        %v5606 = vsel %vm5542, %v5452, %v5574
        %v5607 = vsel %vm5543, %v5455, %v5575
        %v5608 = vsel %vm5544, %v5460, %v5576
        %v5609 = vsel %vm5545, %v5463, %v5577
        %v5610 = vsel %vm5546, %v5468, %v5578
        %v5611 = vsel %vm5547, %v5471, %v5579
        %v5612 = vsel %vm5548, %v5476, %v5580
        %v5613 = vsel %vm5549, %v5479, %v5581
        %v5614 = vsel %vm5550, %v5484, %v5582
        %v5615 = vsel %vm5551, %v5487, %v5583
        %v5616 = vsel %vm5552, %v5492, %v5584
        %v5617 = vsel %vm5553, %v5495, %v5585
        %v5618 = vsel %vm5554, %v5500, %v5586
        %v5619 = vsel %vm5555, %v5503, %v5587
        %v5620 = vsel %vm5556, %v5508, %v5588
        %v5621 = vsel %vm5557, %v5511, %v5589
        %v5622 = vsel %vm5558, %v5516, %v5590
        %v5623 = vsel %vm5559, %v5519, %v5591
        %v5624 = vsel %vm5560, %v5524, %v5592
        %v5625 = vsel %vm5561, %v5527, %v5593
        %v5626 = vmul.f32 %v5594, 1.4142135
        %v5627 = vmul.f32 %v5595, 1.4142135
        %v5628 = vmul.f32 %v5596, 1.4142135
        %v5629 = vmul.f32 %v5597, 1.4142135
        %v5630 = vmul.f32 %v5598, 1.4142135
        %v5631 = vmul.f32 %v5599, 1.4142135
        %v5632 = vmul.f32 %v5600, 1.4142135
        %v5633 = vmul.f32 %v5601, 1.4142135
        %v5634 = vmul.f32 %v5602, 1.4142135
        %v5635 = vmul.f32 %v5603, 1.4142135
        %v5636 = vmul.f32 %v5604, 1.4142135
        %v5637 = vmul.f32 %v5605, 1.4142135
        %v5638 = vmul.f32 %v5606, 1.4142135
        %v5639 = vmul.f32 %v5607, 1.4142135
        %v5640 = vmul.f32 %v5608, 1.4142135
        %v5641 = vmul.f32 %v5609, 1.4142135
        %v5642 = vmul.f32 %v5610, 1.4142135
        %v5643 = vmul.f32 %v5611, 1.4142135
        %v5644 = vmul.f32 %v5612, 1.4142135
        %v5645 = vmul.f32 %v5613, 1.4142135
        %v5646 = vmul.f32 %v5614, 1.4142135
        %v5647 = vmul.f32 %v5615, 1.4142135
        %v5648 = vmul.f32 %v5616, 1.4142135
        %v5649 = vmul.f32 %v5617, 1.4142135
        %v5650 = vmul.f32 %v5618, 1.4142135
        %v5651 = vmul.f32 %v5619, 1.4142135
        %v5652 = vmul.f32 %v5620, 1.4142135
        %v5653 = vmul.f32 %v5621, 1.4142135
        %v5654 = vmul.f32 %v5622, 1.4142135
        %v5655 = vmul.f32 %v5623, 1.4142135
        %v5656 = vmul.f32 %v5624, 1.4142135
        %v5657 = vmul.f32 %v5625, 1.4142135
        %v5658 = vld [vmem:[%s627] sm:$0x3]
        %v5659 = vpack.c.bf16 %v5627, %v5626
        %v5660 = vpack.c.bf16 %v5629, %v5628
        %v5661 = vpack.c.bf16 %v5631, %v5630
        %v5662 = vpack.c.bf16 %v5633, %v5632
        %v5663 = vpack.c.bf16 %v5635, %v5634
        %v5664 = vpack.c.bf16 %v5637, %v5636
        %v5665 = vpack.c.bf16 %v5639, %v5638
        %v5666 = vpack.c.bf16 %v5641, %v5640
        %v5667 = vpack.c.bf16 %v5643, %v5642
        %v5668 = vpack.c.bf16 %v5645, %v5644
        %v5669 = vpack.c.bf16 %v5647, %v5646
        %v5670 = vpack.c.bf16 %v5649, %v5648
        %v5671 = vpack.c.bf16 %v5651, %v5650
        %v5672 = vpack.c.bf16 %v5653, %v5652
        %v5673 = vpack.c.bf16 %v5655, %v5654
        %v5674 = vpack.c.bf16 %v5657, %v5656
        %s5675 = scalar_lea.vmem %s620, 64 [#allocation2]
        %v5676 = vld [vmem:[%s5675] sm:$0xf]
        %v5677 = vld [vmem:[%s5675 + $0x4] sm:$0xf]
        %v5678 = vld [vmem:[%s5675 + $0x8] sm:$0xf]
        %v5679 = vld [vmem:[%s5675 + $0xc] sm:$0xf]
        %v5680 = vld [vmem:[%s5675 + $0x10] sm:$0xf]
        %v5681 = vld [vmem:[%s5675 + $0x14] sm:$0xf]
        %v5682 = vld [vmem:[%s5675 + $0x18] sm:$0xf]
        %v5683 = vld [vmem:[%s5675 + $0x1c] sm:$0xf]
        %v5684 = vlaneseq
        %v5685 = vshrl.u32 %v5684, 7
        %v5686 = vsub.s32 2, %v5685
        %v5687 = vrot.slane %v4877, %v5686
        %v5696 = vunpack.c.l.b16 %v5676
        %v5697 = vunpack.c.l.b16 %v5677
        %v5698 = vunpack.c.l.b16 %v5678
        %v5699 = vunpack.c.l.b16 %v5679
        %v5700 = vunpack.c.l.b16 %v5680
        %v5701 = vunpack.c.l.b16 %v5681
        %v5702 = vunpack.c.l.b16 %v5682
        %v5703 = vunpack.c.l.b16 %v5683
        %v5704 = vpack.c.b16 %v5697, %v5696
        %v5705 = vpack.c.b16 %v5699, %v5698
        %v5706 = vpack.c.b16 %v5701, %v5700
        %v5707 = vpack.c.b16 %v5703, %v5702
        %v5713 = vsel %vm4930, %v5659, 0
        %v5716 = vsel %vm4930, %v5660, 0
        %v5719 = vsel %vm4930, %v5661, 0
        %v5722 = vsel %vm4930, %v5662, 0
        %v5725 = vsel %vm4930, %v5663, 0
        %v5728 = vsel %vm4930, %v5664, 0
        %v5731 = vsel %vm4930, %v5665, 0
        %v5734 = vsel %vm4930, %v5666, 0
        %v5737 = vsel %vm4930, %v5667, 0
        %v5740 = vsel %vm4930, %v5668, 0
        %v5743 = vsel %vm4930, %v5669, 0
        %v5746 = vsel %vm4930, %v5670, 0
        %v5749 = vsel %vm4930, %v5671, 0
        %v5752 = vsel %vm4930, %v5672, 0
        %v5755 = vsel %vm4930, %v5673, 0
        %v5758 = vsel %vm4930, %v5674, 0
        %5760 = vmatprep.subr.bf16.mxu0 0
        %5761 = vmatpush1.bf16.msra.mxu0 0
        %5762 = vmatprep.subr.bf16.mxu0 0
        %5763 = vmatpush1.bf16.msra.mxu0 0
        %5764 = vmatprep.subr.bf16.mxu0 0
        %5765 = vmatpush1.bf16.msra.mxu0 0
        %5766 = vmatprep.subr.bf16.mxu0 0
        %5767 = vmatpush1.bf16.msra.mxu0 0
        %5768 = vmatprep.subr.bf16.mxu0 0
        %5769 = vmatpush1.bf16.msra.mxu0 %v5707
        %5770 = vmatprep.subr.bf16.mxu0 0
        %5771 = vmatpush1.bf16.msra.mxu0 %v5706
        %5772 = vmatprep.subr.bf16.mxu0 0
        %5773 = vmatpush1.bf16.msra.mxu0 %v5705
        %5774 = vmatprep.subr.bf16.mxu0 0
        %5775 = vmatpush1.bf16.msra.mxu0 %v5704
        %5776 = vmatprep.subr.bf16.mxu0 0
        %5777 = vmatpush2.bf16.msra.mxu0 0
        %5778 = vmatprep.subr.bf16.mxu0 0
        %5779 = vmatpush2.bf16.msra.mxu0 0
        %5780 = vmatprep.subr.bf16.mxu0 0
        %5781 = vmatpush2.bf16.msra.mxu0 0
        %5782 = vmatprep.subr.bf16.mxu0 0
        %5783 = vmatpush2.bf16.msra.mxu0 0
        %5784 = vmatprep.subr.bf16.mxu0 0
        %5785 = vmatpush2.bf16.msra.mxu0 0
        %5786 = vmatprep.subr.bf16.mxu0 0
        %5787 = vmatpush2.bf16.msra.mxu0 0
        %5788 = vmatprep.subr.bf16.mxu0 0
        %5789 = vmatpush2.bf16.msra.mxu0 0
        %5790 = vmatprep.subr.bf16.mxu0 0
        %5791 = vmatpush2.bf16.msra.mxu0 0
        %5792 = vmatprep.mubr.bf16.mxu0 0
        %5793 = vmatmul.mubr.bf16.gmra.mxu0 %v5713
        %v5794 = vpop.f32.mrf.mxu0
        %v5795 = vadd.f32 %v5687, %v5794
        %v5796 = vpop.f32.mrf.mxu0
        %v5797 = vpop.f32.mrf.mxu0
        %v5798 = vadd.f32 %v5687, %v5797
        %v5799 = vpop.f32.mrf.mxu0
        %5800 = vmatprep.mubr.bf16.mxu0 0
        %5801 = vmatmul.mubr.bf16.gmra.mxu0 %v5716
        %v5802 = vpop.f32.mrf.mxu0
        %v5803 = vadd.f32 %v5687, %v5802
        %v5804 = vpop.f32.mrf.mxu0
        %v5805 = vpop.f32.mrf.mxu0
        %v5806 = vadd.f32 %v5687, %v5805
        %v5807 = vpop.f32.mrf.mxu0
        %5808 = vmatprep.mubr.bf16.mxu0 0
        %5809 = vmatmul.mubr.bf16.gmra.mxu0 %v5719
        %v5810 = vpop.f32.mrf.mxu0
        %v5811 = vadd.f32 %v5687, %v5810
        %v5812 = vpop.f32.mrf.mxu0
        %v5813 = vpop.f32.mrf.mxu0
        %v5814 = vadd.f32 %v5687, %v5813
        %v5815 = vpop.f32.mrf.mxu0
        %5816 = vmatprep.mubr.bf16.mxu0 0
        %5817 = vmatmul.mubr.bf16.gmra.mxu0 %v5722
        %v5818 = vpop.f32.mrf.mxu0
        %v5819 = vadd.f32 %v5687, %v5818
        %v5820 = vpop.f32.mrf.mxu0
        %v5821 = vpop.f32.mrf.mxu0
        %v5822 = vadd.f32 %v5687, %v5821
        %v5823 = vpop.f32.mrf.mxu0
        %5824 = vmatprep.mubr.bf16.mxu0 0
        %5825 = vmatmul.mubr.bf16.gmra.mxu0 %v5725
        %v5826 = vpop.f32.mrf.mxu0
        %v5827 = vadd.f32 %v5687, %v5826
        %v5828 = vpop.f32.mrf.mxu0
        %v5829 = vpop.f32.mrf.mxu0
        %v5830 = vadd.f32 %v5687, %v5829
        %v5831 = vpop.f32.mrf.mxu0
        %5832 = vmatprep.mubr.bf16.mxu0 0
        %5833 = vmatmul.mubr.bf16.gmra.mxu0 %v5728
        %v5834 = vpop.f32.mrf.mxu0
        %v5835 = vadd.f32 %v5687, %v5834
        %v5836 = vpop.f32.mrf.mxu0
        %v5837 = vpop.f32.mrf.mxu0
        %v5838 = vadd.f32 %v5687, %v5837
        %v5839 = vpop.f32.mrf.mxu0
        %5840 = vmatprep.mubr.bf16.mxu0 0
        %5841 = vmatmul.mubr.bf16.gmra.mxu0 %v5731
        %v5842 = vpop.f32.mrf.mxu0
        %v5843 = vadd.f32 %v5687, %v5842
        %v5844 = vpop.f32.mrf.mxu0
        %v5845 = vpop.f32.mrf.mxu0
        %v5846 = vadd.f32 %v5687, %v5845
        %v5847 = vpop.f32.mrf.mxu0
        %5848 = vmatprep.mubr.bf16.mxu0 0
        %5849 = vmatmul.mubr.bf16.gmra.mxu0 %v5734
        %v5850 = vpop.f32.mrf.mxu0
        %v5851 = vadd.f32 %v5687, %v5850
        %v5852 = vpop.f32.mrf.mxu0
        %v5853 = vpop.f32.mrf.mxu0
        %v5854 = vadd.f32 %v5687, %v5853
        %v5855 = vpop.f32.mrf.mxu0
        %5856 = vmatprep.mubr.bf16.mxu0 0
        %5857 = vmatmul.mubr.bf16.gmra.mxu0 %v5737
        %v5858 = vpop.f32.mrf.mxu0
        %v5859 = vadd.f32 %v5687, %v5858
        %v5860 = vpop.f32.mrf.mxu0
        %v5861 = vpop.f32.mrf.mxu0
        %v5862 = vadd.f32 %v5687, %v5861
        %v5863 = vpop.f32.mrf.mxu0
        %5864 = vmatprep.mubr.bf16.mxu0 0
        %5865 = vmatmul.mubr.bf16.gmra.mxu0 %v5740
        %v5866 = vpop.f32.mrf.mxu0
        %v5867 = vadd.f32 %v5687, %v5866
        %v5868 = vpop.f32.mrf.mxu0
        %v5869 = vpop.f32.mrf.mxu0
        %v5870 = vadd.f32 %v5687, %v5869
        %v5871 = vpop.f32.mrf.mxu0
        %5872 = vmatprep.mubr.bf16.mxu0 0
        %5873 = vmatmul.mubr.bf16.gmra.mxu0 %v5743
        %v5874 = vpop.f32.mrf.mxu0
        %v5875 = vadd.f32 %v5687, %v5874
        %v5876 = vpop.f32.mrf.mxu0
        %v5877 = vpop.f32.mrf.mxu0
        %v5878 = vadd.f32 %v5687, %v5877
        %v5879 = vpop.f32.mrf.mxu0
        %5880 = vmatprep.mubr.bf16.mxu0 0
        %5881 = vmatmul.mubr.bf16.gmra.mxu0 %v5746
        %v5882 = vpop.f32.mrf.mxu0
        %v5883 = vadd.f32 %v5687, %v5882
        %v5884 = vpop.f32.mrf.mxu0
        %v5885 = vpop.f32.mrf.mxu0
        %v5886 = vadd.f32 %v5687, %v5885
        %v5887 = vpop.f32.mrf.mxu0
        %5888 = vmatprep.mubr.bf16.mxu0 0
        %5889 = vmatmul.mubr.bf16.gmra.mxu0 %v5749
        %v5890 = vpop.f32.mrf.mxu0
        %v5891 = vadd.f32 %v5687, %v5890
        %v5892 = vpop.f32.mrf.mxu0
        %v5893 = vpop.f32.mrf.mxu0
        %v5894 = vadd.f32 %v5687, %v5893
        %v5895 = vpop.f32.mrf.mxu0
        %5896 = vmatprep.mubr.bf16.mxu0 0
        %5897 = vmatmul.mubr.bf16.gmra.mxu0 %v5752
        %v5898 = vpop.f32.mrf.mxu0
        %v5899 = vadd.f32 %v5687, %v5898
        %v5900 = vpop.f32.mrf.mxu0
        %v5901 = vpop.f32.mrf.mxu0
        %v5902 = vadd.f32 %v5687, %v5901
        %v5903 = vpop.f32.mrf.mxu0
        %5904 = vmatprep.mubr.bf16.mxu0 0
        %5905 = vmatmul.mubr.bf16.gmra.mxu0 %v5755
        %v5906 = vpop.f32.mrf.mxu0
        %v5907 = vadd.f32 %v5687, %v5906
        %v5908 = vpop.f32.mrf.mxu0
        %v5909 = vpop.f32.mrf.mxu0
        %v5910 = vadd.f32 %v5687, %v5909
        %v5911 = vpop.f32.mrf.mxu0
        %5912 = vmatprep.mubr.bf16.mxu0 0
        %5913 = vmatmul.mubr.bf16.gmra.mxu0 %v5758
        %v5914 = vpop.f32.mrf.mxu0
        %v5915 = vadd.f32 %v5687, %v5914
        %v5916 = vpop.f32.mrf.mxu0
        %v5917 = vpop.f32.mrf.mxu0
        %v5918 = vadd.f32 %v5687, %v5917
        %v5919 = vpop.f32.mrf.mxu0
        %5920 = vdwg.mxu0
        %vm5921 = vcmp.ge.f32.partialorder %v5795, 0.0
        %vm5922 = vcmp.ge.f32.partialorder %v5798, 0.0
        %vm5923 = vcmp.ge.f32.partialorder %v5803, 0.0
        %vm5924 = vcmp.ge.f32.partialorder %v5806, 0.0
        %vm5925 = vcmp.ge.f32.partialorder %v5811, 0.0
        %vm5926 = vcmp.ge.f32.partialorder %v5814, 0.0
        %vm5927 = vcmp.ge.f32.partialorder %v5819, 0.0
        %vm5928 = vcmp.ge.f32.partialorder %v5822, 0.0
        %vm5929 = vcmp.ge.f32.partialorder %v5827, 0.0
        %vm5930 = vcmp.ge.f32.partialorder %v5830, 0.0
        %vm5931 = vcmp.ge.f32.partialorder %v5835, 0.0
        %vm5932 = vcmp.ge.f32.partialorder %v5838, 0.0
        %vm5933 = vcmp.ge.f32.partialorder %v5843, 0.0
        %vm5934 = vcmp.ge.f32.partialorder %v5846, 0.0
        %vm5935 = vcmp.ge.f32.partialorder %v5851, 0.0
        %vm5936 = vcmp.ge.f32.partialorder %v5854, 0.0
        %vm5937 = vcmp.ge.f32.partialorder %v5859, 0.0
        %vm5938 = vcmp.ge.f32.partialorder %v5862, 0.0
        %vm5939 = vcmp.ge.f32.partialorder %v5867, 0.0
        %vm5940 = vcmp.ge.f32.partialorder %v5870, 0.0
        %vm5941 = vcmp.ge.f32.partialorder %v5875, 0.0
        %vm5942 = vcmp.ge.f32.partialorder %v5878, 0.0
        %vm5943 = vcmp.ge.f32.partialorder %v5883, 0.0
        %vm5944 = vcmp.ge.f32.partialorder %v5886, 0.0
        %vm5945 = vcmp.ge.f32.partialorder %v5891, 0.0
        %vm5946 = vcmp.ge.f32.partialorder %v5894, 0.0
        %vm5947 = vcmp.ge.f32.partialorder %v5899, 0.0
        %vm5948 = vcmp.ge.f32.partialorder %v5902, 0.0
        %vm5949 = vcmp.ge.f32.partialorder %v5907, 0.0
        %vm5950 = vcmp.ge.f32.partialorder %v5910, 0.0
        %vm5951 = vcmp.ge.f32.partialorder %v5915, 0.0
        %vm5952 = vcmp.ge.f32.partialorder %v5918, 0.0
        %v5953 = vmul.f32 %v5795, 0.2
        %v5954 = vmul.f32 %v5798, 0.2
        %v5955 = vmul.f32 %v5803, 0.2
        %v5956 = vmul.f32 %v5806, 0.2
        %v5957 = vmul.f32 %v5811, 0.2
        %v5958 = vmul.f32 %v5814, 0.2
        %v5959 = vmul.f32 %v5819, 0.2
        %v5960 = vmul.f32 %v5822, 0.2
        %v5961 = vmul.f32 %v5827, 0.2
        %v5962 = vmul.f32 %v5830, 0.2
        %v5963 = vmul.f32 %v5835, 0.2
        %v5964 = vmul.f32 %v5838, 0.2
        %v5965 = vmul.f32 %v5843, 0.2
        %v5966 = vmul.f32 %v5846, 0.2
        %v5967 = vmul.f32 %v5851, 0.2
        %v5968 = vmul.f32 %v5854, 0.2
        %v5969 = vmul.f32 %v5859, 0.2
        %v5970 = vmul.f32 %v5862, 0.2
        %v5971 = vmul.f32 %v5867, 0.2
        %v5972 = vmul.f32 %v5870, 0.2
        %v5973 = vmul.f32 %v5875, 0.2
        %v5974 = vmul.f32 %v5878, 0.2
        %v5975 = vmul.f32 %v5883, 0.2
        %v5976 = vmul.f32 %v5886, 0.2
        %v5977 = vmul.f32 %v5891, 0.2
        %v5978 = vmul.f32 %v5894, 0.2
        %v5979 = vmul.f32 %v5899, 0.2
        %v5980 = vmul.f32 %v5902, 0.2
        %v5981 = vmul.f32 %v5907, 0.2
        %v5982 = vmul.f32 %v5910, 0.2
        %v5983 = vmul.f32 %v5915, 0.2
        %v5984 = vmul.f32 %v5918, 0.2
        %v5985 = vsel %vm5921, %v5795, %v5953
        %v5986 = vsel %vm5922, %v5798, %v5954
        %v5987 = vsel %vm5923, %v5803, %v5955
        %v5988 = vsel %vm5924, %v5806, %v5956
        %v5989 = vsel %vm5925, %v5811, %v5957
        %v5990 = vsel %vm5926, %v5814, %v5958
        %v5991 = vsel %vm5927, %v5819, %v5959
        %v5992 = vsel %vm5928, %v5822, %v5960
        %v5993 = vsel %vm5929, %v5827, %v5961
        %v5994 = vsel %vm5930, %v5830, %v5962
        %v5995 = vsel %vm5931, %v5835, %v5963
        %v5996 = vsel %vm5932, %v5838, %v5964
        %v5997 = vsel %vm5933, %v5843, %v5965
        %v5998 = vsel %vm5934, %v5846, %v5966
        %v5999 = vsel %vm5935, %v5851, %v5967
        %v6000 = vsel %vm5936, %v5854, %v5968
        %v6001 = vsel %vm5937, %v5859, %v5969
        %v6002 = vsel %vm5938, %v5862, %v5970
        %v6003 = vsel %vm5939, %v5867, %v5971
        %v6004 = vsel %vm5940, %v5870, %v5972
        %v6005 = vsel %vm5941, %v5875, %v5973
        %v6006 = vsel %vm5942, %v5878, %v5974
        %v6007 = vsel %vm5943, %v5883, %v5975
        %v6008 = vsel %vm5944, %v5886, %v5976
        %v6009 = vsel %vm5945, %v5891, %v5977
        %v6010 = vsel %vm5946, %v5894, %v5978
        %v6011 = vsel %vm5947, %v5899, %v5979
        %v6012 = vsel %vm5948, %v5902, %v5980
        %v6013 = vsel %vm5949, %v5907, %v5981
        %v6014 = vsel %vm5950, %v5910, %v5982
        %v6015 = vsel %vm5951, %v5915, %v5983
        %v6016 = vsel %vm5952, %v5918, %v5984
        %v6017 = vmul.f32 %v5985, 1.4142135
        %v6018 = vmul.f32 %v5986, 1.4142135
        %v6019 = vmul.f32 %v5987, 1.4142135
        %v6020 = vmul.f32 %v5988, 1.4142135
        %v6021 = vmul.f32 %v5989, 1.4142135
        %v6022 = vmul.f32 %v5990, 1.4142135
        %v6023 = vmul.f32 %v5991, 1.4142135
        %v6024 = vmul.f32 %v5992, 1.4142135
        %v6025 = vmul.f32 %v5993, 1.4142135
        %v6026 = vmul.f32 %v5994, 1.4142135
        %v6027 = vmul.f32 %v5995, 1.4142135
        %v6028 = vmul.f32 %v5996, 1.4142135
        %v6029 = vmul.f32 %v5997, 1.4142135
        %v6030 = vmul.f32 %v5998, 1.4142135
        %v6031 = vmul.f32 %v5999, 1.4142135
        %v6032 = vmul.f32 %v6000, 1.4142135
        %v6033 = vmul.f32 %v6001, 1.4142135
        %v6034 = vmul.f32 %v6002, 1.4142135
        %v6035 = vmul.f32 %v6003, 1.4142135
        %v6036 = vmul.f32 %v6004, 1.4142135
        %v6037 = vmul.f32 %v6005, 1.4142135
        %v6038 = vmul.f32 %v6006, 1.4142135
        %v6039 = vmul.f32 %v6007, 1.4142135
        %v6040 = vmul.f32 %v6008, 1.4142135
        %v6041 = vmul.f32 %v6009, 1.4142135
        %v6042 = vmul.f32 %v6010, 1.4142135
        %v6043 = vmul.f32 %v6011, 1.4142135
        %v6044 = vmul.f32 %v6012, 1.4142135
        %v6045 = vmul.f32 %v6013, 1.4142135
        %v6046 = vmul.f32 %v6014, 1.4142135
        %v6047 = vmul.f32 %v6015, 1.4142135
        %v6048 = vmul.f32 %v6016, 1.4142135
        %v6049 = vpack.c.bf16 %v6018, %v6017
        %v6050 = vpack.c.bf16 %v6020, %v6019
        %v6051 = vpack.c.bf16 %v6022, %v6021
        %v6052 = vpack.c.bf16 %v6024, %v6023
        %v6053 = vpack.c.bf16 %v6026, %v6025
        %v6054 = vpack.c.bf16 %v6028, %v6027
        %v6055 = vpack.c.bf16 %v6030, %v6029
        %v6056 = vpack.c.bf16 %v6032, %v6031
        %v6057 = vpack.c.bf16 %v6034, %v6033
        %v6058 = vpack.c.bf16 %v6036, %v6035
        %v6059 = vpack.c.bf16 %v6038, %v6037
        %v6060 = vpack.c.bf16 %v6040, %v6039
        %v6061 = vpack.c.bf16 %v6042, %v6041
        %v6062 = vpack.c.bf16 %v6044, %v6043
        %v6063 = vpack.c.bf16 %v6046, %v6045
        %v6064 = vpack.c.bf16 %v6048, %v6047
        %s6065 = scalar_lea.vmem %s620, 96 [#allocation2]
        %v6066 = vld [vmem:[%s6065] sm:$0xf]
        %v6067 = vld [vmem:[%s6065 + $0x4] sm:$0xf]
        %v6068 = vld [vmem:[%s6065 + $0x8] sm:$0xf]
        %v6069 = vld [vmem:[%s6065 + $0xc] sm:$0xf]
        %v6070 = vld [vmem:[%s6065 + $0x10] sm:$0xf]
        %v6071 = vld [vmem:[%s6065 + $0x14] sm:$0xf]
        %v6072 = vld [vmem:[%s6065 + $0x18] sm:$0xf]
        %v6073 = vld [vmem:[%s6065 + $0x1c] sm:$0xf]
        %v6074 = vlaneseq
        %v6075 = vshrl.u32 %v6074, 7
        %v6076 = vsub.s32 3, %v6075
        %v6077 = vrot.slane %v4877, %v6076
        %v6086 = vunpack.c.l.b16 %v6066
        %v6087 = vunpack.c.l.b16 %v6067
        %v6088 = vunpack.c.l.b16 %v6068
        %v6089 = vunpack.c.l.b16 %v6069
        %v6090 = vunpack.c.l.b16 %v6070
        %v6091 = vunpack.c.l.b16 %v6071
        %v6092 = vunpack.c.l.b16 %v6072
        %v6093 = vunpack.c.l.b16 %v6073
        %v6094 = vpack.c.b16 %v6087, %v6086
        %v6095 = vpack.c.b16 %v6089, %v6088
        %v6096 = vpack.c.b16 %v6091, %v6090
        %v6097 = vpack.c.b16 %v6093, %v6092
        %v6103 = vsel %vm4930, %v6049, 0
        %v6106 = vsel %vm4930, %v6050, 0
        %v6109 = vsel %vm4930, %v6051, 0
        %v6112 = vsel %vm4930, %v6052, 0
        %v6115 = vsel %vm4930, %v6053, 0
        %v6118 = vsel %vm4930, %v6054, 0
        %v6121 = vsel %vm4930, %v6055, 0
        %v6124 = vsel %vm4930, %v6056, 0
        %v6127 = vsel %vm4930, %v6057, 0
        %v6130 = vsel %vm4930, %v6058, 0
        %v6133 = vsel %vm4930, %v6059, 0
        %v6136 = vsel %vm4930, %v6060, 0
        %v6139 = vsel %vm4930, %v6061, 0
        %v6142 = vsel %vm4930, %v6062, 0
        %v6145 = vsel %vm4930, %v6063, 0
        %v6148 = vsel %vm4930, %v6064, 0
        %6150 = vmatprep.subr.bf16.mxu0 0
        %6151 = vmatpush1.bf16.msra.mxu0 0
        %6152 = vmatprep.subr.bf16.mxu0 0
        %6153 = vmatpush1.bf16.msra.mxu0 0
        %6154 = vmatprep.subr.bf16.mxu0 0
        %6155 = vmatpush1.bf16.msra.mxu0 0
        %6156 = vmatprep.subr.bf16.mxu0 0
        %6157 = vmatpush1.bf16.msra.mxu0 0
        %6158 = vmatprep.subr.bf16.mxu0 0
        %6159 = vmatpush1.bf16.msra.mxu0 %v6097
        %6160 = vmatprep.subr.bf16.mxu0 0
        %6161 = vmatpush1.bf16.msra.mxu0 %v6096
        %6162 = vmatprep.subr.bf16.mxu0 0
        %6163 = vmatpush1.bf16.msra.mxu0 %v6095
        %6164 = vmatprep.subr.bf16.mxu0 0
        %6165 = vmatpush1.bf16.msra.mxu0 %v6094
        %6166 = vmatprep.subr.bf16.mxu0 0
        %6167 = vmatpush2.bf16.msra.mxu0 0
        %6168 = vmatprep.subr.bf16.mxu0 0
        %6169 = vmatpush2.bf16.msra.mxu0 0
        %6170 = vmatprep.subr.bf16.mxu0 0
        %6171 = vmatpush2.bf16.msra.mxu0 0
        %6172 = vmatprep.subr.bf16.mxu0 0
        %6173 = vmatpush2.bf16.msra.mxu0 0
        %6174 = vmatprep.subr.bf16.mxu0 0
        %6175 = vmatpush2.bf16.msra.mxu0 0
        %6176 = vmatprep.subr.bf16.mxu0 0
        %6177 = vmatpush2.bf16.msra.mxu0 0
        %6178 = vmatprep.subr.bf16.mxu0 0
        %6179 = vmatpush2.bf16.msra.mxu0 0
        %6180 = vmatprep.subr.bf16.mxu0 0
        %6181 = vmatpush2.bf16.msra.mxu0 0
        %6182 = vmatprep.mubr.bf16.mxu0 0
        %6183 = vmatmul.mubr.bf16.gmra.mxu0 %v6103
        %v6184 = vpop.f32.mrf.mxu0
        %v6185 = vadd.f32 %v6077, %v6184
        %v6186 = vpop.f32.mrf.mxu0
        %v6187 = vpop.f32.mrf.mxu0
        %v6188 = vadd.f32 %v6077, %v6187
        %v6189 = vpop.f32.mrf.mxu0
        %6190 = vmatprep.mubr.bf16.mxu0 0
        %6191 = vmatmul.mubr.bf16.gmra.mxu0 %v6106
        %v6192 = vpop.f32.mrf.mxu0
        %v6193 = vadd.f32 %v6077, %v6192
        %v6194 = vpop.f32.mrf.mxu0
        %v6195 = vpop.f32.mrf.mxu0
        %v6196 = vadd.f32 %v6077, %v6195
        %v6197 = vpop.f32.mrf.mxu0
        %6198 = vmatprep.mubr.bf16.mxu0 0
        %6199 = vmatmul.mubr.bf16.gmra.mxu0 %v6109
        %v6200 = vpop.f32.mrf.mxu0
        %v6201 = vadd.f32 %v6077, %v6200
        %v6202 = vpop.f32.mrf.mxu0
        %v6203 = vpop.f32.mrf.mxu0
        %v6204 = vadd.f32 %v6077, %v6203
        %v6205 = vpop.f32.mrf.mxu0
        %6206 = vmatprep.mubr.bf16.mxu0 0
        %6207 = vmatmul.mubr.bf16.gmra.mxu0 %v6112
        %v6208 = vpop.f32.mrf.mxu0
        %v6209 = vadd.f32 %v6077, %v6208
        %v6210 = vpop.f32.mrf.mxu0
        %v6211 = vpop.f32.mrf.mxu0
        %v6212 = vadd.f32 %v6077, %v6211
        %v6213 = vpop.f32.mrf.mxu0
        %6214 = vmatprep.mubr.bf16.mxu0 0
        %6215 = vmatmul.mubr.bf16.gmra.mxu0 %v6115
        %v6216 = vpop.f32.mrf.mxu0
        %v6217 = vadd.f32 %v6077, %v6216
        %v6218 = vpop.f32.mrf.mxu0
        %v6219 = vpop.f32.mrf.mxu0
        %v6220 = vadd.f32 %v6077, %v6219
        %v6221 = vpop.f32.mrf.mxu0
        %6222 = vmatprep.mubr.bf16.mxu0 0
        %6223 = vmatmul.mubr.bf16.gmra.mxu0 %v6118
        %v6224 = vpop.f32.mrf.mxu0
        %v6225 = vadd.f32 %v6077, %v6224
        %v6226 = vpop.f32.mrf.mxu0
        %v6227 = vpop.f32.mrf.mxu0
        %v6228 = vadd.f32 %v6077, %v6227
        %v6229 = vpop.f32.mrf.mxu0
        %6230 = vmatprep.mubr.bf16.mxu0 0
        %6231 = vmatmul.mubr.bf16.gmra.mxu0 %v6121
        %v6232 = vpop.f32.mrf.mxu0
        %v6233 = vadd.f32 %v6077, %v6232
        %v6234 = vpop.f32.mrf.mxu0
        %v6235 = vpop.f32.mrf.mxu0
        %v6236 = vadd.f32 %v6077, %v6235
        %v6237 = vpop.f32.mrf.mxu0
        %6238 = vmatprep.mubr.bf16.mxu0 0
        %6239 = vmatmul.mubr.bf16.gmra.mxu0 %v6124
        %v6240 = vpop.f32.mrf.mxu0
        %v6241 = vadd.f32 %v6077, %v6240
        %v6242 = vpop.f32.mrf.mxu0
        %v6243 = vpop.f32.mrf.mxu0
        %v6244 = vadd.f32 %v6077, %v6243
        %v6245 = vpop.f32.mrf.mxu0
        %6246 = vmatprep.mubr.bf16.mxu0 0
        %6247 = vmatmul.mubr.bf16.gmra.mxu0 %v6127
        %v6248 = vpop.f32.mrf.mxu0
        %v6249 = vadd.f32 %v6077, %v6248
        %v6250 = vpop.f32.mrf.mxu0
        %v6251 = vpop.f32.mrf.mxu0
        %v6252 = vadd.f32 %v6077, %v6251
        %v6253 = vpop.f32.mrf.mxu0
        %6254 = vmatprep.mubr.bf16.mxu0 0
        %6255 = vmatmul.mubr.bf16.gmra.mxu0 %v6130
        %v6256 = vpop.f32.mrf.mxu0
        %v6257 = vadd.f32 %v6077, %v6256
        %v6258 = vpop.f32.mrf.mxu0
        %v6259 = vpop.f32.mrf.mxu0
        %v6260 = vadd.f32 %v6077, %v6259
        %v6261 = vpop.f32.mrf.mxu0
        %6262 = vmatprep.mubr.bf16.mxu0 0
        %6263 = vmatmul.mubr.bf16.gmra.mxu0 %v6133
        %v6264 = vpop.f32.mrf.mxu0
        %v6265 = vadd.f32 %v6077, %v6264
        %v6266 = vpop.f32.mrf.mxu0
        %v6267 = vpop.f32.mrf.mxu0
        %v6268 = vadd.f32 %v6077, %v6267
        %v6269 = vpop.f32.mrf.mxu0
        %6270 = vmatprep.mubr.bf16.mxu0 0
        %6271 = vmatmul.mubr.bf16.gmra.mxu0 %v6136
        %v6272 = vpop.f32.mrf.mxu0
        %v6273 = vadd.f32 %v6077, %v6272
        %v6274 = vpop.f32.mrf.mxu0
        %v6275 = vpop.f32.mrf.mxu0
        %v6276 = vadd.f32 %v6077, %v6275
        %v6277 = vpop.f32.mrf.mxu0
        %6278 = vmatprep.mubr.bf16.mxu0 0
        %6279 = vmatmul.mubr.bf16.gmra.mxu0 %v6139
        %v6280 = vpop.f32.mrf.mxu0
        %v6281 = vadd.f32 %v6077, %v6280
        %v6282 = vpop.f32.mrf.mxu0
        %v6283 = vpop.f32.mrf.mxu0
        %v6284 = vadd.f32 %v6077, %v6283
        %v6285 = vpop.f32.mrf.mxu0
        %6286 = vmatprep.mubr.bf16.mxu0 0
        %6287 = vmatmul.mubr.bf16.gmra.mxu0 %v6142
        %v6288 = vpop.f32.mrf.mxu0
        %v6289 = vadd.f32 %v6077, %v6288
        %v6290 = vpop.f32.mrf.mxu0
        %v6291 = vpop.f32.mrf.mxu0
        %v6292 = vadd.f32 %v6077, %v6291
        %v6293 = vpop.f32.mrf.mxu0
        %6294 = vmatprep.mubr.bf16.mxu0 0
        %6295 = vmatmul.mubr.bf16.gmra.mxu0 %v6145
        %v6296 = vpop.f32.mrf.mxu0
        %v6297 = vadd.f32 %v6077, %v6296
        %v6298 = vpop.f32.mrf.mxu0
        %v6299 = vpop.f32.mrf.mxu0
        %v6300 = vadd.f32 %v6077, %v6299
        %v6301 = vpop.f32.mrf.mxu0
        %6302 = vmatprep.mubr.bf16.mxu0 0
        %6303 = vmatmul.mubr.bf16.gmra.mxu0 %v6148
        %v6304 = vpop.f32.mrf.mxu0
        %v6305 = vadd.f32 %v6077, %v6304
        %v6306 = vpop.f32.mrf.mxu0
        %v6307 = vpop.f32.mrf.mxu0
        %v6308 = vadd.f32 %v6077, %v6307
        %v6309 = vpop.f32.mrf.mxu0
        %6310 = vdwg.mxu0
        %vm6311 = vcmp.ge.f32.partialorder %v6185, 0.0
        %vm6312 = vcmp.ge.f32.partialorder %v6188, 0.0
        %vm6313 = vcmp.ge.f32.partialorder %v6193, 0.0
        %vm6314 = vcmp.ge.f32.partialorder %v6196, 0.0
        %vm6315 = vcmp.ge.f32.partialorder %v6201, 0.0
        %vm6316 = vcmp.ge.f32.partialorder %v6204, 0.0
        %vm6317 = vcmp.ge.f32.partialorder %v6209, 0.0
        %vm6318 = vcmp.ge.f32.partialorder %v6212, 0.0
        %vm6319 = vcmp.ge.f32.partialorder %v6217, 0.0
        %vm6320 = vcmp.ge.f32.partialorder %v6220, 0.0
        %vm6321 = vcmp.ge.f32.partialorder %v6225, 0.0
        %vm6322 = vcmp.ge.f32.partialorder %v6228, 0.0
        %vm6323 = vcmp.ge.f32.partialorder %v6233, 0.0
        %vm6324 = vcmp.ge.f32.partialorder %v6236, 0.0
        %vm6325 = vcmp.ge.f32.partialorder %v6241, 0.0
        %vm6326 = vcmp.ge.f32.partialorder %v6244, 0.0
        %vm6327 = vcmp.ge.f32.partialorder %v6249, 0.0
        %vm6328 = vcmp.ge.f32.partialorder %v6252, 0.0
        %vm6329 = vcmp.ge.f32.partialorder %v6257, 0.0
        %vm6330 = vcmp.ge.f32.partialorder %v6260, 0.0
        %vm6331 = vcmp.ge.f32.partialorder %v6265, 0.0
        %vm6332 = vcmp.ge.f32.partialorder %v6268, 0.0
        %vm6333 = vcmp.ge.f32.partialorder %v6273, 0.0
        %vm6334 = vcmp.ge.f32.partialorder %v6276, 0.0
        %vm6335 = vcmp.ge.f32.partialorder %v6281, 0.0
        %vm6336 = vcmp.ge.f32.partialorder %v6284, 0.0
        %vm6337 = vcmp.ge.f32.partialorder %v6289, 0.0
        %vm6338 = vcmp.ge.f32.partialorder %v6292, 0.0
        %vm6339 = vcmp.ge.f32.partialorder %v6297, 0.0
        %vm6340 = vcmp.ge.f32.partialorder %v6300, 0.0
        %vm6341 = vcmp.ge.f32.partialorder %v6305, 0.0
        %vm6342 = vcmp.ge.f32.partialorder %v6308, 0.0
        %v6343 = vmul.f32 %v6185, 0.2
        %v6344 = vmul.f32 %v6188, 0.2
        %v6345 = vmul.f32 %v6193, 0.2
        %v6346 = vmul.f32 %v6196, 0.2
        %v6347 = vmul.f32 %v6201, 0.2
        %v6348 = vmul.f32 %v6204, 0.2
        %v6349 = vmul.f32 %v6209, 0.2
        %v6350 = vmul.f32 %v6212, 0.2
        %v6351 = vmul.f32 %v6217, 0.2
        %v6352 = vmul.f32 %v6220, 0.2
        %v6353 = vmul.f32 %v6225, 0.2
        %v6354 = vmul.f32 %v6228, 0.2
        %v6355 = vmul.f32 %v6233, 0.2
        %v6356 = vmul.f32 %v6236, 0.2
        %v6357 = vmul.f32 %v6241, 0.2
        %v6358 = vmul.f32 %v6244, 0.2
        %v6359 = vmul.f32 %v6249, 0.2
        %v6360 = vmul.f32 %v6252, 0.2
        %v6361 = vmul.f32 %v6257, 0.2
        %v6362 = vmul.f32 %v6260, 0.2
        %v6363 = vmul.f32 %v6265, 0.2
        %v6364 = vmul.f32 %v6268, 0.2
        %v6365 = vmul.f32 %v6273, 0.2
        %v6366 = vmul.f32 %v6276, 0.2
        %v6367 = vmul.f32 %v6281, 0.2
        %v6368 = vmul.f32 %v6284, 0.2
        %v6369 = vmul.f32 %v6289, 0.2
        %v6370 = vmul.f32 %v6292, 0.2
        %v6371 = vmul.f32 %v6297, 0.2
        %v6372 = vmul.f32 %v6300, 0.2
        %v6373 = vmul.f32 %v6305, 0.2
        %v6374 = vmul.f32 %v6308, 0.2
        %v6375 = vsel %vm6311, %v6185, %v6343
        %v6376 = vsel %vm6312, %v6188, %v6344
        %v6377 = vsel %vm6313, %v6193, %v6345
        %v6378 = vsel %vm6314, %v6196, %v6346
        %v6379 = vsel %vm6315, %v6201, %v6347
        %v6380 = vsel %vm6316, %v6204, %v6348
        %v6381 = vsel %vm6317, %v6209, %v6349
        %v6382 = vsel %vm6318, %v6212, %v6350
        %v6383 = vsel %vm6319, %v6217, %v6351
        %v6384 = vsel %vm6320, %v6220, %v6352
        %v6385 = vsel %vm6321, %v6225, %v6353
        %v6386 = vsel %vm6322, %v6228, %v6354
        %v6387 = vsel %vm6323, %v6233, %v6355
        %v6388 = vsel %vm6324, %v6236, %v6356
        %v6389 = vsel %vm6325, %v6241, %v6357
        %v6390 = vsel %vm6326, %v6244, %v6358
        %v6391 = vsel %vm6327, %v6249, %v6359
        %v6392 = vsel %vm6328, %v6252, %v6360
        %v6393 = vsel %vm6329, %v6257, %v6361
        %v6394 = vsel %vm6330, %v6260, %v6362
        %v6395 = vsel %vm6331, %v6265, %v6363
        %v6396 = vsel %vm6332, %v6268, %v6364
        %v6397 = vsel %vm6333, %v6273, %v6365
        %v6398 = vsel %vm6334, %v6276, %v6366
        %v6399 = vsel %vm6335, %v6281, %v6367
        %v6400 = vsel %vm6336, %v6284, %v6368
        %v6401 = vsel %vm6337, %v6289, %v6369
        %v6402 = vsel %vm6338, %v6292, %v6370
        %v6403 = vsel %vm6339, %v6297, %v6371
        %v6404 = vsel %vm6340, %v6300, %v6372
        %v6405 = vsel %vm6341, %v6305, %v6373
        %v6406 = vsel %vm6342, %v6308, %v6374
        %v6407 = vmul.f32 %v6375, 1.4142135
        %v6408 = vmul.f32 %v6376, 1.4142135
        %v6409 = vmul.f32 %v6377, 1.4142135
        %v6410 = vmul.f32 %v6378, 1.4142135
        %v6411 = vmul.f32 %v6379, 1.4142135
        %v6412 = vmul.f32 %v6380, 1.4142135
        %v6413 = vmul.f32 %v6381, 1.4142135
        %v6414 = vmul.f32 %v6382, 1.4142135
        %v6415 = vmul.f32 %v6383, 1.4142135
        %v6416 = vmul.f32 %v6384, 1.4142135
        %v6417 = vmul.f32 %v6385, 1.4142135
        %v6418 = vmul.f32 %v6386, 1.4142135
        %v6419 = vmul.f32 %v6387, 1.4142135
        %v6420 = vmul.f32 %v6388, 1.4142135
        %v6421 = vmul.f32 %v6389, 1.4142135
        %v6422 = vmul.f32 %v6390, 1.4142135
        %v6423 = vmul.f32 %v6391, 1.4142135
        %v6424 = vmul.f32 %v6392, 1.4142135
        %v6425 = vmul.f32 %v6393, 1.4142135
        %v6426 = vmul.f32 %v6394, 1.4142135
        %v6427 = vmul.f32 %v6395, 1.4142135
        %v6428 = vmul.f32 %v6396, 1.4142135
        %v6429 = vmul.f32 %v6397, 1.4142135
        %v6430 = vmul.f32 %v6398, 1.4142135
        %v6431 = vmul.f32 %v6399, 1.4142135
        %v6432 = vmul.f32 %v6400, 1.4142135
        %v6433 = vmul.f32 %v6401, 1.4142135
        %v6434 = vmul.f32 %v6402, 1.4142135
        %v6435 = vmul.f32 %v6403, 1.4142135
        %v6436 = vmul.f32 %v6404, 1.4142135
        %v6437 = vmul.f32 %v6405, 1.4142135
        %v6438 = vmul.f32 %v6406, 1.4142135
        %s6439 = scalar_lea.vmem %s627, 2 [#allocation3]
        %v6440 = vld [vmem:[%s6439] sm:$0x3]
        %v6441 = vpack.c.bf16 %v6408, %v6407
        %v6442 = vpack.c.bf16 %v6410, %v6409
        %v6443 = vpack.c.bf16 %v6412, %v6411
        %v6444 = vpack.c.bf16 %v6414, %v6413
        %v6445 = vpack.c.bf16 %v6416, %v6415
        %v6446 = vpack.c.bf16 %v6418, %v6417
        %v6447 = vpack.c.bf16 %v6420, %v6419
        %v6448 = vpack.c.bf16 %v6422, %v6421
        %v6449 = vpack.c.bf16 %v6424, %v6423
        %v6450 = vpack.c.bf16 %v6426, %v6425
        %v6451 = vpack.c.bf16 %v6428, %v6427
        %v6452 = vpack.c.bf16 %v6430, %v6429
        %v6453 = vpack.c.bf16 %v6432, %v6431
        %v6454 = vpack.c.bf16 %v6434, %v6433
        %v6455 = vpack.c.bf16 %v6436, %v6435
        %v6456 = vpack.c.bf16 %v6438, %v6437
        %v6458 = vsel %vm4930, %v6440, 0
        %v6461 = vsel %vm4930, %v6441, 0
        %v6464 = vsel %vm4930, %v6442, 0
        %v6467 = vsel %vm4930, %v6443, 0
        %v6470 = vsel %vm4930, %v6444, 0
        %v6473 = vsel %vm4930, %v6445, 0
        %v6476 = vsel %vm4930, %v6446, 0
        %v6479 = vsel %vm4930, %v6447, 0
        %v6482 = vsel %vm4930, %v6448, 0
        %v6485 = vsel %vm4930, %v6449, 0
        %v6488 = vsel %vm4930, %v6450, 0
        %v6491 = vsel %vm4930, %v6451, 0
        %v6494 = vsel %vm4930, %v6452, 0
        %v6497 = vsel %vm4930, %v6453, 0
        %v6500 = vsel %vm4930, %v6454, 0
        %v6503 = vsel %vm4930, %v6455, 0
        %v6506 = vsel %vm4930, %v6456, 0
        %6508 = vmatprep.subr.bf16.mxu0 0
        %6509 = vmatpush1.bf16.xpose.msra.mxu0 %v6482
        %6510 = vmatprep.subr.bf16.mxu0 0
        %6511 = vmatpush1.bf16.xpose.msra.mxu0 %v6479
        %6512 = vmatprep.subr.bf16.mxu0 0
        %6513 = vmatpush1.bf16.xpose.msra.mxu0 %v6476
        %6514 = vmatprep.subr.bf16.mxu0 0
        %6515 = vmatpush1.bf16.xpose.msra.mxu0 %v6473
        %6516 = vmatprep.subr.bf16.mxu0 0
        %6517 = vmatpush1.bf16.xpose.msra.mxu0 %v6470
        %6518 = vmatprep.subr.bf16.mxu0 0
        %6519 = vmatpush1.bf16.xpose.msra.mxu0 %v6467
        %6520 = vmatprep.subr.bf16.mxu0 0
        %6521 = vmatpush1.bf16.xpose.msra.mxu0 %v6464
        %6522 = vmatprep.subr.bf16.mxu0 0
        %6523 = vmatpush1.bf16.xpose.msra.mxu0 %v6461
        %6524 = vmatprep.subr.bf16.mxu0 0
        %6525 = vmatpush2.bf16.xpose.msra.mxu0 %v6506
        %6526 = vmatprep.subr.bf16.mxu0 0
        %6527 = vmatpush2.bf16.xpose.msra.mxu0 %v6503
        %6528 = vmatprep.subr.bf16.mxu0 0
        %6529 = vmatpush2.bf16.xpose.msra.mxu0 %v6500
        %6530 = vmatprep.subr.bf16.mxu0 0
        %6531 = vmatpush2.bf16.xpose.msra.mxu0 %v6497
        %6532 = vmatprep.subr.bf16.mxu0 0
        %6533 = vmatpush2.bf16.xpose.msra.mxu0 %v6494
        %6534 = vmatprep.subr.bf16.mxu0 0
        %6535 = vmatpush2.bf16.xpose.msra.mxu0 %v6491
        %6536 = vmatprep.subr.bf16.mxu0 0
        %6537 = vmatpush2.bf16.xpose.msra.mxu0 %v6488
        %6538 = vmatprep.subr.bf16.mxu0 0
        %6539 = vmatpush2.bf16.xpose.msra.mxu0 %v6485
        %6540 = vmatprep.mubr.bf16.mxu0 0
        %6541 = vmatmul.mubr.bf16.gmra.mxu0 %v6458
        %v6542 = vpop.f32.mrf.mxu0
        %v6543 = vadd.f32 0.0, %v6542
        %v6544 = vpop.f32.mrf.mxu0
        %v6545 = vadd.f32 0.0, %v6544
        %v6546 = vpop.f32.mrf.mxu0
        %v6547 = vpop.f32.mrf.mxu0
        %6548 = vdwg.mxu0
        %v6550 = vsel %vm4930, %v5658, 0
        %6552 = vmatprep.subr.bf16.mxu0 0
        %6553 = vmatpush1.bf16.xpose.msra.mxu0 %v5734
        %6554 = vmatprep.subr.bf16.mxu0 0
        %6555 = vmatpush1.bf16.xpose.msra.mxu0 %v5731
        %6556 = vmatprep.subr.bf16.mxu0 0
        %6557 = vmatpush1.bf16.xpose.msra.mxu0 %v5728
        %6558 = vmatprep.subr.bf16.mxu0 0
        %6559 = vmatpush1.bf16.xpose.msra.mxu0 %v5725
        %6560 = vmatprep.subr.bf16.mxu0 0
        %6561 = vmatpush1.bf16.xpose.msra.mxu0 %v5722
        %6562 = vmatprep.subr.bf16.mxu0 0
        %6563 = vmatpush1.bf16.xpose.msra.mxu0 %v5719
        %6564 = vmatprep.subr.bf16.mxu0 0
        %6565 = vmatpush1.bf16.xpose.msra.mxu0 %v5716
        %6566 = vmatprep.subr.bf16.mxu0 0
        %6567 = vmatpush1.bf16.xpose.msra.mxu0 %v5713
        %6568 = vmatprep.subr.bf16.mxu0 0
        %6569 = vmatpush2.bf16.xpose.msra.mxu0 %v5758
        %6570 = vmatprep.subr.bf16.mxu0 0
        %6571 = vmatpush2.bf16.xpose.msra.mxu0 %v5755
        %6572 = vmatprep.subr.bf16.mxu0 0
        %6573 = vmatpush2.bf16.xpose.msra.mxu0 %v5752
        %6574 = vmatprep.subr.bf16.mxu0 0
        %6575 = vmatpush2.bf16.xpose.msra.mxu0 %v5749
        %6576 = vmatprep.subr.bf16.mxu0 0
        %6577 = vmatpush2.bf16.xpose.msra.mxu0 %v5746
        %6578 = vmatprep.subr.bf16.mxu0 0
        %6579 = vmatpush2.bf16.xpose.msra.mxu0 %v5743
        %6580 = vmatprep.subr.bf16.mxu0 0
        %6581 = vmatpush2.bf16.xpose.msra.mxu0 %v5740
        %6582 = vmatprep.subr.bf16.mxu0 0
        %6583 = vmatpush2.bf16.xpose.msra.mxu0 %v5737
        %6584 = vmatprep.mubr.bf16.mxu0 0
        %6585 = vmatmul.mubr.bf16.gmra.mxu0 %v6550
        %v6586 = vpop.f32.mrf.mxu0
        %v6587 = vadd.f32 %v6543, %v6586
        %v6588 = vpop.f32.mrf.mxu0
        %v6589 = vadd.f32 %v6545, %v6588
        %v6590 = vpop.f32.mrf.mxu0
        %v6591 = vpop.f32.mrf.mxu0
        %6592 = vdwg.mxu0
        %s6593 = scalar_lea.vmem %s620, 128 [#allocation2]
        %v6594 = vld [vmem:[%s6593] sm:$0xf]
        %v6595 = vld [vmem:[%s6593 + $0x4] sm:$0xf]
        %v6596 = vld [vmem:[%s6593 + $0x8] sm:$0xf]
        %v6597 = vld [vmem:[%s6593 + $0xc] sm:$0xf]
        %v6598 = vld [vmem:[%s6593 + $0x10] sm:$0xf]
        %v6599 = vld [vmem:[%s6593 + $0x14] sm:$0xf]
        %v6600 = vld [vmem:[%s6593 + $0x18] sm:$0xf]
        %v6601 = vld [vmem:[%s6593 + $0x1c] sm:$0xf]
        %v6602 = vlaneseq
        %v6603 = vshrl.u32 %v6602, 7
        %v6604 = vsub.s32 4, %v6603
        %v6605 = vrot.slane %v4877, %v6604
        %v6614 = vunpack.c.l.b16 %v6594
        %v6615 = vunpack.c.l.b16 %v6595
        %v6616 = vunpack.c.l.b16 %v6596
        %v6617 = vunpack.c.l.b16 %v6597
        %v6618 = vunpack.c.l.b16 %v6598
        %v6619 = vunpack.c.l.b16 %v6599
        %v6620 = vunpack.c.l.b16 %v6600
        %v6621 = vunpack.c.l.b16 %v6601
        %v6622 = vpack.c.b16 %v6615, %v6614
        %v6623 = vpack.c.b16 %v6617, %v6616
        %v6624 = vpack.c.b16 %v6619, %v6618
        %v6625 = vpack.c.b16 %v6621, %v6620
        %6630 = vmatprep.subr.bf16.mxu0 0
        %6631 = vmatpush1.bf16.msra.mxu0 0
        %6632 = vmatprep.subr.bf16.mxu0 0
        %6633 = vmatpush1.bf16.msra.mxu0 0
        %6634 = vmatprep.subr.bf16.mxu0 0
        %6635 = vmatpush1.bf16.msra.mxu0 0
        %6636 = vmatprep.subr.bf16.mxu0 0
        %6637 = vmatpush1.bf16.msra.mxu0 0
        %6638 = vmatprep.subr.bf16.mxu0 0
        %6639 = vmatpush1.bf16.msra.mxu0 %v6625
        %6640 = vmatprep.subr.bf16.mxu0 0
        %6641 = vmatpush1.bf16.msra.mxu0 %v6624
        %6642 = vmatprep.subr.bf16.mxu0 0
        %6643 = vmatpush1.bf16.msra.mxu0 %v6623
        %6644 = vmatprep.subr.bf16.mxu0 0
        %6645 = vmatpush1.bf16.msra.mxu0 %v6622
        %6646 = vmatprep.subr.bf16.mxu0 0
        %6647 = vmatpush2.bf16.msra.mxu0 0
        %6648 = vmatprep.subr.bf16.mxu0 0
        %6649 = vmatpush2.bf16.msra.mxu0 0
        %6650 = vmatprep.subr.bf16.mxu0 0
        %6651 = vmatpush2.bf16.msra.mxu0 0
        %6652 = vmatprep.subr.bf16.mxu0 0
        %6653 = vmatpush2.bf16.msra.mxu0 0
        %6654 = vmatprep.subr.bf16.mxu0 0
        %6655 = vmatpush2.bf16.msra.mxu0 0
        %6656 = vmatprep.subr.bf16.mxu0 0
        %6657 = vmatpush2.bf16.msra.mxu0 0
        %6658 = vmatprep.subr.bf16.mxu0 0
        %6659 = vmatpush2.bf16.msra.mxu0 0
        %6660 = vmatprep.subr.bf16.mxu0 0
        %6661 = vmatpush2.bf16.msra.mxu0 0
        %6662 = vmatprep.mubr.bf16.mxu0 0
        %6663 = vmatmul.mubr.bf16.gmra.mxu0 %v6461
        %v6664 = vpop.f32.mrf.mxu0
        %v6665 = vadd.f32 %v6605, %v6664
        %v6666 = vpop.f32.mrf.mxu0
        %v6667 = vpop.f32.mrf.mxu0
        %v6668 = vadd.f32 %v6605, %v6667
        %v6669 = vpop.f32.mrf.mxu0
        %6670 = vmatprep.mubr.bf16.mxu0 0
        %6671 = vmatmul.mubr.bf16.gmra.mxu0 %v6464
        %v6672 = vpop.f32.mrf.mxu0
        %v6673 = vadd.f32 %v6605, %v6672
        %v6674 = vpop.f32.mrf.mxu0
        %v6675 = vpop.f32.mrf.mxu0
        %v6676 = vadd.f32 %v6605, %v6675
        %v6677 = vpop.f32.mrf.mxu0
        %6678 = vmatprep.mubr.bf16.mxu0 0
        %6679 = vmatmul.mubr.bf16.gmra.mxu0 %v6467
        %v6680 = vpop.f32.mrf.mxu0
        %v6681 = vadd.f32 %v6605, %v6680
        %v6682 = vpop.f32.mrf.mxu0
        %v6683 = vpop.f32.mrf.mxu0
        %v6684 = vadd.f32 %v6605, %v6683
        %v6685 = vpop.f32.mrf.mxu0
        %6686 = vmatprep.mubr.bf16.mxu0 0
        %6687 = vmatmul.mubr.bf16.gmra.mxu0 %v6470
        %v6688 = vpop.f32.mrf.mxu0
        %v6689 = vadd.f32 %v6605, %v6688
        %v6690 = vpop.f32.mrf.mxu0
        %v6691 = vpop.f32.mrf.mxu0
        %v6692 = vadd.f32 %v6605, %v6691
        %v6693 = vpop.f32.mrf.mxu0
        %6694 = vmatprep.mubr.bf16.mxu0 0
        %6695 = vmatmul.mubr.bf16.gmra.mxu0 %v6473
        %v6696 = vpop.f32.mrf.mxu0
        %v6697 = vadd.f32 %v6605, %v6696
        %v6698 = vpop.f32.mrf.mxu0
        %v6699 = vpop.f32.mrf.mxu0
        %v6700 = vadd.f32 %v6605, %v6699
        %v6701 = vpop.f32.mrf.mxu0
        %6702 = vmatprep.mubr.bf16.mxu0 0
        %6703 = vmatmul.mubr.bf16.gmra.mxu0 %v6476
        %v6704 = vpop.f32.mrf.mxu0
        %v6705 = vadd.f32 %v6605, %v6704
        %v6706 = vpop.f32.mrf.mxu0
        %v6707 = vpop.f32.mrf.mxu0
        %v6708 = vadd.f32 %v6605, %v6707
        %v6709 = vpop.f32.mrf.mxu0
        %6710 = vmatprep.mubr.bf16.mxu0 0
        %6711 = vmatmul.mubr.bf16.gmra.mxu0 %v6479
        %v6712 = vpop.f32.mrf.mxu0
        %v6713 = vadd.f32 %v6605, %v6712
        %v6714 = vpop.f32.mrf.mxu0
        %v6715 = vpop.f32.mrf.mxu0
        %v6716 = vadd.f32 %v6605, %v6715
        %v6717 = vpop.f32.mrf.mxu0
        %6718 = vmatprep.mubr.bf16.mxu0 0
        %6719 = vmatmul.mubr.bf16.gmra.mxu0 %v6482
        %v6720 = vpop.f32.mrf.mxu0
        %v6721 = vadd.f32 %v6605, %v6720
        %v6722 = vpop.f32.mrf.mxu0
        %v6723 = vpop.f32.mrf.mxu0
        %v6724 = vadd.f32 %v6605, %v6723
        %v6725 = vpop.f32.mrf.mxu0
        %6726 = vmatprep.mubr.bf16.mxu0 0
        %6727 = vmatmul.mubr.bf16.gmra.mxu0 %v6485
        %v6728 = vpop.f32.mrf.mxu0
        %v6729 = vadd.f32 %v6605, %v6728
        %v6730 = vpop.f32.mrf.mxu0
        %v6731 = vpop.f32.mrf.mxu0
        %v6732 = vadd.f32 %v6605, %v6731
        %v6733 = vpop.f32.mrf.mxu0
        %6734 = vmatprep.mubr.bf16.mxu0 0
        %6735 = vmatmul.mubr.bf16.gmra.mxu0 %v6488
        %v6736 = vpop.f32.mrf.mxu0
        %v6737 = vadd.f32 %v6605, %v6736
        %v6738 = vpop.f32.mrf.mxu0
        %v6739 = vpop.f32.mrf.mxu0
        %v6740 = vadd.f32 %v6605, %v6739
        %v6741 = vpop.f32.mrf.mxu0
        %6742 = vmatprep.mubr.bf16.mxu0 0
        %6743 = vmatmul.mubr.bf16.gmra.mxu0 %v6491
        %v6744 = vpop.f32.mrf.mxu0
        %v6745 = vadd.f32 %v6605, %v6744
        %v6746 = vpop.f32.mrf.mxu0
        %v6747 = vpop.f32.mrf.mxu0
        %v6748 = vadd.f32 %v6605, %v6747
        %v6749 = vpop.f32.mrf.mxu0
        %6750 = vmatprep.mubr.bf16.mxu0 0
        %6751 = vmatmul.mubr.bf16.gmra.mxu0 %v6494
        %v6752 = vpop.f32.mrf.mxu0
        %v6753 = vadd.f32 %v6605, %v6752
        %v6754 = vpop.f32.mrf.mxu0
        %v6755 = vpop.f32.mrf.mxu0
        %v6756 = vadd.f32 %v6605, %v6755
        %v6757 = vpop.f32.mrf.mxu0
        %6758 = vmatprep.mubr.bf16.mxu0 0
        %6759 = vmatmul.mubr.bf16.gmra.mxu0 %v6497
        %v6760 = vpop.f32.mrf.mxu0
        %v6761 = vadd.f32 %v6605, %v6760
        %v6762 = vpop.f32.mrf.mxu0
        %v6763 = vpop.f32.mrf.mxu0
        %v6764 = vadd.f32 %v6605, %v6763
        %v6765 = vpop.f32.mrf.mxu0
        %6766 = vmatprep.mubr.bf16.mxu0 0
        %6767 = vmatmul.mubr.bf16.gmra.mxu0 %v6500
        %v6768 = vpop.f32.mrf.mxu0
        %v6769 = vadd.f32 %v6605, %v6768
        %v6770 = vpop.f32.mrf.mxu0
        %v6771 = vpop.f32.mrf.mxu0
        %v6772 = vadd.f32 %v6605, %v6771
        %v6773 = vpop.f32.mrf.mxu0
        %6774 = vmatprep.mubr.bf16.mxu0 0
        %6775 = vmatmul.mubr.bf16.gmra.mxu0 %v6503
        %v6776 = vpop.f32.mrf.mxu0
        %v6777 = vadd.f32 %v6605, %v6776
        %v6778 = vpop.f32.mrf.mxu0
        %v6779 = vpop.f32.mrf.mxu0
        %v6780 = vadd.f32 %v6605, %v6779
        %v6781 = vpop.f32.mrf.mxu0
        %6782 = vmatprep.mubr.bf16.mxu0 0
        %6783 = vmatmul.mubr.bf16.gmra.mxu0 %v6506
        %v6784 = vpop.f32.mrf.mxu0
        %v6785 = vadd.f32 %v6605, %v6784
        %v6786 = vpop.f32.mrf.mxu0
        %v6787 = vpop.f32.mrf.mxu0
        %v6788 = vadd.f32 %v6605, %v6787
        %v6789 = vpop.f32.mrf.mxu0
        %6790 = vdwg.mxu0
        %vm6791 = vcmp.ge.f32.partialorder %v6665, 0.0
        %vm6792 = vcmp.ge.f32.partialorder %v6668, 0.0
        %vm6793 = vcmp.ge.f32.partialorder %v6673, 0.0
        %vm6794 = vcmp.ge.f32.partialorder %v6676, 0.0
        %vm6795 = vcmp.ge.f32.partialorder %v6681, 0.0
        %vm6796 = vcmp.ge.f32.partialorder %v6684, 0.0
        %vm6797 = vcmp.ge.f32.partialorder %v6689, 0.0
        %vm6798 = vcmp.ge.f32.partialorder %v6692, 0.0
        %vm6799 = vcmp.ge.f32.partialorder %v6697, 0.0
        %vm6800 = vcmp.ge.f32.partialorder %v6700, 0.0
        %vm6801 = vcmp.ge.f32.partialorder %v6705, 0.0
        %vm6802 = vcmp.ge.f32.partialorder %v6708, 0.0
        %vm6803 = vcmp.ge.f32.partialorder %v6713, 0.0
        %vm6804 = vcmp.ge.f32.partialorder %v6716, 0.0
        %vm6805 = vcmp.ge.f32.partialorder %v6721, 0.0
        %vm6806 = vcmp.ge.f32.partialorder %v6724, 0.0
        %vm6807 = vcmp.ge.f32.partialorder %v6729, 0.0
        %vm6808 = vcmp.ge.f32.partialorder %v6732, 0.0
        %vm6809 = vcmp.ge.f32.partialorder %v6737, 0.0
        %vm6810 = vcmp.ge.f32.partialorder %v6740, 0.0
        %vm6811 = vcmp.ge.f32.partialorder %v6745, 0.0
        %vm6812 = vcmp.ge.f32.partialorder %v6748, 0.0
        %vm6813 = vcmp.ge.f32.partialorder %v6753, 0.0
        %vm6814 = vcmp.ge.f32.partialorder %v6756, 0.0
        %vm6815 = vcmp.ge.f32.partialorder %v6761, 0.0
        %vm6816 = vcmp.ge.f32.partialorder %v6764, 0.0
        %vm6817 = vcmp.ge.f32.partialorder %v6769, 0.0
        %vm6818 = vcmp.ge.f32.partialorder %v6772, 0.0
        %vm6819 = vcmp.ge.f32.partialorder %v6777, 0.0
        %vm6820 = vcmp.ge.f32.partialorder %v6780, 0.0
        %vm6821 = vcmp.ge.f32.partialorder %v6785, 0.0
        %vm6822 = vcmp.ge.f32.partialorder %v6788, 0.0
        %v6823 = vmul.f32 %v6665, 0.2
        %v6824 = vmul.f32 %v6668, 0.2
        %v6825 = vmul.f32 %v6673, 0.2
        %v6826 = vmul.f32 %v6676, 0.2
        %v6827 = vmul.f32 %v6681, 0.2
        %v6828 = vmul.f32 %v6684, 0.2
        %v6829 = vmul.f32 %v6689, 0.2
        %v6830 = vmul.f32 %v6692, 0.2
        %v6831 = vmul.f32 %v6697, 0.2
        %v6832 = vmul.f32 %v6700, 0.2
        %v6833 = vmul.f32 %v6705, 0.2
        %v6834 = vmul.f32 %v6708, 0.2
        %v6835 = vmul.f32 %v6713, 0.2
        %v6836 = vmul.f32 %v6716, 0.2
        %v6837 = vmul.f32 %v6721, 0.2
        %v6838 = vmul.f32 %v6724, 0.2
        %v6839 = vmul.f32 %v6729, 0.2
        %v6840 = vmul.f32 %v6732, 0.2
        %v6841 = vmul.f32 %v6737, 0.2
        %v6842 = vmul.f32 %v6740, 0.2
        %v6843 = vmul.f32 %v6745, 0.2
        %v6844 = vmul.f32 %v6748, 0.2
        %v6845 = vmul.f32 %v6753, 0.2
        %v6846 = vmul.f32 %v6756, 0.2
        %v6847 = vmul.f32 %v6761, 0.2
        %v6848 = vmul.f32 %v6764, 0.2
        %v6849 = vmul.f32 %v6769, 0.2
        %v6850 = vmul.f32 %v6772, 0.2
        %v6851 = vmul.f32 %v6777, 0.2
        %v6852 = vmul.f32 %v6780, 0.2
        %v6853 = vmul.f32 %v6785, 0.2
        %v6854 = vmul.f32 %v6788, 0.2
        %v6855 = vsel %vm6791, %v6665, %v6823
        %v6856 = vsel %vm6792, %v6668, %v6824
        %v6857 = vsel %vm6793, %v6673, %v6825
        %v6858 = vsel %vm6794, %v6676, %v6826
        %v6859 = vsel %vm6795, %v6681, %v6827
        %v6860 = vsel %vm6796, %v6684, %v6828
        %v6861 = vsel %vm6797, %v6689, %v6829
        %v6862 = vsel %vm6798, %v6692, %v6830
        %v6863 = vsel %vm6799, %v6697, %v6831
        %v6864 = vsel %vm6800, %v6700, %v6832
        %v6865 = vsel %vm6801, %v6705, %v6833
        %v6866 = vsel %vm6802, %v6708, %v6834
        %v6867 = vsel %vm6803, %v6713, %v6835
        %v6868 = vsel %vm6804, %v6716, %v6836
        %v6869 = vsel %vm6805, %v6721, %v6837
        %v6870 = vsel %vm6806, %v6724, %v6838
        %v6871 = vsel %vm6807, %v6729, %v6839
        %v6872 = vsel %vm6808, %v6732, %v6840
        %v6873 = vsel %vm6809, %v6737, %v6841
        %v6874 = vsel %vm6810, %v6740, %v6842
        %v6875 = vsel %vm6811, %v6745, %v6843
        %v6876 = vsel %vm6812, %v6748, %v6844
        %v6877 = vsel %vm6813, %v6753, %v6845
        %v6878 = vsel %vm6814, %v6756, %v6846
        %v6879 = vsel %vm6815, %v6761, %v6847
        %v6880 = vsel %vm6816, %v6764, %v6848
        %v6881 = vsel %vm6817, %v6769, %v6849
        %v6882 = vsel %vm6818, %v6772, %v6850
        %v6883 = vsel %vm6819, %v6777, %v6851
        %v6884 = vsel %vm6820, %v6780, %v6852
        %v6885 = vsel %vm6821, %v6785, %v6853
        %v6886 = vsel %vm6822, %v6788, %v6854
        %v6887 = vmul.f32 %v6855, 1.4142135
        %v6888 = vmul.f32 %v6856, 1.4142135
        %v6889 = vmul.f32 %v6857, 1.4142135
        %v6890 = vmul.f32 %v6858, 1.4142135
        %v6891 = vmul.f32 %v6859, 1.4142135
        %v6892 = vmul.f32 %v6860, 1.4142135
        %v6893 = vmul.f32 %v6861, 1.4142135
        %v6894 = vmul.f32 %v6862, 1.4142135
        %v6895 = vmul.f32 %v6863, 1.4142135
        %v6896 = vmul.f32 %v6864, 1.4142135
        %v6897 = vmul.f32 %v6865, 1.4142135
        %v6898 = vmul.f32 %v6866, 1.4142135
        %v6899 = vmul.f32 %v6867, 1.4142135
        %v6900 = vmul.f32 %v6868, 1.4142135
        %v6901 = vmul.f32 %v6869, 1.4142135
        %v6902 = vmul.f32 %v6870, 1.4142135
        %v6903 = vmul.f32 %v6871, 1.4142135
        %v6904 = vmul.f32 %v6872, 1.4142135
        %v6905 = vmul.f32 %v6873, 1.4142135
        %v6906 = vmul.f32 %v6874, 1.4142135
        %v6907 = vmul.f32 %v6875, 1.4142135
        %v6908 = vmul.f32 %v6876, 1.4142135
        %v6909 = vmul.f32 %v6877, 1.4142135
        %v6910 = vmul.f32 %v6878, 1.4142135
        %v6911 = vmul.f32 %v6879, 1.4142135
        %v6912 = vmul.f32 %v6880, 1.4142135
        %v6913 = vmul.f32 %v6881, 1.4142135
        %v6914 = vmul.f32 %v6882, 1.4142135
        %v6915 = vmul.f32 %v6883, 1.4142135
        %v6916 = vmul.f32 %v6884, 1.4142135
        %v6917 = vmul.f32 %v6885, 1.4142135
        %v6918 = vmul.f32 %v6886, 1.4142135
        %v6919 = vpack.c.bf16 %v6888, %v6887
        %v6920 = vpack.c.bf16 %v6890, %v6889
        %v6921 = vpack.c.bf16 %v6892, %v6891
        %v6922 = vpack.c.bf16 %v6894, %v6893
        %v6923 = vpack.c.bf16 %v6896, %v6895
        %v6924 = vpack.c.bf16 %v6898, %v6897
        %v6925 = vpack.c.bf16 %v6900, %v6899
        %v6926 = vpack.c.bf16 %v6902, %v6901
        %v6927 = vpack.c.bf16 %v6904, %v6903
        %v6928 = vpack.c.bf16 %v6906, %v6905
        %v6929 = vpack.c.bf16 %v6908, %v6907
        %v6930 = vpack.c.bf16 %v6910, %v6909
        %v6931 = vpack.c.bf16 %v6912, %v6911
        %v6932 = vpack.c.bf16 %v6914, %v6913
        %v6933 = vpack.c.bf16 %v6916, %v6915
        %v6934 = vpack.c.bf16 %v6918, %v6917
        %s6935 = scalar_lea.vmem %s620, 160 [#allocation2]
        %v6936 = vld [vmem:[%s6935] sm:$0xf]
        %v6937 = vld [vmem:[%s6935 + $0x4] sm:$0xf]
        %v6938 = vld [vmem:[%s6935 + $0x8] sm:$0xf]
        %v6939 = vld [vmem:[%s6935 + $0xc] sm:$0xf]
        %v6940 = vld [vmem:[%s6935 + $0x10] sm:$0xf]
        %v6941 = vld [vmem:[%s6935 + $0x14] sm:$0xf]
        %v6942 = vld [vmem:[%s6935 + $0x18] sm:$0xf]
        %v6943 = vld [vmem:[%s6935 + $0x1c] sm:$0xf]
        %v6944 = vlaneseq
        %v6945 = vshrl.u32 %v6944, 7
        %v6946 = vsub.s32 5, %v6945
        %v6947 = vrot.slane %v4877, %v6946
        %v6956 = vunpack.c.l.b16 %v6936
        %v6957 = vunpack.c.l.b16 %v6937
        %v6958 = vunpack.c.l.b16 %v6938
        %v6959 = vunpack.c.l.b16 %v6939
        %v6960 = vunpack.c.l.b16 %v6940
        %v6961 = vunpack.c.l.b16 %v6941
        %v6962 = vunpack.c.l.b16 %v6942
        %v6963 = vunpack.c.l.b16 %v6943
        %v6964 = vpack.c.b16 %v6957, %v6956
        %v6965 = vpack.c.b16 %v6959, %v6958
        %v6966 = vpack.c.b16 %v6961, %v6960
        %v6967 = vpack.c.b16 %v6963, %v6962
        %v6973 = vsel %vm4930, %v6919, 0
        %v6976 = vsel %vm4930, %v6920, 0
        %v6979 = vsel %vm4930, %v6921, 0
        %v6982 = vsel %vm4930, %v6922, 0
        %v6985 = vsel %vm4930, %v6923, 0
        %v6988 = vsel %vm4930, %v6924, 0
        %v6991 = vsel %vm4930, %v6925, 0
        %v6994 = vsel %vm4930, %v6926, 0
        %v6997 = vsel %vm4930, %v6927, 0
        %v7000 = vsel %vm4930, %v6928, 0
        %v7003 = vsel %vm4930, %v6929, 0
        %v7006 = vsel %vm4930, %v6930, 0
        %v7009 = vsel %vm4930, %v6931, 0
        %v7012 = vsel %vm4930, %v6932, 0
        %v7015 = vsel %vm4930, %v6933, 0
        %v7018 = vsel %vm4930, %v6934, 0
        %7020 = vmatprep.subr.bf16.mxu0 0
        %7021 = vmatpush1.bf16.msra.mxu0 0
        %7022 = vmatprep.subr.bf16.mxu0 0
        %7023 = vmatpush1.bf16.msra.mxu0 0
        %7024 = vmatprep.subr.bf16.mxu0 0
        %7025 = vmatpush1.bf16.msra.mxu0 0
        %7026 = vmatprep.subr.bf16.mxu0 0
        %7027 = vmatpush1.bf16.msra.mxu0 0
        %7028 = vmatprep.subr.bf16.mxu0 0
        %7029 = vmatpush1.bf16.msra.mxu0 %v6967
        %7030 = vmatprep.subr.bf16.mxu0 0
        %7031 = vmatpush1.bf16.msra.mxu0 %v6966
        %7032 = vmatprep.subr.bf16.mxu0 0
        %7033 = vmatpush1.bf16.msra.mxu0 %v6965
        %7034 = vmatprep.subr.bf16.mxu0 0
        %7035 = vmatpush1.bf16.msra.mxu0 %v6964
        %7036 = vmatprep.subr.bf16.mxu0 0
        %7037 = vmatpush2.bf16.msra.mxu0 0
        %7038 = vmatprep.subr.bf16.mxu0 0
        %7039 = vmatpush2.bf16.msra.mxu0 0
        %7040 = vmatprep.subr.bf16.mxu0 0
        %7041 = vmatpush2.bf16.msra.mxu0 0
        %7042 = vmatprep.subr.bf16.mxu0 0
        %7043 = vmatpush2.bf16.msra.mxu0 0
        %7044 = vmatprep.subr.bf16.mxu0 0
        %7045 = vmatpush2.bf16.msra.mxu0 0
        %7046 = vmatprep.subr.bf16.mxu0 0
        %7047 = vmatpush2.bf16.msra.mxu0 0
        %7048 = vmatprep.subr.bf16.mxu0 0
        %7049 = vmatpush2.bf16.msra.mxu0 0
        %7050 = vmatprep.subr.bf16.mxu0 0
        %7051 = vmatpush2.bf16.msra.mxu0 0
        %7052 = vmatprep.mubr.bf16.mxu0 0
        %7053 = vmatmul.mubr.bf16.gmra.mxu0 %v6973
        %v7054 = vpop.f32.mrf.mxu0
        %v7055 = vadd.f32 %v6947, %v7054
        %v7056 = vpop.f32.mrf.mxu0
        %v7057 = vpop.f32.mrf.mxu0
        %v7058 = vadd.f32 %v6947, %v7057
        %v7059 = vpop.f32.mrf.mxu0
        %7060 = vmatprep.mubr.bf16.mxu0 0
        %7061 = vmatmul.mubr.bf16.gmra.mxu0 %v6976
        %v7062 = vpop.f32.mrf.mxu0
        %v7063 = vadd.f32 %v6947, %v7062
        %v7064 = vpop.f32.mrf.mxu0
        %v7065 = vpop.f32.mrf.mxu0
        %v7066 = vadd.f32 %v6947, %v7065
        %v7067 = vpop.f32.mrf.mxu0
        %7068 = vmatprep.mubr.bf16.mxu0 0
        %7069 = vmatmul.mubr.bf16.gmra.mxu0 %v6979
        %v7070 = vpop.f32.mrf.mxu0
        %v7071 = vadd.f32 %v6947, %v7070
        %v7072 = vpop.f32.mrf.mxu0
        %v7073 = vpop.f32.mrf.mxu0
        %v7074 = vadd.f32 %v6947, %v7073
        %v7075 = vpop.f32.mrf.mxu0
        %7076 = vmatprep.mubr.bf16.mxu0 0
        %7077 = vmatmul.mubr.bf16.gmra.mxu0 %v6982
        %v7078 = vpop.f32.mrf.mxu0
        %v7079 = vadd.f32 %v6947, %v7078
        %v7080 = vpop.f32.mrf.mxu0
        %v7081 = vpop.f32.mrf.mxu0
        %v7082 = vadd.f32 %v6947, %v7081
        %v7083 = vpop.f32.mrf.mxu0
        %7084 = vmatprep.mubr.bf16.mxu0 0
        %7085 = vmatmul.mubr.bf16.gmra.mxu0 %v6985
        %v7086 = vpop.f32.mrf.mxu0
        %v7087 = vadd.f32 %v6947, %v7086
        %v7088 = vpop.f32.mrf.mxu0
        %v7089 = vpop.f32.mrf.mxu0
        %v7090 = vadd.f32 %v6947, %v7089
        %v7091 = vpop.f32.mrf.mxu0
        %7092 = vmatprep.mubr.bf16.mxu0 0
        %7093 = vmatmul.mubr.bf16.gmra.mxu0 %v6988
        %v7094 = vpop.f32.mrf.mxu0
        %v7095 = vadd.f32 %v6947, %v7094
        %v7096 = vpop.f32.mrf.mxu0
        %v7097 = vpop.f32.mrf.mxu0
        %v7098 = vadd.f32 %v6947, %v7097
        %v7099 = vpop.f32.mrf.mxu0
        %7100 = vmatprep.mubr.bf16.mxu0 0
        %7101 = vmatmul.mubr.bf16.gmra.mxu0 %v6991
        %v7102 = vpop.f32.mrf.mxu0
        %v7103 = vadd.f32 %v6947, %v7102
        %v7104 = vpop.f32.mrf.mxu0
        %v7105 = vpop.f32.mrf.mxu0
        %v7106 = vadd.f32 %v6947, %v7105
        %v7107 = vpop.f32.mrf.mxu0
        %7108 = vmatprep.mubr.bf16.mxu0 0
        %7109 = vmatmul.mubr.bf16.gmra.mxu0 %v6994
        %v7110 = vpop.f32.mrf.mxu0
        %v7111 = vadd.f32 %v6947, %v7110
        %v7112 = vpop.f32.mrf.mxu0
        %v7113 = vpop.f32.mrf.mxu0
        %v7114 = vadd.f32 %v6947, %v7113
        %v7115 = vpop.f32.mrf.mxu0
        %7116 = vmatprep.mubr.bf16.mxu0 0
        %7117 = vmatmul.mubr.bf16.gmra.mxu0 %v6997
        %v7118 = vpop.f32.mrf.mxu0
        %v7119 = vadd.f32 %v6947, %v7118
        %v7120 = vpop.f32.mrf.mxu0
        %v7121 = vpop.f32.mrf.mxu0
        %v7122 = vadd.f32 %v6947, %v7121
        %v7123 = vpop.f32.mrf.mxu0
        %7124 = vmatprep.mubr.bf16.mxu0 0
        %7125 = vmatmul.mubr.bf16.gmra.mxu0 %v7000
        %v7126 = vpop.f32.mrf.mxu0
        %v7127 = vadd.f32 %v6947, %v7126
        %v7128 = vpop.f32.mrf.mxu0
        %v7129 = vpop.f32.mrf.mxu0
        %v7130 = vadd.f32 %v6947, %v7129
        %v7131 = vpop.f32.mrf.mxu0
        %7132 = vmatprep.mubr.bf16.mxu0 0
        %7133 = vmatmul.mubr.bf16.gmra.mxu0 %v7003
        %v7134 = vpop.f32.mrf.mxu0
        %v7135 = vadd.f32 %v6947, %v7134
        %v7136 = vpop.f32.mrf.mxu0
        %v7137 = vpop.f32.mrf.mxu0
        %v7138 = vadd.f32 %v6947, %v7137
        %v7139 = vpop.f32.mrf.mxu0
        %7140 = vmatprep.mubr.bf16.mxu0 0
        %7141 = vmatmul.mubr.bf16.gmra.mxu0 %v7006
        %v7142 = vpop.f32.mrf.mxu0
        %v7143 = vadd.f32 %v6947, %v7142
        %v7144 = vpop.f32.mrf.mxu0
        %v7145 = vpop.f32.mrf.mxu0
        %v7146 = vadd.f32 %v6947, %v7145
        %v7147 = vpop.f32.mrf.mxu0
        %7148 = vmatprep.mubr.bf16.mxu0 0
        %7149 = vmatmul.mubr.bf16.gmra.mxu0 %v7009
        %v7150 = vpop.f32.mrf.mxu0
        %v7151 = vadd.f32 %v6947, %v7150
        %v7152 = vpop.f32.mrf.mxu0
        %v7153 = vpop.f32.mrf.mxu0
        %v7154 = vadd.f32 %v6947, %v7153
        %v7155 = vpop.f32.mrf.mxu0
        %7156 = vmatprep.mubr.bf16.mxu0 0
        %7157 = vmatmul.mubr.bf16.gmra.mxu0 %v7012
        %v7158 = vpop.f32.mrf.mxu0
        %v7159 = vadd.f32 %v6947, %v7158
        %v7160 = vpop.f32.mrf.mxu0
        %v7161 = vpop.f32.mrf.mxu0
        %v7162 = vadd.f32 %v6947, %v7161
        %v7163 = vpop.f32.mrf.mxu0
        %7164 = vmatprep.mubr.bf16.mxu0 0
        %7165 = vmatmul.mubr.bf16.gmra.mxu0 %v7015
        %v7166 = vpop.f32.mrf.mxu0
        %v7167 = vadd.f32 %v6947, %v7166
        %v7168 = vpop.f32.mrf.mxu0
        %v7169 = vpop.f32.mrf.mxu0
        %v7170 = vadd.f32 %v6947, %v7169
        %v7171 = vpop.f32.mrf.mxu0
        %7172 = vmatprep.mubr.bf16.mxu0 0
        %7173 = vmatmul.mubr.bf16.gmra.mxu0 %v7018
        %v7174 = vpop.f32.mrf.mxu0
        %v7175 = vadd.f32 %v6947, %v7174
        %v7176 = vpop.f32.mrf.mxu0
        %v7177 = vpop.f32.mrf.mxu0
        %v7178 = vadd.f32 %v6947, %v7177
        %v7179 = vpop.f32.mrf.mxu0
        %7180 = vdwg.mxu0
        %vm7181 = vcmp.ge.f32.partialorder %v7055, 0.0
        %vm7182 = vcmp.ge.f32.partialorder %v7058, 0.0
        %vm7183 = vcmp.ge.f32.partialorder %v7063, 0.0
        %vm7184 = vcmp.ge.f32.partialorder %v7066, 0.0
        %vm7185 = vcmp.ge.f32.partialorder %v7071, 0.0
        %vm7186 = vcmp.ge.f32.partialorder %v7074, 0.0
        %vm7187 = vcmp.ge.f32.partialorder %v7079, 0.0
        %vm7188 = vcmp.ge.f32.partialorder %v7082, 0.0
        %vm7189 = vcmp.ge.f32.partialorder %v7087, 0.0
        %vm7190 = vcmp.ge.f32.partialorder %v7090, 0.0
        %vm7191 = vcmp.ge.f32.partialorder %v7095, 0.0
        %vm7192 = vcmp.ge.f32.partialorder %v7098, 0.0
        %vm7193 = vcmp.ge.f32.partialorder %v7103, 0.0
        %vm7194 = vcmp.ge.f32.partialorder %v7106, 0.0
        %vm7195 = vcmp.ge.f32.partialorder %v7111, 0.0
        %vm7196 = vcmp.ge.f32.partialorder %v7114, 0.0
        %vm7197 = vcmp.ge.f32.partialorder %v7119, 0.0
        %vm7198 = vcmp.ge.f32.partialorder %v7122, 0.0
        %vm7199 = vcmp.ge.f32.partialorder %v7127, 0.0
        %vm7200 = vcmp.ge.f32.partialorder %v7130, 0.0
        %vm7201 = vcmp.ge.f32.partialorder %v7135, 0.0
        %vm7202 = vcmp.ge.f32.partialorder %v7138, 0.0
        %vm7203 = vcmp.ge.f32.partialorder %v7143, 0.0
        %vm7204 = vcmp.ge.f32.partialorder %v7146, 0.0
        %vm7205 = vcmp.ge.f32.partialorder %v7151, 0.0
        %vm7206 = vcmp.ge.f32.partialorder %v7154, 0.0
        %vm7207 = vcmp.ge.f32.partialorder %v7159, 0.0
        %vm7208 = vcmp.ge.f32.partialorder %v7162, 0.0
        %vm7209 = vcmp.ge.f32.partialorder %v7167, 0.0
        %vm7210 = vcmp.ge.f32.partialorder %v7170, 0.0
        %vm7211 = vcmp.ge.f32.partialorder %v7175, 0.0
        %vm7212 = vcmp.ge.f32.partialorder %v7178, 0.0
        %v7213 = vmul.f32 %v7055, 0.2
        %v7214 = vmul.f32 %v7058, 0.2
        %v7215 = vmul.f32 %v7063, 0.2
        %v7216 = vmul.f32 %v7066, 0.2
        %v7217 = vmul.f32 %v7071, 0.2
        %v7218 = vmul.f32 %v7074, 0.2
        %v7219 = vmul.f32 %v7079, 0.2
        %v7220 = vmul.f32 %v7082, 0.2
        %v7221 = vmul.f32 %v7087, 0.2
        %v7222 = vmul.f32 %v7090, 0.2
        %v7223 = vmul.f32 %v7095, 0.2
        %v7224 = vmul.f32 %v7098, 0.2
        %v7225 = vmul.f32 %v7103, 0.2
        %v7226 = vmul.f32 %v7106, 0.2
        %v7227 = vmul.f32 %v7111, 0.2
        %v7228 = vmul.f32 %v7114, 0.2
        %v7229 = vmul.f32 %v7119, 0.2
        %v7230 = vmul.f32 %v7122, 0.2
        %v7231 = vmul.f32 %v7127, 0.2
        %v7232 = vmul.f32 %v7130, 0.2
        %v7233 = vmul.f32 %v7135, 0.2
        %v7234 = vmul.f32 %v7138, 0.2
        %v7235 = vmul.f32 %v7143, 0.2
        %v7236 = vmul.f32 %v7146, 0.2
        %v7237 = vmul.f32 %v7151, 0.2
        %v7238 = vmul.f32 %v7154, 0.2
        %v7239 = vmul.f32 %v7159, 0.2
        %v7240 = vmul.f32 %v7162, 0.2
        %v7241 = vmul.f32 %v7167, 0.2
        %v7242 = vmul.f32 %v7170, 0.2
        %v7243 = vmul.f32 %v7175, 0.2
        %v7244 = vmul.f32 %v7178, 0.2
        %v7245 = vsel %vm7181, %v7055, %v7213
        %v7246 = vsel %vm7182, %v7058, %v7214
        %v7247 = vsel %vm7183, %v7063, %v7215
        %v7248 = vsel %vm7184, %v7066, %v7216
        %v7249 = vsel %vm7185, %v7071, %v7217
        %v7250 = vsel %vm7186, %v7074, %v7218
        %v7251 = vsel %vm7187, %v7079, %v7219
        %v7252 = vsel %vm7188, %v7082, %v7220
        %v7253 = vsel %vm7189, %v7087, %v7221
        %v7254 = vsel %vm7190, %v7090, %v7222
        %v7255 = vsel %vm7191, %v7095, %v7223
        %v7256 = vsel %vm7192, %v7098, %v7224
        %v7257 = vsel %vm7193, %v7103, %v7225
        %v7258 = vsel %vm7194, %v7106, %v7226
        %v7259 = vsel %vm7195, %v7111, %v7227
        %v7260 = vsel %vm7196, %v7114, %v7228
        %v7261 = vsel %vm7197, %v7119, %v7229
        %v7262 = vsel %vm7198, %v7122, %v7230
        %v7263 = vsel %vm7199, %v7127, %v7231
        %v7264 = vsel %vm7200, %v7130, %v7232
        %v7265 = vsel %vm7201, %v7135, %v7233
        %v7266 = vsel %vm7202, %v7138, %v7234
        %v7267 = vsel %vm7203, %v7143, %v7235
        %v7268 = vsel %vm7204, %v7146, %v7236
        %v7269 = vsel %vm7205, %v7151, %v7237
        %v7270 = vsel %vm7206, %v7154, %v7238
        %v7271 = vsel %vm7207, %v7159, %v7239
        %v7272 = vsel %vm7208, %v7162, %v7240
        %v7273 = vsel %vm7209, %v7167, %v7241
        %v7274 = vsel %vm7210, %v7170, %v7242
        %v7275 = vsel %vm7211, %v7175, %v7243
        %v7276 = vsel %vm7212, %v7178, %v7244
        %v7277 = vmul.f32 %v7245, 1.4142135
        %v7278 = vmul.f32 %v7246, 1.4142135
        %v7279 = vmul.f32 %v7247, 1.4142135
        %v7280 = vmul.f32 %v7248, 1.4142135
        %v7281 = vmul.f32 %v7249, 1.4142135
        %v7282 = vmul.f32 %v7250, 1.4142135
        %v7283 = vmul.f32 %v7251, 1.4142135
        %v7284 = vmul.f32 %v7252, 1.4142135
        %v7285 = vmul.f32 %v7253, 1.4142135
        %v7286 = vmul.f32 %v7254, 1.4142135
        %v7287 = vmul.f32 %v7255, 1.4142135
        %v7288 = vmul.f32 %v7256, 1.4142135
        %v7289 = vmul.f32 %v7257, 1.4142135
        %v7290 = vmul.f32 %v7258, 1.4142135
        %v7291 = vmul.f32 %v7259, 1.4142135
        %v7292 = vmul.f32 %v7260, 1.4142135
        %v7293 = vmul.f32 %v7261, 1.4142135
        %v7294 = vmul.f32 %v7262, 1.4142135
        %v7295 = vmul.f32 %v7263, 1.4142135
        %v7296 = vmul.f32 %v7264, 1.4142135
        %v7297 = vmul.f32 %v7265, 1.4142135
        %v7298 = vmul.f32 %v7266, 1.4142135
        %v7299 = vmul.f32 %v7267, 1.4142135
        %v7300 = vmul.f32 %v7268, 1.4142135
        %v7301 = vmul.f32 %v7269, 1.4142135
        %v7302 = vmul.f32 %v7270, 1.4142135
        %v7303 = vmul.f32 %v7271, 1.4142135
        %v7304 = vmul.f32 %v7272, 1.4142135
        %v7305 = vmul.f32 %v7273, 1.4142135
        %v7306 = vmul.f32 %v7274, 1.4142135
        %v7307 = vmul.f32 %v7275, 1.4142135
        %v7308 = vmul.f32 %v7276, 1.4142135
        %s7309 = scalar_lea.vmem %s627, 4 [#allocation3]
        %v7310 = vld [vmem:[%s7309] sm:$0x3]
        %v7311 = vpack.c.bf16 %v7278, %v7277
        %v7312 = vpack.c.bf16 %v7280, %v7279
        %v7313 = vpack.c.bf16 %v7282, %v7281
        %v7314 = vpack.c.bf16 %v7284, %v7283
        %v7315 = vpack.c.bf16 %v7286, %v7285
        %v7316 = vpack.c.bf16 %v7288, %v7287
        %v7317 = vpack.c.bf16 %v7290, %v7289
        %v7318 = vpack.c.bf16 %v7292, %v7291
        %v7319 = vpack.c.bf16 %v7294, %v7293
        %v7320 = vpack.c.bf16 %v7296, %v7295
        %v7321 = vpack.c.bf16 %v7298, %v7297
        %v7322 = vpack.c.bf16 %v7300, %v7299
        %v7323 = vpack.c.bf16 %v7302, %v7301
        %v7324 = vpack.c.bf16 %v7304, %v7303
        %v7325 = vpack.c.bf16 %v7306, %v7305
        %v7326 = vpack.c.bf16 %v7308, %v7307
        %v7328 = vsel %vm4930, %v7310, 0
        %v7331 = vsel %vm4930, %v7311, 0
        %v7334 = vsel %vm4930, %v7312, 0
        %v7337 = vsel %vm4930, %v7313, 0
        %v7340 = vsel %vm4930, %v7314, 0
        %v7343 = vsel %vm4930, %v7315, 0
        %v7346 = vsel %vm4930, %v7316, 0
        %v7349 = vsel %vm4930, %v7317, 0
        %v7352 = vsel %vm4930, %v7318, 0
        %v7355 = vsel %vm4930, %v7319, 0
        %v7358 = vsel %vm4930, %v7320, 0
        %v7361 = vsel %vm4930, %v7321, 0
        %v7364 = vsel %vm4930, %v7322, 0
        %v7367 = vsel %vm4930, %v7323, 0
        %v7370 = vsel %vm4930, %v7324, 0
        %v7373 = vsel %vm4930, %v7325, 0
        %v7376 = vsel %vm4930, %v7326, 0
        %7378 = vmatprep.subr.bf16.mxu0 0
        %7379 = vmatpush1.bf16.xpose.msra.mxu0 %v7352
        %7380 = vmatprep.subr.bf16.mxu0 0
        %7381 = vmatpush1.bf16.xpose.msra.mxu0 %v7349
        %7382 = vmatprep.subr.bf16.mxu0 0
        %7383 = vmatpush1.bf16.xpose.msra.mxu0 %v7346
        %7384 = vmatprep.subr.bf16.mxu0 0
        %7385 = vmatpush1.bf16.xpose.msra.mxu0 %v7343
        %7386 = vmatprep.subr.bf16.mxu0 0
        %7387 = vmatpush1.bf16.xpose.msra.mxu0 %v7340
        %7388 = vmatprep.subr.bf16.mxu0 0
        %7389 = vmatpush1.bf16.xpose.msra.mxu0 %v7337
        %7390 = vmatprep.subr.bf16.mxu0 0
        %7391 = vmatpush1.bf16.xpose.msra.mxu0 %v7334
        %7392 = vmatprep.subr.bf16.mxu0 0
        %7393 = vmatpush1.bf16.xpose.msra.mxu0 %v7331
        %7394 = vmatprep.subr.bf16.mxu0 0
        %7395 = vmatpush2.bf16.xpose.msra.mxu0 %v7376
        %7396 = vmatprep.subr.bf16.mxu0 0
        %7397 = vmatpush2.bf16.xpose.msra.mxu0 %v7373
        %7398 = vmatprep.subr.bf16.mxu0 0
        %7399 = vmatpush2.bf16.xpose.msra.mxu0 %v7370
        %7400 = vmatprep.subr.bf16.mxu0 0
        %7401 = vmatpush2.bf16.xpose.msra.mxu0 %v7367
        %7402 = vmatprep.subr.bf16.mxu0 0
        %7403 = vmatpush2.bf16.xpose.msra.mxu0 %v7364
        %7404 = vmatprep.subr.bf16.mxu0 0
        %7405 = vmatpush2.bf16.xpose.msra.mxu0 %v7361
        %7406 = vmatprep.subr.bf16.mxu0 0
        %7407 = vmatpush2.bf16.xpose.msra.mxu0 %v7358
        %7408 = vmatprep.subr.bf16.mxu0 0
        %7409 = vmatpush2.bf16.xpose.msra.mxu0 %v7355
        %7410 = vmatprep.mubr.bf16.mxu0 0
        %7411 = vmatmul.mubr.bf16.gmra.mxu0 %v7328
        %v7412 = vpop.f32.mrf.mxu0
        %v7413 = vadd.f32 0.0, %v7412
        %v7414 = vpop.f32.mrf.mxu0
        %v7415 = vadd.f32 0.0, %v7414
        %v7416 = vpop.f32.mrf.mxu0
        %v7417 = vpop.f32.mrf.mxu0
        %7418 = vdwg.mxu0
        %v7419 = vadd.f32 %v6587, %v7413
        %v7420 = vadd.f32 %v6589, %v7415
        %v7421 = vld [vmem:[%s8] sm:$0x7]
        %7423 = vset.pattern.permute.xlu0 0
        %7424 = vperm.xlu0 %7423, %v7421
        %v7425 = vpop.permute.xlu0 %7424
        %v7427 = vadd.f32 %v7419, %v7425
        %v7428 = vadd.f32 %v7420, %v7425
        %v7431 = vcombine.low %v7427, %v7428
        %7433 = vst [vmem:[%s705] sm:$0x77] %v7431
        %s7434 = smul.u32 2, %s25
        %p7435 = scmp.lt.s32.totalorder %s24, 1
        %s7436 = scalar_select %p7435, %s24, 1
        %p7437 = scmp.lt.s32.totalorder %s7434, 1
        %s7438 = scalar_select %p7437, %s7434, 1
        %s7439 = smul.addr %s7436, 2
        %s7440 = sadd.s32 %s7438, %s7439
        %s7441 = smul.addr %s7440, 4
        %s7442 = scalar_lea.vmem %s9, %s7441
        // Predicated region
        $region132: #{_lambda_.3} parent=122 // pred_check
          %p7443 = pneg %p263
        $region133: #{_lambda_.3} parent=122 // pred_check_branch
          %7445 = sbr.rel (%p7443) target = $region135
        $region134: #{_lambda_.3} parent=122 // pred_region
          %s7446 = smul.u32 2, %s25
        $region135: #{_lambda_.3} parent=122 // pred_fallthru
          _
      $region123: #{_lambda_.3} parent=5 // pred_fallthru
        _
      %p7447 = scmp.le.s32.totalorder 2, %s15
      // Predicated region
      $region136: #{_lambda_.3} parent=5 // pred_check
        %p7448 = pneg %p7447
      $region137: #{_lambda_.3} parent=5 // pred_check_branch
        %7450 = sbr.rel (%p7448) target = $region139
      $region138: #{_lambda_.3} parent=5 // pred_region
        %s7451 = ssub.s32 %s15, 2
        // Predicated region
        $region140: #{_lambda_.3} parent=138 // pred_check
          %p7452 = pneg %p269
        $region141: #{_lambda_.3} parent=138 // pred_check_branch
          %7454 = sbr.rel (%p7452) target = $region143
        $region142: #{_lambda_.3} parent=138 // pred_region
          %s7455 = smul.u32 2, %s27
          %p7456 = scmp.lt.s32.totalorder %s26, 1
          %s7457 = scalar_select %p7456, %s26, 1
          %p7458 = scmp.lt.s32.totalorder %s7455, 1
          %s7459 = scalar_select %p7458, %s7455, 1
          %s7460 = smul.addr %s7457, 2
          %s7461 = sadd.s32 %s7459, %s7460
          %s7462 = smul.addr %s7461, 4
          %s7463 = scalar_lea.vmem %s9, %s7462
        $region143: #{_lambda_.3} parent=138 // pred_fallthru
          _
      $region139: #{_lambda_.3} parent=5 // pred_fallthru
        _
    $region6: #{_lambda_.3} parent=1 // loop_footer
      %s19 = sadd.s32 1, %s15
    $region7: #{_lambda_.3} parent=1 // loop_footer_branch
      %14 = sbr.rel target = $region3
    $region8: #{_lambda_.3} parent=1 // loop_exit
      _

</llo_original>
